<compile_context>
chip_gen: v6e
topology: v6e:2x2x1
jax: 0.10.0
libtpu: 0.0.40
codegen_flags: <defaults>
</compile_context>

<pallas_src>
import functools

import jax
import jax.numpy as jnp
from jax import lax
from jax.experimental import pallas as pl
from jax.experimental.pallas import tpu as pltpu


# ----------------------------- in-kernel helpers -----------------------------

_SQRT1_2 = 0.7071067811865476


def _gelu_exact(x):
    # exact GELU: 0.5 * x * (1 + erf(x / sqrt(2)))   (torch.nn.GELU default)
    return 0.5 * x * (1.0 + lax.erf(x * _SQRT1_2))


def _softmax_lastdim(x):
    m = jnp.max(x, axis=-1, keepdims=True)
    e = jnp.exp(x - m)
    return e * pl.reciprocal(jnp.sum(e, axis=-1, keepdims=True), approx=True)


def _layernorm(x, gamma, beta, eps=1e-5):
    mean = jnp.mean(x, axis=-1, keepdims=True)
    var = jnp.mean((x - mean) ** 2, axis=-1, keepdims=True)
    return (x - mean) * lax.rsqrt(var + eps) * gamma + beta


def _tile(dim, target, align):
    """Largest tile <= target that divides dim and is a multiple of align;
    falls back to the full dim (always a legal block)."""
    if dim <= target:
        return dim
    t = (target // align) * align
    while t >= align:
        if dim % t == 0:
            return t
        t -= align
    return dim


# ------------------------------- Pallas kernels -------------------------------

def _matmul_kernel(x_ref, w_ref, b_ref, o_ref, acc_ref, *, act):
    """Tiled y = act(x @ w + b) with K-accumulation in f32 VMEM scratch."""
    @pl.when(pl.program_id(2) == 0)
    def _():
        acc_ref[...] = jnp.zeros_like(acc_ref)

    acc_ref[...] += jnp.dot(x_ref[...], w_ref[...],
                            preferred_element_type=jnp.float32)

    @pl.when(pl.program_id(2) == pl.num_programs(2) - 1)
    def _():
        y = acc_ref[...] + b_ref[...].astype(jnp.float32)
        if act == "gelu":
            y = _gelu_exact(y)
        o_ref[...] = y.astype(o_ref.dtype)


def _matmul_res_kernel(x_ref, w_ref, b_ref, r_ref, o_ref, acc_ref, *, act):
    """Tiled y = act(x @ w + b) + r  (residual fused into the epilogue)."""
    @pl.when(pl.program_id(2) == 0)
    def _():
        acc_ref[...] = jnp.zeros_like(acc_ref)

    acc_ref[...] += jnp.dot(x_ref[...], w_ref[...],
                            preferred_element_type=jnp.float32)

    @pl.when(pl.program_id(2) == pl.num_programs(2) - 1)
    def _():
        y = acc_ref[...] + b_ref[...].astype(jnp.float32)
        if act == "gelu":
            y = _gelu_exact(y)
        o_ref[...] = (y + r_ref[...].astype(jnp.float32)).astype(o_ref.dtype)


def _gate_kernel(p_ref, w0_ref, b0_ref, w1_ref, b1_ref, w2_ref, b2_ref, o_ref):
    """Fused gate network: softmax(L2(gelu(L1(gelu(L0(pos))))))."""
    h = _gelu_exact(jnp.dot(p_ref[...].astype(jnp.float32), w0_ref[...],
                            preferred_element_type=jnp.float32) + b0_ref[...])
    h = _gelu_exact(jnp.dot(h, w1_ref[...],
                            preferred_element_type=jnp.float32) + b1_ref[...])
    g = jnp.dot(h, w2_ref[...], preferred_element_type=jnp.float32) + b2_ref[...]
    o_ref[...] = _softmax_lastdim(g).astype(o_ref.dtype)


def _self_attn_kernel(xt_ref, xf_ref, lng_ref, lnb_ref, wq_ref, bq_ref,
                      wkv_ref, bkv_ref, wp_ref, bp_ref, o_ref, *, n_head):
    """Fused: out = x + proj( l1-linear-attention( LN(x) ) ), all heads."""
    C = xt_ref.shape[1]
    d = C // n_head
    xt = xt_ref[...].astype(jnp.float32)          # [tq, C] (query rows + residual)
    xf = xf_ref[...].astype(jnp.float32)          # [T, C]  (key/value rows)
    g = lng_ref[...].astype(jnp.float32)
    b = lnb_ref[...].astype(jnp.float32)
    xtn = _layernorm(xt, g, b)
    xfn = _layernorm(xf, g, b)

    q = jnp.dot(xtn, wq_ref[...], preferred_element_type=jnp.float32) + bq_ref[...]
    kv = jnp.dot(xfn, wkv_ref[...], preferred_element_type=jnp.float32) + bkv_ref[...]
    wp = wp_ref[...]

    y = bp_ref[...].astype(jnp.float32)           # [1, C], broadcasts on first add
    for h in range(n_head):
        sl = slice(h * d, (h + 1) * d)
        q_h = _softmax_lastdim(q[:, sl])                               # [tq, d]
        k_h = _softmax_lastdim(kv[:, sl])                              # [T, d]
        v_h = kv[:, C + h * d: C + (h + 1) * d]                        # [T, d]
        ksum = jnp.sum(k_h, axis=0, keepdims=True)                     # [1, d]
        d_inv = pl.reciprocal(
            jnp.sum(q_h * ksum, axis=-1, keepdims=True), approx=True)  # [tq, 1]
        ctx = lax.dot_general(k_h, v_h, (((0,), (0,)), ((), ())),
                              preferred_element_type=jnp.float32)      # [d, d]
        o_h = jnp.dot(q_h, ctx, preferred_element_type=jnp.float32) * d_inv + q_h
        y = y + jnp.dot(o_h, wp[sl, :], preferred_element_type=jnp.float32)

    o_ref[...] = (xt + y).astype(o_ref.dtype)


def _cross_attn_kernel(xt_ref, z_ref, ln1g_ref, ln1b_ref, ln2g_ref, ln2b_ref,
                       wq_ref, bq_ref, wk_ref, bk_ref, wv_ref, bv_ref,
                       wp_ref, bp_ref, o_ref, *, n_head, n_inputs):
    """Fused: out = x + proj( l1-linear-cross-attention( LN1(x), LN2(z_i) ) )."""
    C = xt_ref.shape[1]
    d = C // n_head
    xt = xt_ref[...].astype(jnp.float32)          # [tq, C]
    xn = _layernorm(xt, ln1g_ref[...].astype(jnp.float32),
                    ln1b_ref[...].astype(jnp.float32))

    q = jnp.dot(xn, wq_ref[...], preferred_element_type=jnp.float32) + bq_ref[...]
    q_heads = [_softmax_lastdim(q[:, h * d:(h + 1) * d]) for h in range(n_head)]
    out_heads = list(q_heads)                     # out starts as softmax(q)

    for i in range(n_inputs):
        z = z_ref[i].astype(jnp.float32)          # [T2, C]
        zn = _layernorm(z, ln2g_ref[i].astype(jnp.float32),
                        ln2b_ref[i].astype(jnp.float32))
        k = jnp.dot(zn, wk_ref[i], preferred_element_type=jnp.float32) + bk_ref[i]
        v = jnp.dot(zn, wv_ref[i], preferred_element_type=jnp.float32) + bv_ref[i]
        for h in range(n_head):
            sl = slice(h * d, (h + 1) * d)
            k_h = _softmax_lastdim(k[:, sl])
            v_h = v[:, sl]
            ksum = jnp.sum(k_h, axis=0, keepdims=True)
            d_inv = pl.reciprocal(
                jnp.sum(q_heads[h] * ksum, axis=-1, keepdims=True), approx=True)
            ctx = lax.dot_general(k_h, v_h, (((0,), (0,)), ((), ())),
                                  preferred_element_type=jnp.float32)
            out_heads[h] = out_heads[h] + jnp.dot(
                q_heads[h], ctx, preferred_element_type=jnp.float32) * d_inv

    wp = wp_ref[...]
    y = bp_ref[...].astype(jnp.float32)
    for h in range(n_head):
        y = y + jnp.dot(out_heads[h], wp[h * d:(h + 1) * d, :],
                        preferred_element_type=jnp.float32)

    o_ref[...] = (xt + y).astype(o_ref.dtype)


def _moe_kernel(x_ref, g_ref, w1_ref, b1_ref, w2_ref, b2_ref,
                lng_ref, lnb_ref, o_ref, *, n_experts):
    """Fused MoE: out = x + LN( sum_e gate[:,e] * (gelu(x@W1e+b1e)@W2e+b2e) )."""
    x = x_ref[...].astype(jnp.float32)            # [tm, C]
    g = g_ref[...].astype(jnp.float32)            # [tm, E]
    acc = jnp.zeros(x.shape, jnp.float32)
    for e in range(n_experts):
        h = _gelu_exact(jnp.dot(x, w1_ref[e],
                                preferred_element_type=jnp.float32) + b1_ref[e])
        y_e = jnp.dot(h, w2_ref[e], preferred_element_type=jnp.float32) + b2_ref[e]
        acc = acc + y_e * g[:, e:e + 1]
    normed = _layernorm(acc, lng_ref[...].astype(jnp.float32),
                        lnb_ref[...].astype(jnp.float32))
    o_ref[...] = (x + normed).astype(o_ref.dtype)


# ------------------------------- Pallas wrappers ------------------------------

def linear(x, w, b, act="none", residual=None):
    """Tiled y = act(x @ w + b) [+ residual].  x:[M,K] w:[K,N] b:[1,N]."""
    M, K = x.shape
    K2, N = w.shape
    assert K == K2
    tm = _tile(M, 256, 8)
    tn = _tile(N, 256, 128)
    tk = _tile(K, 512, 128)
    grid = (M // tm, N // tn, K // tk)
    cparams = pltpu.CompilerParams(
        dimension_semantics=("parallel", "parallel", "arbitrary"))
    x_spec = pl.BlockSpec((tm, tk), lambda i, j, k: (i, k))
    w_spec = pl.BlockSpec((tk, tn), lambda i, j, k: (k, j))
    b_spec = pl.BlockSpec((1, tn), lambda i, j, k: (0, j))
    o_spec = pl.BlockSpec((tm, tn), lambda i, j, k: (i, j))
    scratch = [pltpu.VMEM((tm, tn), jnp.float32)]
    out_shape = jax.ShapeDtypeStruct((M, N), x.dtype)

    if residual is None:
        return pl.pallas_call(
            functools.partial(_matmul_kernel, act=act),
            out_shape=out_shape, grid=grid,
            in_specs=[x_spec, w_spec, b_spec],
            out_specs=o_spec, scratch_shapes=scratch,
            compiler_params=cparams,
        )(x, w, b)

    r_spec = pl.BlockSpec((tm, tn), lambda i, j, k: (i, j))
    return pl.pallas_call(
        functools.partial(_matmul_res_kernel, act=act),
        out_shape=out_shape, grid=grid,
        in_specs=[x_spec, w_spec, b_spec, r_spec],
        out_specs=o_spec, scratch_shapes=scratch,
        compiler_params=cparams,
    )(x, w, b, residual)


def gate_forward(gp, pos_sp):
    M, S = pos_sp.shape
    Ni = gp["w0"].shape[1]
    E = gp["w2"].shape[1]
    tm = _tile(M, 512, 8)
    return pl.pallas_call(
        _gate_kernel,
        out_shape=jax.ShapeDtypeStruct((M, E), pos_sp.dtype),
        grid=(M // tm,),
        in_specs=[pl.BlockSpec((tm, S), lambda i: (i, 0)),
                  pl.BlockSpec((S, Ni), lambda i: (0, 0)),
                  pl.BlockSpec((1, Ni), lambda i: (0, 0)),
                  pl.BlockSpec((Ni, Ni), lambda i: (0, 0)),
                  pl.BlockSpec((1, Ni), lambda i: (0, 0)),
                  pl.BlockSpec((Ni, E), lambda i: (0, 0)),
                  pl.BlockSpec((1, E), lambda i: (0, 0))],
        out_specs=pl.BlockSpec((tm, E), lambda i: (i, 0)),
        compiler_params=pltpu.CompilerParams(dimension_semantics=("parallel",)),
    )(pos_sp, gp["w0"], gp["b0"], gp["w1"], gp["b1"], gp["w2"], gp["b2"])


def self_attention(ap, lnp, x, n_head):
    T, C = x.shape
    tq = _tile(T, 256, 8)
    kernel = functools.partial(_self_attn_kernel, n_head=n_head)
    return pl.pallas_call(
        kernel,
        out_shape=jax.ShapeDtypeStruct((T, C), x.dtype),
        grid=(T // tq,),
        in_specs=[pl.BlockSpec((tq, C), lambda i: (i, 0)),      # x tile (q + residual)
                  pl.BlockSpec((T, C), lambda i: (0, 0)),       # full x (k, v)
                  pl.BlockSpec((1, C), lambda i: (0, 0)),       # ln gamma
                  pl.BlockSpec((1, C), lambda i: (0, 0)),       # ln beta
                  pl.BlockSpec((C, C), lambda i: (0, 0)),       # wq
                  pl.BlockSpec((1, C), lambda i: (0, 0)),       # bq
                  pl.BlockSpec((C, 2 * C), lambda i: (0, 0)),   # wkv (fused)
                  pl.BlockSpec((1, 2 * C), lambda i: (0, 0)),   # bkv
                  pl.BlockSpec((C, C), lambda i: (0, 0)),       # wproj
                  pl.BlockSpec((1, C), lambda i: (0, 0))],      # bproj
        out_specs=pl.BlockSpec((tq, C), lambda i: (i, 0)),
        compiler_params=pltpu.CompilerParams(dimension_semantics=("parallel",)),
    )(x, x, lnp["g"], lnp["b"], ap["wq"], ap["bq"], ap["wkv"], ap["bkv"],
      ap["wp"], ap["bp"])


def cross_attention(bp, x, z, n_head):
    ap = bp["cross"]
    T1, C = x.shape
    n_in, T2, _ = z.shape
    tq = _tile(T1, 256, 8)
    kernel = functools.partial(_cross_attn_kernel, n_head=n_head, n_inputs=n_in)
    return pl.pallas_call(
        kernel,
        out_shape=jax.ShapeDtypeStruct((T1, C), x.dtype),
        grid=(T1 // tq,),
        in_specs=[pl.BlockSpec((tq, C), lambda i: (i, 0)),          # x tile
                  pl.BlockSpec((n_in, T2, C), lambda i: (0, 0, 0)),  # branches
                  pl.BlockSpec((1, C), lambda i: (0, 0)),           # ln1 gamma
                  pl.BlockSpec((1, C), lambda i: (0, 0)),           # ln1 beta
                  pl.BlockSpec((n_in, 1, C), lambda i: (0, 0, 0)),  # ln2 gamma
                  pl.BlockSpec((n_in, 1, C), lambda i: (0, 0, 0)),  # ln2 beta
                  pl.BlockSpec((C, C), lambda i: (0, 0)),           # wq
                  pl.BlockSpec((1, C), lambda i: (0, 0)),           # bq
                  pl.BlockSpec((n_in, C, C), lambda i: (0, 0, 0)),  # wk
                  pl.BlockSpec((n_in, 1, C), lambda i: (0, 0, 0)),  # bk
                  pl.BlockSpec((n_in, C, C), lambda i: (0, 0, 0)),  # wv
                  pl.BlockSpec((n_in, 1, C), lambda i: (0, 0, 0)),  # bv
                  pl.BlockSpec((C, C), lambda i: (0, 0)),           # wproj
                  pl.BlockSpec((1, C), lambda i: (0, 0))],          # bproj
        out_specs=pl.BlockSpec((tq, C), lambda i: (i, 0)),
        compiler_params=pltpu.CompilerParams(dimension_semantics=("parallel",)),
    )(x, z, bp["ln1"]["g"], bp["ln1"]["b"], bp["ln2_g"], bp["ln2_b"],
      ap["wq"], ap["bq"], ap["wk"], ap["bk"], ap["wv"], ap["bv"],
      ap["wp"], ap["bp"])


def moe_forward(mp, lnp, x, gate):
    M, C = x.shape
    E = gate.shape[1]
    Ni = mp["w1"].shape[2]
    tm = _tile(M, 256, 8)
    kernel = functools.partial(_moe_kernel, n_experts=E)
    return pl.pallas_call(
        kernel,
        out_shape=jax.ShapeDtypeStruct((M, C), x.dtype),
        grid=(M // tm,),
        in_specs=[pl.BlockSpec((tm, C), lambda i: (i, 0)),
                  pl.BlockSpec((tm, E), lambda i: (i, 0)),
                  pl.BlockSpec((E, C, Ni), lambda i: (0, 0, 0)),
                  pl.BlockSpec((E, 1, Ni), lambda i: (0, 0, 0)),
                  pl.BlockSpec((E, Ni, C), lambda i: (0, 0, 0)),
                  pl.BlockSpec((E, 1, C), lambda i: (0, 0, 0)),
                  pl.BlockSpec((1, C), lambda i: (0, 0)),
                  pl.BlockSpec((1, C), lambda i: (0, 0))],
        out_specs=pl.BlockSpec((tm, C), lambda i: (i, 0)),
        compiler_params=pltpu.CompilerParams(dimension_semantics=("parallel",)),
    )(x, gate, mp["w1"], mp["b1"], mp["w2"], mp["b2"], lnp["g"], lnp["b"])


# ------------------------------- model pieces --------------------------------

def mlp_forward(p, x):
    # TODO(synk): the GNOT `MLP` class is not in the provided source; using the
    # GNOT-style MLP (linear_pre -> act, residual act-linear blocks, linear_post).
    h = linear(x, p["pre"]["w"], p["pre"]["b"], act="gelu")
    for lp in p["hidden"]:
        h = linear(h, lp["w"], lp["b"], act="gelu", residual=h)
    return linear(h, p["post"]["w"], p["post"]["b"])


def block_forward(bp, x, z, pos_sp, n_head):
    # x: [T1, C], z: [n_inputs, T2, C], pos_sp: [T1, space_dim]
    gate = gate_forward(bp["gate"], pos_sp)                    # [T1, E]
    x = cross_attention(bp, x, z, n_head)                      # + residual (fused)
    x = moe_forward(bp["moe1"], bp["ln3"], x, gate)            # + LN + residual (fused)
    x = self_attention(bp["self"], bp["ln4"], x, n_head)       # + residual (fused)
    x = moe_forward(bp["moe2"], bp["ln5"], x, gate)            # + LN + residual (fused)
    return x


def gptnot_forward(params, cfg, pos, recent_pos):
    # pos: [1, T1, trunk_size], recent_pos: [T2, branch_size]
    x = pos[0]                                   # B == 1
    pos_sp = x[:, :cfg["space_dim"]]             # [T1, space_dim]

    x = mlp_forward(params["trunk_mlp"], x)                           # [T1, C]
    z = jnp.stack([mlp_forward(params["branch_mlps"][i], recent_pos)
                   for i in range(cfg["n_inputs"])], axis=0)          # [n_in, T2, C]

    for bp in params["blocks"]:
        x = block_forward(bp, x, z, pos_sp, cfg["n_head"])

    x = mlp_forward(params["out_mlp"], x)                             # [T1, out]
    return x                                                          # == squeeze(0)


# ------------------------------- init ----------------------------------------

def init_params(key, cfg):
    keys = iter(jax.random.split(key, 1024))

    def w(shape):
        return jax.random.normal(next(keys), shape, jnp.float32) * 0.02

    def zeros(shape):
        return jnp.zeros(shape, jnp.float32)

    def lin(i, o):
        return {"w": w((i, o)), "b": zeros((1, o))}

    def ln(c):
        return {"g": jnp.ones((1, c), jnp.float32), "b": zeros((1, c))}

    def mlp(i, h, o, n_layers):
        return {"pre": lin(i, h),
                "hidden": [lin(h, h) for _ in range(n_layers)],
                "post": lin(h, o)}

    C = cfg["n_hidden"]
    Ni = cfg["n_inner_dim"]
    E = cfg["n_experts"]
    n_in = cfg["n_inputs"]
    S = cfg["space_dim"]

    def moe():
        return {"w1": w((E, C, Ni)), "b1": zeros((E, 1, Ni)),
                "w2": w((E, Ni, C)), "b2": zeros((E, 1, C))}

    def block():
        return {
            "ln1": ln(C),
            "ln2_g": jnp.ones((n_in, 1, C), jnp.float32),
            "ln2_b": zeros((n_in, 1, C)),
            "ln3": ln(C), "ln4": ln(C), "ln5": ln(C),
            "cross": {"wq": w((C, C)), "bq": zeros((1, C)),
                      "wk": w((n_in, C, C)), "bk": zeros((n_in, 1, C)),
                      "wv": w((n_in, C, C)), "bv": zeros((n_in, 1, C)),
                      "wp": w((C, C)), "bp": zeros((1, C))},
            "self": {"wq": w((C, C)), "bq": zeros((1, C)),
                     "wkv": w((C, 2 * C)), "bkv": zeros((1, 2 * C)),   # fused K|V
                     "wp": w((C, C)), "bp": zeros((1, C))},
            "moe1": moe(), "moe2": moe(),
            "gate": {"w0": w((S, Ni)), "b0": zeros((1, Ni)),
                     "w1": w((Ni, Ni)), "b1": zeros((1, Ni)),
                     "w2": w((Ni, E)), "b2": zeros((1, E))},
        }

    return {
        "trunk_mlp": mlp(cfg["trunk_size"], C, C, cfg["mlp_layers"]),
        "branch_mlps": [mlp(bs, C, C, cfg["mlp_layers"])
                        for bs in cfg["branch_sizes"]],
        "blocks": [block() for _ in range(cfg["n_layers"])],
        "out_mlp": mlp(C, C, cfg["output_size"], cfg["mlp_layers"]),
    }


# ------------------------------- main -----------------------------------------

if __name__ == "__main__":
    cfg = dict(
        trunk_size=8, branch_sizes=[4], n_inputs=1, space_dim=2, output_size=2,
        n_layers=2, n_hidden=32, n_head=4, n_experts=2, n_inner_dim=32,
        mlp_layers=1,
    )
    # TODO(synk): dropout (p=0.3) layers are identity here (eval-mode semantics).

    key = jax.random.PRNGKey(0)
    kp, kx, kr = jax.random.split(key, 3)
    params = init_params(kp, cfg)

    T1, T2 = 16, 8
    pos = jax.random.normal(kx, (1, T1, cfg["trunk_size"]), jnp.float32)
    recent_pos = jax.random.normal(kr, (T2, cfg["branch_sizes"][0]), jnp.float32)

    fwd = jax.jit(lambda p, r: gptnot_forward(params, cfg, p, r))
    out = fwd(pos, recent_pos)
    jax.block_until_ready(out)

    assert out.shape == (T1, cfg["output_size"]), out.shape
    assert bool(jnp.all(jnp.isfinite(out)))
    print("KERNEL_OK")
</pallas_src>

<mosaic_0001>
module attributes {stable_mosaic.version = 11 : i64} {
  func.func @_matmul_kernel(%arg0: i32, %arg1: i32, %arg2: i32, %arg3: memref<8x4xf32, #tpu.memory_space<vmem>>, %arg4: memref<4x32xf32, #tpu.memory_space<vmem>>, %arg5: memref<1x32xf32, #tpu.memory_space<vmem>>, %arg6: memref<8x32xf32, #tpu.memory_space<vmem>>, %arg7: memref<8x32xf32, #tpu.memory_space<vmem>>) attributes {dimension_semantics = [#tpu.dimension_semantics<parallel>, #tpu.dimension_semantics<parallel>, #tpu.dimension_semantics<arbitrary>], iteration_bounds = array<i64: 1, 1, 1>, scalar_prefetch = 0 : i64, scratch_operands = 1 : i64, tpu.core_type = #tpu.core_type<tc>, window_params = [{transform_indices = @transform_0, window_bounds = array<i64: 8, 4>}, {transform_indices = @transform_1, window_bounds = array<i64: 4, 32>}, {transform_indices = @transform_2, window_bounds = array<i64: 1, 32>}, {transform_indices = @transform_3, window_bounds = array<i64: 8, 32>}]} {
    %c0_i32 = arith.constant 0 : i32
    %0 = arith.cmpi eq, %arg2, %c0_i32 : i32
    %1 = arith.extui %0 : i1 to i32
    %c0_i32_0 = arith.constant 0 : i32
    %2 = arith.cmpi ne, %1, %c0_i32_0 : i32
    scf.if %2 {
      %cst_10 = arith.constant 0.000000e+00 : f32
      %12 = vector.broadcast %cst_10 : f32 to vector<8x32xf32>
      %c0_11 = arith.constant 0 : index
      %c0_12 = arith.constant 0 : index
      %13 = vector.load %arg7[%c0_11, %c0_12] : memref<8x32xf32, #tpu.memory_space<vmem>>, vector<8x32xf32>
      tpu.vector_store %arg7[%c0_11, %c0_12], %12 {strides = array<i32>} : memref<8x32xf32, #tpu.memory_space<vmem>>, vector<8x32xf32>,
    } else {
    }
    %c0 = arith.constant 0 : index
    %c0_1 = arith.constant 0 : index
    %3 = vector.load %arg7[%c0, %c0_1] : memref<8x32xf32, #tpu.memory_space<vmem>>, vector<8x32xf32>
    %c0_2 = arith.constant 0 : index
    %c0_3 = arith.constant 0 : index
    %4 = vector.load %arg3[%c0_2, %c0_3] : memref<8x4xf32, #tpu.memory_space<vmem>>, vector<8x4xf32>
    %c0_4 = arith.constant 0 : index
    %c0_5 = arith.constant 0 : index
    %5 = vector.load %arg4[%c0_4, %c0_5] : memref<4x32xf32, #tpu.memory_space<vmem>>, vector<4x32xf32>
    %cst = arith.constant dense<0.000000e+00> : vector<8x32xf32>
    %6 = tpu.matmul %4, %5, %cst {dimension_numbers = #tpu.dot_dimension_numbers<[1], [0], [0], [1], [0, 0, 1, 1], [], []>} : vector<8x4xf32>, vector<4x32xf32>, vector<8x32xf32> -> vector<8x32xf32>
    %7 = arith.addf %3, %6 : vector<8x32xf32>
    %c0_6 = arith.constant 0 : index
    %c0_7 = arith.constant 0 : index
    %8 = vector.load %arg7[%c0_6, %c0_7] : memref<8x32xf32, #tpu.memory_space<vmem>>, vector<8x32xf32>
    tpu.vector_store %arg7[%c0_6, %c0_7], %7 {strides = array<i32>} : memref<8x32xf32, #tpu.memory_space<vmem>>, vector<8x32xf32>,
    %c0_i32_8 = arith.constant 0 : i32
    %9 = arith.cmpi eq, %arg2, %c0_i32_8 : i32
    %10 = arith.extui %9 : i1 to i32
    %c0_i32_9 = arith.constant 0 : i32
    %11 = arith.cmpi ne, %10, %c0_i32_9 : i32
    scf.if %11 {
      %c0_10 = arith.constant 0 : index
      %c0_11 = arith.constant 0 : index
      %12 = vector.load %arg7[%c0_10, %c0_11] : memref<8x32xf32, #tpu.memory_space<vmem>>, vector<8x32xf32>
      %c0_12 = arith.constant 0 : index
      %c0_13 = arith.constant 0 : index
      %13 = vector.load %arg5[%c0_12, %c0_13] : memref<1x32xf32, #tpu.memory_space<vmem>>, vector<1x32xf32>
      %14 = vector.broadcast %13 : vector<1x32xf32> to vector<8x32xf32>
      %15 = arith.addf %12, %14 : vector<8x32xf32>
      %cst_14 = arith.constant 5.000000e-01 : f32
      %16 = vector.broadcast %cst_14 : f32 to vector<8x32xf32>
      %17 = arith.mulf %16, %15 : vector<8x32xf32>
      %cst_15 = arith.constant 0.707106769 : f32
      %18 = vector.broadcast %cst_15 : f32 to vector<8x32xf32>
      %19 = arith.mulf %15, %18 : vector<8x32xf32>
      %20 = math.erf %19 : vector<8x32xf32>
      %cst_16 = arith.constant 1.000000e+00 : f32
      %21 = vector.broadcast %cst_16 : f32 to vector<8x32xf32>
      %22 = arith.addf %21, %20 : vector<8x32xf32>
      %23 = arith.mulf %17, %22 : vector<8x32xf32>
      %c0_17 = arith.constant 0 : index
      %c0_18 = arith.constant 0 : index
      %24 = vector.load %arg6[%c0_17, %c0_18] : memref<8x32xf32, #tpu.memory_space<vmem>>, vector<8x32xf32>
      tpu.vector_store %arg6[%c0_17, %c0_18], %23 {strides = array<i32>} : memref<8x32xf32, #tpu.memory_space<vmem>>, vector<8x32xf32>,
    } else {
    }
    return
  }
  func.func @transform_0(%arg0: i32, %arg1: i32, %arg2: i32) -> (i32, i32) {
    %c0_i32 = arith.constant 0 : i32
    return %arg0, %arg2 : i32, i32
  }
  func.func @transform_1(%arg0: i32, %arg1: i32, %arg2: i32) -> (i32, i32) {
    %c0_i32 = arith.constant 0 : i32
    return %arg2, %arg1 : i32, i32
  }
  func.func @transform_2(%arg0: i32, %arg1: i32, %arg2: i32) -> (i32, i32) {
    %c0_i32 = arith.constant 0 : i32
    %c0_i32_0 = arith.constant 0 : i32
    return %c0_i32, %arg1 : i32, i32
  }
  func.func @transform_3(%arg0: i32, %arg1: i32, %arg2: i32) -> (i32, i32) {
    %c0_i32 = arith.constant 0 : i32
    return %arg0, %arg1 : i32, i32
  }
}

module attributes {stable_mosaic.version = 11 : i64} {
  func.func @_matmul_res_kernel(%arg0: i32, %arg1: i32, %arg2: i32, %arg3: memref<8x32xf32, #tpu.memory_space<vmem>>, %arg4: memref<32x32xf32, #tpu.memory_space<vmem>>, %arg5: memref<1x32xf32, #tpu.memory_space<vmem>>, %arg6: memref<8x32xf32, #tpu.memory_space<vmem>>, %arg7: memref<8x32xf32, #tpu.memory_space<vmem>>, %arg8: memref<8x32xf32, #tpu.memory_space<vmem>>) attributes {dimension_semantics = [#tpu.dimension_semantics<parallel>, #tpu.dimension_semantics<parallel>, #tpu.dimension_semantics<arbitrary>], iteration_bounds = array<i64: 1, 1, 1>, scalar_prefetch = 0 : i64, scratch_operands = 1 : i64, tpu.core_type = #tpu.core_type<tc>, window_params = [{transform_indices = @transform_0, window_bounds = array<i64: 8, 32>}, {transform_indices = @transform_1, window_bounds = array<i64: 32, 32>}, {transform_indices = @transform_2, window_bounds = array<i64: 1, 32>}, {transform_indices = @transform_3, window_bounds = array<i64: 8, 32>}, {transform_indices = @transform_4, window_bounds = array<i64: 8, 32>}]} {
    %c0_i32 = arith.constant 0 : i32
    %0 = arith.cmpi eq, %arg2, %c0_i32 : i32
    %1 = arith.extui %0 : i1 to i32
    %c0_i32_0 = arith.constant 0 : i32
    %2 = arith.cmpi ne, %1, %c0_i32_0 : i32
    scf.if %2 {
      %cst_10 = arith.constant 0.000000e+00 : f32
      %12 = vector.broadcast %cst_10 : f32 to vector<8x32xf32>
      %c0_11 = arith.constant 0 : index
      %c0_12 = arith.constant 0 : index
      %13 = vector.load %arg8[%c0_11, %c0_12] : memref<8x32xf32, #tpu.memory_space<vmem>>, vector<8x32xf32>
      tpu.vector_store %arg8[%c0_11, %c0_12], %12 {strides = array<i32>} : memref<8x32xf32, #tpu.memory_space<vmem>>, vector<8x32xf32>,
    } else {
    }
    %c0 = arith.constant 0 : index
    %c0_1 = arith.constant 0 : index
    %3 = vector.load %arg8[%c0, %c0_1] : memref<8x32xf32, #tpu.memory_space<vmem>>, vector<8x32xf32>
    %c0_2 = arith.constant 0 : index
    %c0_3 = arith.constant 0 : index
    %4 = vector.load %arg3[%c0_2, %c0_3] : memref<8x32xf32, #tpu.memory_space<vmem>>, vector<8x32xf32>
    %c0_4 = arith.constant 0 : index
    %c0_5 = arith.constant 0 : index
    %5 = vector.load %arg4[%c0_4, %c0_5] : memref<32x32xf32, #tpu.memory_space<vmem>>, vector<32x32xf32>
    %cst = arith.constant dense<0.000000e+00> : vector<8x32xf32>
    %6 = tpu.matmul %4, %5, %cst {dimension_numbers = #tpu.dot_dimension_numbers<[1], [0], [0], [1], [0, 0, 1, 1], [], []>} : vector<8x32xf32>, vector<32x32xf32>, vector<8x32xf32> -> vector<8x32xf32>
    %7 = arith.addf %3, %6 : vector<8x32xf32>
    %c0_6 = arith.constant 0 : index
    %c0_7 = arith.constant 0 : index
    %8 = vector.load %arg8[%c0_6, %c0_7] : memref<8x32xf32, #tpu.memory_space<vmem>>, vector<8x32xf32>
    tpu.vector_store %arg8[%c0_6, %c0_7], %7 {strides = array<i32>} : memref<8x32xf32, #tpu.memory_space<vmem>>, vector<8x32xf32>,
    %c0_i32_8 = arith.constant 0 : i32
    %9 = arith.cmpi eq, %arg2, %c0_i32_8 : i32
    %10 = arith.extui %9 : i1 to i32
    %c0_i32_9 = arith.constant 0 : i32
    %11 = arith.cmpi ne, %10, %c0_i32_9 : i32
    scf.if %11 {
      %c0_10 = arith.constant 0 : index
      %c0_11 = arith.constant 0 : index
      %12 = vector.load %arg8[%c0_10, %c0_11] : memref<8x32xf32, #tpu.memory_space<vmem>>, vector<8x32xf32>
      %c0_12 = arith.constant 0 : index
      %c0_13 = arith.constant 0 : index
      %13 = vector.load %arg5[%c0_12, %c0_13] : memref<1x32xf32, #tpu.memory_space<vmem>>, vector<1x32xf32>
      %14 = vector.broadcast %13 : vector<1x32xf32> to vector<8x32xf32>
      %15 = arith.addf %12, %14 : vector<8x32xf32>
      %cst_14 = arith.constant 5.000000e-01 : f32
      %16 = vector.broadcast %cst_14 : f32 to vector<8x32xf32>
      %17 = arith.mulf %16, %15 : vector<8x32xf32>
      %cst_15 = arith.constant 0.707106769 : f32
      %18 = vector.broadcast %cst_15 : f32 to vector<8x32xf32>
      %19 = arith.mulf %15, %18 : vector<8x32xf32>
      %20 = math.erf %19 : vector<8x32xf32>
      %cst_16 = arith.constant 1.000000e+00 : f32
      %21 = vector.broadcast %cst_16 : f32 to vector<8x32xf32>
      %22 = arith.addf %21, %20 : vector<8x32xf32>
      %23 = arith.mulf %17, %22 : vector<8x32xf32>
      %c0_17 = arith.constant 0 : index
      %c0_18 = arith.constant 0 : index
      %24 = vector.load %arg6[%c0_17, %c0_18] : memref<8x32xf32, #tpu.memory_space<vmem>>, vector<8x32xf32>
      %25 = arith.addf %23, %24 : vector<8x32xf32>
      %c0_19 = arith.constant 0 : index
      %c0_20 = arith.constant 0 : index
      %26 = vector.load %arg7[%c0_19, %c0_20] : memref<8x32xf32, #tpu.memory_space<vmem>>, vector<8x32xf32>
      tpu.vector_store %arg7[%c0_19, %c0_20], %25 {strides = array<i32>} : memref<8x32xf32, #tpu.memory_space<vmem>>, vector<8x32xf32>,
    } else {
    }
    return
  }
  func.func @transform_0(%arg0: i32, %arg1: i32, %arg2: i32) -> (i32, i32) {
    %c0_i32 = arith.constant 0 : i32
    return %arg0, %arg2 : i32, i32
  }
  func.func @transform_1(%arg0: i32, %arg1: i32, %arg2: i32) -> (i32, i32) {
    %c0_i32 = arith.constant 0 : i32
    return %arg2, %arg1 : i32, i32
  }
  func.func @transform_2(%arg0: i32, %arg1: i32, %arg2: i32) -> (i32, i32) {
    %c0_i32 = arith.constant 0 : i32
    %c0_i32_0 = arith.constant 0 : i32
    return %c0_i32, %arg1 : i32, i32
  }
  func.func @transform_3(%arg0: i32, %arg1: i32, %arg2: i32) -> (i32, i32) {
    %c0_i32 = arith.constant 0 : i32
    return %arg0, %arg1 : i32, i32
  }
  func.func @transform_4(%arg0: i32, %arg1: i32, %arg2: i32) -> (i32, i32) {
    %c0_i32 = arith.constant 0 : i32
    return %arg0, %arg1 : i32, i32
  }
}

module attributes {stable_mosaic.version = 11 : i64} {
  func.func @_matmul_kernel(%arg0: i32, %arg1: i32, %arg2: i32, %arg3: memref<8x32xf32, #tpu.memory_space<vmem>>, %arg4: memref<32x32xf32, #tpu.memory_space<vmem>>, %arg5: memref<1x32xf32, #tpu.memory_space<vmem>>, %arg6: memref<8x32xf32, #tpu.memory_space<vmem>>, %arg7: memref<8x32xf32, #tpu.memory_space<vmem>>) attributes {dimension_semantics = [#tpu.dimension_semantics<parallel>, #tpu.dimension_semantics<parallel>, #tpu.dimension_semantics<arbitrary>], iteration_bounds = array<i64: 1, 1, 1>, scalar_prefetch = 0 : i64, scratch_operands = 1 : i64, tpu.core_type = #tpu.core_type<tc>, window_params = [{transform_indices = @transform_0, window_bounds = array<i64: 8, 32>}, {transform_indices = @transform_1, window_bounds = array<i64: 32, 32>}, {transform_indices = @transform_2, window_bounds = array<i64: 1, 32>}, {transform_indices = @transform_3, window_bounds = array<i64: 8, 32>}]} {
    %c0_i32 = arith.constant 0 : i32
    %0 = arith.cmpi eq, %arg2, %c0_i32 : i32
    %1 = arith.extui %0 : i1 to i32
    %c0_i32_0 = arith.constant 0 : i32
    %2 = arith.cmpi ne, %1, %c0_i32_0 : i32
    scf.if %2 {
      %cst_10 = arith.constant 0.000000e+00 : f32
      %12 = vector.broadcast %cst_10 : f32 to vector<8x32xf32>
      %c0_11 = arith.constant 0 : index
      %c0_12 = arith.constant 0 : index
      %13 = vector.load %arg7[%c0_11, %c0_12] : memref<8x32xf32, #tpu.memory_space<vmem>>, vector<8x32xf32>
      tpu.vector_store %arg7[%c0_11, %c0_12], %12 {strides = array<i32>} : memref<8x32xf32, #tpu.memory_space<vmem>>, vector<8x32xf32>,
    } else {
    }
    %c0 = arith.constant 0 : index
    %c0_1 = arith.constant 0 : index
    %3 = vector.load %arg7[%c0, %c0_1] : memref<8x32xf32, #tpu.memory_space<vmem>>, vector<8x32xf32>
    %c0_2 = arith.constant 0 : index
    %c0_3 = arith.constant 0 : index
    %4 = vector.load %arg3[%c0_2, %c0_3] : memref<8x32xf32, #tpu.memory_space<vmem>>, vector<8x32xf32>
    %c0_4 = arith.constant 0 : index
    %c0_5 = arith.constant 0 : index
    %5 = vector.load %arg4[%c0_4, %c0_5] : memref<32x32xf32, #tpu.memory_space<vmem>>, vector<32x32xf32>
    %cst = arith.constant dense<0.000000e+00> : vector<8x32xf32>
    %6 = tpu.matmul %4, %5, %cst {dimension_numbers = #tpu.dot_dimension_numbers<[1], [0], [0], [1], [0, 0, 1, 1], [], []>} : vector<8x32xf32>, vector<32x32xf32>, vector<8x32xf32> -> vector<8x32xf32>
    %7 = arith.addf %3, %6 : vector<8x32xf32>
    %c0_6 = arith.constant 0 : index
    %c0_7 = arith.constant 0 : index
    %8 = vector.load %arg7[%c0_6, %c0_7] : memref<8x32xf32, #tpu.memory_space<vmem>>, vector<8x32xf32>
    tpu.vector_store %arg7[%c0_6, %c0_7], %7 {strides = array<i32>} : memref<8x32xf32, #tpu.memory_space<vmem>>, vector<8x32xf32>,
    %c0_i32_8 = arith.constant 0 : i32
    %9 = arith.cmpi eq, %arg2, %c0_i32_8 : i32
    %10 = arith.extui %9 : i1 to i32
    %c0_i32_9 = arith.constant 0 : i32
    %11 = arith.cmpi ne, %10, %c0_i32_9 : i32
    scf.if %11 {
      %c0_10 = arith.constant 0 : index
      %c0_11 = arith.constant 0 : index
      %12 = vector.load %arg7[%c0_10, %c0_11] : memref<8x32xf32, #tpu.memory_space<vmem>>, vector<8x32xf32>
      %c0_12 = arith.constant 0 : index
      %c0_13 = arith.constant 0 : index
      %13 = vector.load %arg5[%c0_12, %c0_13] : memref<1x32xf32, #tpu.memory_space<vmem>>, vector<1x32xf32>
      %14 = vector.broadcast %13 : vector<1x32xf32> to vector<8x32xf32>
      %15 = arith.addf %12, %14 : vector<8x32xf32>
      %c0_14 = arith.constant 0 : index
      %c0_15 = arith.constant 0 : index
      %16 = vector.load %arg6[%c0_14, %c0_15] : memref<8x32xf32, #tpu.memory_space<vmem>>, vector<8x32xf32>
      tpu.vector_store %arg6[%c0_14, %c0_15], %15 {strides = array<i32>} : memref<8x32xf32, #tpu.memory_space<vmem>>, vector<8x32xf32>,
    } else {
    }
    return
  }
  func.func @transform_0(%arg0: i32, %arg1: i32, %arg2: i32) -> (i32, i32) {
    %c0_i32 = arith.constant 0 : i32
    return %arg0, %arg2 : i32, i32
  }
  func.func @transform_1(%arg0: i32, %arg1: i32, %arg2: i32) -> (i32, i32) {
    %c0_i32 = arith.constant 0 : i32
    return %arg2, %arg1 : i32, i32
  }
  func.func @transform_2(%arg0: i32, %arg1: i32, %arg2: i32) -> (i32, i32) {
    %c0_i32 = arith.constant 0 : i32
    %c0_i32_0 = arith.constant 0 : i32
    return %c0_i32, %arg1 : i32, i32
  }
  func.func @transform_3(%arg0: i32, %arg1: i32, %arg2: i32) -> (i32, i32) {
    %c0_i32 = arith.constant 0 : i32
    return %arg0, %arg1 : i32, i32
  }
}

module attributes {stable_mosaic.version = 11 : i64} {
  func.func @_gate_kernel(%arg0: i32, %arg1: memref<16x2xf32, #tpu.memory_space<vmem>>, %arg2: memref<2x32xf32, #tpu.memory_space<vmem>>, %arg3: memref<1x32xf32, #tpu.memory_space<vmem>>, %arg4: memref<32x32xf32, #tpu.memory_space<vmem>>, %arg5: memref<1x32xf32, #tpu.memory_space<vmem>>, %arg6: memref<32x2xf32, #tpu.memory_space<vmem>>, %arg7: memref<1x2xf32, #tpu.memory_space<vmem>>, %arg8: memref<16x2xf32, #tpu.memory_space<vmem>>) attributes {dimension_semantics = [#tpu.dimension_semantics<parallel>], iteration_bounds = array<i64: 1>, scalar_prefetch = 0 : i64, scratch_operands = 0 : i64, tpu.core_type = #tpu.core_type<tc>, window_params = [{transform_indices = @transform_0, window_bounds = array<i64: 16, 2>}, {pipeline_mode = #tpu.pipeline_mode<synchronous>, transform_indices = @transform_1, window_bounds = array<i64: 2, 32>}, {pipeline_mode = #tpu.pipeline_mode<synchronous>, transform_indices = @transform_2, window_bounds = array<i64: 1, 32>}, {pipeline_mode = #tpu.pipeline_mode<synchronous>, transform_indices = @transform_3, window_bounds = array<i64: 32, 32>}, {pipeline_mode = #tpu.pipeline_mode<synchronous>, transform_indices = @transform_4, window_bounds = array<i64: 1, 32>}, {pipeline_mode = #tpu.pipeline_mode<synchronous>, transform_indices = @transform_5, window_bounds = array<i64: 32, 2>}, {pipeline_mode = #tpu.pipeline_mode<synchronous>, transform_indices = @transform_6, window_bounds = array<i64: 1, 2>}, {transform_indices = @transform_7, window_bounds = array<i64: 16, 2>}]} {
    %c0 = arith.constant 0 : index
    %c0_0 = arith.constant 0 : index
    %0 = vector.load %arg1[%c0, %c0_0] : memref<16x2xf32, #tpu.memory_space<vmem>>, vector<16x2xf32>
    %c0_1 = arith.constant 0 : index
    %c0_2 = arith.constant 0 : index
    %1 = vector.load %arg2[%c0_1, %c0_2] : memref<2x32xf32, #tpu.memory_space<vmem>>, vector<2x32xf32>
    %cst = arith.constant dense<0.000000e+00> : vector<16x32xf32>
    %2 = tpu.matmul %0, %1, %cst {dimension_numbers = #tpu.dot_dimension_numbers<[1], [0], [0], [1], [0, 0, 1, 1], [], []>} : vector<16x2xf32>, vector<2x32xf32>, vector<16x32xf32> -> vector<16x32xf32>
    %c0_3 = arith.constant 0 : index
    %c0_4 = arith.constant 0 : index
    %3 = vector.load %arg3[%c0_3, %c0_4] : memref<1x32xf32, #tpu.memory_space<vmem>>, vector<1x32xf32>
    %4 = vector.broadcast %3 : vector<1x32xf32> to vector<16x32xf32>
    %5 = arith.addf %2, %4 : vector<16x32xf32>
    %cst_5 = arith.constant 5.000000e-01 : f32
    %6 = vector.broadcast %cst_5 : f32 to vector<16x32xf32>
    %7 = arith.mulf %6, %5 : vector<16x32xf32>
    %cst_6 = arith.constant 0.707106769 : f32
    %8 = vector.broadcast %cst_6 : f32 to vector<16x32xf32>
    %9 = arith.mulf %5, %8 : vector<16x32xf32>
    %10 = math.erf %9 : vector<16x32xf32>
    %cst_7 = arith.constant 1.000000e+00 : f32
    %11 = vector.broadcast %cst_7 : f32 to vector<16x32xf32>
    %12 = arith.addf %11, %10 : vector<16x32xf32>
    %13 = arith.mulf %7, %12 : vector<16x32xf32>
    %c0_8 = arith.constant 0 : index
    %c0_9 = arith.constant 0 : index
    %14 = vector.load %arg4[%c0_8, %c0_9] : memref<32x32xf32, #tpu.memory_space<vmem>>, vector<32x32xf32>
    %cst_10 = arith.constant dense<0.000000e+00> : vector<16x32xf32>
    %15 = tpu.matmul %13, %14, %cst_10 {dimension_numbers = #tpu.dot_dimension_numbers<[1], [0], [0], [1], [0, 0, 1, 1], [], []>} : vector<16x32xf32>, vector<32x32xf32>, vector<16x32xf32> -> vector<16x32xf32>
    %c0_11 = arith.constant 0 : index
    %c0_12 = arith.constant 0 : index
    %16 = vector.load %arg5[%c0_11, %c0_12] : memref<1x32xf32, #tpu.memory_space<vmem>>, vector<1x32xf32>
    %17 = vector.broadcast %16 : vector<1x32xf32> to vector<16x32xf32>
    %18 = arith.addf %15, %17 : vector<16x32xf32>
    %cst_13 = arith.constant 5.000000e-01 : f32
    %19 = vector.broadcast %cst_13 : f32 to vector<16x32xf32>
    %20 = arith.mulf %19, %18 : vector<16x32xf32>
    %cst_14 = arith.constant 0.707106769 : f32
    %21 = vector.broadcast %cst_14 : f32 to vector<16x32xf32>
    %22 = arith.mulf %18, %21 : vector<16x32xf32>
    %23 = math.erf %22 : vector<16x32xf32>
    %cst_15 = arith.constant 1.000000e+00 : f32
    %24 = vector.broadcast %cst_15 : f32 to vector<16x32xf32>
    %25 = arith.addf %24, %23 : vector<16x32xf32>
    %26 = arith.mulf %20, %25 : vector<16x32xf32>
    %c0_16 = arith.constant 0 : index
    %c0_17 = arith.constant 0 : index
    %27 = vector.load %arg6[%c0_16, %c0_17] : memref<32x2xf32, #tpu.memory_space<vmem>>, vector<32x2xf32>
    %cst_18 = arith.constant dense<0.000000e+00> : vector<16x2xf32>
    %28 = tpu.matmul %26, %27, %cst_18 {dimension_numbers = #tpu.dot_dimension_numbers<[1], [0], [0], [1], [0, 0, 1, 1], [], []>} : vector<16x32xf32>, vector<32x2xf32>, vector<16x2xf32> -> vector<16x2xf32>
    %c0_19 = arith.constant 0 : index
    %c0_20 = arith.constant 0 : index
    %29 = vector.load %arg7[%c0_19, %c0_20] : memref<1x2xf32, #tpu.memory_space<vmem>>, vector<1x2xf32>
    %30 = vector.broadcast %29 : vector<1x2xf32> to vector<16x2xf32>
    %31 = arith.addf %28, %30 : vector<16x2xf32>
    %cst_21 = arith.constant dense<0xFF800000> : vector<16xf32>
    %32 = vector.multi_reduction <maximumf>, %31, %cst_21 [1] : vector<16x2xf32> to vector<16xf32>
    %33 = vector.shape_cast %32 : vector<16xf32> to vector<16x1xf32>
    %34 = vector.broadcast %33 : vector<16x1xf32> to vector<16x2xf32>
    %35 = arith.subf %31, %34 : vector<16x2xf32>
    %36 = math.exp %35 : vector<16x2xf32>
    %cst_22 = arith.constant dense<0.000000e+00> : vector<16xf32>
    %37 = vector.multi_reduction <add>, %36, %cst_22 [1] : vector<16x2xf32> to vector<16xf32>
    %38 = vector.shape_cast %37 : vector<16xf32> to vector<16x1xf32>
    %39 = tpu.reciprocal %38 {approx = true} : vector<16x1xf32> -> vector<16x1xf32>
    %40 = vector.broadcast %39 : vector<16x1xf32> to vector<16x2xf32>
    %41 = arith.mulf %36, %40 : vector<16x2xf32>
    %c0_23 = arith.constant 0 : index
    %c0_24 = arith.constant 0 : index
    %42 = vector.load %arg8[%c0_23, %c0_24] : memref<16x2xf32, #tpu.memory_space<vmem>>, vector<16x2xf32>
    tpu.vector_store %arg8[%c0_23, %c0_24], %41 {strides = array<i32>} : memref<16x2xf32, #tpu.memory_space<vmem>>, vector<16x2xf32>,
    return
  }
  func.func @transform_0(%arg0: i32) -> (i32, i32) {
    %c0_i32 = arith.constant 0 : i32
    %c0_i32_0 = arith.constant 0 : i32
    return %arg0, %c0_i32 : i32, i32
  }
  func.func @transform_1(%arg0: i32) -> (i32, i32) {
    %c0_i32 = arith.constant 0 : i32
    %c0_i32_0 = arith.constant 0 : i32
    %c0_i32_1 = arith.constant 0 : i32
    return %c0_i32, %c0_i32_0 : i32, i32
  }
  func.func @transform_2(%arg0: i32) -> (i32, i32) {
    %c0_i32 = arith.constant 0 : i32
    %c0_i32_0 = arith.constant 0 : i32
    %c0_i32_1 = arith.constant 0 : i32
    return %c0_i32, %c0_i32_0 : i32, i32
  }
  func.func @transform_3(%arg0: i32) -> (i32, i32) {
    %c0_i32 = arith.constant 0 : i32
    %c0_i32_0 = arith.constant 0 : i32
    %c0_i32_1 = arith.constant 0 : i32
    return %c0_i32, %c0_i32_0 : i32, i32
  }
  func.func @transform_4(%arg0: i32) -> (i32, i32) {
    %c0_i32 = arith.constant 0 : i32
    %c0_i32_0 = arith.constant 0 : i32
    %c0_i32_1 = arith.constant 0 : i32
    return %c0_i32, %c0_i32_0 : i32, i32
  }
  func.func @transform_5(%arg0: i32) -> (i32, i32) {
    %c0_i32 = arith.constant 0 : i32
    %c0_i32_0 = arith.constant 0 : i32
    %c0_i32_1 = arith.constant 0 : i32
    return %c0_i32, %c0_i32_0 : i32, i32
  }
  func.func @transform_6(%arg0: i32) -> (i32, i32) {
    %c0_i32 = arith.constant 0 : i32
    %c0_i32_0 = arith.constant 0 : i32
    %c0_i32_1 = arith.constant 0 : i32
    return %c0_i32, %c0_i32_0 : i32, i32
  }
  func.func @transform_7(%arg0: i32) -> (i32, i32) {
    %c0_i32 = arith.constant 0 : i32
    %c0_i32_0 = arith.constant 0 : i32
    return %arg0, %c0_i32 : i32, i32
  }
}

module attributes {stable_mosaic.version = 11 : i64} {
  func.func @_matmul_kernel(%arg0: i32, %arg1: i32, %arg2: i32, %arg3: memref<16x8xf32, #tpu.memory_space<vmem>>, %arg4: memref<8x32xf32, #tpu.memory_space<vmem>>, %arg5: memref<1x32xf32, #tpu.memory_space<vmem>>, %arg6: memref<16x32xf32, #tpu.memory_space<vmem>>, %arg7: memref<16x32xf32, #tpu.memory_space<vmem>>) attributes {dimension_semantics = [#tpu.dimension_semantics<parallel>, #tpu.dimension_semantics<parallel>, #tpu.dimension_semantics<arbitrary>], iteration_bounds = array<i64: 1, 1, 1>, scalar_prefetch = 0 : i64, scratch_operands = 1 : i64, tpu.core_type = #tpu.core_type<tc>, window_params = [{transform_indices = @transform_0, window_bounds = array<i64: 16, 8>}, {transform_indices = @transform_1, window_bounds = array<i64: 8, 32>}, {transform_indices = @transform_2, window_bounds = array<i64: 1, 32>}, {transform_indices = @transform_3, window_bounds = array<i64: 16, 32>}]} {
    %c0_i32 = arith.constant 0 : i32
    %0 = arith.cmpi eq, %arg2, %c0_i32 : i32
    %1 = arith.extui %0 : i1 to i32
    %c0_i32_0 = arith.constant 0 : i32
    %2 = arith.cmpi ne, %1, %c0_i32_0 : i32
    scf.if %2 {
      %cst_10 = arith.constant 0.000000e+00 : f32
      %12 = vector.broadcast %cst_10 : f32 to vector<16x32xf32>
      %c0_11 = arith.constant 0 : index
      %c0_12 = arith.constant 0 : index
      %13 = vector.load %arg7[%c0_11, %c0_12] : memref<16x32xf32, #tpu.memory_space<vmem>>, vector<16x32xf32>
      tpu.vector_store %arg7[%c0_11, %c0_12], %12 {strides = array<i32>} : memref<16x32xf32, #tpu.memory_space<vmem>>, vector<16x32xf32>,
    } else {
    }
    %c0 = arith.constant 0 : index
    %c0_1 = arith.constant 0 : index
    %3 = vector.load %arg7[%c0, %c0_1] : memref<16x32xf32, #tpu.memory_space<vmem>>, vector<16x32xf32>
    %c0_2 = arith.constant 0 : index
    %c0_3 = arith.constant 0 : index
    %4 = vector.load %arg3[%c0_2, %c0_3] : memref<16x8xf32, #tpu.memory_space<vmem>>, vector<16x8xf32>
    %c0_4 = arith.constant 0 : index
    %c0_5 = arith.constant 0 : index
    %5 = vector.load %arg4[%c0_4, %c0_5] : memref<8x32xf32, #tpu.memory_space<vmem>>, vector<8x32xf32>
    %cst = arith.constant dense<0.000000e+00> : vector<16x32xf32>
    %6 = tpu.matmul %4, %5, %cst {dimension_numbers = #tpu.dot_dimension_numbers<[1], [0], [0], [1], [0, 0, 1, 1], [], []>} : vector<16x8xf32>, vector<8x32xf32>, vector<16x32xf32> -> vector<16x32xf32>
    %7 = arith.addf %3, %6 : vector<16x32xf32>
    %c0_6 = arith.constant 0 : index
    %c0_7 = arith.constant 0 : index
    %8 = vector.load %arg7[%c0_6, %c0_7] : memref<16x32xf32, #tpu.memory_space<vmem>>, vector<16x32xf32>
    tpu.vector_store %arg7[%c0_6, %c0_7], %7 {strides = array<i32>} : memref<16x32xf32, #tpu.memory_space<vmem>>, vector<16x32xf32>,
    %c0_i32_8 = arith.constant 0 : i32
    %9 = arith.cmpi eq, %arg2, %c0_i32_8 : i32
    %10 = arith.extui %9 : i1 to i32
    %c0_i32_9 = arith.constant 0 : i32
    %11 = arith.cmpi ne, %10, %c0_i32_9 : i32
    scf.if %11 {
      %c0_10 = arith.constant 0 : index
      %c0_11 = arith.constant 0 : index
      %12 = vector.load %arg7[%c0_10, %c0_11] : memref<16x32xf32, #tpu.memory_space<vmem>>, vector<16x32xf32>
      %c0_12 = arith.constant 0 : index
      %c0_13 = arith.constant 0 : index
      %13 = vector.load %arg5[%c0_12, %c0_13] : memref<1x32xf32, #tpu.memory_space<vmem>>, vector<1x32xf32>
      %14 = vector.broadcast %13 : vector<1x32xf32> to vector<16x32xf32>
      %15 = arith.addf %12, %14 : vector<16x32xf32>
      %cst_14 = arith.constant 5.000000e-01 : f32
      %16 = vector.broadcast %cst_14 : f32 to vector<16x32xf32>
      %17 = arith.mulf %16, %15 : vector<16x32xf32>
      %cst_15 = arith.constant 0.707106769 : f32
      %18 = vector.broadcast %cst_15 : f32 to vector<16x32xf32>
      %19 = arith.mulf %15, %18 : vector<16x32xf32>
      %20 = math.erf %19 : vector<16x32xf32>
      %cst_16 = arith.constant 1.000000e+00 : f32
      %21 = vector.broadcast %cst_16 : f32 to vector<16x32xf32>
      %22 = arith.addf %21, %20 : vector<16x32xf32>
      %23 = arith.mulf %17, %22 : vector<16x32xf32>
      %c0_17 = arith.constant 0 : index
      %c0_18 = arith.constant 0 : index
      %24 = vector.load %arg6[%c0_17, %c0_18] : memref<16x32xf32, #tpu.memory_space<vmem>>, vector<16x32xf32>
      tpu.vector_store %arg6[%c0_17, %c0_18], %23 {strides = array<i32>} : memref<16x32xf32, #tpu.memory_space<vmem>>, vector<16x32xf32>,
    } else {
    }
    return
  }
  func.func @transform_0(%arg0: i32, %arg1: i32, %arg2: i32) -> (i32, i32) {
    %c0_i32 = arith.constant 0 : i32
    return %arg0, %arg2 : i32, i32
  }
  func.func @transform_1(%arg0: i32, %arg1: i32, %arg2: i32) -> (i32, i32) {
    %c0_i32 = arith.constant 0 : i32
    return %arg2, %arg1 : i32, i32
  }
  func.func @transform_2(%arg0: i32, %arg1: i32, %arg2: i32) -> (i32, i32) {
    %c0_i32 = arith.constant 0 : i32
    %c0_i32_0 = arith.constant 0 : i32
    return %c0_i32, %arg1 : i32, i32
  }
  func.func @transform_3(%arg0: i32, %arg1: i32, %arg2: i32) -> (i32, i32) {
    %c0_i32 = arith.constant 0 : i32
    return %arg0, %arg1 : i32, i32
  }
}

module attributes {stable_mosaic.version = 11 : i64} {
  func.func @_matmul_res_kernel(%arg0: i32, %arg1: i32, %arg2: i32, %arg3: memref<16x32xf32, #tpu.memory_space<vmem>>, %arg4: memref<32x32xf32, #tpu.memory_space<vmem>>, %arg5: memref<1x32xf32, #tpu.memory_space<vmem>>, %arg6: memref<16x32xf32, #tpu.memory_space<vmem>>, %arg7: memref<16x32xf32, #tpu.memory_space<vmem>>, %arg8: memref<16x32xf32, #tpu.memory_space<vmem>>) attributes {dimension_semantics = [#tpu.dimension_semantics<parallel>, #tpu.dimension_semantics<parallel>, #tpu.dimension_semantics<arbitrary>], iteration_bounds = array<i64: 1, 1, 1>, scalar_prefetch = 0 : i64, scratch_operands = 1 : i64, tpu.core_type = #tpu.core_type<tc>, window_params = [{transform_indices = @transform_0, window_bounds = array<i64: 16, 32>}, {transform_indices = @transform_1, window_bounds = array<i64: 32, 32>}, {transform_indices = @transform_2, window_bounds = array<i64: 1, 32>}, {transform_indices = @transform_3, window_bounds = array<i64: 16, 32>}, {transform_indices = @transform_4, window_bounds = array<i64: 16, 32>}]} {
    %c0_i32 = arith.constant 0 : i32
    %0 = arith.cmpi eq, %arg2, %c0_i32 : i32
    %1 = arith.extui %0 : i1 to i32
    %c0_i32_0 = arith.constant 0 : i32
    %2 = arith.cmpi ne, %1, %c0_i32_0 : i32
    scf.if %2 {
      %cst_10 = arith.constant 0.000000e+00 : f32
      %12 = vector.broadcast %cst_10 : f32 to vector<16x32xf32>
      %c0_11 = arith.constant 0 : index
      %c0_12 = arith.constant 0 : index
      %13 = vector.load %arg8[%c0_11, %c0_12] : memref<16x32xf32, #tpu.memory_space<vmem>>, vector<16x32xf32>
      tpu.vector_store %arg8[%c0_11, %c0_12], %12 {strides = array<i32>} : memref<16x32xf32, #tpu.memory_space<vmem>>, vector<16x32xf32>,
    } else {
    }
    %c0 = arith.constant 0 : index
    %c0_1 = arith.constant 0 : index
    %3 = vector.load %arg8[%c0, %c0_1] : memref<16x32xf32, #tpu.memory_space<vmem>>, vector<16x32xf32>
    %c0_2 = arith.constant 0 : index
    %c0_3 = arith.constant 0 : index
    %4 = vector.load %arg3[%c0_2, %c0_3] : memref<16x32xf32, #tpu.memory_space<vmem>>, vector<16x32xf32>
    %c0_4 = arith.constant 0 : index
    %c0_5 = arith.constant 0 : index
    %5 = vector.load %arg4[%c0_4, %c0_5] : memref<32x32xf32, #tpu.memory_space<vmem>>, vector<32x32xf32>
    %cst = arith.constant dense<0.000000e+00> : vector<16x32xf32>
    %6 = tpu.matmul %4, %5, %cst {dimension_numbers = #tpu.dot_dimension_numbers<[1], [0], [0], [1], [0, 0, 1, 1], [], []>} : vector<16x32xf32>, vector<32x32xf32>, vector<16x32xf32> -> vector<16x32xf32>
    %7 = arith.addf %3, %6 : vector<16x32xf32>
    %c0_6 = arith.constant 0 : index
    %c0_7 = arith.constant 0 : index
    %8 = vector.load %arg8[%c0_6, %c0_7] : memref<16x32xf32, #tpu.memory_space<vmem>>, vector<16x32xf32>
    tpu.vector_store %arg8[%c0_6, %c0_7], %7 {strides = array<i32>} : memref<16x32xf32, #tpu.memory_space<vmem>>, vector<16x32xf32>,
    %c0_i32_8 = arith.constant 0 : i32
    %9 = arith.cmpi eq, %arg2, %c0_i32_8 : i32
    %10 = arith.extui %9 : i1 to i32
    %c0_i32_9 = arith.constant 0 : i32
    %11 = arith.cmpi ne, %10, %c0_i32_9 : i32
    scf.if %11 {
      %c0_10 = arith.constant 0 : index
      %c0_11 = arith.constant 0 : index
      %12 = vector.load %arg8[%c0_10, %c0_11] : memref<16x32xf32, #tpu.memory_space<vmem>>, vector<16x32xf32>
      %c0_12 = arith.constant 0 : index
      %c0_13 = arith.constant 0 : index
      %13 = vector.load %arg5[%c0_12, %c0_13] : memref<1x32xf32, #tpu.memory_space<vmem>>, vector<1x32xf32>
      %14 = vector.broadcast %13 : vector<1x32xf32> to vector<16x32xf32>
      %15 = arith.addf %12, %14 : vector<16x32xf32>
      %cst_14 = arith.constant 5.000000e-01 : f32
      %16 = vector.broadcast %cst_14 : f32 to vector<16x32xf32>
      %17 = arith.mulf %16, %15 : vector<16x32xf32>
      %cst_15 = arith.constant 0.707106769 : f32
      %18 = vector.broadcast %cst_15 : f32 to vector<16x32xf32>
      %19 = arith.mulf %15, %18 : vector<16x32xf32>
      %20 = math.erf %19 : vector<16x32xf32>
      %cst_16 = arith.constant 1.000000e+00 : f32
      %21 = vector.broadcast %cst_16 : f32 to vector<16x32xf32>
      %22 = arith.addf %21, %20 : vector<16x32xf32>
      %23 = arith.mulf %17, %22 : vector<16x32xf32>
      %c0_17 = arith.constant 0 : index
      %c0_18 = arith.constant 0 : index
      %24 = vector.load %arg6[%c0_17, %c0_18] : memref<16x32xf32, #tpu.memory_space<vmem>>, vector<16x32xf32>
      %25 = arith.addf %23, %24 : vector<16x32xf32>
      %c0_19 = arith.constant 0 : index
      %c0_20 = arith.constant 0 : index
      %26 = vector.load %arg7[%c0_19, %c0_20] : memref<16x32xf32, #tpu.memory_space<vmem>>, vector<16x32xf32>
      tpu.vector_store %arg7[%c0_19, %c0_20], %25 {strides = array<i32>} : memref<16x32xf32, #tpu.memory_space<vmem>>, vector<16x32xf32>,
    } else {
    }
    return
  }
  func.func @transform_0(%arg0: i32, %arg1: i32, %arg2: i32) -> (i32, i32) {
    %c0_i32 = arith.constant 0 : i32
    return %arg0, %arg2 : i32, i32
  }
  func.func @transform_1(%arg0: i32, %arg1: i32, %arg2: i32) -> (i32, i32) {
    %c0_i32 = arith.constant 0 : i32
    return %arg2, %arg1 : i32, i32
  }
  func.func @transform_2(%arg0: i32, %arg1: i32, %arg2: i32) -> (i32, i32) {
    %c0_i32 = arith.constant 0 : i32
    %c0_i32_0 = arith.constant 0 : i32
    return %c0_i32, %arg1 : i32, i32
  }
  func.func @transform_3(%arg0: i32, %arg1: i32, %arg2: i32) -> (i32, i32) {
    %c0_i32 = arith.constant 0 : i32
    return %arg0, %arg1 : i32, i32
  }
  func.func @transform_4(%arg0: i32, %arg1: i32, %arg2: i32) -> (i32, i32) {
    %c0_i32 = arith.constant 0 : i32
    return %arg0, %arg1 : i32, i32
  }
}

module attributes {stable_mosaic.version = 11 : i64} {
  func.func @_matmul_kernel(%arg0: i32, %arg1: i32, %arg2: i32, %arg3: memref<16x32xf32, #tpu.memory_space<vmem>>, %arg4: memref<32x32xf32, #tpu.memory_space<vmem>>, %arg5: memref<1x32xf32, #tpu.memory_space<vmem>>, %arg6: memref<16x32xf32, #tpu.memory_space<vmem>>, %arg7: memref<16x32xf32, #tpu.memory_space<vmem>>) attributes {dimension_semantics = [#tpu.dimension_semantics<parallel>, #tpu.dimension_semantics<parallel>, #tpu.dimension_semantics<arbitrary>], iteration_bounds = array<i64: 1, 1, 1>, scalar_prefetch = 0 : i64, scratch_operands = 1 : i64, tpu.core_type = #tpu.core_type<tc>, window_params = [{transform_indices = @transform_0, window_bounds = array<i64: 16, 32>}, {transform_indices = @transform_1, window_bounds = array<i64: 32, 32>}, {transform_indices = @transform_2, window_bounds = array<i64: 1, 32>}, {transform_indices = @transform_3, window_bounds = array<i64: 16, 32>}]} {
    %c0_i32 = arith.constant 0 : i32
    %0 = arith.cmpi eq, %arg2, %c0_i32 : i32
    %1 = arith.extui %0 : i1 to i32
    %c0_i32_0 = arith.constant 0 : i32
    %2 = arith.cmpi ne, %1, %c0_i32_0 : i32
    scf.if %2 {
      %cst_10 = arith.constant 0.000000e+00 : f32
      %12 = vector.broadcast %cst_10 : f32 to vector<16x32xf32>
      %c0_11 = arith.constant 0 : index
      %c0_12 = arith.constant 0 : index
      %13 = vector.load %arg7[%c0_11, %c0_12] : memref<16x32xf32, #tpu.memory_space<vmem>>, vector<16x32xf32>
      tpu.vector_store %arg7[%c0_11, %c0_12], %12 {strides = array<i32>} : memref<16x32xf32, #tpu.memory_space<vmem>>, vector<16x32xf32>,
    } else {
    }
    %c0 = arith.constant 0 : index
    %c0_1 = arith.constant 0 : index
    %3 = vector.load %arg7[%c0, %c0_1] : memref<16x32xf32, #tpu.memory_space<vmem>>, vector<16x32xf32>
    %c0_2 = arith.constant 0 : index
    %c0_3 = arith.constant 0 : index
    %4 = vector.load %arg3[%c0_2, %c0_3] : memref<16x32xf32, #tpu.memory_space<vmem>>, vector<16x32xf32>
    %c0_4 = arith.constant 0 : index
    %c0_5 = arith.constant 0 : index
    %5 = vector.load %arg4[%c0_4, %c0_5] : memref<32x32xf32, #tpu.memory_space<vmem>>, vector<32x32xf32>
    %cst = arith.constant dense<0.000000e+00> : vector<16x32xf32>
    %6 = tpu.matmul %4, %5, %cst {dimension_numbers = #tpu.dot_dimension_numbers<[1], [0], [0], [1], [0, 0, 1, 1], [], []>} : vector<16x32xf32>, vector<32x32xf32>, vector<16x32xf32> -> vector<16x32xf32>
    %7 = arith.addf %3, %6 : vector<16x32xf32>
    %c0_6 = arith.constant 0 : index
    %c0_7 = arith.constant 0 : index
    %8 = vector.load %arg7[%c0_6, %c0_7] : memref<16x32xf32, #tpu.memory_space<vmem>>, vector<16x32xf32>
    tpu.vector_store %arg7[%c0_6, %c0_7], %7 {strides = array<i32>} : memref<16x32xf32, #tpu.memory_space<vmem>>, vector<16x32xf32>,
    %c0_i32_8 = arith.constant 0 : i32
    %9 = arith.cmpi eq, %arg2, %c0_i32_8 : i32
    %10 = arith.extui %9 : i1 to i32
    %c0_i32_9 = arith.constant 0 : i32
    %11 = arith.cmpi ne, %10, %c0_i32_9 : i32
    scf.if %11 {
      %c0_10 = arith.constant 0 : index
      %c0_11 = arith.constant 0 : index
      %12 = vector.load %arg7[%c0_10, %c0_11] : memref<16x32xf32, #tpu.memory_space<vmem>>, vector<16x32xf32>
      %c0_12 = arith.constant 0 : index
      %c0_13 = arith.constant 0 : index
      %13 = vector.load %arg5[%c0_12, %c0_13] : memref<1x32xf32, #tpu.memory_space<vmem>>, vector<1x32xf32>
      %14 = vector.broadcast %13 : vector<1x32xf32> to vector<16x32xf32>
      %15 = arith.addf %12, %14 : vector<16x32xf32>
      %c0_14 = arith.constant 0 : index
      %c0_15 = arith.constant 0 : index
      %16 = vector.load %arg6[%c0_14, %c0_15] : memref<16x32xf32, #tpu.memory_space<vmem>>, vector<16x32xf32>
      tpu.vector_store %arg6[%c0_14, %c0_15], %15 {strides = array<i32>} : memref<16x32xf32, #tpu.memory_space<vmem>>, vector<16x32xf32>,
    } else {
    }
    return
  }
  func.func @transform_0(%arg0: i32, %arg1: i32, %arg2: i32) -> (i32, i32) {
    %c0_i32 = arith.constant 0 : i32
    return %arg0, %arg2 : i32, i32
  }
  func.func @transform_1(%arg0: i32, %arg1: i32, %arg2: i32) -> (i32, i32) {
    %c0_i32 = arith.constant 0 : i32
    return %arg2, %arg1 : i32, i32
  }
  func.func @transform_2(%arg0: i32, %arg1: i32, %arg2: i32) -> (i32, i32) {
    %c0_i32 = arith.constant 0 : i32
    %c0_i32_0 = arith.constant 0 : i32
    return %c0_i32, %arg1 : i32, i32
  }
  func.func @transform_3(%arg0: i32, %arg1: i32, %arg2: i32) -> (i32, i32) {
    %c0_i32 = arith.constant 0 : i32
    return %arg0, %arg1 : i32, i32
  }
}

module attributes {stable_mosaic.version = 11 : i64} {
  func.func @_cross_attn_kernel(%arg0: i32, %arg1: memref<16x32xf32, #tpu.memory_space<vmem>>, %arg2: memref<1x8x32xf32, #tpu.memory_space<vmem>>, %arg3: memref<1x32xf32, #tpu.memory_space<vmem>>, %arg4: memref<1x32xf32, #tpu.memory_space<vmem>>, %arg5: memref<1x1x32xf32, #tpu.memory_space<vmem>>, %arg6: memref<1x1x32xf32, #tpu.memory_space<vmem>>, %arg7: memref<32x32xf32, #tpu.memory_space<vmem>>, %arg8: memref<1x32xf32, #tpu.memory_space<vmem>>, %arg9: memref<1x32x32xf32, #tpu.memory_space<vmem>>, %arg10: memref<1x1x32xf32, #tpu.memory_space<vmem>>, %arg11: memref<1x32x32xf32, #tpu.memory_space<vmem>>, %arg12: memref<1x1x32xf32, #tpu.memory_space<vmem>>, %arg13: memref<32x32xf32, #tpu.memory_space<vmem>>, %arg14: memref<1x32xf32, #tpu.memory_space<vmem>>, %arg15: memref<16x32xf32, #tpu.memory_space<vmem>>) attributes {dimension_semantics = [#tpu.dimension_semantics<parallel>], iteration_bounds = array<i64: 1>, scalar_prefetch = 0 : i64, scratch_operands = 0 : i64, tpu.core_type = #tpu.core_type<tc>, window_params = [{transform_indices = @transform_0, window_bounds = array<i64: 16, 32>}, {pipeline_mode = #tpu.pipeline_mode<synchronous>, transform_indices = @transform_1, window_bounds = array<i64: 1, 8, 32>}, {pipeline_mode = #tpu.pipeline_mode<synchronous>, transform_indices = @transform_2, window_bounds = array<i64: 1, 32>}, {pipeline_mode = #tpu.pipeline_mode<synchronous>, transform_indices = @transform_3, window_bounds = array<i64: 1, 32>}, {pipeline_mode = #tpu.pipeline_mode<synchronous>, transform_indices = @transform_4, window_bounds = array<i64: 1, 1, 32>}, {pipeline_mode = #tpu.pipeline_mode<synchronous>, transform_indices = @transform_5, window_bounds = array<i64: 1, 1, 32>}, {pipeline_mode = #tpu.pipeline_mode<synchronous>, transform_indices = @transform_6, window_bounds = array<i64: 32, 32>}, {pipeline_mode = #tpu.pipeline_mode<synchronous>, transform_indices = @transform_7, window_bounds = array<i64: 1, 32>}, {pipeline_mode = #tpu.pipeline_mode<synchronous>, transform_indices = @transform_8, window_bounds = array<i64: 1, 32, 32>}, {pipeline_mode = #tpu.pipeline_mode<synchronous>, transform_indices = @transform_9, window_bounds = array<i64: 1, 1, 32>}, {pipeline_mode = #tpu.pipeline_mode<synchronous>, transform_indices = @transform_10, window_bounds = array<i64: 1, 32, 32>}, {pipeline_mode = #tpu.pipeline_mode<synchronous>, transform_indices = @transform_11, window_bounds = array<i64: 1, 1, 32>}, {pipeline_mode = #tpu.pipeline_mode<synchronous>, transform_indices = @transform_12, window_bounds = array<i64: 32, 32>}, {pipeline_mode = #tpu.pipeline_mode<synchronous>, transform_indices = @transform_13, window_bounds = array<i64: 1, 32>}, {transform_indices = @transform_14, window_bounds = array<i64: 16, 32>}]} {
    %c0 = arith.constant 0 : index
    %c0_0 = arith.constant 0 : index
    %0 = vector.load %arg1[%c0, %c0_0] : memref<16x32xf32, #tpu.memory_space<vmem>>, vector<16x32xf32>
    %c0_1 = arith.constant 0 : index
    %c0_2 = arith.constant 0 : index
    %1 = vector.load %arg3[%c0_1, %c0_2] : memref<1x32xf32, #tpu.memory_space<vmem>>, vector<1x32xf32>
    %c0_3 = arith.constant 0 : index
    %c0_4 = arith.constant 0 : index
    %2 = vector.load %arg4[%c0_3, %c0_4] : memref<1x32xf32, #tpu.memory_space<vmem>>, vector<1x32xf32>
    %cst = arith.constant dense<0.000000e+00> : vector<16xf32>
    %3 = vector.multi_reduction <add>, %0, %cst [1] : vector<16x32xf32> to vector<16xf32>
    %4 = vector.shape_cast %3 : vector<16xf32> to vector<16x1xf32>
    %cst_5 = arith.constant 3.200000e+01 : f32
    %5 = vector.broadcast %cst_5 : f32 to vector<16x1xf32>
    %6 = arith.divf %4, %5 : vector<16x1xf32>
    %7 = vector.broadcast %6 : vector<16x1xf32> to vector<16x32xf32>
    %8 = arith.subf %0, %7 : vector<16x32xf32>
    %9 = arith.mulf %8, %8 : vector<16x32xf32>
    %cst_6 = arith.constant dense<0.000000e+00> : vector<16xf32>
    %10 = vector.multi_reduction <add>, %9, %cst_6 [1] : vector<16x32xf32> to vector<16xf32>
    %11 = vector.shape_cast %10 : vector<16xf32> to vector<16x1xf32>
    %cst_7 = arith.constant 3.200000e+01 : f32
    %12 = vector.broadcast %cst_7 : f32 to vector<16x1xf32>
    %13 = arith.divf %11, %12 : vector<16x1xf32>
    %14 = vector.broadcast %6 : vector<16x1xf32> to vector<16x32xf32>
    %15 = arith.subf %0, %14 : vector<16x32xf32>
    %cst_8 = arith.constant 9.99999974E-6 : f32
    %16 = vector.broadcast %cst_8 : f32 to vector<16x1xf32>
    %17 = arith.addf %13, %16 : vector<16x1xf32>
    %18 = math.rsqrt %17 : vector<16x1xf32>
    %19 = vector.broadcast %18 : vector<16x1xf32> to vector<16x32xf32>
    %20 = arith.mulf %15, %19 : vector<16x32xf32>
    %21 = vector.broadcast %1 : vector<1x32xf32> to vector<16x32xf32>
    %22 = arith.mulf %20, %21 : vector<16x32xf32>
    %23 = vector.broadcast %2 : vector<1x32xf32> to vector<16x32xf32>
    %24 = arith.addf %22, %23 : vector<16x32xf32>
    %c0_9 = arith.constant 0 : index
    %c0_10 = arith.constant 0 : index
    %25 = vector.load %arg7[%c0_9, %c0_10] : memref<32x32xf32, #tpu.memory_space<vmem>>, vector<32x32xf32>
    %cst_11 = arith.constant dense<0.000000e+00> : vector<16x32xf32>
    %26 = tpu.matmul %24, %25, %cst_11 {dimension_numbers = #tpu.dot_dimension_numbers<[1], [0], [0], [1], [0, 0, 1, 1], [], []>} : vector<16x32xf32>, vector<32x32xf32>, vector<16x32xf32> -> vector<16x32xf32>
    %c0_12 = arith.constant 0 : index
    %c0_13 = arith.constant 0 : index
    %27 = vector.load %arg8[%c0_12, %c0_13] : memref<1x32xf32, #tpu.memory_space<vmem>>, vector<1x32xf32>
    %28 = vector.broadcast %27 : vector<1x32xf32> to vector<16x32xf32>
    %29 = arith.addf %26, %28 : vector<16x32xf32>
    %30 = vector.extract_strided_slice %29 {offsets = [0, 0], sizes = [16, 8], strides = [1, 1]} : vector<16x32xf32> to vector<16x8xf32>
    %cst_14 = arith.constant dense<0xFF800000> : vector<16xf32>
    %31 = vector.multi_reduction <maximumf>, %30, %cst_14 [1] : vector<16x8xf32> to vector<16xf32>
    %32 = vector.shape_cast %31 : vector<16xf32> to vector<16x1xf32>
    %33 = vector.broadcast %32 : vector<16x1xf32> to vector<16x8xf32>
    %34 = arith.subf %30, %33 : vector<16x8xf32>
    %35 = math.exp %34 : vector<16x8xf32>
    %cst_15 = arith.constant dense<0.000000e+00> : vector<16xf32>
    %36 = vector.multi_reduction <add>, %35, %cst_15 [1] : vector<16x8xf32> to vector<16xf32>
    %37 = vector.shape_cast %36 : vector<16xf32> to vector<16x1xf32>
    %38 = tpu.reciprocal %37 {approx = true} : vector<16x1xf32> -> vector<16x1xf32>
    %39 = vector.broadcast %38 : vector<16x1xf32> to vector<16x8xf32>
    %40 = arith.mulf %35, %39 : vector<16x8xf32>
    %41 = vector.extract_strided_slice %29 {offsets = [0, 8], sizes = [16, 8], strides = [1, 1]} : vector<16x32xf32> to vector<16x8xf32>
    %cst_16 = arith.constant dense<0xFF800000> : vector<16xf32>
    %42 = vector.multi_reduction <maximumf>, %41, %cst_16 [1] : vector<16x8xf32> to vector<16xf32>
    %43 = vector.shape_cast %42 : vector<16xf32> to vector<16x1xf32>
    %44 = vector.broadcast %43 : vector<16x1xf32> to vector<16x8xf32>
    %45 = arith.subf %41, %44 : vector<16x8xf32>
    %46 = math.exp %45 : vector<16x8xf32>
    %cst_17 = arith.constant dense<0.000000e+00> : vector<16xf32>
    %47 = vector.multi_reduction <add>, %46, %cst_17 [1] : vector<16x8xf32> to vector<16xf32>
    %48 = vector.shape_cast %47 : vector<16xf32> to vector<16x1xf32>
    %49 = tpu.reciprocal %48 {approx = true} : vector<16x1xf32> -> vector<16x1xf32>
    %50 = vector.broadcast %49 : vector<16x1xf32> to vector<16x8xf32>
    %51 = arith.mulf %46, %50 : vector<16x8xf32>
    %52 = vector.extract_strided_slice %29 {offsets = [0, 16], sizes = [16, 8], strides = [1, 1]} : vector<16x32xf32> to vector<16x8xf32>
    %cst_18 = arith.constant dense<0xFF800000> : vector<16xf32>
    %53 = vector.multi_reduction <maximumf>, %52, %cst_18 [1] : vector<16x8xf32> to vector<16xf32>
    %54 = vector.shape_cast %53 : vector<16xf32> to vector<16x1xf32>
    %55 = vector.broadcast %54 : vector<16x1xf32> to vector<16x8xf32>
    %56 = arith.subf %52, %55 : vector<16x8xf32>
    %57 = math.exp %56 : vector<16x8xf32>
    %cst_19 = arith.constant dense<0.000000e+00> : vector<16xf32>
    %58 = vector.multi_reduction <add>, %57, %cst_19 [1] : vector<16x8xf32> to vector<16xf32>
    %59 = vector.shape_cast %58 : vector<16xf32> to vector<16x1xf32>
    %60 = tpu.reciprocal %59 {approx = true} : vector<16x1xf32> -> vector<16x1xf32>
    %61 = vector.broadcast %60 : vector<16x1xf32> to vector<16x8xf32>
    %62 = arith.mulf %57, %61 : vector<16x8xf32>
    %63 = vector.extract_strided_slice %29 {offsets = [0, 24], sizes = [16, 8], strides = [1, 1]} : vector<16x32xf32> to vector<16x8xf32>
    %cst_20 = arith.constant dense<0xFF800000> : vector<16xf32>
    %64 = vector.multi_reduction <maximumf>, %63, %cst_20 [1] : vector<16x8xf32> to vector<16xf32>
    %65 = vector.shape_cast %64 : vector<16xf32> to vector<16x1xf32>
    %66 = vector.broadcast %65 : vector<16x1xf32> to vector<16x8xf32>
    %67 = arith.subf %63, %66 : vector<16x8xf32>
    %68 = math.exp %67 : vector<16x8xf32>
    %cst_21 = arith.constant dense<0.000000e+00> : vector<16xf32>
    %69 = vector.multi_reduction <add>, %68, %cst_21 [1] : vector<16x8xf32> to vector<16xf32>
    %70 = vector.shape_cast %69 : vector<16xf32> to vector<16x1xf32>
    %71 = tpu.reciprocal %70 {approx = true} : vector<16x1xf32> -> vector<16x1xf32>
    %72 = vector.broadcast %71 : vector<16x1xf32> to vector<16x8xf32>
    %73 = arith.mulf %68, %72 : vector<16x8xf32>
    %c0_22 = arith.constant 0 : index
    %c0_23 = arith.constant 0 : index
    %c0_24 = arith.constant 0 : index
    %74 = vector.load %arg2[%c0_22, %c0_23, %c0_24] : memref<1x8x32xf32, #tpu.memory_space<vmem>>, vector<1x8x32xf32>
    %75 = vector.shape_cast %74 : vector<1x8x32xf32> to vector<8x32xf32>
    %c0_25 = arith.constant 0 : index
    %c0_26 = arith.constant 0 : index
    %c0_27 = arith.constant 0 : index
    %76 = vector.load %arg5[%c0_25, %c0_26, %c0_27] : memref<1x1x32xf32, #tpu.memory_space<vmem>>, vector<1x1x32xf32>
    %77 = vector.shape_cast %76 : vector<1x1x32xf32> to vector<1x32xf32>
    %c0_28 = arith.constant 0 : index
    %c0_29 = arith.constant 0 : index
    %c0_30 = arith.constant 0 : index
    %78 = vector.load %arg6[%c0_28, %c0_29, %c0_30] : memref<1x1x32xf32, #tpu.memory_space<vmem>>, vector<1x1x32xf32>
    %79 = vector.shape_cast %78 : vector<1x1x32xf32> to vector<1x32xf32>
    %cst_31 = arith.constant dense<0.000000e+00> : vector<8xf32>
    %80 = vector.multi_reduction <add>, %75, %cst_31 [1] : vector<8x32xf32> to vector<8xf32>
    %81 = vector.shape_cast %80 : vector<8xf32> to vector<8x1xf32>
    %cst_32 = arith.constant 3.200000e+01 : f32
    %82 = vector.broadcast %cst_32 : f32 to vector<8x1xf32>
    %83 = arith.divf %81, %82 : vector<8x1xf32>
    %84 = vector.broadcast %83 : vector<8x1xf32> to vector<8x32xf32>
    %85 = arith.subf %75, %84 : vector<8x32xf32>
    %86 = arith.mulf %85, %85 : vector<8x32xf32>
    %cst_33 = arith.constant dense<0.000000e+00> : vector<8xf32>
    %87 = vector.multi_reduction <add>, %86, %cst_33 [1] : vector<8x32xf32> to vector<8xf32>
    %88 = vector.shape_cast %87 : vector<8xf32> to vector<8x1xf32>
    %cst_34 = arith.constant 3.200000e+01 : f32
    %89 = vector.broadcast %cst_34 : f32 to vector<8x1xf32>
    %90 = arith.divf %88, %89 : vector<8x1xf32>
    %91 = vector.broadcast %83 : vector<8x1xf32> to vector<8x32xf32>
    %92 = arith.subf %75, %91 : vector<8x32xf32>
    %cst_35 = arith.constant 9.99999974E-6 : f32
    %93 = vector.broadcast %cst_35 : f32 to vector<8x1xf32>
    %94 = arith.addf %90, %93 : vector<8x1xf32>
    %95 = math.rsqrt %94 : vector<8x1xf32>
    %96 = vector.broadcast %95 : vector<8x1xf32> to vector<8x32xf32>
    %97 = arith.mulf %92, %96 : vector<8x32xf32>
    %98 = vector.broadcast %77 : vector<1x32xf32> to vector<8x32xf32>
    %99 = arith.mulf %97, %98 : vector<8x32xf32>
    %100 = vector.broadcast %79 : vector<1x32xf32> to vector<8x32xf32>
    %101 = arith.addf %99, %100 : vector<8x32xf32>
    %c0_36 = arith.constant 0 : index
    %c0_37 = arith.constant 0 : index
    %c0_38 = arith.constant 0 : index
    %102 = vector.load %arg9[%c0_36, %c0_37, %c0_38] : memref<1x32x32xf32, #tpu.memory_space<vmem>>, vector<1x32x32xf32>
    %103 = vector.shape_cast %102 : vector<1x32x32xf32> to vector<32x32xf32>
    %cst_39 = arith.constant dense<0.000000e+00> : vector<8x32xf32>
    %104 = tpu.matmul %101, %103, %cst_39 {dimension_numbers = #tpu.dot_dimension_numbers<[1], [0], [0], [1], [0, 0, 1, 1], [], []>} : vector<8x32xf32>, vector<32x32xf32>, vector<8x32xf32> -> vector<8x32xf32>
    %c0_40 = arith.constant 0 : index
    %c0_41 = arith.constant 0 : index
    %c0_42 = arith.constant 0 : index
    %105 = vector.load %arg10[%c0_40, %c0_41, %c0_42] : memref<1x1x32xf32, #tpu.memory_space<vmem>>, vector<1x1x32xf32>
    %106 = vector.shape_cast %105 : vector<1x1x32xf32> to vector<1x32xf32>
    %107 = vector.broadcast %106 : vector<1x32xf32> to vector<8x32xf32>
    %108 = arith.addf %104, %107 : vector<8x32xf32>
    %c0_43 = arith.constant 0 : index
    %c0_44 = arith.constant 0 : index
    %c0_45 = arith.constant 0 : index
    %109 = vector.load %arg11[%c0_43, %c0_44, %c0_45] : memref<1x32x32xf32, #tpu.memory_space<vmem>>, vector<1x32x32xf32>
    %110 = vector.shape_cast %109 : vector<1x32x32xf32> to vector<32x32xf32>
    %cst_46 = arith.constant dense<0.000000e+00> : vector<8x32xf32>
    %111 = tpu.matmul %101, %110, %cst_46 {dimension_numbers = #tpu.dot_dimension_numbers<[1], [0], [0], [1], [0, 0, 1, 1], [], []>} : vector<8x32xf32>, vector<32x32xf32>, vector<8x32xf32> -> vector<8x32xf32>
    %c0_47 = arith.constant 0 : index
    %c0_48 = arith.constant 0 : index
    %c0_49 = arith.constant 0 : index
    %112 = vector.load %arg12[%c0_47, %c0_48, %c0_49] : memref<1x1x32xf32, #tpu.memory_space<vmem>>, vector<1x1x32xf32>
    %113 = vector.shape_cast %112 : vector<1x1x32xf32> to vector<1x32xf32>
    %114 = vector.broadcast %113 : vector<1x32xf32> to vector<8x32xf32>
    %115 = arith.addf %111, %114 : vector<8x32xf32>
    %116 = vector.extract_strided_slice %108 {offsets = [0, 0], sizes = [8, 8], strides = [1, 1]} : vector<8x32xf32> to vector<8x8xf32>
    %cst_50 = arith.constant dense<0xFF800000> : vector<8xf32>
    %117 = vector.multi_reduction <maximumf>, %116, %cst_50 [1] : vector<8x8xf32> to vector<8xf32>
    %118 = vector.shape_cast %117 : vector<8xf32> to vector<8x1xf32>
    %119 = vector.broadcast %118 : vector<8x1xf32> to vector<8x8xf32>
    %120 = arith.subf %116, %119 : vector<8x8xf32>
    %121 = math.exp %120 : vector<8x8xf32>
    %cst_51 = arith.constant dense<0.000000e+00> : vector<8xf32>
    %122 = vector.multi_reduction <add>, %121, %cst_51 [1] : vector<8x8xf32> to vector<8xf32>
    %123 = vector.shape_cast %122 : vector<8xf32> to vector<8x1xf32>
    %124 = tpu.reciprocal %123 {approx = true} : vector<8x1xf32> -> vector<8x1xf32>
    %125 = vector.broadcast %124 : vector<8x1xf32> to vector<8x8xf32>
    %126 = arith.mulf %121, %125 : vector<8x8xf32>
    %127 = vector.extract_strided_slice %115 {offsets = [0, 0], sizes = [8, 8], strides = [1, 1]} : vector<8x32xf32> to vector<8x8xf32>
    %cst_52 = arith.constant dense<0.000000e+00> : vector<8xf32>
    %128 = vector.multi_reduction <add>, %126, %cst_52 [0] : vector<8x8xf32> to vector<8xf32>
    %129 = vector.shape_cast %128 : vector<8xf32> to vector<1x8xf32>
    %130 = vector.broadcast %129 : vector<1x8xf32> to vector<16x8xf32>
    %131 = arith.mulf %40, %130 : vector<16x8xf32>
    %cst_53 = arith.constant dense<0.000000e+00> : vector<16xf32>
    %132 = vector.multi_reduction <add>, %131, %cst_53 [1] : vector<16x8xf32> to vector<16xf32>
    %133 = vector.shape_cast %132 : vector<16xf32> to vector<16x1xf32>
    %134 = tpu.reciprocal %133 {approx = true} : vector<16x1xf32> -> vector<16x1xf32>
    %cst_54 = arith.constant dense<0.000000e+00> : vector<8x8xf32>
    %135 = tpu.matmul %126, %127, %cst_54 {dimension_numbers = #tpu.dot_dimension_numbers<[0], [0], [1], [1], [0, 1, 1, 1], [], []>} : vector<8x8xf32>, vector<8x8xf32>, vector<8x8xf32> -> vector<8x8xf32>
    %cst_55 = arith.constant dense<0.000000e+00> : vector<16x8xf32>
    %136 = tpu.matmul %40, %135, %cst_55 {dimension_numbers = #tpu.dot_dimension_numbers<[1], [0], [0], [1], [0, 0, 1, 1], [], []>} : vector<16x8xf32>, vector<8x8xf32>, vector<16x8xf32> -> vector<16x8xf32>
    %137 = vector.broadcast %134 : vector<16x1xf32> to vector<16x8xf32>
    %138 = arith.mulf %136, %137 : vector<16x8xf32>
    %139 = arith.addf %40, %138 : vector<16x8xf32>
    %140 = vector.extract_strided_slice %108 {offsets = [0, 8], sizes = [8, 8], strides = [1, 1]} : vector<8x32xf32> to vector<8x8xf32>
    %cst_56 = arith.constant dense<0xFF800000> : vector<8xf32>
    %141 = vector.multi_reduction <maximumf>, %140, %cst_56 [1] : vector<8x8xf32> to vector<8xf32>
    %142 = vector.shape_cast %141 : vector<8xf32> to vector<8x1xf32>
    %143 = vector.broadcast %142 : vector<8x1xf32> to vector<8x8xf32>
    %144 = arith.subf %140, %143 : vector<8x8xf32>
    %145 = math.exp %144 : vector<8x8xf32>
    %cst_57 = arith.constant dense<0.000000e+00> : vector<8xf32>
    %146 = vector.multi_reduction <add>, %145, %cst_57 [1] : vector<8x8xf32> to vector<8xf32>
    %147 = vector.shape_cast %146 : vector<8xf32> to vector<8x1xf32>
    %148 = tpu.reciprocal %147 {approx = true} : vector<8x1xf32> -> vector<8x1xf32>
    %149 = vector.broadcast %148 : vector<8x1xf32> to vector<8x8xf32>
    %150 = arith.mulf %145, %149 : vector<8x8xf32>
    %151 = vector.extract_strided_slice %115 {offsets = [0, 8], sizes = [8, 8], strides = [1, 1]} : vector<8x32xf32> to vector<8x8xf32>
    %cst_58 = arith.constant dense<0.000000e+00> : vector<8xf32>
    %152 = vector.multi_reduction <add>, %150, %cst_58 [0] : vector<8x8xf32> to vector<8xf32>
    %153 = vector.shape_cast %152 : vector<8xf32> to vector<1x8xf32>
    %154 = vector.broadcast %153 : vector<1x8xf32> to vector<16x8xf32>
    %155 = arith.mulf %51, %154 : vector<16x8xf32>
    %cst_59 = arith.constant dense<0.000000e+00> : vector<16xf32>
    %156 = vector.multi_reduction <add>, %155, %cst_59 [1] : vector<16x8xf32> to vector<16xf32>
    %157 = vector.shape_cast %156 : vector<16xf32> to vector<16x1xf32>
    %158 = tpu.reciprocal %157 {approx = true} : vector<16x1xf32> -> vector<16x1xf32>
    %cst_60 = arith.constant dense<0.000000e+00> : vector<8x8xf32>
    %159 = tpu.matmul %150, %151, %cst_60 {dimension_numbers = #tpu.dot_dimension_numbers<[0], [0], [1], [1], [0, 1, 1, 1], [], []>} : vector<8x8xf32>, vector<8x8xf32>, vector<8x8xf32> -> vector<8x8xf32>
    %cst_61 = arith.constant dense<0.000000e+00> : vector<16x8xf32>
    %160 = tpu.matmul %51, %159, %cst_61 {dimension_numbers = #tpu.dot_dimension_numbers<[1], [0], [0], [1], [0, 0, 1, 1], [], []>} : vector<16x8xf32>, vector<8x8xf32>, vector<16x8xf32> -> vector<16x8xf32>
    %161 = vector.broadcast %158 : vector<16x1xf32> to vector<16x8xf32>
    %162 = arith.mulf %160, %161 : vector<16x8xf32>
    %163 = arith.addf %51, %162 : vector<16x8xf32>
    %164 = vector.extract_strided_slice %108 {offsets = [0, 16], sizes = [8, 8], strides = [1, 1]} : vector<8x32xf32> to vector<8x8xf32>
    %cst_62 = arith.constant dense<0xFF800000> : vector<8xf32>
    %165 = vector.multi_reduction <maximumf>, %164, %cst_62 [1] : vector<8x8xf32> to vector<8xf32>
    %166 = vector.shape_cast %165 : vector<8xf32> to vector<8x1xf32>
    %167 = vector.broadcast %166 : vector<8x1xf32> to vector<8x8xf32>
    %168 = arith.subf %164, %167 : vector<8x8xf32>
    %169 = math.exp %168 : vector<8x8xf32>
    %cst_63 = arith.constant dense<0.000000e+00> : vector<8xf32>
    %170 = vector.multi_reduction <add>, %169, %cst_63 [1] : vector<8x8xf32> to vector<8xf32>
    %171 = vector.shape_cast %170 : vector<8xf32> to vector<8x1xf32>
    %172 = tpu.reciprocal %171 {approx = true} : vector<8x1xf32> -> vector<8x1xf32>
    %173 = vector.broadcast %172 : vector<8x1xf32> to vector<8x8xf32>
    %174 = arith.mulf %169, %173 : vector<8x8xf32>
    %175 = vector.extract_strided_slice %115 {offsets = [0, 16], sizes = [8, 8], strides = [1, 1]} : vector<8x32xf32> to vector<8x8xf32>
    %cst_64 = arith.constant dense<0.000000e+00> : vector<8xf32>
    %176 = vector.multi_reduction <add>, %174, %cst_64 [0] : vector<8x8xf32> to vector<8xf32>
    %177 = vector.shape_cast %176 : vector<8xf32> to vector<1x8xf32>
    %178 = vector.broadcast %177 : vector<1x8xf32> to vector<16x8xf32>
    %179 = arith.mulf %62, %178 : vector<16x8xf32>
    %cst_65 = arith.constant dense<0.000000e+00> : vector<16xf32>
    %180 = vector.multi_reduction <add>, %179, %cst_65 [1] : vector<16x8xf32> to vector<16xf32>
    %181 = vector.shape_cast %180 : vector<16xf32> to vector<16x1xf32>
    %182 = tpu.reciprocal %181 {approx = true} : vector<16x1xf32> -> vector<16x1xf32>
    %cst_66 = arith.constant dense<0.000000e+00> : vector<8x8xf32>
    %183 = tpu.matmul %174, %175, %cst_66 {dimension_numbers = #tpu.dot_dimension_numbers<[0], [0], [1], [1], [0, 1, 1, 1], [], []>} : vector<8x8xf32>, vector<8x8xf32>, vector<8x8xf32> -> vector<8x8xf32>
    %cst_67 = arith.constant dense<0.000000e+00> : vector<16x8xf32>
    %184 = tpu.matmul %62, %183, %cst_67 {dimension_numbers = #tpu.dot_dimension_numbers<[1], [0], [0], [1], [0, 0, 1, 1], [], []>} : vector<16x8xf32>, vector<8x8xf32>, vector<16x8xf32> -> vector<16x8xf32>
    %185 = vector.broadcast %182 : vector<16x1xf32> to vector<16x8xf32>
    %186 = arith.mulf %184, %185 : vector<16x8xf32>
    %187 = arith.addf %62, %186 : vector<16x8xf32>
    %188 = vector.extract_strided_slice %108 {offsets = [0, 24], sizes = [8, 8], strides = [1, 1]} : vector<8x32xf32> to vector<8x8xf32>
    %cst_68 = arith.constant dense<0xFF800000> : vector<8xf32>
    %189 = vector.multi_reduction <maximumf>, %188, %cst_68 [1] : vector<8x8xf32> to vector<8xf32>
    %190 = vector.shape_cast %189 : vector<8xf32> to vector<8x1xf32>
    %191 = vector.broadcast %190 : vector<8x1xf32> to vector<8x8xf32>
    %192 = arith.subf %188, %191 : vector<8x8xf32>
    %193 = math.exp %192 : vector<8x8xf32>
    %cst_69 = arith.constant dense<0.000000e+00> : vector<8xf32>
    %194 = vector.multi_reduction <add>, %193, %cst_69 [1] : vector<8x8xf32> to vector<8xf32>
    %195 = vector.shape_cast %194 : vector<8xf32> to vector<8x1xf32>
    %196 = tpu.reciprocal %195 {approx = true} : vector<8x1xf32> -> vector<8x1xf32>
    %197 = vector.broadcast %196 : vector<8x1xf32> to vector<8x8xf32>
    %198 = arith.mulf %193, %197 : vector<8x8xf32>
    %199 = vector.extract_strided_slice %115 {offsets = [0, 24], sizes = [8, 8], strides = [1, 1]} : vector<8x32xf32> to vector<8x8xf32>
    %cst_70 = arith.constant dense<0.000000e+00> : vector<8xf32>
    %200 = vector.multi_reduction <add>, %198, %cst_70 [0] : vector<8x8xf32> to vector<8xf32>
    %201 = vector.shape_cast %200 : vector<8xf32> to vector<1x8xf32>
    %202 = vector.broadcast %201 : vector<1x8xf32> to vector<16x8xf32>
    %203 = arith.mulf %73, %202 : vector<16x8xf32>
    %cst_71 = arith.constant dense<0.000000e+00> : vector<16xf32>
    %204 = vector.multi_reduction <add>, %203, %cst_71 [1] : vector<16x8xf32> to vector<16xf32>
    %205 = vector.shape_cast %204 : vector<16xf32> to vector<16x1xf32>
    %206 = tpu.reciprocal %205 {approx = true} : vector<16x1xf32> -> vector<16x1xf32>
    %cst_72 = arith.constant dense<0.000000e+00> : vector<8x8xf32>
    %207 = tpu.matmul %198, %199, %cst_72 {dimension_numbers = #tpu.dot_dimension_numbers<[0], [0], [1], [1], [0, 1, 1, 1], [], []>} : vector<8x8xf32>, vector<8x8xf32>, vector<8x8xf32> -> vector<8x8xf32>
    %cst_73 = arith.constant dense<0.000000e+00> : vector<16x8xf32>
    %208 = tpu.matmul %73, %207, %cst_73 {dimension_numbers = #tpu.dot_dimension_numbers<[1], [0], [0], [1], [0, 0, 1, 1], [], []>} : vector<16x8xf32>, vector<8x8xf32>, vector<16x8xf32> -> vector<16x8xf32>
    %209 = vector.broadcast %206 : vector<16x1xf32> to vector<16x8xf32>
    %210 = arith.mulf %208, %209 : vector<16x8xf32>
    %211 = arith.addf %73, %210 : vector<16x8xf32>
    %c0_74 = arith.constant 0 : index
    %c0_75 = arith.constant 0 : index
    %212 = vector.load %arg13[%c0_74, %c0_75] : memref<32x32xf32, #tpu.memory_space<vmem>>, vector<32x32xf32>
    %c0_76 = arith.constant 0 : index
    %c0_77 = arith.constant 0 : index
    %213 = vector.load %arg14[%c0_76, %c0_77] : memref<1x32xf32, #tpu.memory_space<vmem>>, vector<1x32xf32>
    %214 = vector.extract_strided_slice %212 {offsets = [0, 0], sizes = [8, 32], strides = [1, 1]} : vector<32x32xf32> to vector<8x32xf32>
    %cst_78 = arith.constant dense<0.000000e+00> : vector<16x32xf32>
    %215 = tpu.matmul %139, %214, %cst_78 {dimension_numbers = #tpu.dot_dimension_numbers<[1], [0], [0], [1], [0, 0, 1, 1], [], []>} : vector<16x8xf32>, vector<8x32xf32>, vector<16x32xf32> -> vector<16x32xf32>
    %216 = vector.broadcast %213 : vector<1x32xf32> to vector<16x32xf32>
    %217 = arith.addf %216, %215 : vector<16x32xf32>
    %218 = vector.extract_strided_slice %212 {offsets = [8, 0], sizes = [8, 32], strides = [1, 1]} : vector<32x32xf32> to vector<8x32xf32>
    %cst_79 = arith.constant dense<0.000000e+00> : vector<16x32xf32>
    %219 = tpu.matmul %163, %218, %cst_79 {dimension_numbers = #tpu.dot_dimension_numbers<[1], [0], [0], [1], [0, 0, 1, 1], [], []>} : vector<16x8xf32>, vector<8x32xf32>, vector<16x32xf32> -> vector<16x32xf32>
    %220 = arith.addf %217, %219 : vector<16x32xf32>
    %221 = vector.extract_strided_slice %212 {offsets = [16, 0], sizes = [8, 32], strides = [1, 1]} : vector<32x32xf32> to vector<8x32xf32>
    %cst_80 = arith.constant dense<0.000000e+00> : vector<16x32xf32>
    %222 = tpu.matmul %187, %221, %cst_80 {dimension_numbers = #tpu.dot_dimension_numbers<[1], [0], [0], [1], [0, 0, 1, 1], [], []>} : vector<16x8xf32>, vector<8x32xf32>, vector<16x32xf32> -> vector<16x32xf32>
    %223 = arith.addf %220, %222 : vector<16x32xf32>
    %224 = vector.extract_strided_slice %212 {offsets = [24, 0], sizes = [8, 32], strides = [1, 1]} : vector<32x32xf32> to vector<8x32xf32>
    %cst_81 = arith.constant dense<0.000000e+00> : vector<16x32xf32>
    %225 = tpu.matmul %211, %224, %cst_81 {dimension_numbers = #tpu.dot_dimension_numbers<[1], [0], [0], [1], [0, 0, 1, 1], [], []>} : vector<16x8xf32>, vector<8x32xf32>, vector<16x32xf32> -> vector<16x32xf32>
    %226 = arith.addf %223, %225 : vector<16x32xf32>
    %227 = arith.addf %0, %226 : vector<16x32xf32>
    %c0_82 = arith.constant 0 : index
    %c0_83 = arith.constant 0 : index
    %228 = vector.load %arg15[%c0_82, %c0_83] : memref<16x32xf32, #tpu.memory_space<vmem>>, vector<16x32xf32>
    tpu.vector_store %arg15[%c0_82, %c0_83], %227 {strides = array<i32>} : memref<16x32xf32, #tpu.memory_space<vmem>>, vector<16x32xf32>,
    return
  }
  func.func @transform_0(%arg0: i32) -> (i32, i32) {
    %c0_i32 = arith.constant 0 : i32
    %c0_i32_0 = arith.constant 0 : i32
    return %arg0, %c0_i32 : i32, i32
  }
  func.func @transform_1(%arg0: i32) -> (i32, i32, i32) {
    %c0_i32 = arith.constant 0 : i32
    %c0_i32_0 = arith.constant 0 : i32
    %c0_i32_1 = arith.constant 0 : i32
    %c0_i32_2 = arith.constant 0 : i32
    return %c0_i32, %c0_i32_0, %c0_i32_1 : i32, i32, i32
  }
  func.func @transform_2(%arg0: i32) -> (i32, i32) {
    %c0_i32 = arith.constant 0 : i32
    %c0_i32_0 = arith.constant 0 : i32
    %c0_i32_1 = arith.constant 0 : i32
    return %c0_i32, %c0_i32_0 : i32, i32
  }
  func.func @transform_3(%arg0: i32) -> (i32, i32) {
    %c0_i32 = arith.constant 0 : i32
    %c0_i32_0 = arith.constant 0 : i32
    %c0_i32_1 = arith.constant 0 : i32
    return %c0_i32, %c0_i32_0 : i32, i32
  }
  func.func @transform_4(%arg0: i32) -> (i32, i32, i32) {
    %c0_i32 = arith.constant 0 : i32
    %c0_i32_0 = arith.constant 0 : i32
    %c0_i32_1 = arith.constant 0 : i32
    %c0_i32_2 = arith.constant 0 : i32
    return %c0_i32, %c0_i32_0, %c0_i32_1 : i32, i32, i32
  }
  func.func @transform_5(%arg0: i32) -> (i32, i32, i32) {
    %c0_i32 = arith.constant 0 : i32
    %c0_i32_0 = arith.constant 0 : i32
    %c0_i32_1 = arith.constant 0 : i32
    %c0_i32_2 = arith.constant 0 : i32
    return %c0_i32, %c0_i32_0, %c0_i32_1 : i32, i32, i32
  }
  func.func @transform_6(%arg0: i32) -> (i32, i32) {
    %c0_i32 = arith.constant 0 : i32
    %c0_i32_0 = arith.constant 0 : i32
    %c0_i32_1 = arith.constant 0 : i32
    return %c0_i32, %c0_i32_0 : i32, i32
  }
  func.func @transform_7(%arg0: i32) -> (i32, i32) {
    %c0_i32 = arith.constant 0 : i32
    %c0_i32_0 = arith.constant 0 : i32
    %c0_i32_1 = arith.constant 0 : i32
    return %c0_i32, %c0_i32_0 : i32, i32
  }
  func.func @transform_8(%arg0: i32) -> (i32, i32, i32) {
    %c0_i32 = arith.constant 0 : i32
    %c0_i32_0 = arith.constant 0 : i32
    %c0_i32_1 = arith.constant 0 : i32
    %c0_i32_2 = arith.constant 0 : i32
    return %c0_i32, %c0_i32_0, %c0_i32_1 : i32, i32, i32
  }
  func.func @transform_9(%arg0: i32) -> (i32, i32, i32) {
    %c0_i32 = arith.constant 0 : i32
    %c0_i32_0 = arith.constant 0 : i32
    %c0_i32_1 = arith.constant 0 : i32
    %c0_i32_2 = arith.constant 0 : i32
    return %c0_i32, %c0_i32_0, %c0_i32_1 : i32, i32, i32
  }
  func.func @transform_10(%arg0: i32) -> (i32, i32, i32) {
    %c0_i32 = arith.constant 0 : i32
    %c0_i32_0 = arith.constant 0 : i32
    %c0_i32_1 = arith.constant 0 : i32
    %c0_i32_2 = arith.constant 0 : i32
    return %c0_i32, %c0_i32_0, %c0_i32_1 : i32, i32, i32
  }
  func.func @transform_11(%arg0: i32) -> (i32, i32, i32) {
    %c0_i32 = arith.constant 0 : i32
    %c0_i32_0 = arith.constant 0 : i32
    %c0_i32_1 = arith.constant 0 : i32
    %c0_i32_2 = arith.constant 0 : i32
    return %c0_i32, %c0_i32_0, %c0_i32_1 : i32, i32, i32
  }
  func.func @transform_12(%arg0: i32) -> (i32, i32) {
    %c0_i32 = arith.constant 0 : i32
    %c0_i32_0 = arith.constant 0 : i32
    %c0_i32_1 = arith.constant 0 : i32
    return %c0_i32, %c0_i32_0 : i32, i32
  }
  func.func @transform_13(%arg0: i32) -> (i32, i32) {
    %c0_i32 = arith.constant 0 : i32
    %c0_i32_0 = arith.constant 0 : i32
    %c0_i32_1 = arith.constant 0 : i32
    return %c0_i32, %c0_i32_0 : i32, i32
  }
  func.func @transform_14(%arg0: i32) -> (i32, i32) {
    %c0_i32 = arith.constant 0 : i32
    %c0_i32_0 = arith.constant 0 : i32
    return %arg0, %c0_i32 : i32, i32
  }
}

module attributes {stable_mosaic.version = 11 : i64} {
  func.func @_moe_kernel(%arg0: i32, %arg1: memref<16x32xf32, #tpu.memory_space<vmem>>, %arg2: memref<16x2xf32, #tpu.memory_space<vmem>>, %arg3: memref<2x32x32xf32, #tpu.memory_space<vmem>>, %arg4: memref<2x1x32xf32, #tpu.memory_space<vmem>>, %arg5: memref<2x32x32xf32, #tpu.memory_space<vmem>>, %arg6: memref<2x1x32xf32, #tpu.memory_space<vmem>>, %arg7: memref<1x32xf32, #tpu.memory_space<vmem>>, %arg8: memref<1x32xf32, #tpu.memory_space<vmem>>, %arg9: memref<16x32xf32, #tpu.memory_space<vmem>>) attributes {dimension_semantics = [#tpu.dimension_semantics<parallel>], iteration_bounds = array<i64: 1>, scalar_prefetch = 0 : i64, scratch_operands = 0 : i64, tpu.core_type = #tpu.core_type<tc>, window_params = [{transform_indices = @transform_0, window_bounds = array<i64: 16, 32>}, {transform_indices = @transform_1, window_bounds = array<i64: 16, 2>}, {pipeline_mode = #tpu.pipeline_mode<synchronous>, transform_indices = @transform_2, window_bounds = array<i64: 2, 32, 32>}, {pipeline_mode = #tpu.pipeline_mode<synchronous>, transform_indices = @transform_3, window_bounds = array<i64: 2, 1, 32>}, {pipeline_mode = #tpu.pipeline_mode<synchronous>, transform_indices = @transform_4, window_bounds = array<i64: 2, 32, 32>}, {pipeline_mode = #tpu.pipeline_mode<synchronous>, transform_indices = @transform_5, window_bounds = array<i64: 2, 1, 32>}, {pipeline_mode = #tpu.pipeline_mode<synchronous>, transform_indices = @transform_6, window_bounds = array<i64: 1, 32>}, {pipeline_mode = #tpu.pipeline_mode<synchronous>, transform_indices = @transform_7, window_bounds = array<i64: 1, 32>}, {transform_indices = @transform_8, window_bounds = array<i64: 16, 32>}]} {
    %c0 = arith.constant 0 : index
    %c0_0 = arith.constant 0 : index
    %0 = vector.load %arg1[%c0, %c0_0] : memref<16x32xf32, #tpu.memory_space<vmem>>, vector<16x32xf32>
    %c0_1 = arith.constant 0 : index
    %c0_2 = arith.constant 0 : index
    %1 = vector.load %arg2[%c0_1, %c0_2] : memref<16x2xf32, #tpu.memory_space<vmem>>, vector<16x2xf32>
    %cst = arith.constant 0.000000e+00 : f32
    %2 = vector.broadcast %cst : f32 to vector<16x32xf32>
    %c0_3 = arith.constant 0 : index
    %c0_4 = arith.constant 0 : index
    %c0_5 = arith.constant 0 : index
    %3 = vector.load %arg3[%c0_3, %c0_4, %c0_5] : memref<2x32x32xf32, #tpu.memory_space<vmem>>, vector<1x32x32xf32>
    %4 = vector.shape_cast %3 : vector<1x32x32xf32> to vector<32x32xf32>
    %cst_6 = arith.constant dense<0.000000e+00> : vector<16x32xf32>
    %5 = tpu.matmul %0, %4, %cst_6 {dimension_numbers = #tpu.dot_dimension_numbers<[1], [0], [0], [1], [0, 0, 1, 1], [], []>} : vector<16x32xf32>, vector<32x32xf32>, vector<16x32xf32> -> vector<16x32xf32>
    %c0_7 = arith.constant 0 : index
    %c0_8 = arith.constant 0 : index
    %c0_9 = arith.constant 0 : index
    %6 = vector.load %arg4[%c0_7, %c0_8, %c0_9] : memref<2x1x32xf32, #tpu.memory_space<vmem>>, vector<1x1x32xf32>
    %7 = vector.shape_cast %6 : vector<1x1x32xf32> to vector<1x32xf32>
    %8 = vector.broadcast %7 : vector<1x32xf32> to vector<16x32xf32>
    %9 = arith.addf %5, %8 : vector<16x32xf32>
    %cst_10 = arith.constant 5.000000e-01 : f32
    %10 = vector.broadcast %cst_10 : f32 to vector<16x32xf32>
    %11 = arith.mulf %10, %9 : vector<16x32xf32>
    %cst_11 = arith.constant 0.707106769 : f32
    %12 = vector.broadcast %cst_11 : f32 to vector<16x32xf32>
    %13 = arith.mulf %9, %12 : vector<16x32xf32>
    %14 = math.erf %13 : vector<16x32xf32>
    %cst_12 = arith.constant 1.000000e+00 : f32
    %15 = vector.broadcast %cst_12 : f32 to vector<16x32xf32>
    %16 = arith.addf %15, %14 : vector<16x32xf32>
    %17 = arith.mulf %11, %16 : vector<16x32xf32>
    %c0_13 = arith.constant 0 : index
    %c0_14 = arith.constant 0 : index
    %c0_15 = arith.constant 0 : index
    %18 = vector.load %arg5[%c0_13, %c0_14, %c0_15] : memref<2x32x32xf32, #tpu.memory_space<vmem>>, vector<1x32x32xf32>
    %19 = vector.shape_cast %18 : vector<1x32x32xf32> to vector<32x32xf32>
    %cst_16 = arith.constant dense<0.000000e+00> : vector<16x32xf32>
    %20 = tpu.matmul %17, %19, %cst_16 {dimension_numbers = #tpu.dot_dimension_numbers<[1], [0], [0], [1], [0, 0, 1, 1], [], []>} : vector<16x32xf32>, vector<32x32xf32>, vector<16x32xf32> -> vector<16x32xf32>
    %c0_17 = arith.constant 0 : index
    %c0_18 = arith.constant 0 : index
    %c0_19 = arith.constant 0 : index
    %21 = vector.load %arg6[%c0_17, %c0_18, %c0_19] : memref<2x1x32xf32, #tpu.memory_space<vmem>>, vector<1x1x32xf32>
    %22 = vector.shape_cast %21 : vector<1x1x32xf32> to vector<1x32xf32>
    %23 = vector.broadcast %22 : vector<1x32xf32> to vector<16x32xf32>
    %24 = arith.addf %20, %23 : vector<16x32xf32>
    %25 = vector.extract_strided_slice %1 {offsets = [0, 0], sizes = [16, 1], strides = [1, 1]} : vector<16x2xf32> to vector<16x1xf32>
    %26 = vector.broadcast %25 : vector<16x1xf32> to vector<16x32xf32>
    %27 = arith.mulf %24, %26 : vector<16x32xf32>
    %28 = arith.addf %2, %27 : vector<16x32xf32>
    %c1 = arith.constant 1 : index
    %c0_20 = arith.constant 0 : index
    %c0_21 = arith.constant 0 : index
    %29 = vector.load %arg3[%c1, %c0_20, %c0_21] : memref<2x32x32xf32, #tpu.memory_space<vmem>>, vector<1x32x32xf32>
    %30 = vector.shape_cast %29 : vector<1x32x32xf32> to vector<32x32xf32>
    %cst_22 = arith.constant dense<0.000000e+00> : vector<16x32xf32>
    %31 = tpu.matmul %0, %30, %cst_22 {dimension_numbers = #tpu.dot_dimension_numbers<[1], [0], [0], [1], [0, 0, 1, 1], [], []>} : vector<16x32xf32>, vector<32x32xf32>, vector<16x32xf32> -> vector<16x32xf32>
    %c1_23 = arith.constant 1 : index
    %c0_24 = arith.constant 0 : index
    %c0_25 = arith.constant 0 : index
    %32 = vector.load %arg4[%c1_23, %c0_24, %c0_25] : memref<2x1x32xf32, #tpu.memory_space<vmem>>, vector<1x1x32xf32>
    %33 = vector.shape_cast %32 : vector<1x1x32xf32> to vector<1x32xf32>
    %34 = vector.broadcast %33 : vector<1x32xf32> to vector<16x32xf32>
    %35 = arith.addf %31, %34 : vector<16x32xf32>
    %cst_26 = arith.constant 5.000000e-01 : f32
    %36 = vector.broadcast %cst_26 : f32 to vector<16x32xf32>
    %37 = arith.mulf %36, %35 : vector<16x32xf32>
    %cst_27 = arith.constant 0.707106769 : f32
    %38 = vector.broadcast %cst_27 : f32 to vector<16x32xf32>
    %39 = arith.mulf %35, %38 : vector<16x32xf32>
    %40 = math.erf %39 : vector<16x32xf32>
    %cst_28 = arith.constant 1.000000e+00 : f32
    %41 = vector.broadcast %cst_28 : f32 to vector<16x32xf32>
    %42 = arith.addf %41, %40 : vector<16x32xf32>
    %43 = arith.mulf %37, %42 : vector<16x32xf32>
    %c1_29 = arith.constant 1 : index
    %c0_30 = arith.constant 0 : index
    %c0_31 = arith.constant 0 : index
    %44 = vector.load %arg5[%c1_29, %c0_30, %c0_31] : memref<2x32x32xf32, #tpu.memory_space<vmem>>, vector<1x32x32xf32>
    %45 = vector.shape_cast %44 : vector<1x32x32xf32> to vector<32x32xf32>
    %cst_32 = arith.constant dense<0.000000e+00> : vector<16x32xf32>
    %46 = tpu.matmul %43, %45, %cst_32 {dimension_numbers = #tpu.dot_dimension_numbers<[1], [0], [0], [1], [0, 0, 1, 1], [], []>} : vector<16x32xf32>, vector<32x32xf32>, vector<16x32xf32> -> vector<16x32xf32>
    %c1_33 = arith.constant 1 : index
    %c0_34 = arith.constant 0 : index
    %c0_35 = arith.constant 0 : index
    %47 = vector.load %arg6[%c1_33, %c0_34, %c0_35] : memref<2x1x32xf32, #tpu.memory_space<vmem>>, vector<1x1x32xf32>
    %48 = vector.shape_cast %47 : vector<1x1x32xf32> to vector<1x32xf32>
    %49 = vector.broadcast %48 : vector<1x32xf32> to vector<16x32xf32>
    %50 = arith.addf %46, %49 : vector<16x32xf32>
    %51 = vector.extract_strided_slice %1 {offsets = [0, 1], sizes = [16, 1], strides = [1, 1]} : vector<16x2xf32> to vector<16x1xf32>
    %52 = vector.broadcast %51 : vector<16x1xf32> to vector<16x32xf32>
    %53 = arith.mulf %50, %52 : vector<16x32xf32>
    %54 = arith.addf %28, %53 : vector<16x32xf32>
    %c0_36 = arith.constant 0 : index
    %c0_37 = arith.constant 0 : index
    %55 = vector.load %arg7[%c0_36, %c0_37] : memref<1x32xf32, #tpu.memory_space<vmem>>, vector<1x32xf32>
    %c0_38 = arith.constant 0 : index
    %c0_39 = arith.constant 0 : index
    %56 = vector.load %arg8[%c0_38, %c0_39] : memref<1x32xf32, #tpu.memory_space<vmem>>, vector<1x32xf32>
    %cst_40 = arith.constant dense<0.000000e+00> : vector<16xf32>
    %57 = vector.multi_reduction <add>, %54, %cst_40 [1] : vector<16x32xf32> to vector<16xf32>
    %58 = vector.shape_cast %57 : vector<16xf32> to vector<16x1xf32>
    %cst_41 = arith.constant 3.200000e+01 : f32
    %59 = vector.broadcast %cst_41 : f32 to vector<16x1xf32>
    %60 = arith.divf %58, %59 : vector<16x1xf32>
    %61 = vector.broadcast %60 : vector<16x1xf32> to vector<16x32xf32>
    %62 = arith.subf %54, %61 : vector<16x32xf32>
    %63 = arith.mulf %62, %62 : vector<16x32xf32>
    %cst_42 = arith.constant dense<0.000000e+00> : vector<16xf32>
    %64 = vector.multi_reduction <add>, %63, %cst_42 [1] : vector<16x32xf32> to vector<16xf32>
    %65 = vector.shape_cast %64 : vector<16xf32> to vector<16x1xf32>
    %cst_43 = arith.constant 3.200000e+01 : f32
    %66 = vector.broadcast %cst_43 : f32 to vector<16x1xf32>
    %67 = arith.divf %65, %66 : vector<16x1xf32>
    %68 = vector.broadcast %60 : vector<16x1xf32> to vector<16x32xf32>
    %69 = arith.subf %54, %68 : vector<16x32xf32>
    %cst_44 = arith.constant 9.99999974E-6 : f32
    %70 = vector.broadcast %cst_44 : f32 to vector<16x1xf32>
    %71 = arith.addf %67, %70 : vector<16x1xf32>
    %72 = math.rsqrt %71 : vector<16x1xf32>
    %73 = vector.broadcast %72 : vector<16x1xf32> to vector<16x32xf32>
    %74 = arith.mulf %69, %73 : vector<16x32xf32>
    %75 = vector.broadcast %55 : vector<1x32xf32> to vector<16x32xf32>
    %76 = arith.mulf %74, %75 : vector<16x32xf32>
    %77 = vector.broadcast %56 : vector<1x32xf32> to vector<16x32xf32>
    %78 = arith.addf %76, %77 : vector<16x32xf32>
    %79 = arith.addf %0, %78 : vector<16x32xf32>
    %c0_45 = arith.constant 0 : index
    %c0_46 = arith.constant 0 : index
    %80 = vector.load %arg9[%c0_45, %c0_46] : memref<16x32xf32, #tpu.memory_space<vmem>>, vector<16x32xf32>
    tpu.vector_store %arg9[%c0_45, %c0_46], %79 {strides = array<i32>} : memref<16x32xf32, #tpu.memory_space<vmem>>, vector<16x32xf32>,
    return
  }
  func.func @transform_0(%arg0: i32) -> (i32, i32) {
    %c0_i32 = arith.constant 0 : i32
    %c0_i32_0 = arith.constant 0 : i32
    return %arg0, %c0_i32 : i32, i32
  }
  func.func @transform_1(%arg0: i32) -> (i32, i32) {
    %c0_i32 = arith.constant 0 : i32
    %c0_i32_0 = arith.constant 0 : i32
    return %arg0, %c0_i32 : i32, i32
  }
  func.func @transform_2(%arg0: i32) -> (i32, i32, i32) {
    %c0_i32 = arith.constant 0 : i32
    %c0_i32_0 = arith.constant 0 : i32
    %c0_i32_1 = arith.constant 0 : i32
    %c0_i32_2 = arith.constant 0 : i32
    return %c0_i32, %c0_i32_0, %c0_i32_1 : i32, i32, i32
  }
  func.func @transform_3(%arg0: i32) -> (i32, i32, i32) {
    %c0_i32 = arith.constant 0 : i32
    %c0_i32_0 = arith.constant 0 : i32
    %c0_i32_1 = arith.constant 0 : i32
    %c0_i32_2 = arith.constant 0 : i32
    return %c0_i32, %c0_i32_0, %c0_i32_1 : i32, i32, i32
  }
  func.func @transform_4(%arg0: i32) -> (i32, i32, i32) {
    %c0_i32 = arith.constant 0 : i32
    %c0_i32_0 = arith.constant 0 : i32
    %c0_i32_1 = arith.constant 0 : i32
    %c0_i32_2 = arith.constant 0 : i32
    return %c0_i32, %c0_i32_0, %c0_i32_1 : i32, i32, i32
  }
  func.func @transform_5(%arg0: i32) -> (i32, i32, i32) {
    %c0_i32 = arith.constant 0 : i32
    %c0_i32_0 = arith.constant 0 : i32
    %c0_i32_1 = arith.constant 0 : i32
    %c0_i32_2 = arith.constant 0 : i32
    return %c0_i32, %c0_i32_0, %c0_i32_1 : i32, i32, i32
  }
  func.func @transform_6(%arg0: i32) -> (i32, i32) {
    %c0_i32 = arith.constant 0 : i32
    %c0_i32_0 = arith.constant 0 : i32
    %c0_i32_1 = arith.constant 0 : i32
    return %c0_i32, %c0_i32_0 : i32, i32
  }
  func.func @transform_7(%arg0: i32) -> (i32, i32) {
    %c0_i32 = arith.constant 0 : i32
    %c0_i32_0 = arith.constant 0 : i32
    %c0_i32_1 = arith.constant 0 : i32
    return %c0_i32, %c0_i32_0 : i32, i32
  }
  func.func @transform_8(%arg0: i32) -> (i32, i32) {
    %c0_i32 = arith.constant 0 : i32
    %c0_i32_0 = arith.constant 0 : i32
    return %arg0, %c0_i32 : i32, i32
  }
}

module attributes {stable_mosaic.version = 11 : i64} {
  func.func @_matmul_kernel(%arg0: i32, %arg1: i32, %arg2: i32, %arg3: memref<16x32xf32, #tpu.memory_space<vmem>>, %arg4: memref<32x32xf32, #tpu.memory_space<vmem>>, %arg5: memref<1x32xf32, #tpu.memory_space<vmem>>, %arg6: memref<16x32xf32, #tpu.memory_space<vmem>>, %arg7: memref<16x32xf32, #tpu.memory_space<vmem>>) attributes {dimension_semantics = [#tpu.dimension_semantics<parallel>, #tpu.dimension_semantics<parallel>, #tpu.dimension_semantics<arbitrary>], iteration_bounds = array<i64: 1, 1, 1>, scalar_prefetch = 0 : i64, scratch_operands = 1 : i64, tpu.core_type = #tpu.core_type<tc>, window_params = [{transform_indices = @transform_0, window_bounds = array<i64: 16, 32>}, {transform_indices = @transform_1, window_bounds = array<i64: 32, 32>}, {transform_indices = @transform_2, window_bounds = array<i64: 1, 32>}, {transform_indices = @transform_3, window_bounds = array<i64: 16, 32>}]} {
    %c0_i32 = arith.constant 0 : i32
    %0 = arith.cmpi eq, %arg2, %c0_i32 : i32
    %1 = arith.extui %0 : i1 to i32
    %c0_i32_0 = arith.constant 0 : i32
    %2 = arith.cmpi ne, %1, %c0_i32_0 : i32
    scf.if %2 {
      %cst_10 = arith.constant 0.000000e+00 : f32
      %12 = vector.broadcast %cst_10 : f32 to vector<16x32xf32>
      %c0_11 = arith.constant 0 : index
      %c0_12 = arith.constant 0 : index
      %13 = vector.load %arg7[%c0_11, %c0_12] : memref<16x32xf32, #tpu.memory_space<vmem>>, vector<16x32xf32>
      tpu.vector_store %arg7[%c0_11, %c0_12], %12 {strides = array<i32>} : memref<16x32xf32, #tpu.memory_space<vmem>>, vector<16x32xf32>,
    } else {
    }
    %c0 = arith.constant 0 : index
    %c0_1 = arith.constant 0 : index
    %3 = vector.load %arg7[%c0, %c0_1] : memref<16x32xf32, #tpu.memory_space<vmem>>, vector<16x32xf32>
    %c0_2 = arith.constant 0 : index
    %c0_3 = arith.constant 0 : index
    %4 = vector.load %arg3[%c0_2, %c0_3] : memref<16x32xf32, #tpu.memory_space<vmem>>, vector<16x32xf32>
    %c0_4 = arith.constant 0 : index
    %c0_5 = arith.constant 0 : index
    %5 = vector.load %arg4[%c0_4, %c0_5] : memref<32x32xf32, #tpu.memory_space<vmem>>, vector<32x32xf32>
    %cst = arith.constant dense<0.000000e+00> : vector<16x32xf32>
    %6 = tpu.matmul %4, %5, %cst {dimension_numbers = #tpu.dot_dimension_numbers<[1], [0], [0], [1], [0, 0, 1, 1], [], []>} : vector<16x32xf32>, vector<32x32xf32>, vector<16x32xf32> -> vector<16x32xf32>
    %7 = arith.addf %3, %6 : vector<16x32xf32>
    %c0_6 = arith.constant 0 : index
    %c0_7 = arith.constant 0 : index
    %8 = vector.load %arg7[%c0_6, %c0_7] : memref<16x32xf32, #tpu.memory_space<vmem>>, vector<16x32xf32>
    tpu.vector_store %arg7[%c0_6, %c0_7], %7 {strides = array<i32>} : memref<16x32xf32, #tpu.memory_space<vmem>>, vector<16x32xf32>,
    %c0_i32_8 = arith.constant 0 : i32
    %9 = arith.cmpi eq, %arg2, %c0_i32_8 : i32
    %10 = arith.extui %9 : i1 to i32
    %c0_i32_9 = arith.constant 0 : i32
    %11 = arith.cmpi ne, %10, %c0_i32_9 : i32
    scf.if %11 {
      %c0_10 = arith.constant 0 : index
      %c0_11 = arith.constant 0 : index
      %12 = vector.load %arg7[%c0_10, %c0_11] : memref<16x32xf32, #tpu.memory_space<vmem>>, vector<16x32xf32>
      %c0_12 = arith.constant 0 : index
      %c0_13 = arith.constant 0 : index
      %13 = vector.load %arg5[%c0_12, %c0_13] : memref<1x32xf32, #tpu.memory_space<vmem>>, vector<1x32xf32>
      %14 = vector.broadcast %13 : vector<1x32xf32> to vector<16x32xf32>
      %15 = arith.addf %12, %14 : vector<16x32xf32>
      %cst_14 = arith.constant 5.000000e-01 : f32
      %16 = vector.broadcast %cst_14 : f32 to vector<16x32xf32>
      %17 = arith.mulf %16, %15 : vector<16x32xf32>
      %cst_15 = arith.constant 0.707106769 : f32
      %18 = vector.broadcast %cst_15 : f32 to vector<16x32xf32>
      %19 = arith.mulf %15, %18 : vector<16x32xf32>
      %20 = math.erf %19 : vector<16x32xf32>
      %cst_16 = arith.constant 1.000000e+00 : f32
      %21 = vector.broadcast %cst_16 : f32 to vector<16x32xf32>
      %22 = arith.addf %21, %20 : vector<16x32xf32>
      %23 = arith.mulf %17, %22 : vector<16x32xf32>
      %c0_17 = arith.constant 0 : index
      %c0_18 = arith.constant 0 : index
      %24 = vector.load %arg6[%c0_17, %c0_18] : memref<16x32xf32, #tpu.memory_space<vmem>>, vector<16x32xf32>
      tpu.vector_store %arg6[%c0_17, %c0_18], %23 {strides = array<i32>} : memref<16x32xf32, #tpu.memory_space<vmem>>, vector<16x32xf32>,
    } else {
    }
    return
  }
  func.func @transform_0(%arg0: i32, %arg1: i32, %arg2: i32) -> (i32, i32) {
    %c0_i32 = arith.constant 0 : i32
    return %arg0, %arg2 : i32, i32
  }
  func.func @transform_1(%arg0: i32, %arg1: i32, %arg2: i32) -> (i32, i32) {
    %c0_i32 = arith.constant 0 : i32
    return %arg2, %arg1 : i32, i32
  }
  func.func @transform_2(%arg0: i32, %arg1: i32, %arg2: i32) -> (i32, i32) {
    %c0_i32 = arith.constant 0 : i32
    %c0_i32_0 = arith.constant 0 : i32
    return %c0_i32, %arg1 : i32, i32
  }
  func.func @transform_3(%arg0: i32, %arg1: i32, %arg2: i32) -> (i32, i32) {
    %c0_i32 = arith.constant 0 : i32
    return %arg0, %arg1 : i32, i32
  }
}

module attributes {stable_mosaic.version = 11 : i64} {
  func.func @_self_attn_kernel(%arg0: i32, %arg1: memref<16x32xf32, #tpu.memory_space<vmem>>, %arg2: memref<16x32xf32, #tpu.memory_space<vmem>>, %arg3: memref<1x32xf32, #tpu.memory_space<vmem>>, %arg4: memref<1x32xf32, #tpu.memory_space<vmem>>, %arg5: memref<32x32xf32, #tpu.memory_space<vmem>>, %arg6: memref<1x32xf32, #tpu.memory_space<vmem>>, %arg7: memref<32x64xf32, #tpu.memory_space<vmem>>, %arg8: memref<1x64xf32, #tpu.memory_space<vmem>>, %arg9: memref<32x32xf32, #tpu.memory_space<vmem>>, %arg10: memref<1x32xf32, #tpu.memory_space<vmem>>, %arg11: memref<16x32xf32, #tpu.memory_space<vmem>>) attributes {dimension_semantics = [#tpu.dimension_semantics<parallel>], iteration_bounds = array<i64: 1>, scalar_prefetch = 0 : i64, scratch_operands = 0 : i64, tpu.core_type = #tpu.core_type<tc>, window_params = [{transform_indices = @transform_0, window_bounds = array<i64: 16, 32>}, {pipeline_mode = #tpu.pipeline_mode<synchronous>, transform_indices = @transform_1, window_bounds = array<i64: 16, 32>}, {pipeline_mode = #tpu.pipeline_mode<synchronous>, transform_indices = @transform_2, window_bounds = array<i64: 1, 32>}, {pipeline_mode = #tpu.pipeline_mode<synchronous>, transform_indices = @transform_3, window_bounds = array<i64: 1, 32>}, {pipeline_mode = #tpu.pipeline_mode<synchronous>, transform_indices = @transform_4, window_bounds = array<i64: 32, 32>}, {pipeline_mode = #tpu.pipeline_mode<synchronous>, transform_indices = @transform_5, window_bounds = array<i64: 1, 32>}, {pipeline_mode = #tpu.pipeline_mode<synchronous>, transform_indices = @transform_6, window_bounds = array<i64: 32, 64>}, {pipeline_mode = #tpu.pipeline_mode<synchronous>, transform_indices = @transform_7, window_bounds = array<i64: 1, 64>}, {pipeline_mode = #tpu.pipeline_mode<synchronous>, transform_indices = @transform_8, window_bounds = array<i64: 32, 32>}, {pipeline_mode = #tpu.pipeline_mode<synchronous>, transform_indices = @transform_9, window_bounds = array<i64: 1, 32>}, {transform_indices = @transform_10, window_bounds = array<i64: 16, 32>}]} {
    %c0 = arith.constant 0 : index
    %c0_0 = arith.constant 0 : index
    %0 = vector.load %arg1[%c0, %c0_0] : memref<16x32xf32, #tpu.memory_space<vmem>>, vector<16x32xf32>
    %c0_1 = arith.constant 0 : index
    %c0_2 = arith.constant 0 : index
    %1 = vector.load %arg2[%c0_1, %c0_2] : memref<16x32xf32, #tpu.memory_space<vmem>>, vector<16x32xf32>
    %c0_3 = arith.constant 0 : index
    %c0_4 = arith.constant 0 : index
    %2 = vector.load %arg3[%c0_3, %c0_4] : memref<1x32xf32, #tpu.memory_space<vmem>>, vector<1x32xf32>
    %c0_5 = arith.constant 0 : index
    %c0_6 = arith.constant 0 : index
    %3 = vector.load %arg4[%c0_5, %c0_6] : memref<1x32xf32, #tpu.memory_space<vmem>>, vector<1x32xf32>
    %cst = arith.constant dense<0.000000e+00> : vector<16xf32>
    %4 = vector.multi_reduction <add>, %0, %cst [1] : vector<16x32xf32> to vector<16xf32>
    %5 = vector.shape_cast %4 : vector<16xf32> to vector<16x1xf32>
    %cst_7 = arith.constant 3.200000e+01 : f32
    %6 = vector.broadcast %cst_7 : f32 to vector<16x1xf32>
    %7 = arith.divf %5, %6 : vector<16x1xf32>
    %8 = vector.broadcast %7 : vector<16x1xf32> to vector<16x32xf32>
    %9 = arith.subf %0, %8 : vector<16x32xf32>
    %10 = arith.mulf %9, %9 : vector<16x32xf32>
    %cst_8 = arith.constant dense<0.000000e+00> : vector<16xf32>
    %11 = vector.multi_reduction <add>, %10, %cst_8 [1] : vector<16x32xf32> to vector<16xf32>
    %12 = vector.shape_cast %11 : vector<16xf32> to vector<16x1xf32>
    %cst_9 = arith.constant 3.200000e+01 : f32
    %13 = vector.broadcast %cst_9 : f32 to vector<16x1xf32>
    %14 = arith.divf %12, %13 : vector<16x1xf32>
    %15 = vector.broadcast %7 : vector<16x1xf32> to vector<16x32xf32>
    %16 = arith.subf %0, %15 : vector<16x32xf32>
    %cst_10 = arith.constant 9.99999974E-6 : f32
    %17 = vector.broadcast %cst_10 : f32 to vector<16x1xf32>
    %18 = arith.addf %14, %17 : vector<16x1xf32>
    %19 = math.rsqrt %18 : vector<16x1xf32>
    %20 = vector.broadcast %19 : vector<16x1xf32> to vector<16x32xf32>
    %21 = arith.mulf %16, %20 : vector<16x32xf32>
    %22 = vector.broadcast %2 : vector<1x32xf32> to vector<16x32xf32>
    %23 = arith.mulf %21, %22 : vector<16x32xf32>
    %24 = vector.broadcast %3 : vector<1x32xf32> to vector<16x32xf32>
    %25 = arith.addf %23, %24 : vector<16x32xf32>
    %cst_11 = arith.constant dense<0.000000e+00> : vector<16xf32>
    %26 = vector.multi_reduction <add>, %1, %cst_11 [1] : vector<16x32xf32> to vector<16xf32>
    %27 = vector.shape_cast %26 : vector<16xf32> to vector<16x1xf32>
    %cst_12 = arith.constant 3.200000e+01 : f32
    %28 = vector.broadcast %cst_12 : f32 to vector<16x1xf32>
    %29 = arith.divf %27, %28 : vector<16x1xf32>
    %30 = vector.broadcast %29 : vector<16x1xf32> to vector<16x32xf32>
    %31 = arith.subf %1, %30 : vector<16x32xf32>
    %32 = arith.mulf %31, %31 : vector<16x32xf32>
    %cst_13 = arith.constant dense<0.000000e+00> : vector<16xf32>
    %33 = vector.multi_reduction <add>, %32, %cst_13 [1] : vector<16x32xf32> to vector<16xf32>
    %34 = vector.shape_cast %33 : vector<16xf32> to vector<16x1xf32>
    %cst_14 = arith.constant 3.200000e+01 : f32
    %35 = vector.broadcast %cst_14 : f32 to vector<16x1xf32>
    %36 = arith.divf %34, %35 : vector<16x1xf32>
    %37 = vector.broadcast %29 : vector<16x1xf32> to vector<16x32xf32>
    %38 = arith.subf %1, %37 : vector<16x32xf32>
    %cst_15 = arith.constant 9.99999974E-6 : f32
    %39 = vector.broadcast %cst_15 : f32 to vector<16x1xf32>
    %40 = arith.addf %36, %39 : vector<16x1xf32>
    %41 = math.rsqrt %40 : vector<16x1xf32>
    %42 = vector.broadcast %41 : vector<16x1xf32> to vector<16x32xf32>
    %43 = arith.mulf %38, %42 : vector<16x32xf32>
    %44 = vector.broadcast %2 : vector<1x32xf32> to vector<16x32xf32>
    %45 = arith.mulf %43, %44 : vector<16x32xf32>
    %46 = vector.broadcast %3 : vector<1x32xf32> to vector<16x32xf32>
    %47 = arith.addf %45, %46 : vector<16x32xf32>
    %c0_16 = arith.constant 0 : index
    %c0_17 = arith.constant 0 : index
    %48 = vector.load %arg5[%c0_16, %c0_17] : memref<32x32xf32, #tpu.memory_space<vmem>>, vector<32x32xf32>
    %cst_18 = arith.constant dense<0.000000e+00> : vector<16x32xf32>
    %49 = tpu.matmul %25, %48, %cst_18 {dimension_numbers = #tpu.dot_dimension_numbers<[1], [0], [0], [1], [0, 0, 1, 1], [], []>} : vector<16x32xf32>, vector<32x32xf32>, vector<16x32xf32> -> vector<16x32xf32>
    %c0_19 = arith.constant 0 : index
    %c0_20 = arith.constant 0 : index
    %50 = vector.load %arg6[%c0_19, %c0_20] : memref<1x32xf32, #tpu.memory_space<vmem>>, vector<1x32xf32>
    %51 = vector.broadcast %50 : vector<1x32xf32> to vector<16x32xf32>
    %52 = arith.addf %49, %51 : vector<16x32xf32>
    %c0_21 = arith.constant 0 : index
    %c0_22 = arith.constant 0 : index
    %53 = vector.load %arg7[%c0_21, %c0_22] : memref<32x64xf32, #tpu.memory_space<vmem>>, vector<32x64xf32>
    %cst_23 = arith.constant dense<0.000000e+00> : vector<16x64xf32>
    %54 = tpu.matmul %47, %53, %cst_23 {dimension_numbers = #tpu.dot_dimension_numbers<[1], [0], [0], [1], [0, 0, 1, 1], [], []>} : vector<16x32xf32>, vector<32x64xf32>, vector<16x64xf32> -> vector<16x64xf32>
    %c0_24 = arith.constant 0 : index
    %c0_25 = arith.constant 0 : index
    %55 = vector.load %arg8[%c0_24, %c0_25] : memref<1x64xf32, #tpu.memory_space<vmem>>, vector<1x64xf32>
    %56 = vector.broadcast %55 : vector<1x64xf32> to vector<16x64xf32>
    %57 = arith.addf %54, %56 : vector<16x64xf32>
    %c0_26 = arith.constant 0 : index
    %c0_27 = arith.constant 0 : index
    %58 = vector.load %arg9[%c0_26, %c0_27] : memref<32x32xf32, #tpu.memory_space<vmem>>, vector<32x32xf32>
    %c0_28 = arith.constant 0 : index
    %c0_29 = arith.constant 0 : index
    %59 = vector.load %arg10[%c0_28, %c0_29] : memref<1x32xf32, #tpu.memory_space<vmem>>, vector<1x32xf32>
    %60 = vector.extract_strided_slice %52 {offsets = [0, 0], sizes = [16, 8], strides = [1, 1]} : vector<16x32xf32> to vector<16x8xf32>
    %cst_30 = arith.constant dense<0xFF800000> : vector<16xf32>
    %61 = vector.multi_reduction <maximumf>, %60, %cst_30 [1] : vector<16x8xf32> to vector<16xf32>
    %62 = vector.shape_cast %61 : vector<16xf32> to vector<16x1xf32>
    %63 = vector.broadcast %62 : vector<16x1xf32> to vector<16x8xf32>
    %64 = arith.subf %60, %63 : vector<16x8xf32>
    %65 = math.exp %64 : vector<16x8xf32>
    %cst_31 = arith.constant dense<0.000000e+00> : vector<16xf32>
    %66 = vector.multi_reduction <add>, %65, %cst_31 [1] : vector<16x8xf32> to vector<16xf32>
    %67 = vector.shape_cast %66 : vector<16xf32> to vector<16x1xf32>
    %68 = tpu.reciprocal %67 {approx = true} : vector<16x1xf32> -> vector<16x1xf32>
    %69 = vector.broadcast %68 : vector<16x1xf32> to vector<16x8xf32>
    %70 = arith.mulf %65, %69 : vector<16x8xf32>
    %71 = vector.extract_strided_slice %57 {offsets = [0, 0], sizes = [16, 8], strides = [1, 1]} : vector<16x64xf32> to vector<16x8xf32>
    %cst_32 = arith.constant dense<0xFF800000> : vector<16xf32>
    %72 = vector.multi_reduction <maximumf>, %71, %cst_32 [1] : vector<16x8xf32> to vector<16xf32>
    %73 = vector.shape_cast %72 : vector<16xf32> to vector<16x1xf32>
    %74 = vector.broadcast %73 : vector<16x1xf32> to vector<16x8xf32>
    %75 = arith.subf %71, %74 : vector<16x8xf32>
    %76 = math.exp %75 : vector<16x8xf32>
    %cst_33 = arith.constant dense<0.000000e+00> : vector<16xf32>
    %77 = vector.multi_reduction <add>, %76, %cst_33 [1] : vector<16x8xf32> to vector<16xf32>
    %78 = vector.shape_cast %77 : vector<16xf32> to vector<16x1xf32>
    %79 = tpu.reciprocal %78 {approx = true} : vector<16x1xf32> -> vector<16x1xf32>
    %80 = vector.broadcast %79 : vector<16x1xf32> to vector<16x8xf32>
    %81 = arith.mulf %76, %80 : vector<16x8xf32>
    %82 = vector.extract_strided_slice %57 {offsets = [0, 32], sizes = [16, 8], strides = [1, 1]} : vector<16x64xf32> to vector<16x8xf32>
    %cst_34 = arith.constant dense<0.000000e+00> : vector<8xf32>
    %83 = vector.multi_reduction <add>, %81, %cst_34 [0] : vector<16x8xf32> to vector<8xf32>
    %84 = vector.shape_cast %83 : vector<8xf32> to vector<1x8xf32>
    %85 = vector.broadcast %84 : vector<1x8xf32> to vector<16x8xf32>
    %86 = arith.mulf %70, %85 : vector<16x8xf32>
    %cst_35 = arith.constant dense<0.000000e+00> : vector<16xf32>
    %87 = vector.multi_reduction <add>, %86, %cst_35 [1] : vector<16x8xf32> to vector<16xf32>
    %88 = vector.shape_cast %87 : vector<16xf32> to vector<16x1xf32>
    %89 = tpu.reciprocal %88 {approx = true} : vector<16x1xf32> -> vector<16x1xf32>
    %cst_36 = arith.constant dense<0.000000e+00> : vector<8x8xf32>
    %90 = tpu.matmul %81, %82, %cst_36 {dimension_numbers = #tpu.dot_dimension_numbers<[0], [0], [1], [1], [0, 1, 1, 1], [], []>} : vector<16x8xf32>, vector<16x8xf32>, vector<8x8xf32> -> vector<8x8xf32>
    %cst_37 = arith.constant dense<0.000000e+00> : vector<16x8xf32>
    %91 = tpu.matmul %70, %90, %cst_37 {dimension_numbers = #tpu.dot_dimension_numbers<[1], [0], [0], [1], [0, 0, 1, 1], [], []>} : vector<16x8xf32>, vector<8x8xf32>, vector<16x8xf32> -> vector<16x8xf32>
    %92 = vector.broadcast %89 : vector<16x1xf32> to vector<16x8xf32>
    %93 = arith.mulf %91, %92 : vector<16x8xf32>
    %94 = arith.addf %93, %70 : vector<16x8xf32>
    %95 = vector.extract_strided_slice %58 {offsets = [0, 0], sizes = [8, 32], strides = [1, 1]} : vector<32x32xf32> to vector<8x32xf32>
    %cst_38 = arith.constant dense<0.000000e+00> : vector<16x32xf32>
    %96 = tpu.matmul %94, %95, %cst_38 {dimension_numbers = #tpu.dot_dimension_numbers<[1], [0], [0], [1], [0, 0, 1, 1], [], []>} : vector<16x8xf32>, vector<8x32xf32>, vector<16x32xf32> -> vector<16x32xf32>
    %97 = vector.broadcast %59 : vector<1x32xf32> to vector<16x32xf32>
    %98 = arith.addf %97, %96 : vector<16x32xf32>
    %99 = vector.extract_strided_slice %52 {offsets = [0, 8], sizes = [16, 8], strides = [1, 1]} : vector<16x32xf32> to vector<16x8xf32>
    %cst_39 = arith.constant dense<0xFF800000> : vector<16xf32>
    %100 = vector.multi_reduction <maximumf>, %99, %cst_39 [1] : vector<16x8xf32> to vector<16xf32>
    %101 = vector.shape_cast %100 : vector<16xf32> to vector<16x1xf32>
    %102 = vector.broadcast %101 : vector<16x1xf32> to vector<16x8xf32>
    %103 = arith.subf %99, %102 : vector<16x8xf32>
    %104 = math.exp %103 : vector<16x8xf32>
    %cst_40 = arith.constant dense<0.000000e+00> : vector<16xf32>
    %105 = vector.multi_reduction <add>, %104, %cst_40 [1] : vector<16x8xf32> to vector<16xf32>
    %106 = vector.shape_cast %105 : vector<16xf32> to vector<16x1xf32>
    %107 = tpu.reciprocal %106 {approx = true} : vector<16x1xf32> -> vector<16x1xf32>
    %108 = vector.broadcast %107 : vector<16x1xf32> to vector<16x8xf32>
    %109 = arith.mulf %104, %108 : vector<16x8xf32>
    %110 = vector.extract_strided_slice %57 {offsets = [0, 8], sizes = [16, 8], strides = [1, 1]} : vector<16x64xf32> to vector<16x8xf32>
    %cst_41 = arith.constant dense<0xFF800000> : vector<16xf32>
    %111 = vector.multi_reduction <maximumf>, %110, %cst_41 [1] : vector<16x8xf32> to vector<16xf32>
    %112 = vector.shape_cast %111 : vector<16xf32> to vector<16x1xf32>
    %113 = vector.broadcast %112 : vector<16x1xf32> to vector<16x8xf32>
    %114 = arith.subf %110, %113 : vector<16x8xf32>
    %115 = math.exp %114 : vector<16x8xf32>
    %cst_42 = arith.constant dense<0.000000e+00> : vector<16xf32>
    %116 = vector.multi_reduction <add>, %115, %cst_42 [1] : vector<16x8xf32> to vector<16xf32>
    %117 = vector.shape_cast %116 : vector<16xf32> to vector<16x1xf32>
    %118 = tpu.reciprocal %117 {approx = true} : vector<16x1xf32> -> vector<16x1xf32>
    %119 = vector.broadcast %118 : vector<16x1xf32> to vector<16x8xf32>
    %120 = arith.mulf %115, %119 : vector<16x8xf32>
    %121 = vector.extract_strided_slice %57 {offsets = [0, 40], sizes = [16, 8], strides = [1, 1]} : vector<16x64xf32> to vector<16x8xf32>
    %cst_43 = arith.constant dense<0.000000e+00> : vector<8xf32>
    %122 = vector.multi_reduction <add>, %120, %cst_43 [0] : vector<16x8xf32> to vector<8xf32>
    %123 = vector.shape_cast %122 : vector<8xf32> to vector<1x8xf32>
    %124 = vector.broadcast %123 : vector<1x8xf32> to vector<16x8xf32>
    %125 = arith.mulf %109, %124 : vector<16x8xf32>
    %cst_44 = arith.constant dense<0.000000e+00> : vector<16xf32>
    %126 = vector.multi_reduction <add>, %125, %cst_44 [1] : vector<16x8xf32> to vector<16xf32>
    %127 = vector.shape_cast %126 : vector<16xf32> to vector<16x1xf32>
    %128 = tpu.reciprocal %127 {approx = true} : vector<16x1xf32> -> vector<16x1xf32>
    %cst_45 = arith.constant dense<0.000000e+00> : vector<8x8xf32>
    %129 = tpu.matmul %120, %121, %cst_45 {dimension_numbers = #tpu.dot_dimension_numbers<[0], [0], [1], [1], [0, 1, 1, 1], [], []>} : vector<16x8xf32>, vector<16x8xf32>, vector<8x8xf32> -> vector<8x8xf32>
    %cst_46 = arith.constant dense<0.000000e+00> : vector<16x8xf32>
    %130 = tpu.matmul %109, %129, %cst_46 {dimension_numbers = #tpu.dot_dimension_numbers<[1], [0], [0], [1], [0, 0, 1, 1], [], []>} : vector<16x8xf32>, vector<8x8xf32>, vector<16x8xf32> -> vector<16x8xf32>
    %131 = vector.broadcast %128 : vector<16x1xf32> to vector<16x8xf32>
    %132 = arith.mulf %130, %131 : vector<16x8xf32>
    %133 = arith.addf %132, %109 : vector<16x8xf32>
    %134 = vector.extract_strided_slice %58 {offsets = [8, 0], sizes = [8, 32], strides = [1, 1]} : vector<32x32xf32> to vector<8x32xf32>
    %cst_47 = arith.constant dense<0.000000e+00> : vector<16x32xf32>
    %135 = tpu.matmul %133, %134, %cst_47 {dimension_numbers = #tpu.dot_dimension_numbers<[1], [0], [0], [1], [0, 0, 1, 1], [], []>} : vector<16x8xf32>, vector<8x32xf32>, vector<16x32xf32> -> vector<16x32xf32>
    %136 = arith.addf %98, %135 : vector<16x32xf32>
    %137 = vector.extract_strided_slice %52 {offsets = [0, 16], sizes = [16, 8], strides = [1, 1]} : vector<16x32xf32> to vector<16x8xf32>
    %cst_48 = arith.constant dense<0xFF800000> : vector<16xf32>
    %138 = vector.multi_reduction <maximumf>, %137, %cst_48 [1] : vector<16x8xf32> to vector<16xf32>
    %139 = vector.shape_cast %138 : vector<16xf32> to vector<16x1xf32>
    %140 = vector.broadcast %139 : vector<16x1xf32> to vector<16x8xf32>
    %141 = arith.subf %137, %140 : vector<16x8xf32>
    %142 = math.exp %141 : vector<16x8xf32>
    %cst_49 = arith.constant dense<0.000000e+00> : vector<16xf32>
    %143 = vector.multi_reduction <add>, %142, %cst_49 [1] : vector<16x8xf32> to vector<16xf32>
    %144 = vector.shape_cast %143 : vector<16xf32> to vector<16x1xf32>
    %145 = tpu.reciprocal %144 {approx = true} : vector<16x1xf32> -> vector<16x1xf32>
    %146 = vector.broadcast %145 : vector<16x1xf32> to vector<16x8xf32>
    %147 = arith.mulf %142, %146 : vector<16x8xf32>
    %148 = vector.extract_strided_slice %57 {offsets = [0, 16], sizes = [16, 8], strides = [1, 1]} : vector<16x64xf32> to vector<16x8xf32>
    %cst_50 = arith.constant dense<0xFF800000> : vector<16xf32>
    %149 = vector.multi_reduction <maximumf>, %148, %cst_50 [1] : vector<16x8xf32> to vector<16xf32>
    %150 = vector.shape_cast %149 : vector<16xf32> to vector<16x1xf32>
    %151 = vector.broadcast %150 : vector<16x1xf32> to vector<16x8xf32>
    %152 = arith.subf %148, %151 : vector<16x8xf32>
    %153 = math.exp %152 : vector<16x8xf32>
    %cst_51 = arith.constant dense<0.000000e+00> : vector<16xf32>
    %154 = vector.multi_reduction <add>, %153, %cst_51 [1] : vector<16x8xf32> to vector<16xf32>
    %155 = vector.shape_cast %154 : vector<16xf32> to vector<16x1xf32>
    %156 = tpu.reciprocal %155 {approx = true} : vector<16x1xf32> -> vector<16x1xf32>
    %157 = vector.broadcast %156 : vector<16x1xf32> to vector<16x8xf32>
    %158 = arith.mulf %153, %157 : vector<16x8xf32>
    %159 = vector.extract_strided_slice %57 {offsets = [0, 48], sizes = [16, 8], strides = [1, 1]} : vector<16x64xf32> to vector<16x8xf32>
    %cst_52 = arith.constant dense<0.000000e+00> : vector<8xf32>
    %160 = vector.multi_reduction <add>, %158, %cst_52 [0] : vector<16x8xf32> to vector<8xf32>
    %161 = vector.shape_cast %160 : vector<8xf32> to vector<1x8xf32>
    %162 = vector.broadcast %161 : vector<1x8xf32> to vector<16x8xf32>
    %163 = arith.mulf %147, %162 : vector<16x8xf32>
    %cst_53 = arith.constant dense<0.000000e+00> : vector<16xf32>
    %164 = vector.multi_reduction <add>, %163, %cst_53 [1] : vector<16x8xf32> to vector<16xf32>
    %165 = vector.shape_cast %164 : vector<16xf32> to vector<16x1xf32>
    %166 = tpu.reciprocal %165 {approx = true} : vector<16x1xf32> -> vector<16x1xf32>
    %cst_54 = arith.constant dense<0.000000e+00> : vector<8x8xf32>
    %167 = tpu.matmul %158, %159, %cst_54 {dimension_numbers = #tpu.dot_dimension_numbers<[0], [0], [1], [1], [0, 1, 1, 1], [], []>} : vector<16x8xf32>, vector<16x8xf32>, vector<8x8xf32> -> vector<8x8xf32>
    %cst_55 = arith.constant dense<0.000000e+00> : vector<16x8xf32>
    %168 = tpu.matmul %147, %167, %cst_55 {dimension_numbers = #tpu.dot_dimension_numbers<[1], [0], [0], [1], [0, 0, 1, 1], [], []>} : vector<16x8xf32>, vector<8x8xf32>, vector<16x8xf32> -> vector<16x8xf32>
    %169 = vector.broadcast %166 : vector<16x1xf32> to vector<16x8xf32>
    %170 = arith.mulf %168, %169 : vector<16x8xf32>
    %171 = arith.addf %170, %147 : vector<16x8xf32>
    %172 = vector.extract_strided_slice %58 {offsets = [16, 0], sizes = [8, 32], strides = [1, 1]} : vector<32x32xf32> to vector<8x32xf32>
    %cst_56 = arith.constant dense<0.000000e+00> : vector<16x32xf32>
    %173 = tpu.matmul %171, %172, %cst_56 {dimension_numbers = #tpu.dot_dimension_numbers<[1], [0], [0], [1], [0, 0, 1, 1], [], []>} : vector<16x8xf32>, vector<8x32xf32>, vector<16x32xf32> -> vector<16x32xf32>
    %174 = arith.addf %136, %173 : vector<16x32xf32>
    %175 = vector.extract_strided_slice %52 {offsets = [0, 24], sizes = [16, 8], strides = [1, 1]} : vector<16x32xf32> to vector<16x8xf32>
    %cst_57 = arith.constant dense<0xFF800000> : vector<16xf32>
    %176 = vector.multi_reduction <maximumf>, %175, %cst_57 [1] : vector<16x8xf32> to vector<16xf32>
    %177 = vector.shape_cast %176 : vector<16xf32> to vector<16x1xf32>
    %178 = vector.broadcast %177 : vector<16x1xf32> to vector<16x8xf32>
    %179 = arith.subf %175, %178 : vector<16x8xf32>
    %180 = math.exp %179 : vector<16x8xf32>
    %cst_58 = arith.constant dense<0.000000e+00> : vector<16xf32>
    %181 = vector.multi_reduction <add>, %180, %cst_58 [1] : vector<16x8xf32> to vector<16xf32>
    %182 = vector.shape_cast %181 : vector<16xf32> to vector<16x1xf32>
    %183 = tpu.reciprocal %182 {approx = true} : vector<16x1xf32> -> vector<16x1xf32>
    %184 = vector.broadcast %183 : vector<16x1xf32> to vector<16x8xf32>
    %185 = arith.mulf %180, %184 : vector<16x8xf32>
    %186 = vector.extract_strided_slice %57 {offsets = [0, 24], sizes = [16, 8], strides = [1, 1]} : vector<16x64xf32> to vector<16x8xf32>
    %cst_59 = arith.constant dense<0xFF800000> : vector<16xf32>
    %187 = vector.multi_reduction <maximumf>, %186, %cst_59 [1] : vector<16x8xf32> to vector<16xf32>
    %188 = vector.shape_cast %187 : vector<16xf32> to vector<16x1xf32>
    %189 = vector.broadcast %188 : vector<16x1xf32> to vector<16x8xf32>
    %190 = arith.subf %186, %189 : vector<16x8xf32>
    %191 = math.exp %190 : vector<16x8xf32>
    %cst_60 = arith.constant dense<0.000000e+00> : vector<16xf32>
    %192 = vector.multi_reduction <add>, %191, %cst_60 [1] : vector<16x8xf32> to vector<16xf32>
    %193 = vector.shape_cast %192 : vector<16xf32> to vector<16x1xf32>
    %194 = tpu.reciprocal %193 {approx = true} : vector<16x1xf32> -> vector<16x1xf32>
    %195 = vector.broadcast %194 : vector<16x1xf32> to vector<16x8xf32>
    %196 = arith.mulf %191, %195 : vector<16x8xf32>
    %197 = vector.extract_strided_slice %57 {offsets = [0, 56], sizes = [16, 8], strides = [1, 1]} : vector<16x64xf32> to vector<16x8xf32>
    %cst_61 = arith.constant dense<0.000000e+00> : vector<8xf32>
    %198 = vector.multi_reduction <add>, %196, %cst_61 [0] : vector<16x8xf32> to vector<8xf32>
    %199 = vector.shape_cast %198 : vector<8xf32> to vector<1x8xf32>
    %200 = vector.broadcast %199 : vector<1x8xf32> to vector<16x8xf32>
    %201 = arith.mulf %185, %200 : vector<16x8xf32>
    %cst_62 = arith.constant dense<0.000000e+00> : vector<16xf32>
    %202 = vector.multi_reduction <add>, %201, %cst_62 [1] : vector<16x8xf32> to vector<16xf32>
    %203 = vector.shape_cast %202 : vector<16xf32> to vector<16x1xf32>
    %204 = tpu.reciprocal %203 {approx = true} : vector<16x1xf32> -> vector<16x1xf32>
    %cst_63 = arith.constant dense<0.000000e+00> : vector<8x8xf32>
    %205 = tpu.matmul %196, %197, %cst_63 {dimension_numbers = #tpu.dot_dimension_numbers<[0], [0], [1], [1], [0, 1, 1, 1], [], []>} : vector<16x8xf32>, vector<16x8xf32>, vector<8x8xf32> -> vector<8x8xf32>
    %cst_64 = arith.constant dense<0.000000e+00> : vector<16x8xf32>
    %206 = tpu.matmul %185, %205, %cst_64 {dimension_numbers = #tpu.dot_dimension_numbers<[1], [0], [0], [1], [0, 0, 1, 1], [], []>} : vector<16x8xf32>, vector<8x8xf32>, vector<16x8xf32> -> vector<16x8xf32>
    %207 = vector.broadcast %204 : vector<16x1xf32> to vector<16x8xf32>
    %208 = arith.mulf %206, %207 : vector<16x8xf32>
    %209 = arith.addf %208, %185 : vector<16x8xf32>
    %210 = vector.extract_strided_slice %58 {offsets = [24, 0], sizes = [8, 32], strides = [1, 1]} : vector<32x32xf32> to vector<8x32xf32>
    %cst_65 = arith.constant dense<0.000000e+00> : vector<16x32xf32>
    %211 = tpu.matmul %209, %210, %cst_65 {dimension_numbers = #tpu.dot_dimension_numbers<[1], [0], [0], [1], [0, 0, 1, 1], [], []>} : vector<16x8xf32>, vector<8x32xf32>, vector<16x32xf32> -> vector<16x32xf32>
    %212 = arith.addf %174, %211 : vector<16x32xf32>
    %213 = arith.addf %0, %212 : vector<16x32xf32>
    %c0_66 = arith.constant 0 : index
    %c0_67 = arith.constant 0 : index
    %214 = vector.load %arg11[%c0_66, %c0_67] : memref<16x32xf32, #tpu.memory_space<vmem>>, vector<16x32xf32>
    tpu.vector_store %arg11[%c0_66, %c0_67], %213 {strides = array<i32>} : memref<16x32xf32, #tpu.memory_space<vmem>>, vector<16x32xf32>,
    return
  }
  func.func @transform_0(%arg0: i32) -> (i32, i32) {
    %c0_i32 = arith.constant 0 : i32
    %c0_i32_0 = arith.constant 0 : i32
    return %arg0, %c0_i32 : i32, i32
  }
  func.func @transform_1(%arg0: i32) -> (i32, i32) {
    %c0_i32 = arith.constant 0 : i32
    %c0_i32_0 = arith.constant 0 : i32
    %c0_i32_1 = arith.constant 0 : i32
    return %c0_i32, %c0_i32_0 : i32, i32
  }
  func.func @transform_2(%arg0: i32) -> (i32, i32) {
    %c0_i32 = arith.constant 0 : i32
    %c0_i32_0 = arith.constant 0 : i32
    %c0_i32_1 = arith.constant 0 : i32
    return %c0_i32, %c0_i32_0 : i32, i32
  }
  func.func @transform_3(%arg0: i32) -> (i32, i32) {
    %c0_i32 = arith.constant 0 : i32
    %c0_i32_0 = arith.constant 0 : i32
    %c0_i32_1 = arith.constant 0 : i32
    return %c0_i32, %c0_i32_0 : i32, i32
  }
  func.func @transform_4(%arg0: i32) -> (i32, i32) {
    %c0_i32 = arith.constant 0 : i32
    %c0_i32_0 = arith.constant 0 : i32
    %c0_i32_1 = arith.constant 0 : i32
    return %c0_i32, %c0_i32_0 : i32, i32
  }
  func.func @transform_5(%arg0: i32) -> (i32, i32) {
    %c0_i32 = arith.constant 0 : i32
    %c0_i32_0 = arith.constant 0 : i32
    %c0_i32_1 = arith.constant 0 : i32
    return %c0_i32, %c0_i32_0 : i32, i32
  }
  func.func @transform_6(%arg0: i32) -> (i32, i32) {
    %c0_i32 = arith.constant 0 : i32
    %c0_i32_0 = arith.constant 0 : i32
    %c0_i32_1 = arith.constant 0 : i32
    return %c0_i32, %c0_i32_0 : i32, i32
  }
  func.func @transform_7(%arg0: i32) -> (i32, i32) {
    %c0_i32 = arith.constant 0 : i32
    %c0_i32_0 = arith.constant 0 : i32
    %c0_i32_1 = arith.constant 0 : i32
    return %c0_i32, %c0_i32_0 : i32, i32
  }
  func.func @transform_8(%arg0: i32) -> (i32, i32) {
    %c0_i32 = arith.constant 0 : i32
    %c0_i32_0 = arith.constant 0 : i32
    %c0_i32_1 = arith.constant 0 : i32
    return %c0_i32, %c0_i32_0 : i32, i32
  }
  func.func @transform_9(%arg0: i32) -> (i32, i32) {
    %c0_i32 = arith.constant 0 : i32
    %c0_i32_0 = arith.constant 0 : i32
    %c0_i32_1 = arith.constant 0 : i32
    return %c0_i32, %c0_i32_0 : i32, i32
  }
  func.func @transform_10(%arg0: i32) -> (i32, i32) {
    %c0_i32 = arith.constant 0 : i32
    %c0_i32_0 = arith.constant 0 : i32
    return %arg0, %c0_i32 : i32, i32
  }
}

module attributes {stable_mosaic.version = 11 : i64} {
  func.func @_matmul_kernel(%arg0: i32, %arg1: i32, %arg2: i32, %arg3: memref<16x32xf32, #tpu.memory_space<vmem>>, %arg4: memref<32x2xf32, #tpu.memory_space<vmem>>, %arg5: memref<1x2xf32, #tpu.memory_space<vmem>>, %arg6: memref<16x2xf32, #tpu.memory_space<vmem>>, %arg7: memref<16x2xf32, #tpu.memory_space<vmem>>) attributes {dimension_semantics = [#tpu.dimension_semantics<parallel>, #tpu.dimension_semantics<parallel>, #tpu.dimension_semantics<arbitrary>], iteration_bounds = array<i64: 1, 1, 1>, scalar_prefetch = 0 : i64, scratch_operands = 1 : i64, tpu.core_type = #tpu.core_type<tc>, window_params = [{transform_indices = @transform_0, window_bounds = array<i64: 16, 32>}, {transform_indices = @transform_1, window_bounds = array<i64: 32, 2>}, {transform_indices = @transform_2, window_bounds = array<i64: 1, 2>}, {transform_indices = @transform_3, window_bounds = array<i64: 16, 2>}]} {
    %c0_i32 = arith.constant 0 : i32
    %0 = arith.cmpi eq, %arg2, %c0_i32 : i32
    %1 = arith.extui %0 : i1 to i32
    %c0_i32_0 = arith.constant 0 : i32
    %2 = arith.cmpi ne, %1, %c0_i32_0 : i32
    scf.if %2 {
      %cst_10 = arith.constant 0.000000e+00 : f32
      %12 = vector.broadcast %cst_10 : f32 to vector<16x2xf32>
      %c0_11 = arith.constant 0 : index
      %c0_12 = arith.constant 0 : index
      %13 = vector.load %arg7[%c0_11, %c0_12] : memref<16x2xf32, #tpu.memory_space<vmem>>, vector<16x2xf32>
      tpu.vector_store %arg7[%c0_11, %c0_12], %12 {strides = array<i32>} : memref<16x2xf32, #tpu.memory_space<vmem>>, vector<16x2xf32>,
    } else {
    }
    %c0 = arith.constant 0 : index
    %c0_1 = arith.constant 0 : index
    %3 = vector.load %arg7[%c0, %c0_1] : memref<16x2xf32, #tpu.memory_space<vmem>>, vector<16x2xf32>
    %c0_2 = arith.constant 0 : index
    %c0_3 = arith.constant 0 : index
    %4 = vector.load %arg3[%c0_2, %c0_3] : memref<16x32xf32, #tpu.memory_space<vmem>>, vector<16x32xf32>
    %c0_4 = arith.constant 0 : index
    %c0_5 = arith.constant 0 : index
    %5 = vector.load %arg4[%c0_4, %c0_5] : memref<32x2xf32, #tpu.memory_space<vmem>>, vector<32x2xf32>
    %cst = arith.constant dense<0.000000e+00> : vector<16x2xf32>
    %6 = tpu.matmul %4, %5, %cst {dimension_numbers = #tpu.dot_dimension_numbers<[1], [0], [0], [1], [0, 0, 1, 1], [], []>} : vector<16x32xf32>, vector<32x2xf32>, vector<16x2xf32> -> vector<16x2xf32>
    %7 = arith.addf %3, %6 : vector<16x2xf32>
    %c0_6 = arith.constant 0 : index
    %c0_7 = arith.constant 0 : index
    %8 = vector.load %arg7[%c0_6, %c0_7] : memref<16x2xf32, #tpu.memory_space<vmem>>, vector<16x2xf32>
    tpu.vector_store %arg7[%c0_6, %c0_7], %7 {strides = array<i32>} : memref<16x2xf32, #tpu.memory_space<vmem>>, vector<16x2xf32>,
    %c0_i32_8 = arith.constant 0 : i32
    %9 = arith.cmpi eq, %arg2, %c0_i32_8 : i32
    %10 = arith.extui %9 : i1 to i32
    %c0_i32_9 = arith.constant 0 : i32
    %11 = arith.cmpi ne, %10, %c0_i32_9 : i32
    scf.if %11 {
      %c0_10 = arith.constant 0 : index
      %c0_11 = arith.constant 0 : index
      %12 = vector.load %arg7[%c0_10, %c0_11] : memref<16x2xf32, #tpu.memory_space<vmem>>, vector<16x2xf32>
      %c0_12 = arith.constant 0 : index
      %c0_13 = arith.constant 0 : index
      %13 = vector.load %arg5[%c0_12, %c0_13] : memref<1x2xf32, #tpu.memory_space<vmem>>, vector<1x2xf32>
      %14 = vector.broadcast %13 : vector<1x2xf32> to vector<16x2xf32>
      %15 = arith.addf %12, %14 : vector<16x2xf32>
      %c0_14 = arith.constant 0 : index
      %c0_15 = arith.constant 0 : index
      %16 = vector.load %arg6[%c0_14, %c0_15] : memref<16x2xf32, #tpu.memory_space<vmem>>, vector<16x2xf32>
      tpu.vector_store %arg6[%c0_14, %c0_15], %15 {strides = array<i32>} : memref<16x2xf32, #tpu.memory_space<vmem>>, vector<16x2xf32>,
    } else {
    }
    return
  }
  func.func @transform_0(%arg0: i32, %arg1: i32, %arg2: i32) -> (i32, i32) {
    %c0_i32 = arith.constant 0 : i32
    return %arg0, %arg2 : i32, i32
  }
  func.func @transform_1(%arg0: i32, %arg1: i32, %arg2: i32) -> (i32, i32) {
    %c0_i32 = arith.constant 0 : i32
    return %arg2, %arg1 : i32, i32
  }
  func.func @transform_2(%arg0: i32, %arg1: i32, %arg2: i32) -> (i32, i32) {
    %c0_i32 = arith.constant 0 : i32
    %c0_i32_0 = arith.constant 0 : i32
    return %c0_i32, %arg1 : i32, i32
  }
  func.func @transform_3(%arg0: i32, %arg1: i32, %arg2: i32) -> (i32, i32) {
    %c0_i32 = arith.constant 0 : i32
    return %arg0, %arg1 : i32, i32
  }
}

</mosaic_0001>

<llo_original>
// kernel: _lambda_.22
$region0: #{_lambda_.22}
  #allocation0 [shape = 'u32[]', space=smem, size = 0x4, offset = 0x4, fixed_abs, tag = 'smem constant byte address 0x4 - core index']
  #allocation1 [shape = 'u32[144,128]{1,0:T(1,128)}', space=vmem, size = 0x12000, scoped, tag = 'internal scratch']
  #allocation2 [shape = 'f32[8,32]{1,0:T(8,128)}', space=vmem, size = 0x1000, scoped, tag = 'scratch operand']
  %s0 = inlined_call_operand.vmem [shape: f32[8,4], index: 0, kind: input, shape index: {}]
  %s1 = inlined_call_operand.vmem [shape: f32[4,32], index: 1, kind: input, shape index: {}]
  %s2 = inlined_call_operand.vmem [shape: f32[1,32], index: 2, kind: input, shape index: {}]
  %s3 = inlined_call_operand.vmem [shape: f32[8,32], index: 3, kind: output, shape index: {}]
  %s4 = sld [smem:[#allocation0]]
  $region30: #{_lambda_.22} parent=0
    _
  %s6 = ssub.s32 1, %s4
  %s7 = scalar_select 0, %s6, %s4
  // Predicated region
  $region2: #{_lambda_.22} parent=0 // pred_check
    _
  $region3: #{_lambda_.22} parent=0 // pred_check_branch
    %9 = sbr.rel (0) target = $region5
  $region4: #{_lambda_.22} parent=0 // pred_region
    _
  $region5: #{_lambda_.22} parent=0 // pred_fallthru
    _
  // Predicated region
  $region6: #{_lambda_.22} parent=0 // pred_check
    _
  $region7: #{_lambda_.22} parent=0 // pred_check_branch
    %11 = sbr.rel (0) target = $region9
  $region8: #{_lambda_.22} parent=0 // pred_region
    _
  $region9: #{_lambda_.22} parent=0 // pred_fallthru
    _
  // Predicated region
  $region10: #{_lambda_.22} parent=0 // pred_check
    _
  $region11: #{_lambda_.22} parent=0 // pred_check_branch
    %13 = sbr.rel (0) target = $region13
  $region12: #{_lambda_.22} parent=0 // pred_region
    _
  $region13: #{_lambda_.22} parent=0 // pred_fallthru
    _
  %p14 = scmp.eq.s32.totalorder 0, 0
  // Predicated region
  $region14: #{_lambda_.22} parent=0 // pred_check
    %p15 = pneg %p14
  $region15: #{_lambda_.22} parent=0 // pred_check_branch
    %17 = sbr.rel (%p15) target = $region17
  $region16: #{_lambda_.22} parent=0 // pred_region
    %vm18 = vcmask 261120
    %19 = vst.msk [vmem:[#allocation2] sm:$0xff] %vm18, 0.0
  $region17: #{_lambda_.22} parent=0 // pred_fallthru
    _
  %v20 = vld [vmem:[#allocation2] sm:$0xff]
  %v21 = vld [vmem:[%s0] sm:$0xff]
  %v22 = vld [vmem:[%s1] sm:$0xf]
  %vm23 = vcmask 31744
  %v25 = vsel %vm23, %v21, 0
  %vm27 = vcmask 1043456
  %v29 = vsel %vm27, %v22, 0
  %31 = vmatprep.subr.mxu0 0.0
  %32 = vmatpush1.msra.mxu0 0.0
  %33 = vmatprep.subr.mxu0 0.0
  %34 = vmatpush1.msra.mxu0 0.0
  %35 = vmatprep.subr.mxu0 0.0
  %36 = vmatpush1.msra.mxu0 0.0
  %37 = vmatprep.subr.mxu0 0.0
  %38 = vmatpush1.msra.mxu0 0.0
  %39 = vmatprep.subr.mxu0 0.0
  %40 = vmatpush1.msra.mxu0 0.0
  %41 = vmatprep.subr.mxu0 0.0
  %42 = vmatpush1.msra.mxu0 0.0
  %43 = vmatprep.subr.mxu0 0.0
  %44 = vmatpush1.msra.mxu0 0.0
  %45 = vmatprep.subr.mxu0 0.0
  %46 = vmatpush1.msra.mxu0 0.0
  %47 = vmatprep.subr.mxu0 0.0
  %48 = vmatpush1.msra.mxu0 0.0
  %49 = vmatprep.subr.mxu0 0.0
  %50 = vmatpush1.msra.mxu0 0.0
  %51 = vmatprep.subr.mxu0 0.0
  %52 = vmatpush1.msra.mxu0 0.0
  %53 = vmatprep.subr.mxu0 0.0
  %54 = vmatpush1.msra.mxu0 0.0
  %55 = vmatprep.subr.mxu0 0.0
  %56 = vmatpush1.msra.mxu0 0.0
  %57 = vmatprep.subr.mxu0 0.0
  %58 = vmatpush1.msra.mxu0 0.0
  %59 = vmatprep.subr.mxu0 0.0
  %60 = vmatpush1.msra.mxu0 0.0
  %61 = vmatprep.subr.mxu0 0.0
  %62 = vmatpush1.msra.mxu0 %v29
  %63 = vmatprep.subr.mxu0 0.0
  %64 = vmatpush2.msra.mxu0 0.0
  %65 = vmatprep.subr.mxu0 0.0
  %66 = vmatpush2.msra.mxu0 0.0
  %67 = vmatprep.subr.mxu0 0.0
  %68 = vmatpush2.msra.mxu0 0.0
  %69 = vmatprep.subr.mxu0 0.0
  %70 = vmatpush2.msra.mxu0 0.0
  %71 = vmatprep.subr.mxu0 0.0
  %72 = vmatpush2.msra.mxu0 0.0
  %73 = vmatprep.subr.mxu0 0.0
  %74 = vmatpush2.msra.mxu0 0.0
  %75 = vmatprep.subr.mxu0 0.0
  %76 = vmatpush2.msra.mxu0 0.0
  %77 = vmatprep.subr.mxu0 0.0
  %78 = vmatpush2.msra.mxu0 0.0
  %79 = vmatprep.subr.mxu0 0.0
  %80 = vmatpush2.msra.mxu0 0.0
  %81 = vmatprep.subr.mxu0 0.0
  %82 = vmatpush2.msra.mxu0 0.0
  %83 = vmatprep.subr.mxu0 0.0
  %84 = vmatpush2.msra.mxu0 0.0
  %85 = vmatprep.subr.mxu0 0.0
  %86 = vmatpush2.msra.mxu0 0.0
  %87 = vmatprep.subr.mxu0 0.0
  %88 = vmatpush2.msra.mxu0 0.0
  %89 = vmatprep.subr.mxu0 0.0
  %90 = vmatpush2.msra.mxu0 0.0
  %91 = vmatprep.subr.mxu0 0.0
  %92 = vmatpush2.msra.mxu0 0.0
  %93 = vmatprep.subr.mxu0 0.0
  %94 = vmatpush2.msra.mxu0 0.0
  %95 = vmatprep.mubr.f32.mxu0 0.0
  %96 = vmatmul.mubr.f32.gmra.mxu0 %v25
  %v97 = vpop.f32.mrf.mxu0
  %v98 = vadd.f32 0.0, %v97
  %v99 = vpop.f32.mrf.mxu0
  %100 = vdwg.mxu0
  %v101 = vadd.f32 %v20, %v98
  %vm102 = vcmask 261120
  %103 = vst.msk [vmem:[#allocation2] sm:$0xff] %vm102, %v101
  // Predicated region
  $region18: #{_lambda_.22} parent=0 // pred_check
    %p104 = pneg %p14
  $region19: #{_lambda_.22} parent=0 // pred_check_branch
    %106 = sbr.rel (%p104) target = $region21
  $region20: #{_lambda_.22} parent=0 // pred_region
    %v107 = vld [vmem:[#allocation2] sm:$0xff]
    %v108 = vld [vmem:[%s2] sm:$0x1]
    %v110 = vlaneseq
    %v111 = vshrl.u32 %v110, 7
    %v112 = vsub.s32 0, %v111
    %v113 = vrot.slane %v108, %v112
    %v115 = vadd.f32 %v107, %v113
    %v116 = vmul.f32 %v115, 0.5
    %v117 = vmul.f32 %v115, 0.70710677
    %v118 = verf.f32.pop %v117
    %v119 = vadd.f32 %v118, 1.0
    %v120 = vmul.f32 %v116, %v119
    %121 = vst.msk [vmem:[%s3] sm:$0xff] %vm102, %v120
  $region21: #{_lambda_.22} parent=0 // pred_fallthru
    _
  // Predicated region
  $region22: #{_lambda_.22} parent=0 // pred_check
    _
  $region23: #{_lambda_.22} parent=0 // pred_check_branch
    %123 = sbr.rel (0) target = $region25
  $region24: #{_lambda_.22} parent=0 // pred_region
    _
  $region25: #{_lambda_.22} parent=0 // pred_fallthru
    _
  // Predicated region
  $region26: #{_lambda_.22} parent=0 // pred_check
    _
  $region27: #{_lambda_.22} parent=0 // pred_check_branch
    %125 = sbr.rel (0) target = $region29
  $region28: #{_lambda_.22} parent=0 // pred_region
    _
  $region29: #{_lambda_.22} parent=0 // pred_fallthru
    _

// kernel: _lambda_.23
$region0: #{_lambda_.23}
  #allocation0 [shape = 'u32[]', space=smem, size = 0x4, offset = 0x4, fixed_abs, tag = 'smem constant byte address 0x4 - core index']
  #allocation1 [shape = 'u32[144,128]{1,0:T(1,128)}', space=vmem, size = 0x12000, scoped, tag = 'internal scratch']
  #allocation2 [shape = 'f32[8,32]{1,0:T(8,128)}', space=vmem, size = 0x1000, scoped, tag = 'scratch operand']
  %s0 = inlined_call_operand.vmem [shape: f32[8,32], index: 0, kind: input, shape index: {}, may-alias: {0,3}]
  %s1 = inlined_call_operand.vmem [shape: f32[32,32], index: 1, kind: input, shape index: {}]
  %s2 = inlined_call_operand.vmem [shape: f32[1,32], index: 2, kind: input, shape index: {}]
  %s3 = inlined_call_operand.vmem [shape: f32[8,32], index: 3, kind: input, shape index: {}, may-alias: {0,3}]
  %s4 = inlined_call_operand.vmem [shape: f32[8,32], index: 4, kind: output, shape index: {}]
  %s5 = sld [smem:[#allocation0]]
  $region34: #{_lambda_.23} parent=0
    _
  %s7 = ssub.s32 1, %s5
  %s8 = scalar_select 0, %s7, %s5
  // Predicated region
  $region2: #{_lambda_.23} parent=0 // pred_check
    _
  $region3: #{_lambda_.23} parent=0 // pred_check_branch
    %10 = sbr.rel (0) target = $region5
  $region4: #{_lambda_.23} parent=0 // pred_region
    _
  $region5: #{_lambda_.23} parent=0 // pred_fallthru
    _
  // Predicated region
  $region6: #{_lambda_.23} parent=0 // pred_check
    _
  $region7: #{_lambda_.23} parent=0 // pred_check_branch
    %12 = sbr.rel (0) target = $region9
  $region8: #{_lambda_.23} parent=0 // pred_region
    _
  $region9: #{_lambda_.23} parent=0 // pred_fallthru
    _
  // Predicated region
  $region10: #{_lambda_.23} parent=0 // pred_check
    _
  $region11: #{_lambda_.23} parent=0 // pred_check_branch
    %14 = sbr.rel (0) target = $region13
  $region12: #{_lambda_.23} parent=0 // pred_region
    _
  $region13: #{_lambda_.23} parent=0 // pred_fallthru
    _
  // Predicated region
  $region14: #{_lambda_.23} parent=0 // pred_check
    _
  $region15: #{_lambda_.23} parent=0 // pred_check_branch
    %16 = sbr.rel (0) target = $region17
  $region16: #{_lambda_.23} parent=0 // pred_region
    _
  $region17: #{_lambda_.23} parent=0 // pred_fallthru
    _
  %p17 = scmp.eq.s32.totalorder 0, 0
  // Predicated region
  $region18: #{_lambda_.23} parent=0 // pred_check
    %p18 = pneg %p17
  $region19: #{_lambda_.23} parent=0 // pred_check_branch
    %20 = sbr.rel (%p18) target = $region21
  $region20: #{_lambda_.23} parent=0 // pred_region
    %vm21 = vcmask 261120
    %22 = vst.msk [vmem:[#allocation2] sm:$0xff] %vm21, 0.0
  $region21: #{_lambda_.23} parent=0 // pred_fallthru
    _
  %v23 = vld [vmem:[#allocation2] sm:$0xff]
  %v24 = vld [vmem:[%s0] sm:$0xff]
  %v25 = vld [vmem:[%s1] sm:$0xff]
  %v26 = vld [vmem:[%s1 + $0x8] sm:$0xff]
  %v27 = vld [vmem:[%s1 + $0x10] sm:$0xff]
  %v28 = vld [vmem:[%s1 + $0x18] sm:$0xff]
  %vm29 = vcmask 261120
  %v31 = vsel %vm29, %v24, 0
  %33 = vmatprep.subr.mxu0 0.0
  %34 = vmatpush1.msra.mxu0 0.0
  %35 = vmatprep.subr.mxu0 0.0
  %36 = vmatpush1.msra.mxu0 0.0
  %37 = vmatprep.subr.mxu0 0.0
  %38 = vmatpush1.msra.mxu0 0.0
  %39 = vmatprep.subr.mxu0 0.0
  %40 = vmatpush1.msra.mxu0 0.0
  %41 = vmatprep.subr.mxu0 0.0
  %42 = vmatpush1.msra.mxu0 0.0
  %43 = vmatprep.subr.mxu0 0.0
  %44 = vmatpush1.msra.mxu0 0.0
  %45 = vmatprep.subr.mxu0 0.0
  %46 = vmatpush1.msra.mxu0 0.0
  %47 = vmatprep.subr.mxu0 0.0
  %48 = vmatpush1.msra.mxu0 0.0
  %49 = vmatprep.subr.mxu0 0.0
  %50 = vmatpush1.msra.mxu0 0.0
  %51 = vmatprep.subr.mxu0 0.0
  %52 = vmatpush1.msra.mxu0 0.0
  %53 = vmatprep.subr.mxu0 0.0
  %54 = vmatpush1.msra.mxu0 0.0
  %55 = vmatprep.subr.mxu0 0.0
  %56 = vmatpush1.msra.mxu0 0.0
  %57 = vmatprep.subr.mxu0 0.0
  %58 = vmatpush1.msra.mxu0 %v28
  %59 = vmatprep.subr.mxu0 0.0
  %60 = vmatpush1.msra.mxu0 %v27
  %61 = vmatprep.subr.mxu0 0.0
  %62 = vmatpush1.msra.mxu0 %v26
  %63 = vmatprep.subr.mxu0 0.0
  %64 = vmatpush1.msra.mxu0 %v25
  %65 = vmatprep.subr.mxu0 0.0
  %66 = vmatpush2.msra.mxu0 0.0
  %67 = vmatprep.subr.mxu0 0.0
  %68 = vmatpush2.msra.mxu0 0.0
  %69 = vmatprep.subr.mxu0 0.0
  %70 = vmatpush2.msra.mxu0 0.0
  %71 = vmatprep.subr.mxu0 0.0
  %72 = vmatpush2.msra.mxu0 0.0
  %73 = vmatprep.subr.mxu0 0.0
  %74 = vmatpush2.msra.mxu0 0.0
  %75 = vmatprep.subr.mxu0 0.0
  %76 = vmatpush2.msra.mxu0 0.0
  %77 = vmatprep.subr.mxu0 0.0
  %78 = vmatpush2.msra.mxu0 0.0
  %79 = vmatprep.subr.mxu0 0.0
  %80 = vmatpush2.msra.mxu0 0.0
  %81 = vmatprep.subr.mxu0 0.0
  %82 = vmatpush2.msra.mxu0 0.0
  %83 = vmatprep.subr.mxu0 0.0
  %84 = vmatpush2.msra.mxu0 0.0
  %85 = vmatprep.subr.mxu0 0.0
  %86 = vmatpush2.msra.mxu0 0.0
  %87 = vmatprep.subr.mxu0 0.0
  %88 = vmatpush2.msra.mxu0 0.0
  %89 = vmatprep.subr.mxu0 0.0
  %90 = vmatpush2.msra.mxu0 0.0
  %91 = vmatprep.subr.mxu0 0.0
  %92 = vmatpush2.msra.mxu0 0.0
  %93 = vmatprep.subr.mxu0 0.0
  %94 = vmatpush2.msra.mxu0 0.0
  %95 = vmatprep.subr.mxu0 0.0
  %96 = vmatpush2.msra.mxu0 0.0
  %97 = vmatprep.mubr.f32.mxu0 0.0
  %98 = vmatmul.mubr.f32.gmra.mxu0 %v31
  %v99 = vpop.f32.mrf.mxu0
  %v100 = vadd.f32 0.0, %v99
  %v101 = vpop.f32.mrf.mxu0
  %102 = vdwg.mxu0
  %v103 = vadd.f32 %v23, %v100
  %104 = vst.msk [vmem:[#allocation2] sm:$0xff] %vm29, %v103
  // Predicated region
  $region22: #{_lambda_.23} parent=0 // pred_check
    %p105 = pneg %p17
  $region23: #{_lambda_.23} parent=0 // pred_check_branch
    %107 = sbr.rel (%p105) target = $region25
  $region24: #{_lambda_.23} parent=0 // pred_region
    %v108 = vld [vmem:[#allocation2] sm:$0xff]
    %v109 = vld [vmem:[%s2] sm:$0x1]
    %v111 = vlaneseq
    %v112 = vshrl.u32 %v111, 7
    %v113 = vsub.s32 0, %v112
    %v114 = vrot.slane %v109, %v113
    %v116 = vadd.f32 %v108, %v114
    %v117 = vmul.f32 %v116, 0.5
    %v118 = vmul.f32 %v116, 0.70710677
    %v119 = verf.f32.pop %v118
    %v120 = vadd.f32 %v119, 1.0
    %v121 = vmul.f32 %v117, %v120
    %v122 = vld [vmem:[%s3] sm:$0xff]
    %v123 = vadd.f32 %v121, %v122
    %124 = vst.msk [vmem:[%s4] sm:$0xff] %vm29, %v123
  $region25: #{_lambda_.23} parent=0 // pred_fallthru
    _
  // Predicated region
  $region26: #{_lambda_.23} parent=0 // pred_check
    _
  $region27: #{_lambda_.23} parent=0 // pred_check_branch
    %126 = sbr.rel (0) target = $region29
  $region28: #{_lambda_.23} parent=0 // pred_region
    _
  $region29: #{_lambda_.23} parent=0 // pred_fallthru
    _
  // Predicated region
  $region30: #{_lambda_.23} parent=0 // pred_check
    _
  $region31: #{_lambda_.23} parent=0 // pred_check_branch
    %128 = sbr.rel (0) target = $region33
  $region32: #{_lambda_.23} parent=0 // pred_region
    _
  $region33: #{_lambda_.23} parent=0 // pred_fallthru
    _

// kernel: _lambda_.24
$region0: #{_lambda_.24}
  #allocation0 [shape = 'u32[]', space=smem, size = 0x4, offset = 0x4, fixed_abs, tag = 'smem constant byte address 0x4 - core index']
  #allocation1 [shape = 'u32[144,128]{1,0:T(1,128)}', space=vmem, size = 0x12000, scoped, tag = 'internal scratch']
  #allocation2 [shape = 'f32[8,32]{1,0:T(8,128)}', space=vmem, size = 0x1000, scoped, tag = 'scratch operand']
  %s0 = inlined_call_operand.vmem [shape: f32[8,32], index: 0, kind: input, shape index: {}]
  %s1 = inlined_call_operand.vmem [shape: f32[32,32], index: 1, kind: input, shape index: {}]
  %s2 = inlined_call_operand.vmem [shape: f32[1,32], index: 2, kind: input, shape index: {}]
  %s3 = inlined_call_operand.vmem [shape: f32[8,32], index: 3, kind: output, shape index: {}]
  %s4 = sld [smem:[#allocation0]]
  $region30: #{_lambda_.24} parent=0
    _
  %s6 = ssub.s32 1, %s4
  %s7 = scalar_select 0, %s6, %s4
  // Predicated region
  $region2: #{_lambda_.24} parent=0 // pred_check
    _
  $region3: #{_lambda_.24} parent=0 // pred_check_branch
    %9 = sbr.rel (0) target = $region5
  $region4: #{_lambda_.24} parent=0 // pred_region
    _
  $region5: #{_lambda_.24} parent=0 // pred_fallthru
    _
  // Predicated region
  $region6: #{_lambda_.24} parent=0 // pred_check
    _
  $region7: #{_lambda_.24} parent=0 // pred_check_branch
    %11 = sbr.rel (0) target = $region9
  $region8: #{_lambda_.24} parent=0 // pred_region
    _
  $region9: #{_lambda_.24} parent=0 // pred_fallthru
    _
  // Predicated region
  $region10: #{_lambda_.24} parent=0 // pred_check
    _
  $region11: #{_lambda_.24} parent=0 // pred_check_branch
    %13 = sbr.rel (0) target = $region13
  $region12: #{_lambda_.24} parent=0 // pred_region
    _
  $region13: #{_lambda_.24} parent=0 // pred_fallthru
    _
  %p14 = scmp.eq.s32.totalorder 0, 0
  // Predicated region
  $region14: #{_lambda_.24} parent=0 // pred_check
    %p15 = pneg %p14
  $region15: #{_lambda_.24} parent=0 // pred_check_branch
    %17 = sbr.rel (%p15) target = $region17
  $region16: #{_lambda_.24} parent=0 // pred_region
    %vm18 = vcmask 261120
    %19 = vst.msk [vmem:[#allocation2] sm:$0xff] %vm18, 0.0
  $region17: #{_lambda_.24} parent=0 // pred_fallthru
    _
  %v20 = vld [vmem:[#allocation2] sm:$0xff]
  %v21 = vld [vmem:[%s0] sm:$0xff]
  %v22 = vld [vmem:[%s1] sm:$0xff]
  %v23 = vld [vmem:[%s1 + $0x8] sm:$0xff]
  %v24 = vld [vmem:[%s1 + $0x10] sm:$0xff]
  %v25 = vld [vmem:[%s1 + $0x18] sm:$0xff]
  %vm26 = vcmask 261120
  %v28 = vsel %vm26, %v21, 0
  %30 = vmatprep.subr.mxu0 0.0
  %31 = vmatpush1.msra.mxu0 0.0
  %32 = vmatprep.subr.mxu0 0.0
  %33 = vmatpush1.msra.mxu0 0.0
  %34 = vmatprep.subr.mxu0 0.0
  %35 = vmatpush1.msra.mxu0 0.0
  %36 = vmatprep.subr.mxu0 0.0
  %37 = vmatpush1.msra.mxu0 0.0
  %38 = vmatprep.subr.mxu0 0.0
  %39 = vmatpush1.msra.mxu0 0.0
  %40 = vmatprep.subr.mxu0 0.0
  %41 = vmatpush1.msra.mxu0 0.0
  %42 = vmatprep.subr.mxu0 0.0
  %43 = vmatpush1.msra.mxu0 0.0
  %44 = vmatprep.subr.mxu0 0.0
  %45 = vmatpush1.msra.mxu0 0.0
  %46 = vmatprep.subr.mxu0 0.0
  %47 = vmatpush1.msra.mxu0 0.0
  %48 = vmatprep.subr.mxu0 0.0
  %49 = vmatpush1.msra.mxu0 0.0
  %50 = vmatprep.subr.mxu0 0.0
  %51 = vmatpush1.msra.mxu0 0.0
  %52 = vmatprep.subr.mxu0 0.0
  %53 = vmatpush1.msra.mxu0 0.0
  %54 = vmatprep.subr.mxu0 0.0
  %55 = vmatpush1.msra.mxu0 %v25
  %56 = vmatprep.subr.mxu0 0.0
  %57 = vmatpush1.msra.mxu0 %v24
  %58 = vmatprep.subr.mxu0 0.0
  %59 = vmatpush1.msra.mxu0 %v23
  %60 = vmatprep.subr.mxu0 0.0
  %61 = vmatpush1.msra.mxu0 %v22
  %62 = vmatprep.subr.mxu0 0.0
  %63 = vmatpush2.msra.mxu0 0.0
  %64 = vmatprep.subr.mxu0 0.0
  %65 = vmatpush2.msra.mxu0 0.0
  %66 = vmatprep.subr.mxu0 0.0
  %67 = vmatpush2.msra.mxu0 0.0
  %68 = vmatprep.subr.mxu0 0.0
  %69 = vmatpush2.msra.mxu0 0.0
  %70 = vmatprep.subr.mxu0 0.0
  %71 = vmatpush2.msra.mxu0 0.0
  %72 = vmatprep.subr.mxu0 0.0
  %73 = vmatpush2.msra.mxu0 0.0
  %74 = vmatprep.subr.mxu0 0.0
  %75 = vmatpush2.msra.mxu0 0.0
  %76 = vmatprep.subr.mxu0 0.0
  %77 = vmatpush2.msra.mxu0 0.0
  %78 = vmatprep.subr.mxu0 0.0
  %79 = vmatpush2.msra.mxu0 0.0
  %80 = vmatprep.subr.mxu0 0.0
  %81 = vmatpush2.msra.mxu0 0.0
  %82 = vmatprep.subr.mxu0 0.0
  %83 = vmatpush2.msra.mxu0 0.0
  %84 = vmatprep.subr.mxu0 0.0
  %85 = vmatpush2.msra.mxu0 0.0
  %86 = vmatprep.subr.mxu0 0.0
  %87 = vmatpush2.msra.mxu0 0.0
  %88 = vmatprep.subr.mxu0 0.0
  %89 = vmatpush2.msra.mxu0 0.0
  %90 = vmatprep.subr.mxu0 0.0
  %91 = vmatpush2.msra.mxu0 0.0
  %92 = vmatprep.subr.mxu0 0.0
  %93 = vmatpush2.msra.mxu0 0.0
  %94 = vmatprep.mubr.f32.mxu0 0.0
  %95 = vmatmul.mubr.f32.gmra.mxu0 %v28
  %v96 = vpop.f32.mrf.mxu0
  %v97 = vadd.f32 0.0, %v96
  %v98 = vpop.f32.mrf.mxu0
  %99 = vdwg.mxu0
  %v100 = vadd.f32 %v20, %v97
  %101 = vst.msk [vmem:[#allocation2] sm:$0xff] %vm26, %v100
  // Predicated region
  $region18: #{_lambda_.24} parent=0 // pred_check
    %p102 = pneg %p14
  $region19: #{_lambda_.24} parent=0 // pred_check_branch
    %104 = sbr.rel (%p102) target = $region21
  $region20: #{_lambda_.24} parent=0 // pred_region
    %v105 = vld [vmem:[#allocation2] sm:$0xff]
    %v106 = vld [vmem:[%s2] sm:$0x1]
    %v108 = vlaneseq
    %v109 = vshrl.u32 %v108, 7
    %v110 = vsub.s32 0, %v109
    %v111 = vrot.slane %v106, %v110
    %v113 = vadd.f32 %v105, %v111
    %114 = vst.msk [vmem:[%s3] sm:$0xff] %vm26, %v113
  $region21: #{_lambda_.24} parent=0 // pred_fallthru
    _
  // Predicated region
  $region22: #{_lambda_.24} parent=0 // pred_check
    _
  $region23: #{_lambda_.24} parent=0 // pred_check_branch
    %116 = sbr.rel (0) target = $region25
  $region24: #{_lambda_.24} parent=0 // pred_region
    _
  $region25: #{_lambda_.24} parent=0 // pred_fallthru
    _
  // Predicated region
  $region26: #{_lambda_.24} parent=0 // pred_check
    _
  $region27: #{_lambda_.24} parent=0 // pred_check_branch
    %118 = sbr.rel (0) target = $region29
  $region28: #{_lambda_.24} parent=0 // pred_region
    _
  $region29: #{_lambda_.24} parent=0 // pred_fallthru
    _

// kernel: _lambda_.30
$region0: #{_lambda_.30}
  #allocation0 [shape = 'u32[]', space=smem, size = 0x4, offset = 0x4, fixed_abs, tag = 'smem constant byte address 0x4 - core index']
  #allocation1 [shape = 'u32[144,128]{1,0:T(1,128)}', space=vmem, size = 0x12000, scoped, tag = 'internal scratch']
  %s0 = inlined_call_operand.vmem [shape: f32[16,2], index: 0, kind: input, shape index: {}]
  %s1 = inlined_call_operand.vmem [shape: f32[2,32], index: 1, kind: input, shape index: {}]
  %s2 = inlined_call_operand.vmem [shape: f32[1,32], index: 2, kind: input, shape index: {}, may-alias: {2,4}]
  %s3 = inlined_call_operand.vmem [shape: f32[32,32], index: 3, kind: input, shape index: {}]
  %s4 = inlined_call_operand.vmem [shape: f32[1,32], index: 4, kind: input, shape index: {}, may-alias: {2,4}]
  %s5 = inlined_call_operand.vmem [shape: f32[32,2], index: 5, kind: input, shape index: {}]
  %s6 = inlined_call_operand.vmem [shape: f32[1,2], index: 6, kind: input, shape index: {}]
  %s7 = inlined_call_operand.vmem [shape: f32[16,2], index: 7, kind: output, shape index: {}]
  %s8 = sld [smem:[#allocation0]]
  $region38: #{_lambda_.30} parent=0
    _
  %s10 = ssub.s32 1, %s8
  %s11 = scalar_select 0, %s10, %s8
  // Predicated region
  $region2: #{_lambda_.30} parent=0 // pred_check
    _
  $region3: #{_lambda_.30} parent=0 // pred_check_branch
    %13 = sbr.rel (0) target = $region5
  $region4: #{_lambda_.30} parent=0 // pred_region
    _
  $region5: #{_lambda_.30} parent=0 // pred_fallthru
    _
  // Predicated region
  $region6: #{_lambda_.30} parent=0 // pred_check
    _
  $region7: #{_lambda_.30} parent=0 // pred_check_branch
    %15 = sbr.rel (0) target = $region9
  $region8: #{_lambda_.30} parent=0 // pred_region
    _
  $region9: #{_lambda_.30} parent=0 // pred_fallthru
    _
  // Predicated region
  $region10: #{_lambda_.30} parent=0 // pred_check
    _
  $region11: #{_lambda_.30} parent=0 // pred_check_branch
    %17 = sbr.rel (0) target = $region13
  $region12: #{_lambda_.30} parent=0 // pred_region
    _
  $region13: #{_lambda_.30} parent=0 // pred_fallthru
    _
  // Predicated region
  $region14: #{_lambda_.30} parent=0 // pred_check
    _
  $region15: #{_lambda_.30} parent=0 // pred_check_branch
    %19 = sbr.rel (0) target = $region17
  $region16: #{_lambda_.30} parent=0 // pred_region
    _
  $region17: #{_lambda_.30} parent=0 // pred_fallthru
    _
  // Predicated region
  $region18: #{_lambda_.30} parent=0 // pred_check
    _
  $region19: #{_lambda_.30} parent=0 // pred_check_branch
    %21 = sbr.rel (0) target = $region21
  $region20: #{_lambda_.30} parent=0 // pred_region
    _
  $region21: #{_lambda_.30} parent=0 // pred_fallthru
    _
  // Predicated region
  $region22: #{_lambda_.30} parent=0 // pred_check
    _
  $region23: #{_lambda_.30} parent=0 // pred_check_branch
    %23 = sbr.rel (0) target = $region25
  $region24: #{_lambda_.30} parent=0 // pred_region
    _
  $region25: #{_lambda_.30} parent=0 // pred_fallthru
    _
  // Predicated region
  $region26: #{_lambda_.30} parent=0 // pred_check
    _
  $region27: #{_lambda_.30} parent=0 // pred_check_branch
    %25 = sbr.rel (0) target = $region29
  $region28: #{_lambda_.30} parent=0 // pred_region
    _
  $region29: #{_lambda_.30} parent=0 // pred_fallthru
    _
  %v26 = vld [vmem:[%s0] sm:$0xff]
  %v27 = vld [vmem:[%s0 + $0x8] sm:$0xff]
  %v28 = vld [vmem:[%s1] sm:$0x3]
  %v29 = vld [vmem:[%s2] sm:$0x1]
  %v31 = vlaneseq
  %v32 = vshrl.u32 %v31, 7
  %v33 = vsub.s32 0, %v32
  %v34 = vrot.slane %v29, %v33
  %vm36 = vcmask 15360
  %v38 = vsel %vm36, %v26, 0
  %v41 = vsel %vm36, %v27, 0
  %vm43 = vcmask 1041408
  %v45 = vsel %vm43, %v28, 0
  %47 = vmatprep.subr.mxu0 0.0
  %48 = vmatpush1.msra.mxu0 0.0
  %49 = vmatprep.subr.mxu0 0.0
  %50 = vmatpush1.msra.mxu0 0.0
  %51 = vmatprep.subr.mxu0 0.0
  %52 = vmatpush1.msra.mxu0 0.0
  %53 = vmatprep.subr.mxu0 0.0
  %54 = vmatpush1.msra.mxu0 0.0
  %55 = vmatprep.subr.mxu0 0.0
  %56 = vmatpush1.msra.mxu0 0.0
  %57 = vmatprep.subr.mxu0 0.0
  %58 = vmatpush1.msra.mxu0 0.0
  %59 = vmatprep.subr.mxu0 0.0
  %60 = vmatpush1.msra.mxu0 0.0
  %61 = vmatprep.subr.mxu0 0.0
  %62 = vmatpush1.msra.mxu0 0.0
  %63 = vmatprep.subr.mxu0 0.0
  %64 = vmatpush1.msra.mxu0 0.0
  %65 = vmatprep.subr.mxu0 0.0
  %66 = vmatpush1.msra.mxu0 0.0
  %67 = vmatprep.subr.mxu0 0.0
  %68 = vmatpush1.msra.mxu0 0.0
  %69 = vmatprep.subr.mxu0 0.0
  %70 = vmatpush1.msra.mxu0 0.0
  %71 = vmatprep.subr.mxu0 0.0
  %72 = vmatpush1.msra.mxu0 0.0
  %73 = vmatprep.subr.mxu0 0.0
  %74 = vmatpush1.msra.mxu0 0.0
  %75 = vmatprep.subr.mxu0 0.0
  %76 = vmatpush1.msra.mxu0 0.0
  %77 = vmatprep.subr.mxu0 0.0
  %78 = vmatpush1.msra.mxu0 %v45
  %79 = vmatprep.subr.mxu0 0.0
  %80 = vmatpush2.msra.mxu0 0.0
  %81 = vmatprep.subr.mxu0 0.0
  %82 = vmatpush2.msra.mxu0 0.0
  %83 = vmatprep.subr.mxu0 0.0
  %84 = vmatpush2.msra.mxu0 0.0
  %85 = vmatprep.subr.mxu0 0.0
  %86 = vmatpush2.msra.mxu0 0.0
  %87 = vmatprep.subr.mxu0 0.0
  %88 = vmatpush2.msra.mxu0 0.0
  %89 = vmatprep.subr.mxu0 0.0
  %90 = vmatpush2.msra.mxu0 0.0
  %91 = vmatprep.subr.mxu0 0.0
  %92 = vmatpush2.msra.mxu0 0.0
  %93 = vmatprep.subr.mxu0 0.0
  %94 = vmatpush2.msra.mxu0 0.0
  %95 = vmatprep.subr.mxu0 0.0
  %96 = vmatpush2.msra.mxu0 0.0
  %97 = vmatprep.subr.mxu0 0.0
  %98 = vmatpush2.msra.mxu0 0.0
  %99 = vmatprep.subr.mxu0 0.0
  %100 = vmatpush2.msra.mxu0 0.0
  %101 = vmatprep.subr.mxu0 0.0
  %102 = vmatpush2.msra.mxu0 0.0
  %103 = vmatprep.subr.mxu0 0.0
  %104 = vmatpush2.msra.mxu0 0.0
  %105 = vmatprep.subr.mxu0 0.0
  %106 = vmatpush2.msra.mxu0 0.0
  %107 = vmatprep.subr.mxu0 0.0
  %108 = vmatpush2.msra.mxu0 0.0
  %109 = vmatprep.subr.mxu0 0.0
  %110 = vmatpush2.msra.mxu0 0.0
  %111 = vmatprep.mubr.f32.mxu0 0.0
  %112 = vmatmul.mubr.f32.gmra.mxu0 %v38
  %v113 = vpop.f32.mrf.mxu0
  %v114 = vadd.f32 %v34, %v113
  %v115 = vpop.f32.mrf.mxu0
  %116 = vmatprep.mubr.f32.mxu0 0.0
  %117 = vmatmul.mubr.f32.gmra.mxu0 %v41
  %v118 = vpop.f32.mrf.mxu0
  %v119 = vadd.f32 %v34, %v118
  %v120 = vpop.f32.mrf.mxu0
  %121 = vdwg.mxu0
  %v122 = vmul.f32 %v114, 0.5
  %v123 = vmul.f32 %v119, 0.5
  %v124 = vmul.f32 %v114, 0.70710677
  %v125 = vmul.f32 %v119, 0.70710677
  %v126 = verf.f32.pop %v124
  %v127 = verf.f32.pop %v125
  %v128 = vadd.f32 %v126, 1.0
  %v129 = vadd.f32 %v127, 1.0
  %v130 = vmul.f32 %v122, %v128
  %v131 = vmul.f32 %v123, %v129
  %v132 = vld [vmem:[%s3] sm:$0xff]
  %v133 = vld [vmem:[%s3 + $0x8] sm:$0xff]
  %v134 = vld [vmem:[%s3 + $0x10] sm:$0xff]
  %v135 = vld [vmem:[%s3 + $0x18] sm:$0xff]
  %v136 = vld [vmem:[%s4] sm:$0x1]
  %v138 = vlaneseq
  %v139 = vshrl.u32 %v138, 7
  %v140 = vsub.s32 0, %v139
  %v141 = vrot.slane %v136, %v140
  %vm143 = vcmask 261120
  %v145 = vsel %vm143, %v130, 0
  %v148 = vsel %vm143, %v131, 0
  %150 = vmatprep.subr.mxu0 0.0
  %151 = vmatpush1.msra.mxu0 0.0
  %152 = vmatprep.subr.mxu0 0.0
  %153 = vmatpush1.msra.mxu0 0.0
  %154 = vmatprep.subr.mxu0 0.0
  %155 = vmatpush1.msra.mxu0 0.0
  %156 = vmatprep.subr.mxu0 0.0
  %157 = vmatpush1.msra.mxu0 0.0
  %158 = vmatprep.subr.mxu0 0.0
  %159 = vmatpush1.msra.mxu0 0.0
  %160 = vmatprep.subr.mxu0 0.0
  %161 = vmatpush1.msra.mxu0 0.0
  %162 = vmatprep.subr.mxu0 0.0
  %163 = vmatpush1.msra.mxu0 0.0
  %164 = vmatprep.subr.mxu0 0.0
  %165 = vmatpush1.msra.mxu0 0.0
  %166 = vmatprep.subr.mxu0 0.0
  %167 = vmatpush1.msra.mxu0 0.0
  %168 = vmatprep.subr.mxu0 0.0
  %169 = vmatpush1.msra.mxu0 0.0
  %170 = vmatprep.subr.mxu0 0.0
  %171 = vmatpush1.msra.mxu0 0.0
  %172 = vmatprep.subr.mxu0 0.0
  %173 = vmatpush1.msra.mxu0 0.0
  %174 = vmatprep.subr.mxu0 0.0
  %175 = vmatpush1.msra.mxu0 %v135
  %176 = vmatprep.subr.mxu0 0.0
  %177 = vmatpush1.msra.mxu0 %v134
  %178 = vmatprep.subr.mxu0 0.0
  %179 = vmatpush1.msra.mxu0 %v133
  %180 = vmatprep.subr.mxu0 0.0
  %181 = vmatpush1.msra.mxu0 %v132
  %182 = vmatprep.subr.mxu0 0.0
  %183 = vmatpush2.msra.mxu0 0.0
  %184 = vmatprep.subr.mxu0 0.0
  %185 = vmatpush2.msra.mxu0 0.0
  %186 = vmatprep.subr.mxu0 0.0
  %187 = vmatpush2.msra.mxu0 0.0
  %188 = vmatprep.subr.mxu0 0.0
  %189 = vmatpush2.msra.mxu0 0.0
  %190 = vmatprep.subr.mxu0 0.0
  %191 = vmatpush2.msra.mxu0 0.0
  %192 = vmatprep.subr.mxu0 0.0
  %193 = vmatpush2.msra.mxu0 0.0
  %194 = vmatprep.subr.mxu0 0.0
  %195 = vmatpush2.msra.mxu0 0.0
  %196 = vmatprep.subr.mxu0 0.0
  %197 = vmatpush2.msra.mxu0 0.0
  %198 = vmatprep.subr.mxu0 0.0
  %199 = vmatpush2.msra.mxu0 0.0
  %200 = vmatprep.subr.mxu0 0.0
  %201 = vmatpush2.msra.mxu0 0.0
  %202 = vmatprep.subr.mxu0 0.0
  %203 = vmatpush2.msra.mxu0 0.0
  %204 = vmatprep.subr.mxu0 0.0
  %205 = vmatpush2.msra.mxu0 0.0
  %206 = vmatprep.subr.mxu0 0.0
  %207 = vmatpush2.msra.mxu0 0.0
  %208 = vmatprep.subr.mxu0 0.0
  %209 = vmatpush2.msra.mxu0 0.0
  %210 = vmatprep.subr.mxu0 0.0
  %211 = vmatpush2.msra.mxu0 0.0
  %212 = vmatprep.subr.mxu0 0.0
  %213 = vmatpush2.msra.mxu0 0.0
  %214 = vmatprep.mubr.f32.mxu0 0.0
  %215 = vmatmul.mubr.f32.gmra.mxu0 %v145
  %v216 = vpop.f32.mrf.mxu0
  %v217 = vadd.f32 %v141, %v216
  %v218 = vpop.f32.mrf.mxu0
  %219 = vmatprep.mubr.f32.mxu0 0.0
  %220 = vmatmul.mubr.f32.gmra.mxu0 %v148
  %v221 = vpop.f32.mrf.mxu0
  %v222 = vadd.f32 %v141, %v221
  %v223 = vpop.f32.mrf.mxu0
  %224 = vdwg.mxu0
  %v225 = vmul.f32 %v217, 0.5
  %v226 = vmul.f32 %v222, 0.5
  %v227 = vmul.f32 %v217, 0.70710677
  %v228 = vmul.f32 %v222, 0.70710677
  %v229 = verf.f32.pop %v227
  %v230 = verf.f32.pop %v228
  %v231 = vadd.f32 %v229, 1.0
  %v232 = vadd.f32 %v230, 1.0
  %v233 = vmul.f32 %v225, %v231
  %v234 = vmul.f32 %v226, %v232
  %v235 = vld [vmem:[%s5] sm:$0xff]
  %v236 = vld [vmem:[%s5 + $0x8] sm:$0xff]
  %v237 = vld [vmem:[%s5 + $0x10] sm:$0xff]
  %v238 = vld [vmem:[%s5 + $0x18] sm:$0xff]
  %v239 = vld [vmem:[%s6] sm:$0x1]
  %v241 = vlaneseq
  %v242 = vshrl.u32 %v241, 7
  %v243 = vsub.s32 0, %v242
  %v244 = vrot.slane %v239, %v243
  %v247 = vsel %vm143, %v233, 0
  %v250 = vsel %vm143, %v234, 0
  %252 = vmatprep.subr.mxu0 0.0
  %253 = vmatpush1.msra.mxu0 0.0
  %254 = vmatprep.subr.mxu0 0.0
  %255 = vmatpush1.msra.mxu0 0.0
  %256 = vmatprep.subr.mxu0 0.0
  %257 = vmatpush1.msra.mxu0 0.0
  %258 = vmatprep.subr.mxu0 0.0
  %259 = vmatpush1.msra.mxu0 0.0
  %260 = vmatprep.subr.mxu0 0.0
  %261 = vmatpush1.msra.mxu0 0.0
  %262 = vmatprep.subr.mxu0 0.0
  %263 = vmatpush1.msra.mxu0 0.0
  %264 = vmatprep.subr.mxu0 0.0
  %265 = vmatpush1.msra.mxu0 0.0
  %266 = vmatprep.subr.mxu0 0.0
  %267 = vmatpush1.msra.mxu0 0.0
  %268 = vmatprep.subr.mxu0 0.0
  %269 = vmatpush1.msra.mxu0 0.0
  %270 = vmatprep.subr.mxu0 0.0
  %271 = vmatpush1.msra.mxu0 0.0
  %272 = vmatprep.subr.mxu0 0.0
  %273 = vmatpush1.msra.mxu0 0.0
  %274 = vmatprep.subr.mxu0 0.0
  %275 = vmatpush1.msra.mxu0 0.0
  %276 = vmatprep.subr.mxu0 0.0
  %277 = vmatpush1.msra.mxu0 %v238
  %278 = vmatprep.subr.mxu0 0.0
  %279 = vmatpush1.msra.mxu0 %v237
  %280 = vmatprep.subr.mxu0 0.0
  %281 = vmatpush1.msra.mxu0 %v236
  %282 = vmatprep.subr.mxu0 0.0
  %283 = vmatpush1.msra.mxu0 %v235
  %284 = vmatprep.subr.mxu0 0.0
  %285 = vmatpush2.msra.mxu0 0.0
  %286 = vmatprep.subr.mxu0 0.0
  %287 = vmatpush2.msra.mxu0 0.0
  %288 = vmatprep.subr.mxu0 0.0
  %289 = vmatpush2.msra.mxu0 0.0
  %290 = vmatprep.subr.mxu0 0.0
  %291 = vmatpush2.msra.mxu0 0.0
  %292 = vmatprep.subr.mxu0 0.0
  %293 = vmatpush2.msra.mxu0 0.0
  %294 = vmatprep.subr.mxu0 0.0
  %295 = vmatpush2.msra.mxu0 0.0
  %296 = vmatprep.subr.mxu0 0.0
  %297 = vmatpush2.msra.mxu0 0.0
  %298 = vmatprep.subr.mxu0 0.0
  %299 = vmatpush2.msra.mxu0 0.0
  %300 = vmatprep.subr.mxu0 0.0
  %301 = vmatpush2.msra.mxu0 0.0
  %302 = vmatprep.subr.mxu0 0.0
  %303 = vmatpush2.msra.mxu0 0.0
  %304 = vmatprep.subr.mxu0 0.0
  %305 = vmatpush2.msra.mxu0 0.0
  %306 = vmatprep.subr.mxu0 0.0
  %307 = vmatpush2.msra.mxu0 0.0
  %308 = vmatprep.subr.mxu0 0.0
  %309 = vmatpush2.msra.mxu0 0.0
  %310 = vmatprep.subr.mxu0 0.0
  %311 = vmatpush2.msra.mxu0 0.0
  %312 = vmatprep.subr.mxu0 0.0
  %313 = vmatpush2.msra.mxu0 0.0
  %314 = vmatprep.subr.mxu0 0.0
  %315 = vmatpush2.msra.mxu0 0.0
  %316 = vmatprep.mubr.f32.mxu0 0.0
  %317 = vmatmul.mubr.f32.gmra.mxu0 %v247
  %v318 = vpop.f32.mrf.mxu0
  %v319 = vadd.f32 %v244, %v318
  %v320 = vpop.f32.mrf.mxu0
  %321 = vmatprep.mubr.f32.mxu0 0.0
  %322 = vmatmul.mubr.f32.gmra.mxu0 %v250
  %v323 = vpop.f32.mrf.mxu0
  %v324 = vadd.f32 %v244, %v323
  %v325 = vpop.f32.mrf.mxu0
  %326 = vdwg.mxu0
  %v327 = vsel %vm36, %v319, -inf
  %328 = vmax.xlane.f32.xlu0 %v327
  %v329 = vpop.xlane.xlu0 %328
  %v330 = vsel %vm36, %v324, -inf
  %331 = vmax.xlane.f32.xlu0 %v330
  %v332 = vpop.xlane.xlu0 %331
  %v333 = vsub.f32 %v319, %v329
  %v334 = vsub.f32 %v324, %v332
  %v335 = vmul.f32 %v333, 1.442695
  %v336 = vpow.pop %v335
  %v337 = vmul.f32 %v334, 1.442695
  %v338 = vpow.pop %v337
  %v339 = vsel %vm36, %v336, 0.0
  %340 = vadd.xlane.f32.xlu0 %v339
  %v341 = vpop.xlane.xlu0 %340
  %v342 = vsel %vm36, %v338, 0.0
  %343 = vadd.xlane.f32.xlu0 %v342
  %v344 = vpop.xlane.xlu0 %343
  %v345 = vrcp.pop %v341
  %v346 = vrcp.pop %v344
  %v347 = vmul.f32 %v336, %v345
  %v348 = vmul.f32 %v338, %v346
  %349 = vst.msk [vmem:[%s7] sm:$0xff] %vm36, %v347
  %350 = vst.msk [vmem:[%s7 + $0x8] sm:$0xff] %vm36, %v348
  // Predicated region
  $region30: #{_lambda_.30} parent=0 // pred_check
    _
  $region31: #{_lambda_.30} parent=0 // pred_check_branch
    %352 = sbr.rel (0) target = $region33
  $region32: #{_lambda_.30} parent=0 // pred_region
    _
  $region33: #{_lambda_.30} parent=0 // pred_fallthru
    _
  // Predicated region
  $region34: #{_lambda_.30} parent=0 // pred_check
    _
  $region35: #{_lambda_.30} parent=0 // pred_check_branch
    %354 = sbr.rel (0) target = $region37
  $region36: #{_lambda_.30} parent=0 // pred_region
    _
  $region37: #{_lambda_.30} parent=0 // pred_fallthru
    _

// kernel: _lambda_.19
$region0: #{_lambda_.19}
  #allocation0 [shape = 'u32[]', space=smem, size = 0x4, offset = 0x4, fixed_abs, tag = 'smem constant byte address 0x4 - core index']
  #allocation1 [shape = 'u32[144,128]{1,0:T(1,128)}', space=vmem, size = 0x12000, scoped, tag = 'internal scratch']
  #allocation2 [shape = 'f32[16,32]{1,0:T(8,128)}', space=vmem, size = 0x2000, scoped, tag = 'scratch operand']
  %s0 = inlined_call_operand.vmem [shape: f32[16,8], index: 0, kind: input, shape index: {}]
  %s1 = inlined_call_operand.vmem [shape: f32[8,32], index: 1, kind: input, shape index: {}]
  %s2 = inlined_call_operand.vmem [shape: f32[1,32], index: 2, kind: input, shape index: {}]
  %s3 = inlined_call_operand.vmem [shape: f32[16,32], index: 3, kind: output, shape index: {}]
  %s4 = sld [smem:[#allocation0]]
  $region30: #{_lambda_.19} parent=0
    _
  %s6 = ssub.s32 1, %s4
  %s7 = scalar_select 0, %s6, %s4
  // Predicated region
  $region2: #{_lambda_.19} parent=0 // pred_check
    _
  $region3: #{_lambda_.19} parent=0 // pred_check_branch
    %9 = sbr.rel (0) target = $region5
  $region4: #{_lambda_.19} parent=0 // pred_region
    _
  $region5: #{_lambda_.19} parent=0 // pred_fallthru
    _
  // Predicated region
  $region6: #{_lambda_.19} parent=0 // pred_check
    _
  $region7: #{_lambda_.19} parent=0 // pred_check_branch
    %11 = sbr.rel (0) target = $region9
  $region8: #{_lambda_.19} parent=0 // pred_region
    _
  $region9: #{_lambda_.19} parent=0 // pred_fallthru
    _
  // Predicated region
  $region10: #{_lambda_.19} parent=0 // pred_check
    _
  $region11: #{_lambda_.19} parent=0 // pred_check_branch
    %13 = sbr.rel (0) target = $region13
  $region12: #{_lambda_.19} parent=0 // pred_region
    _
  $region13: #{_lambda_.19} parent=0 // pred_fallthru
    _
  %p14 = scmp.eq.s32.totalorder 0, 0
  // Predicated region
  $region14: #{_lambda_.19} parent=0 // pred_check
    %p15 = pneg %p14
  $region15: #{_lambda_.19} parent=0 // pred_check_branch
    %17 = sbr.rel (%p15) target = $region17
  $region16: #{_lambda_.19} parent=0 // pred_region
    %vm18 = vcmask 261120
    %19 = vst.msk [vmem:[#allocation2] sm:$0xff] %vm18, 0.0
    %20 = vst.msk [vmem:[#allocation2 + $0x8] sm:$0xff] %vm18, 0.0
  $region17: #{_lambda_.19} parent=0 // pred_fallthru
    _
  %v21 = vld [vmem:[#allocation2] sm:$0xff]
  %v22 = vld [vmem:[#allocation2 + $0x8] sm:$0xff]
  %v23 = vld [vmem:[%s0] sm:$0xff]
  %v24 = vld [vmem:[%s0 + $0x8] sm:$0xff]
  %v25 = vld [vmem:[%s1] sm:$0xff]
  %vm26 = vcmask 64512
  %v28 = vsel %vm26, %v23, 0
  %v31 = vsel %vm26, %v24, 0
  %33 = vmatprep.subr.mxu0 0.0
  %34 = vmatpush1.msra.mxu0 0.0
  %35 = vmatprep.subr.mxu0 0.0
  %36 = vmatpush1.msra.mxu0 0.0
  %37 = vmatprep.subr.mxu0 0.0
  %38 = vmatpush1.msra.mxu0 0.0
  %39 = vmatprep.subr.mxu0 0.0
  %40 = vmatpush1.msra.mxu0 0.0
  %41 = vmatprep.subr.mxu0 0.0
  %42 = vmatpush1.msra.mxu0 0.0
  %43 = vmatprep.subr.mxu0 0.0
  %44 = vmatpush1.msra.mxu0 0.0
  %45 = vmatprep.subr.mxu0 0.0
  %46 = vmatpush1.msra.mxu0 0.0
  %47 = vmatprep.subr.mxu0 0.0
  %48 = vmatpush1.msra.mxu0 0.0
  %49 = vmatprep.subr.mxu0 0.0
  %50 = vmatpush1.msra.mxu0 0.0
  %51 = vmatprep.subr.mxu0 0.0
  %52 = vmatpush1.msra.mxu0 0.0
  %53 = vmatprep.subr.mxu0 0.0
  %54 = vmatpush1.msra.mxu0 0.0
  %55 = vmatprep.subr.mxu0 0.0
  %56 = vmatpush1.msra.mxu0 0.0
  %57 = vmatprep.subr.mxu0 0.0
  %58 = vmatpush1.msra.mxu0 0.0
  %59 = vmatprep.subr.mxu0 0.0
  %60 = vmatpush1.msra.mxu0 0.0
  %61 = vmatprep.subr.mxu0 0.0
  %62 = vmatpush1.msra.mxu0 0.0
  %63 = vmatprep.subr.mxu0 0.0
  %64 = vmatpush1.msra.mxu0 %v25
  %65 = vmatprep.subr.mxu0 0.0
  %66 = vmatpush2.msra.mxu0 0.0
  %67 = vmatprep.subr.mxu0 0.0
  %68 = vmatpush2.msra.mxu0 0.0
  %69 = vmatprep.subr.mxu0 0.0
  %70 = vmatpush2.msra.mxu0 0.0
  %71 = vmatprep.subr.mxu0 0.0
  %72 = vmatpush2.msra.mxu0 0.0
  %73 = vmatprep.subr.mxu0 0.0
  %74 = vmatpush2.msra.mxu0 0.0
  %75 = vmatprep.subr.mxu0 0.0
  %76 = vmatpush2.msra.mxu0 0.0
  %77 = vmatprep.subr.mxu0 0.0
  %78 = vmatpush2.msra.mxu0 0.0
  %79 = vmatprep.subr.mxu0 0.0
  %80 = vmatpush2.msra.mxu0 0.0
  %81 = vmatprep.subr.mxu0 0.0
  %82 = vmatpush2.msra.mxu0 0.0
  %83 = vmatprep.subr.mxu0 0.0
  %84 = vmatpush2.msra.mxu0 0.0
  %85 = vmatprep.subr.mxu0 0.0
  %86 = vmatpush2.msra.mxu0 0.0
  %87 = vmatprep.subr.mxu0 0.0
  %88 = vmatpush2.msra.mxu0 0.0
  %89 = vmatprep.subr.mxu0 0.0
  %90 = vmatpush2.msra.mxu0 0.0
  %91 = vmatprep.subr.mxu0 0.0
  %92 = vmatpush2.msra.mxu0 0.0
  %93 = vmatprep.subr.mxu0 0.0
  %94 = vmatpush2.msra.mxu0 0.0
  %95 = vmatprep.subr.mxu0 0.0
  %96 = vmatpush2.msra.mxu0 0.0
  %97 = vmatprep.mubr.f32.mxu0 0.0
  %98 = vmatmul.mubr.f32.gmra.mxu0 %v28
  %v99 = vpop.f32.mrf.mxu0
  %v100 = vadd.f32 0.0, %v99
  %v101 = vpop.f32.mrf.mxu0
  %102 = vmatprep.mubr.f32.mxu0 0.0
  %103 = vmatmul.mubr.f32.gmra.mxu0 %v31
  %v104 = vpop.f32.mrf.mxu0
  %v105 = vadd.f32 0.0, %v104
  %v106 = vpop.f32.mrf.mxu0
  %107 = vdwg.mxu0
  %v108 = vadd.f32 %v21, %v100
  %v109 = vadd.f32 %v22, %v105
  %vm110 = vcmask 261120
  %111 = vst.msk [vmem:[#allocation2] sm:$0xff] %vm110, %v108
  %112 = vst.msk [vmem:[#allocation2 + $0x8] sm:$0xff] %vm110, %v109
  // Predicated region
  $region18: #{_lambda_.19} parent=0 // pred_check
    %p113 = pneg %p14
  $region19: #{_lambda_.19} parent=0 // pred_check_branch
    %115 = sbr.rel (%p113) target = $region21
  $region20: #{_lambda_.19} parent=0 // pred_region
    %v116 = vld [vmem:[#allocation2] sm:$0xff]
    %v117 = vld [vmem:[#allocation2 + $0x8] sm:$0xff]
    %v118 = vld [vmem:[%s2] sm:$0x1]
    %v120 = vlaneseq
    %v121 = vshrl.u32 %v120, 7
    %v122 = vsub.s32 0, %v121
    %v123 = vrot.slane %v118, %v122
    %v125 = vadd.f32 %v116, %v123
    %v126 = vadd.f32 %v117, %v123
    %v127 = vmul.f32 %v125, 0.5
    %v128 = vmul.f32 %v126, 0.5
    %v129 = vmul.f32 %v125, 0.70710677
    %v130 = vmul.f32 %v126, 0.70710677
    %v131 = verf.f32.pop %v129
    %v132 = verf.f32.pop %v130
    %v133 = vadd.f32 %v131, 1.0
    %v134 = vadd.f32 %v132, 1.0
    %v135 = vmul.f32 %v127, %v133
    %v136 = vmul.f32 %v128, %v134
    %137 = vst.msk [vmem:[%s3] sm:$0xff] %vm110, %v135
    %138 = vst.msk [vmem:[%s3 + $0x8] sm:$0xff] %vm110, %v136
  $region21: #{_lambda_.19} parent=0 // pred_fallthru
    _
  // Predicated region
  $region22: #{_lambda_.19} parent=0 // pred_check
    _
  $region23: #{_lambda_.19} parent=0 // pred_check_branch
    %140 = sbr.rel (0) target = $region25
  $region24: #{_lambda_.19} parent=0 // pred_region
    _
  $region25: #{_lambda_.19} parent=0 // pred_fallthru
    _
  // Predicated region
  $region26: #{_lambda_.19} parent=0 // pred_check
    _
  $region27: #{_lambda_.19} parent=0 // pred_check_branch
    %142 = sbr.rel (0) target = $region29
  $region28: #{_lambda_.19} parent=0 // pred_region
    _
  $region29: #{_lambda_.19} parent=0 // pred_fallthru
    _

// kernel: _lambda_.20
$region0: #{_lambda_.20}
  #allocation0 [shape = 'u32[]', space=smem, size = 0x4, offset = 0x4, fixed_abs, tag = 'smem constant byte address 0x4 - core index']
  #allocation1 [shape = 'u32[144,128]{1,0:T(1,128)}', space=vmem, size = 0x12000, scoped, tag = 'internal scratch']
  #allocation2 [shape = 'f32[16,32]{1,0:T(8,128)}', space=vmem, size = 0x2000, scoped, tag = 'scratch operand']
  %s0 = inlined_call_operand.vmem [shape: f32[16,32], index: 0, kind: input, shape index: {}, may-alias: {0,3}]
  %s1 = inlined_call_operand.vmem [shape: f32[32,32], index: 1, kind: input, shape index: {}]
  %s2 = inlined_call_operand.vmem [shape: f32[1,32], index: 2, kind: input, shape index: {}]
  %s3 = inlined_call_operand.vmem [shape: f32[16,32], index: 3, kind: input, shape index: {}, may-alias: {0,3}]
  %s4 = inlined_call_operand.vmem [shape: f32[16,32], index: 4, kind: output, shape index: {}]
  %s5 = sld [smem:[#allocation0]]
  $region34: #{_lambda_.20} parent=0
    _
  %s7 = ssub.s32 1, %s5
  %s8 = scalar_select 0, %s7, %s5
  // Predicated region
  $region2: #{_lambda_.20} parent=0 // pred_check
    _
  $region3: #{_lambda_.20} parent=0 // pred_check_branch
    %10 = sbr.rel (0) target = $region5
  $region4: #{_lambda_.20} parent=0 // pred_region
    _
  $region5: #{_lambda_.20} parent=0 // pred_fallthru
    _
  // Predicated region
  $region6: #{_lambda_.20} parent=0 // pred_check
    _
  $region7: #{_lambda_.20} parent=0 // pred_check_branch
    %12 = sbr.rel (0) target = $region9
  $region8: #{_lambda_.20} parent=0 // pred_region
    _
  $region9: #{_lambda_.20} parent=0 // pred_fallthru
    _
  // Predicated region
  $region10: #{_lambda_.20} parent=0 // pred_check
    _
  $region11: #{_lambda_.20} parent=0 // pred_check_branch
    %14 = sbr.rel (0) target = $region13
  $region12: #{_lambda_.20} parent=0 // pred_region
    _
  $region13: #{_lambda_.20} parent=0 // pred_fallthru
    _
  // Predicated region
  $region14: #{_lambda_.20} parent=0 // pred_check
    _
  $region15: #{_lambda_.20} parent=0 // pred_check_branch
    %16 = sbr.rel (0) target = $region17
  $region16: #{_lambda_.20} parent=0 // pred_region
    _
  $region17: #{_lambda_.20} parent=0 // pred_fallthru
    _
  %p17 = scmp.eq.s32.totalorder 0, 0
  // Predicated region
  $region18: #{_lambda_.20} parent=0 // pred_check
    %p18 = pneg %p17
  $region19: #{_lambda_.20} parent=0 // pred_check_branch
    %20 = sbr.rel (%p18) target = $region21
  $region20: #{_lambda_.20} parent=0 // pred_region
    %vm21 = vcmask 261120
    %22 = vst.msk [vmem:[#allocation2] sm:$0xff] %vm21, 0.0
    %23 = vst.msk [vmem:[#allocation2 + $0x8] sm:$0xff] %vm21, 0.0
  $region21: #{_lambda_.20} parent=0 // pred_fallthru
    _
  %v24 = vld [vmem:[#allocation2] sm:$0xff]
  %v25 = vld [vmem:[#allocation2 + $0x8] sm:$0xff]
  %v26 = vld [vmem:[%s0] sm:$0xff]
  %v27 = vld [vmem:[%s0 + $0x8] sm:$0xff]
  %v28 = vld [vmem:[%s1] sm:$0xff]
  %v29 = vld [vmem:[%s1 + $0x8] sm:$0xff]
  %v30 = vld [vmem:[%s1 + $0x10] sm:$0xff]
  %v31 = vld [vmem:[%s1 + $0x18] sm:$0xff]
  %vm32 = vcmask 261120
  %v34 = vsel %vm32, %v26, 0
  %v37 = vsel %vm32, %v27, 0
  %39 = vmatprep.subr.mxu0 0.0
  %40 = vmatpush1.msra.mxu0 0.0
  %41 = vmatprep.subr.mxu0 0.0
  %42 = vmatpush1.msra.mxu0 0.0
  %43 = vmatprep.subr.mxu0 0.0
  %44 = vmatpush1.msra.mxu0 0.0
  %45 = vmatprep.subr.mxu0 0.0
  %46 = vmatpush1.msra.mxu0 0.0
  %47 = vmatprep.subr.mxu0 0.0
  %48 = vmatpush1.msra.mxu0 0.0
  %49 = vmatprep.subr.mxu0 0.0
  %50 = vmatpush1.msra.mxu0 0.0
  %51 = vmatprep.subr.mxu0 0.0
  %52 = vmatpush1.msra.mxu0 0.0
  %53 = vmatprep.subr.mxu0 0.0
  %54 = vmatpush1.msra.mxu0 0.0
  %55 = vmatprep.subr.mxu0 0.0
  %56 = vmatpush1.msra.mxu0 0.0
  %57 = vmatprep.subr.mxu0 0.0
  %58 = vmatpush1.msra.mxu0 0.0
  %59 = vmatprep.subr.mxu0 0.0
  %60 = vmatpush1.msra.mxu0 0.0
  %61 = vmatprep.subr.mxu0 0.0
  %62 = vmatpush1.msra.mxu0 0.0
  %63 = vmatprep.subr.mxu0 0.0
  %64 = vmatpush1.msra.mxu0 %v31
  %65 = vmatprep.subr.mxu0 0.0
  %66 = vmatpush1.msra.mxu0 %v30
  %67 = vmatprep.subr.mxu0 0.0
  %68 = vmatpush1.msra.mxu0 %v29
  %69 = vmatprep.subr.mxu0 0.0
  %70 = vmatpush1.msra.mxu0 %v28
  %71 = vmatprep.subr.mxu0 0.0
  %72 = vmatpush2.msra.mxu0 0.0
  %73 = vmatprep.subr.mxu0 0.0
  %74 = vmatpush2.msra.mxu0 0.0
  %75 = vmatprep.subr.mxu0 0.0
  %76 = vmatpush2.msra.mxu0 0.0
  %77 = vmatprep.subr.mxu0 0.0
  %78 = vmatpush2.msra.mxu0 0.0
  %79 = vmatprep.subr.mxu0 0.0
  %80 = vmatpush2.msra.mxu0 0.0
  %81 = vmatprep.subr.mxu0 0.0
  %82 = vmatpush2.msra.mxu0 0.0
  %83 = vmatprep.subr.mxu0 0.0
  %84 = vmatpush2.msra.mxu0 0.0
  %85 = vmatprep.subr.mxu0 0.0
  %86 = vmatpush2.msra.mxu0 0.0
  %87 = vmatprep.subr.mxu0 0.0
  %88 = vmatpush2.msra.mxu0 0.0
  %89 = vmatprep.subr.mxu0 0.0
  %90 = vmatpush2.msra.mxu0 0.0
  %91 = vmatprep.subr.mxu0 0.0
  %92 = vmatpush2.msra.mxu0 0.0
  %93 = vmatprep.subr.mxu0 0.0
  %94 = vmatpush2.msra.mxu0 0.0
  %95 = vmatprep.subr.mxu0 0.0
  %96 = vmatpush2.msra.mxu0 0.0
  %97 = vmatprep.subr.mxu0 0.0
  %98 = vmatpush2.msra.mxu0 0.0
  %99 = vmatprep.subr.mxu0 0.0
  %100 = vmatpush2.msra.mxu0 0.0
  %101 = vmatprep.subr.mxu0 0.0
  %102 = vmatpush2.msra.mxu0 0.0
  %103 = vmatprep.mubr.f32.mxu0 0.0
  %104 = vmatmul.mubr.f32.gmra.mxu0 %v34
  %v105 = vpop.f32.mrf.mxu0
  %v106 = vadd.f32 0.0, %v105
  %v107 = vpop.f32.mrf.mxu0
  %108 = vmatprep.mubr.f32.mxu0 0.0
  %109 = vmatmul.mubr.f32.gmra.mxu0 %v37
  %v110 = vpop.f32.mrf.mxu0
  %v111 = vadd.f32 0.0, %v110
  %v112 = vpop.f32.mrf.mxu0
  %113 = vdwg.mxu0
  %v114 = vadd.f32 %v24, %v106
  %v115 = vadd.f32 %v25, %v111
  %116 = vst.msk [vmem:[#allocation2] sm:$0xff] %vm32, %v114
  %117 = vst.msk [vmem:[#allocation2 + $0x8] sm:$0xff] %vm32, %v115
  // Predicated region
  $region22: #{_lambda_.20} parent=0 // pred_check
    %p118 = pneg %p17
  $region23: #{_lambda_.20} parent=0 // pred_check_branch
    %120 = sbr.rel (%p118) target = $region25
  $region24: #{_lambda_.20} parent=0 // pred_region
    %v121 = vld [vmem:[#allocation2] sm:$0xff]
    %v122 = vld [vmem:[#allocation2 + $0x8] sm:$0xff]
    %v123 = vld [vmem:[%s2] sm:$0x1]
    %v125 = vlaneseq
    %v126 = vshrl.u32 %v125, 7
    %v127 = vsub.s32 0, %v126
    %v128 = vrot.slane %v123, %v127
    %v130 = vadd.f32 %v121, %v128
    %v131 = vadd.f32 %v122, %v128
    %v132 = vmul.f32 %v130, 0.5
    %v133 = vmul.f32 %v131, 0.5
    %v134 = vmul.f32 %v130, 0.70710677
    %v135 = vmul.f32 %v131, 0.70710677
    %v136 = verf.f32.pop %v134
    %v137 = verf.f32.pop %v135
    %v138 = vadd.f32 %v136, 1.0
    %v139 = vadd.f32 %v137, 1.0
    %v140 = vmul.f32 %v132, %v138
    %v141 = vmul.f32 %v133, %v139
    %v142 = vld [vmem:[%s3] sm:$0xff]
    %v143 = vld [vmem:[%s3 + $0x8] sm:$0xff]
    %v144 = vadd.f32 %v140, %v142
    %v145 = vadd.f32 %v141, %v143
    %146 = vst.msk [vmem:[%s4] sm:$0xff] %vm32, %v144
    %147 = vst.msk [vmem:[%s4 + $0x8] sm:$0xff] %vm32, %v145
  $region25: #{_lambda_.20} parent=0 // pred_fallthru
    _
  // Predicated region
  $region26: #{_lambda_.20} parent=0 // pred_check
    _
  $region27: #{_lambda_.20} parent=0 // pred_check_branch
    %149 = sbr.rel (0) target = $region29
  $region28: #{_lambda_.20} parent=0 // pred_region
    _
  $region29: #{_lambda_.20} parent=0 // pred_fallthru
    _
  // Predicated region
  $region30: #{_lambda_.20} parent=0 // pred_check
    _
  $region31: #{_lambda_.20} parent=0 // pred_check_branch
    %151 = sbr.rel (0) target = $region33
  $region32: #{_lambda_.20} parent=0 // pred_region
    _
  $region33: #{_lambda_.20} parent=0 // pred_fallthru
    _

// kernel: _lambda_.21
$region0: #{_lambda_.21}
  #allocation0 [shape = 'u32[]', space=smem, size = 0x4, offset = 0x4, fixed_abs, tag = 'smem constant byte address 0x4 - core index']
  #allocation1 [shape = 'u32[144,128]{1,0:T(1,128)}', space=vmem, size = 0x12000, scoped, tag = 'internal scratch']
  #allocation2 [shape = 'f32[16,32]{1,0:T(8,128)}', space=vmem, size = 0x2000, scoped, tag = 'scratch operand']
  %s0 = inlined_call_operand.vmem [shape: f32[16,32], index: 0, kind: input, shape index: {}]
  %s1 = inlined_call_operand.vmem [shape: f32[32,32], index: 1, kind: input, shape index: {}]
  %s2 = inlined_call_operand.vmem [shape: f32[1,32], index: 2, kind: input, shape index: {}]
  %s3 = inlined_call_operand.vmem [shape: f32[16,32], index: 3, kind: output, shape index: {}]
  %s4 = sld [smem:[#allocation0]]
  $region30: #{_lambda_.21} parent=0
    _
  %s6 = ssub.s32 1, %s4
  %s7 = scalar_select 0, %s6, %s4
  // Predicated region
  $region2: #{_lambda_.21} parent=0 // pred_check
    _
  $region3: #{_lambda_.21} parent=0 // pred_check_branch
    %9 = sbr.rel (0) target = $region5
  $region4: #{_lambda_.21} parent=0 // pred_region
    _
  $region5: #{_lambda_.21} parent=0 // pred_fallthru
    _
  // Predicated region
  $region6: #{_lambda_.21} parent=0 // pred_check
    _
  $region7: #{_lambda_.21} parent=0 // pred_check_branch
    %11 = sbr.rel (0) target = $region9
  $region8: #{_lambda_.21} parent=0 // pred_region
    _
  $region9: #{_lambda_.21} parent=0 // pred_fallthru
    _
  // Predicated region
  $region10: #{_lambda_.21} parent=0 // pred_check
    _
  $region11: #{_lambda_.21} parent=0 // pred_check_branch
    %13 = sbr.rel (0) target = $region13
  $region12: #{_lambda_.21} parent=0 // pred_region
    _
  $region13: #{_lambda_.21} parent=0 // pred_fallthru
    _
  %p14 = scmp.eq.s32.totalorder 0, 0
  // Predicated region
  $region14: #{_lambda_.21} parent=0 // pred_check
    %p15 = pneg %p14
  $region15: #{_lambda_.21} parent=0 // pred_check_branch
    %17 = sbr.rel (%p15) target = $region17
  $region16: #{_lambda_.21} parent=0 // pred_region
    %vm18 = vcmask 261120
    %19 = vst.msk [vmem:[#allocation2] sm:$0xff] %vm18, 0.0
    %20 = vst.msk [vmem:[#allocation2 + $0x8] sm:$0xff] %vm18, 0.0
  $region17: #{_lambda_.21} parent=0 // pred_fallthru
    _
  %v21 = vld [vmem:[#allocation2] sm:$0xff]
  %v22 = vld [vmem:[#allocation2 + $0x8] sm:$0xff]
  %v23 = vld [vmem:[%s0] sm:$0xff]
  %v24 = vld [vmem:[%s0 + $0x8] sm:$0xff]
  %v25 = vld [vmem:[%s1] sm:$0xff]
  %v26 = vld [vmem:[%s1 + $0x8] sm:$0xff]
  %v27 = vld [vmem:[%s1 + $0x10] sm:$0xff]
  %v28 = vld [vmem:[%s1 + $0x18] sm:$0xff]
  %vm29 = vcmask 261120
  %v31 = vsel %vm29, %v23, 0
  %v34 = vsel %vm29, %v24, 0
  %36 = vmatprep.subr.mxu0 0.0
  %37 = vmatpush1.msra.mxu0 0.0
  %38 = vmatprep.subr.mxu0 0.0
  %39 = vmatpush1.msra.mxu0 0.0
  %40 = vmatprep.subr.mxu0 0.0
  %41 = vmatpush1.msra.mxu0 0.0
  %42 = vmatprep.subr.mxu0 0.0
  %43 = vmatpush1.msra.mxu0 0.0
  %44 = vmatprep.subr.mxu0 0.0
  %45 = vmatpush1.msra.mxu0 0.0
  %46 = vmatprep.subr.mxu0 0.0
  %47 = vmatpush1.msra.mxu0 0.0
  %48 = vmatprep.subr.mxu0 0.0
  %49 = vmatpush1.msra.mxu0 0.0
  %50 = vmatprep.subr.mxu0 0.0
  %51 = vmatpush1.msra.mxu0 0.0
  %52 = vmatprep.subr.mxu0 0.0
  %53 = vmatpush1.msra.mxu0 0.0
  %54 = vmatprep.subr.mxu0 0.0
  %55 = vmatpush1.msra.mxu0 0.0
  %56 = vmatprep.subr.mxu0 0.0
  %57 = vmatpush1.msra.mxu0 0.0
  %58 = vmatprep.subr.mxu0 0.0
  %59 = vmatpush1.msra.mxu0 0.0
  %60 = vmatprep.subr.mxu0 0.0
  %61 = vmatpush1.msra.mxu0 %v28
  %62 = vmatprep.subr.mxu0 0.0
  %63 = vmatpush1.msra.mxu0 %v27
  %64 = vmatprep.subr.mxu0 0.0
  %65 = vmatpush1.msra.mxu0 %v26
  %66 = vmatprep.subr.mxu0 0.0
  %67 = vmatpush1.msra.mxu0 %v25
  %68 = vmatprep.subr.mxu0 0.0
  %69 = vmatpush2.msra.mxu0 0.0
  %70 = vmatprep.subr.mxu0 0.0
  %71 = vmatpush2.msra.mxu0 0.0
  %72 = vmatprep.subr.mxu0 0.0
  %73 = vmatpush2.msra.mxu0 0.0
  %74 = vmatprep.subr.mxu0 0.0
  %75 = vmatpush2.msra.mxu0 0.0
  %76 = vmatprep.subr.mxu0 0.0
  %77 = vmatpush2.msra.mxu0 0.0
  %78 = vmatprep.subr.mxu0 0.0
  %79 = vmatpush2.msra.mxu0 0.0
  %80 = vmatprep.subr.mxu0 0.0
  %81 = vmatpush2.msra.mxu0 0.0
  %82 = vmatprep.subr.mxu0 0.0
  %83 = vmatpush2.msra.mxu0 0.0
  %84 = vmatprep.subr.mxu0 0.0
  %85 = vmatpush2.msra.mxu0 0.0
  %86 = vmatprep.subr.mxu0 0.0
  %87 = vmatpush2.msra.mxu0 0.0
  %88 = vmatprep.subr.mxu0 0.0
  %89 = vmatpush2.msra.mxu0 0.0
  %90 = vmatprep.subr.mxu0 0.0
  %91 = vmatpush2.msra.mxu0 0.0
  %92 = vmatprep.subr.mxu0 0.0
  %93 = vmatpush2.msra.mxu0 0.0
  %94 = vmatprep.subr.mxu0 0.0
  %95 = vmatpush2.msra.mxu0 0.0
  %96 = vmatprep.subr.mxu0 0.0
  %97 = vmatpush2.msra.mxu0 0.0
  %98 = vmatprep.subr.mxu0 0.0
  %99 = vmatpush2.msra.mxu0 0.0
  %100 = vmatprep.mubr.f32.mxu0 0.0
  %101 = vmatmul.mubr.f32.gmra.mxu0 %v31
  %v102 = vpop.f32.mrf.mxu0
  %v103 = vadd.f32 0.0, %v102
  %v104 = vpop.f32.mrf.mxu0
  %105 = vmatprep.mubr.f32.mxu0 0.0
  %106 = vmatmul.mubr.f32.gmra.mxu0 %v34
  %v107 = vpop.f32.mrf.mxu0
  %v108 = vadd.f32 0.0, %v107
  %v109 = vpop.f32.mrf.mxu0
  %110 = vdwg.mxu0
  %v111 = vadd.f32 %v21, %v103
  %v112 = vadd.f32 %v22, %v108
  %113 = vst.msk [vmem:[#allocation2] sm:$0xff] %vm29, %v111
  %114 = vst.msk [vmem:[#allocation2 + $0x8] sm:$0xff] %vm29, %v112
  // Predicated region
  $region18: #{_lambda_.21} parent=0 // pred_check
    %p115 = pneg %p14
  $region19: #{_lambda_.21} parent=0 // pred_check_branch
    %117 = sbr.rel (%p115) target = $region21
  $region20: #{_lambda_.21} parent=0 // pred_region
    %v118 = vld [vmem:[#allocation2] sm:$0xff]
    %v119 = vld [vmem:[#allocation2 + $0x8] sm:$0xff]
    %v120 = vld [vmem:[%s2] sm:$0x1]
    %v122 = vlaneseq
    %v123 = vshrl.u32 %v122, 7
    %v124 = vsub.s32 0, %v123
    %v125 = vrot.slane %v120, %v124
    %v127 = vadd.f32 %v118, %v125
    %v128 = vadd.f32 %v119, %v125
    %129 = vst.msk [vmem:[%s3] sm:$0xff] %vm29, %v127
    %130 = vst.msk [vmem:[%s3 + $0x8] sm:$0xff] %vm29, %v128
  $region21: #{_lambda_.21} parent=0 // pred_fallthru
    _
  // Predicated region
  $region22: #{_lambda_.21} parent=0 // pred_check
    _
  $region23: #{_lambda_.21} parent=0 // pred_check_branch
    %132 = sbr.rel (0) target = $region25
  $region24: #{_lambda_.21} parent=0 // pred_region
    _
  $region25: #{_lambda_.21} parent=0 // pred_fallthru
    _
  // Predicated region
  $region26: #{_lambda_.21} parent=0 // pred_check
    _
  $region27: #{_lambda_.21} parent=0 // pred_check_branch
    %134 = sbr.rel (0) target = $region29
  $region28: #{_lambda_.21} parent=0 // pred_region
    _
  $region29: #{_lambda_.21} parent=0 // pred_fallthru
    _

// kernel: _lambda_.35
$region0: #{_lambda_.35}
  #allocation0 [shape = 'u32[]', space=smem, size = 0x4, offset = 0x4, fixed_abs, tag = 'smem constant byte address 0x4 - core index']
  #allocation1 [shape = 'u32[144,128]{1,0:T(1,128)}', space=vmem, size = 0x12000, scoped, tag = 'internal scratch']
  #allocation2 [shape = 'f32[16,32]{1,0:T(8,128)}', space=vmem, size = 0x2000, scoped, tag = 'scratch operand']
  %s0 = inlined_call_operand.vmem [shape: f32[16,32], index: 0, kind: input, shape index: {}]
  %s1 = inlined_call_operand.vmem [shape: f32[32,32], index: 1, kind: input, shape index: {}]
  %s2 = inlined_call_operand.vmem [shape: f32[1,32], index: 2, kind: input, shape index: {}]
  %s3 = inlined_call_operand.vmem [shape: f32[16,32], index: 3, kind: output, shape index: {}]
  %s4 = sld [smem:[#allocation0]]
  $region30: #{_lambda_.35} parent=0
    _
  %s6 = ssub.s32 1, %s4
  %s7 = scalar_select 0, %s6, %s4
  // Predicated region
  $region2: #{_lambda_.35} parent=0 // pred_check
    _
  $region3: #{_lambda_.35} parent=0 // pred_check_branch
    %9 = sbr.rel (0) target = $region5
  $region4: #{_lambda_.35} parent=0 // pred_region
    _
  $region5: #{_lambda_.35} parent=0 // pred_fallthru
    _
  // Predicated region
  $region6: #{_lambda_.35} parent=0 // pred_check
    _
  $region7: #{_lambda_.35} parent=0 // pred_check_branch
    %11 = sbr.rel (0) target = $region9
  $region8: #{_lambda_.35} parent=0 // pred_region
    _
  $region9: #{_lambda_.35} parent=0 // pred_fallthru
    _
  // Predicated region
  $region10: #{_lambda_.35} parent=0 // pred_check
    _
  $region11: #{_lambda_.35} parent=0 // pred_check_branch
    %13 = sbr.rel (0) target = $region13
  $region12: #{_lambda_.35} parent=0 // pred_region
    _
  $region13: #{_lambda_.35} parent=0 // pred_fallthru
    _
  %p14 = scmp.eq.s32.totalorder 0, 0
  // Predicated region
  $region14: #{_lambda_.35} parent=0 // pred_check
    %p15 = pneg %p14
  $region15: #{_lambda_.35} parent=0 // pred_check_branch
    %17 = sbr.rel (%p15) target = $region17
  $region16: #{_lambda_.35} parent=0 // pred_region
    %vm18 = vcmask 261120
    %19 = vst.msk [vmem:[#allocation2] sm:$0xff] %vm18, 0.0
    %20 = vst.msk [vmem:[#allocation2 + $0x8] sm:$0xff] %vm18, 0.0
  $region17: #{_lambda_.35} parent=0 // pred_fallthru
    _
  %v21 = vld [vmem:[#allocation2] sm:$0xff]
  %v22 = vld [vmem:[#allocation2 + $0x8] sm:$0xff]
  %v23 = vld [vmem:[%s0] sm:$0xff]
  %v24 = vld [vmem:[%s0 + $0x8] sm:$0xff]
  %v25 = vld [vmem:[%s1] sm:$0xff]
  %v26 = vld [vmem:[%s1 + $0x8] sm:$0xff]
  %v27 = vld [vmem:[%s1 + $0x10] sm:$0xff]
  %v28 = vld [vmem:[%s1 + $0x18] sm:$0xff]
  %vm29 = vcmask 261120
  %v31 = vsel %vm29, %v23, 0
  %v34 = vsel %vm29, %v24, 0
  %36 = vmatprep.subr.mxu0 0.0
  %37 = vmatpush1.msra.mxu0 0.0
  %38 = vmatprep.subr.mxu0 0.0
  %39 = vmatpush1.msra.mxu0 0.0
  %40 = vmatprep.subr.mxu0 0.0
  %41 = vmatpush1.msra.mxu0 0.0
  %42 = vmatprep.subr.mxu0 0.0
  %43 = vmatpush1.msra.mxu0 0.0
  %44 = vmatprep.subr.mxu0 0.0
  %45 = vmatpush1.msra.mxu0 0.0
  %46 = vmatprep.subr.mxu0 0.0
  %47 = vmatpush1.msra.mxu0 0.0
  %48 = vmatprep.subr.mxu0 0.0
  %49 = vmatpush1.msra.mxu0 0.0
  %50 = vmatprep.subr.mxu0 0.0
  %51 = vmatpush1.msra.mxu0 0.0
  %52 = vmatprep.subr.mxu0 0.0
  %53 = vmatpush1.msra.mxu0 0.0
  %54 = vmatprep.subr.mxu0 0.0
  %55 = vmatpush1.msra.mxu0 0.0
  %56 = vmatprep.subr.mxu0 0.0
  %57 = vmatpush1.msra.mxu0 0.0
  %58 = vmatprep.subr.mxu0 0.0
  %59 = vmatpush1.msra.mxu0 0.0
  %60 = vmatprep.subr.mxu0 0.0
  %61 = vmatpush1.msra.mxu0 %v28
  %62 = vmatprep.subr.mxu0 0.0
  %63 = vmatpush1.msra.mxu0 %v27
  %64 = vmatprep.subr.mxu0 0.0
  %65 = vmatpush1.msra.mxu0 %v26
  %66 = vmatprep.subr.mxu0 0.0
  %67 = vmatpush1.msra.mxu0 %v25
  %68 = vmatprep.subr.mxu0 0.0
  %69 = vmatpush2.msra.mxu0 0.0
  %70 = vmatprep.subr.mxu0 0.0
  %71 = vmatpush2.msra.mxu0 0.0
  %72 = vmatprep.subr.mxu0 0.0
  %73 = vmatpush2.msra.mxu0 0.0
  %74 = vmatprep.subr.mxu0 0.0
  %75 = vmatpush2.msra.mxu0 0.0
  %76 = vmatprep.subr.mxu0 0.0
  %77 = vmatpush2.msra.mxu0 0.0
  %78 = vmatprep.subr.mxu0 0.0
  %79 = vmatpush2.msra.mxu0 0.0
  %80 = vmatprep.subr.mxu0 0.0
  %81 = vmatpush2.msra.mxu0 0.0
  %82 = vmatprep.subr.mxu0 0.0
  %83 = vmatpush2.msra.mxu0 0.0
  %84 = vmatprep.subr.mxu0 0.0
  %85 = vmatpush2.msra.mxu0 0.0
  %86 = vmatprep.subr.mxu0 0.0
  %87 = vmatpush2.msra.mxu0 0.0
  %88 = vmatprep.subr.mxu0 0.0
  %89 = vmatpush2.msra.mxu0 0.0
  %90 = vmatprep.subr.mxu0 0.0
  %91 = vmatpush2.msra.mxu0 0.0
  %92 = vmatprep.subr.mxu0 0.0
  %93 = vmatpush2.msra.mxu0 0.0
  %94 = vmatprep.subr.mxu0 0.0
  %95 = vmatpush2.msra.mxu0 0.0
  %96 = vmatprep.subr.mxu0 0.0
  %97 = vmatpush2.msra.mxu0 0.0
  %98 = vmatprep.subr.mxu0 0.0
  %99 = vmatpush2.msra.mxu0 0.0
  %100 = vmatprep.mubr.f32.mxu0 0.0
  %101 = vmatmul.mubr.f32.gmra.mxu0 %v31
  %v102 = vpop.f32.mrf.mxu0
  %v103 = vadd.f32 0.0, %v102
  %v104 = vpop.f32.mrf.mxu0
  %105 = vmatprep.mubr.f32.mxu0 0.0
  %106 = vmatmul.mubr.f32.gmra.mxu0 %v34
  %v107 = vpop.f32.mrf.mxu0
  %v108 = vadd.f32 0.0, %v107
  %v109 = vpop.f32.mrf.mxu0
  %110 = vdwg.mxu0
  %v111 = vadd.f32 %v21, %v103
  %v112 = vadd.f32 %v22, %v108
  %113 = vst.msk [vmem:[#allocation2] sm:$0xff] %vm29, %v111
  %114 = vst.msk [vmem:[#allocation2 + $0x8] sm:$0xff] %vm29, %v112
  // Predicated region
  $region18: #{_lambda_.35} parent=0 // pred_check
    %p115 = pneg %p14
  $region19: #{_lambda_.35} parent=0 // pred_check_branch
    %117 = sbr.rel (%p115) target = $region21
  $region20: #{_lambda_.35} parent=0 // pred_region
    %v118 = vld [vmem:[#allocation2] sm:$0xff]
    %v119 = vld [vmem:[#allocation2 + $0x8] sm:$0xff]
    %v120 = vld [vmem:[%s2] sm:$0x1]
    %v122 = vlaneseq
    %v123 = vshrl.u32 %v122, 7
    %v124 = vsub.s32 0, %v123
    %v125 = vrot.slane %v120, %v124
    %v127 = vadd.f32 %v118, %v125
    %v128 = vadd.f32 %v119, %v125
    %v129 = vmul.f32 %v127, 0.5
    %v130 = vmul.f32 %v128, 0.5
    %v131 = vmul.f32 %v127, 0.70710677
    %v132 = vmul.f32 %v128, 0.70710677
    %v133 = verf.f32.pop %v131
    %v134 = verf.f32.pop %v132
    %v135 = vadd.f32 %v133, 1.0
    %v136 = vadd.f32 %v134, 1.0
    %v137 = vmul.f32 %v129, %v135
    %v138 = vmul.f32 %v130, %v136
    %139 = vst.msk [vmem:[%s3] sm:$0xff] %vm29, %v137
    %140 = vst.msk [vmem:[%s3 + $0x8] sm:$0xff] %vm29, %v138
  $region21: #{_lambda_.35} parent=0 // pred_fallthru
    _
  // Predicated region
  $region22: #{_lambda_.35} parent=0 // pred_check
    _
  $region23: #{_lambda_.35} parent=0 // pred_check_branch
    %142 = sbr.rel (0) target = $region25
  $region24: #{_lambda_.35} parent=0 // pred_region
    _
  $region25: #{_lambda_.35} parent=0 // pred_fallthru
    _
  // Predicated region
  $region26: #{_lambda_.35} parent=0 // pred_check
    _
  $region27: #{_lambda_.35} parent=0 // pred_check_branch
    %144 = sbr.rel (0) target = $region29
  $region28: #{_lambda_.35} parent=0 // pred_region
    _
  $region29: #{_lambda_.35} parent=0 // pred_fallthru
    _

// kernel: _lambda_.27
$region0: #{_lambda_.27}
  #allocation0 [shape = 'u32[]', space=smem, size = 0x4, offset = 0x4, fixed_abs, tag = 'smem constant byte address 0x4 - core index']
  #allocation1 [shape = 'u32[144,128]{1,0:T(1,128)}', space=vmem, size = 0x12000, scoped, tag = 'internal scratch']
  %s0 = inlined_call_operand.vmem [shape: f32[16,32], index: 0, kind: input, shape index: {}]
  %s1 = inlined_call_operand.vmem [shape: f32[16,2], index: 1, kind: input, shape index: {}]
  %s2 = inlined_call_operand.vmem [shape: f32[2,32,32], index: 2, kind: input, shape index: {}]
  %s3 = inlined_call_operand.vmem [shape: f32[2,1,32], index: 3, kind: input, shape index: {}, may-alias: {3,5}]
  %s4 = inlined_call_operand.vmem [shape: f32[2,32,32], index: 4, kind: input, shape index: {}]
  %s5 = inlined_call_operand.vmem [shape: f32[2,1,32], index: 5, kind: input, shape index: {}, may-alias: {3,5}]
  %s6 = inlined_call_operand.vmem [shape: f32[1,32], index: 6, kind: input, shape index: {}]
  %s7 = inlined_call_operand.vmem [shape: f32[1,32], index: 7, kind: input, shape index: {}]
  %s8 = inlined_call_operand.vmem [shape: f32[16,32], index: 8, kind: output, shape index: {}]
  %s9 = sld [smem:[#allocation0]]
  $region42: #{_lambda_.27} parent=0
    _
  %s11 = ssub.s32 1, %s9
  %s12 = scalar_select 0, %s11, %s9
  // Predicated region
  $region2: #{_lambda_.27} parent=0 // pred_check
    _
  $region3: #{_lambda_.27} parent=0 // pred_check_branch
    %14 = sbr.rel (0) target = $region5
  $region4: #{_lambda_.27} parent=0 // pred_region
    _
  $region5: #{_lambda_.27} parent=0 // pred_fallthru
    _
  // Predicated region
  $region6: #{_lambda_.27} parent=0 // pred_check
    _
  $region7: #{_lambda_.27} parent=0 // pred_check_branch
    %16 = sbr.rel (0) target = $region9
  $region8: #{_lambda_.27} parent=0 // pred_region
    _
  $region9: #{_lambda_.27} parent=0 // pred_fallthru
    _
  // Predicated region
  $region10: #{_lambda_.27} parent=0 // pred_check
    _
  $region11: #{_lambda_.27} parent=0 // pred_check_branch
    %18 = sbr.rel (0) target = $region13
  $region12: #{_lambda_.27} parent=0 // pred_region
    _
  $region13: #{_lambda_.27} parent=0 // pred_fallthru
    _
  // Predicated region
  $region14: #{_lambda_.27} parent=0 // pred_check
    _
  $region15: #{_lambda_.27} parent=0 // pred_check_branch
    %20 = sbr.rel (0) target = $region17
  $region16: #{_lambda_.27} parent=0 // pred_region
    _
  $region17: #{_lambda_.27} parent=0 // pred_fallthru
    _
  // Predicated region
  $region18: #{_lambda_.27} parent=0 // pred_check
    _
  $region19: #{_lambda_.27} parent=0 // pred_check_branch
    %22 = sbr.rel (0) target = $region21
  $region20: #{_lambda_.27} parent=0 // pred_region
    _
  $region21: #{_lambda_.27} parent=0 // pred_fallthru
    _
  // Predicated region
  $region22: #{_lambda_.27} parent=0 // pred_check
    _
  $region23: #{_lambda_.27} parent=0 // pred_check_branch
    %24 = sbr.rel (0) target = $region25
  $region24: #{_lambda_.27} parent=0 // pred_region
    _
  $region25: #{_lambda_.27} parent=0 // pred_fallthru
    _
  // Predicated region
  $region26: #{_lambda_.27} parent=0 // pred_check
    _
  $region27: #{_lambda_.27} parent=0 // pred_check_branch
    %26 = sbr.rel (0) target = $region29
  $region28: #{_lambda_.27} parent=0 // pred_region
    _
  $region29: #{_lambda_.27} parent=0 // pred_fallthru
    _
  // Predicated region
  $region30: #{_lambda_.27} parent=0 // pred_check
    _
  $region31: #{_lambda_.27} parent=0 // pred_check_branch
    %28 = sbr.rel (0) target = $region33
  $region32: #{_lambda_.27} parent=0 // pred_region
    _
  $region33: #{_lambda_.27} parent=0 // pred_fallthru
    _
  %v29 = vld [vmem:[%s0] sm:$0xff]
  %v30 = vld [vmem:[%s0 + $0x8] sm:$0xff]
  %v31 = vld [vmem:[%s1] sm:$0xff]
  %v32 = vld [vmem:[%s1 + $0x8] sm:$0xff]
  %v33 = vld [vmem:[%s2] sm:$0xff]
  %v34 = vld [vmem:[%s2 + $0x8] sm:$0xff]
  %v35 = vld [vmem:[%s2 + $0x10] sm:$0xff]
  %v36 = vld [vmem:[%s2 + $0x18] sm:$0xff]
  %v37 = vld [vmem:[%s3] sm:$0x1]
  %v39 = vlaneseq
  %v40 = vshrl.u32 %v39, 7
  %v41 = vsub.s32 0, %v40
  %v42 = vrot.slane %v37, %v41
  %vm44 = vcmask 261120
  %v46 = vsel %vm44, %v29, 0
  %v49 = vsel %vm44, %v30, 0
  %51 = vmatprep.subr.mxu0 0.0
  %52 = vmatpush1.msra.mxu0 0.0
  %53 = vmatprep.subr.mxu0 0.0
  %54 = vmatpush1.msra.mxu0 0.0
  %55 = vmatprep.subr.mxu0 0.0
  %56 = vmatpush1.msra.mxu0 0.0
  %57 = vmatprep.subr.mxu0 0.0
  %58 = vmatpush1.msra.mxu0 0.0
  %59 = vmatprep.subr.mxu0 0.0
  %60 = vmatpush1.msra.mxu0 0.0
  %61 = vmatprep.subr.mxu0 0.0
  %62 = vmatpush1.msra.mxu0 0.0
  %63 = vmatprep.subr.mxu0 0.0
  %64 = vmatpush1.msra.mxu0 0.0
  %65 = vmatprep.subr.mxu0 0.0
  %66 = vmatpush1.msra.mxu0 0.0
  %67 = vmatprep.subr.mxu0 0.0
  %68 = vmatpush1.msra.mxu0 0.0
  %69 = vmatprep.subr.mxu0 0.0
  %70 = vmatpush1.msra.mxu0 0.0
  %71 = vmatprep.subr.mxu0 0.0
  %72 = vmatpush1.msra.mxu0 0.0
  %73 = vmatprep.subr.mxu0 0.0
  %74 = vmatpush1.msra.mxu0 0.0
  %75 = vmatprep.subr.mxu0 0.0
  %76 = vmatpush1.msra.mxu0 %v36
  %77 = vmatprep.subr.mxu0 0.0
  %78 = vmatpush1.msra.mxu0 %v35
  %79 = vmatprep.subr.mxu0 0.0
  %80 = vmatpush1.msra.mxu0 %v34
  %81 = vmatprep.subr.mxu0 0.0
  %82 = vmatpush1.msra.mxu0 %v33
  %83 = vmatprep.subr.mxu0 0.0
  %84 = vmatpush2.msra.mxu0 0.0
  %85 = vmatprep.subr.mxu0 0.0
  %86 = vmatpush2.msra.mxu0 0.0
  %87 = vmatprep.subr.mxu0 0.0
  %88 = vmatpush2.msra.mxu0 0.0
  %89 = vmatprep.subr.mxu0 0.0
  %90 = vmatpush2.msra.mxu0 0.0
  %91 = vmatprep.subr.mxu0 0.0
  %92 = vmatpush2.msra.mxu0 0.0
  %93 = vmatprep.subr.mxu0 0.0
  %94 = vmatpush2.msra.mxu0 0.0
  %95 = vmatprep.subr.mxu0 0.0
  %96 = vmatpush2.msra.mxu0 0.0
  %97 = vmatprep.subr.mxu0 0.0
  %98 = vmatpush2.msra.mxu0 0.0
  %99 = vmatprep.subr.mxu0 0.0
  %100 = vmatpush2.msra.mxu0 0.0
  %101 = vmatprep.subr.mxu0 0.0
  %102 = vmatpush2.msra.mxu0 0.0
  %103 = vmatprep.subr.mxu0 0.0
  %104 = vmatpush2.msra.mxu0 0.0
  %105 = vmatprep.subr.mxu0 0.0
  %106 = vmatpush2.msra.mxu0 0.0
  %107 = vmatprep.subr.mxu0 0.0
  %108 = vmatpush2.msra.mxu0 0.0
  %109 = vmatprep.subr.mxu0 0.0
  %110 = vmatpush2.msra.mxu0 0.0
  %111 = vmatprep.subr.mxu0 0.0
  %112 = vmatpush2.msra.mxu0 0.0
  %113 = vmatprep.subr.mxu0 0.0
  %114 = vmatpush2.msra.mxu0 0.0
  %115 = vmatprep.mubr.f32.mxu0 0.0
  %116 = vmatmul.mubr.f32.gmra.mxu0 %v46
  %v117 = vpop.f32.mrf.mxu0
  %v118 = vadd.f32 %v42, %v117
  %v119 = vpop.f32.mrf.mxu0
  %120 = vmatprep.mubr.f32.mxu0 0.0
  %121 = vmatmul.mubr.f32.gmra.mxu0 %v49
  %v122 = vpop.f32.mrf.mxu0
  %v123 = vadd.f32 %v42, %v122
  %v124 = vpop.f32.mrf.mxu0
  %125 = vdwg.mxu0
  %v126 = vmul.f32 %v118, 0.5
  %v127 = vmul.f32 %v123, 0.5
  %v128 = vmul.f32 %v118, 0.70710677
  %v129 = vmul.f32 %v123, 0.70710677
  %v130 = verf.f32.pop %v128
  %v131 = verf.f32.pop %v129
  %v132 = vadd.f32 %v130, 1.0
  %v133 = vadd.f32 %v131, 1.0
  %v134 = vmul.f32 %v126, %v132
  %v135 = vmul.f32 %v127, %v133
  %v136 = vld [vmem:[%s4] sm:$0xff]
  %v137 = vld [vmem:[%s4 + $0x8] sm:$0xff]
  %v138 = vld [vmem:[%s4 + $0x10] sm:$0xff]
  %v139 = vld [vmem:[%s4 + $0x18] sm:$0xff]
  %v140 = vld [vmem:[%s5] sm:$0x1]
  %v142 = vlaneseq
  %v143 = vshrl.u32 %v142, 7
  %v144 = vsub.s32 0, %v143
  %v145 = vrot.slane %v140, %v144
  %v148 = vsel %vm44, %v134, 0
  %v151 = vsel %vm44, %v135, 0
  %153 = vmatprep.subr.mxu0 0.0
  %154 = vmatpush1.msra.mxu0 0.0
  %155 = vmatprep.subr.mxu0 0.0
  %156 = vmatpush1.msra.mxu0 0.0
  %157 = vmatprep.subr.mxu0 0.0
  %158 = vmatpush1.msra.mxu0 0.0
  %159 = vmatprep.subr.mxu0 0.0
  %160 = vmatpush1.msra.mxu0 0.0
  %161 = vmatprep.subr.mxu0 0.0
  %162 = vmatpush1.msra.mxu0 0.0
  %163 = vmatprep.subr.mxu0 0.0
  %164 = vmatpush1.msra.mxu0 0.0
  %165 = vmatprep.subr.mxu0 0.0
  %166 = vmatpush1.msra.mxu0 0.0
  %167 = vmatprep.subr.mxu0 0.0
  %168 = vmatpush1.msra.mxu0 0.0
  %169 = vmatprep.subr.mxu0 0.0
  %170 = vmatpush1.msra.mxu0 0.0
  %171 = vmatprep.subr.mxu0 0.0
  %172 = vmatpush1.msra.mxu0 0.0
  %173 = vmatprep.subr.mxu0 0.0
  %174 = vmatpush1.msra.mxu0 0.0
  %175 = vmatprep.subr.mxu0 0.0
  %176 = vmatpush1.msra.mxu0 0.0
  %177 = vmatprep.subr.mxu0 0.0
  %178 = vmatpush1.msra.mxu0 %v139
  %179 = vmatprep.subr.mxu0 0.0
  %180 = vmatpush1.msra.mxu0 %v138
  %181 = vmatprep.subr.mxu0 0.0
  %182 = vmatpush1.msra.mxu0 %v137
  %183 = vmatprep.subr.mxu0 0.0
  %184 = vmatpush1.msra.mxu0 %v136
  %185 = vmatprep.subr.mxu0 0.0
  %186 = vmatpush2.msra.mxu0 0.0
  %187 = vmatprep.subr.mxu0 0.0
  %188 = vmatpush2.msra.mxu0 0.0
  %189 = vmatprep.subr.mxu0 0.0
  %190 = vmatpush2.msra.mxu0 0.0
  %191 = vmatprep.subr.mxu0 0.0
  %192 = vmatpush2.msra.mxu0 0.0
  %193 = vmatprep.subr.mxu0 0.0
  %194 = vmatpush2.msra.mxu0 0.0
  %195 = vmatprep.subr.mxu0 0.0
  %196 = vmatpush2.msra.mxu0 0.0
  %197 = vmatprep.subr.mxu0 0.0
  %198 = vmatpush2.msra.mxu0 0.0
  %199 = vmatprep.subr.mxu0 0.0
  %200 = vmatpush2.msra.mxu0 0.0
  %201 = vmatprep.subr.mxu0 0.0
  %202 = vmatpush2.msra.mxu0 0.0
  %203 = vmatprep.subr.mxu0 0.0
  %204 = vmatpush2.msra.mxu0 0.0
  %205 = vmatprep.subr.mxu0 0.0
  %206 = vmatpush2.msra.mxu0 0.0
  %207 = vmatprep.subr.mxu0 0.0
  %208 = vmatpush2.msra.mxu0 0.0
  %209 = vmatprep.subr.mxu0 0.0
  %210 = vmatpush2.msra.mxu0 0.0
  %211 = vmatprep.subr.mxu0 0.0
  %212 = vmatpush2.msra.mxu0 0.0
  %213 = vmatprep.subr.mxu0 0.0
  %214 = vmatpush2.msra.mxu0 0.0
  %215 = vmatprep.subr.mxu0 0.0
  %216 = vmatpush2.msra.mxu0 0.0
  %217 = vmatprep.mubr.f32.mxu0 0.0
  %218 = vmatmul.mubr.f32.gmra.mxu0 %v148
  %v219 = vpop.f32.mrf.mxu0
  %v220 = vadd.f32 %v145, %v219
  %v221 = vpop.f32.mrf.mxu0
  %222 = vmatprep.mubr.f32.mxu0 0.0
  %223 = vmatmul.mubr.f32.gmra.mxu0 %v151
  %v224 = vpop.f32.mrf.mxu0
  %v225 = vadd.f32 %v145, %v224
  %v226 = vpop.f32.mrf.mxu0
  %227 = vdwg.mxu0
  %229 = vset.pattern.permute.xlu0 0
  %230 = vperm.xlu0 %229, %v31
  %v231 = vpop.permute.xlu0 %230
  %234 = vset.pattern.permute.xlu0 0
  %235 = vperm.xlu0 %234, %v32
  %v236 = vpop.permute.xlu0 %235
  %v238 = vmul.f32 %v220, %v231
  %v239 = vmul.f32 %v225, %v236
  %v240 = vadd.f32 %v238, 0.0
  %v241 = vadd.f32 %v239, 0.0
  %s242 = scalar_lea.vmem %s2, 32
  %v243 = vld [vmem:[%s242] sm:$0xff]
  %v244 = vld [vmem:[%s242 + $0x8] sm:$0xff]
  %v245 = vld [vmem:[%s242 + $0x10] sm:$0xff]
  %v246 = vld [vmem:[%s242 + $0x18] sm:$0xff]
  %s247 = scalar_lea.vmem %s3, 1
  %v248 = vld [vmem:[%s247] sm:$0x1]
  %v250 = vlaneseq
  %v251 = vshrl.u32 %v250, 7
  %v252 = vsub.s32 0, %v251
  %v253 = vrot.slane %v248, %v252
  %255 = vmatprep.subr.mxu0 0.0
  %256 = vmatpush1.msra.mxu0 0.0
  %257 = vmatprep.subr.mxu0 0.0
  %258 = vmatpush1.msra.mxu0 0.0
  %259 = vmatprep.subr.mxu0 0.0
  %260 = vmatpush1.msra.mxu0 0.0
  %261 = vmatprep.subr.mxu0 0.0
  %262 = vmatpush1.msra.mxu0 0.0
  %263 = vmatprep.subr.mxu0 0.0
  %264 = vmatpush1.msra.mxu0 0.0
  %265 = vmatprep.subr.mxu0 0.0
  %266 = vmatpush1.msra.mxu0 0.0
  %267 = vmatprep.subr.mxu0 0.0
  %268 = vmatpush1.msra.mxu0 0.0
  %269 = vmatprep.subr.mxu0 0.0
  %270 = vmatpush1.msra.mxu0 0.0
  %271 = vmatprep.subr.mxu0 0.0
  %272 = vmatpush1.msra.mxu0 0.0
  %273 = vmatprep.subr.mxu0 0.0
  %274 = vmatpush1.msra.mxu0 0.0
  %275 = vmatprep.subr.mxu0 0.0
  %276 = vmatpush1.msra.mxu0 0.0
  %277 = vmatprep.subr.mxu0 0.0
  %278 = vmatpush1.msra.mxu0 0.0
  %279 = vmatprep.subr.mxu0 0.0
  %280 = vmatpush1.msra.mxu0 %v246
  %281 = vmatprep.subr.mxu0 0.0
  %282 = vmatpush1.msra.mxu0 %v245
  %283 = vmatprep.subr.mxu0 0.0
  %284 = vmatpush1.msra.mxu0 %v244
  %285 = vmatprep.subr.mxu0 0.0
  %286 = vmatpush1.msra.mxu0 %v243
  %287 = vmatprep.subr.mxu0 0.0
  %288 = vmatpush2.msra.mxu0 0.0
  %289 = vmatprep.subr.mxu0 0.0
  %290 = vmatpush2.msra.mxu0 0.0
  %291 = vmatprep.subr.mxu0 0.0
  %292 = vmatpush2.msra.mxu0 0.0
  %293 = vmatprep.subr.mxu0 0.0
  %294 = vmatpush2.msra.mxu0 0.0
  %295 = vmatprep.subr.mxu0 0.0
  %296 = vmatpush2.msra.mxu0 0.0
  %297 = vmatprep.subr.mxu0 0.0
  %298 = vmatpush2.msra.mxu0 0.0
  %299 = vmatprep.subr.mxu0 0.0
  %300 = vmatpush2.msra.mxu0 0.0
  %301 = vmatprep.subr.mxu0 0.0
  %302 = vmatpush2.msra.mxu0 0.0
  %303 = vmatprep.subr.mxu0 0.0
  %304 = vmatpush2.msra.mxu0 0.0
  %305 = vmatprep.subr.mxu0 0.0
  %306 = vmatpush2.msra.mxu0 0.0
  %307 = vmatprep.subr.mxu0 0.0
  %308 = vmatpush2.msra.mxu0 0.0
  %309 = vmatprep.subr.mxu0 0.0
  %310 = vmatpush2.msra.mxu0 0.0
  %311 = vmatprep.subr.mxu0 0.0
  %312 = vmatpush2.msra.mxu0 0.0
  %313 = vmatprep.subr.mxu0 0.0
  %314 = vmatpush2.msra.mxu0 0.0
  %315 = vmatprep.subr.mxu0 0.0
  %316 = vmatpush2.msra.mxu0 0.0
  %317 = vmatprep.subr.mxu0 0.0
  %318 = vmatpush2.msra.mxu0 0.0
  %319 = vmatprep.mubr.f32.mxu0 0.0
  %320 = vmatmul.mubr.f32.gmra.mxu0 %v46
  %v321 = vpop.f32.mrf.mxu0
  %v322 = vadd.f32 %v253, %v321
  %v323 = vpop.f32.mrf.mxu0
  %324 = vmatprep.mubr.f32.mxu0 0.0
  %325 = vmatmul.mubr.f32.gmra.mxu0 %v49
  %v326 = vpop.f32.mrf.mxu0
  %v327 = vadd.f32 %v253, %v326
  %v328 = vpop.f32.mrf.mxu0
  %329 = vdwg.mxu0
  %v330 = vmul.f32 %v322, 0.5
  %v331 = vmul.f32 %v327, 0.5
  %v332 = vmul.f32 %v322, 0.70710677
  %v333 = vmul.f32 %v327, 0.70710677
  %v334 = verf.f32.pop %v332
  %v335 = verf.f32.pop %v333
  %v336 = vadd.f32 %v334, 1.0
  %v337 = vadd.f32 %v335, 1.0
  %v338 = vmul.f32 %v330, %v336
  %v339 = vmul.f32 %v331, %v337
  %s340 = scalar_lea.vmem %s4, 32
  %v341 = vld [vmem:[%s340] sm:$0xff]
  %v342 = vld [vmem:[%s340 + $0x8] sm:$0xff]
  %v343 = vld [vmem:[%s340 + $0x10] sm:$0xff]
  %v344 = vld [vmem:[%s340 + $0x18] sm:$0xff]
  %s345 = scalar_lea.vmem %s5, 1
  %v346 = vld [vmem:[%s345] sm:$0x1]
  %v348 = vlaneseq
  %v349 = vshrl.u32 %v348, 7
  %v350 = vsub.s32 0, %v349
  %v351 = vrot.slane %v346, %v350
  %v354 = vsel %vm44, %v338, 0
  %v357 = vsel %vm44, %v339, 0
  %359 = vmatprep.subr.mxu0 0.0
  %360 = vmatpush1.msra.mxu0 0.0
  %361 = vmatprep.subr.mxu0 0.0
  %362 = vmatpush1.msra.mxu0 0.0
  %363 = vmatprep.subr.mxu0 0.0
  %364 = vmatpush1.msra.mxu0 0.0
  %365 = vmatprep.subr.mxu0 0.0
  %366 = vmatpush1.msra.mxu0 0.0
  %367 = vmatprep.subr.mxu0 0.0
  %368 = vmatpush1.msra.mxu0 0.0
  %369 = vmatprep.subr.mxu0 0.0
  %370 = vmatpush1.msra.mxu0 0.0
  %371 = vmatprep.subr.mxu0 0.0
  %372 = vmatpush1.msra.mxu0 0.0
  %373 = vmatprep.subr.mxu0 0.0
  %374 = vmatpush1.msra.mxu0 0.0
  %375 = vmatprep.subr.mxu0 0.0
  %376 = vmatpush1.msra.mxu0 0.0
  %377 = vmatprep.subr.mxu0 0.0
  %378 = vmatpush1.msra.mxu0 0.0
  %379 = vmatprep.subr.mxu0 0.0
  %380 = vmatpush1.msra.mxu0 0.0
  %381 = vmatprep.subr.mxu0 0.0
  %382 = vmatpush1.msra.mxu0 0.0
  %383 = vmatprep.subr.mxu0 0.0
  %384 = vmatpush1.msra.mxu0 %v344
  %385 = vmatprep.subr.mxu0 0.0
  %386 = vmatpush1.msra.mxu0 %v343
  %387 = vmatprep.subr.mxu0 0.0
  %388 = vmatpush1.msra.mxu0 %v342
  %389 = vmatprep.subr.mxu0 0.0
  %390 = vmatpush1.msra.mxu0 %v341
  %391 = vmatprep.subr.mxu0 0.0
  %392 = vmatpush2.msra.mxu0 0.0
  %393 = vmatprep.subr.mxu0 0.0
  %394 = vmatpush2.msra.mxu0 0.0
  %395 = vmatprep.subr.mxu0 0.0
  %396 = vmatpush2.msra.mxu0 0.0
  %397 = vmatprep.subr.mxu0 0.0
  %398 = vmatpush2.msra.mxu0 0.0
  %399 = vmatprep.subr.mxu0 0.0
  %400 = vmatpush2.msra.mxu0 0.0
  %401 = vmatprep.subr.mxu0 0.0
  %402 = vmatpush2.msra.mxu0 0.0
  %403 = vmatprep.subr.mxu0 0.0
  %404 = vmatpush2.msra.mxu0 0.0
  %405 = vmatprep.subr.mxu0 0.0
  %406 = vmatpush2.msra.mxu0 0.0
  %407 = vmatprep.subr.mxu0 0.0
  %408 = vmatpush2.msra.mxu0 0.0
  %409 = vmatprep.subr.mxu0 0.0
  %410 = vmatpush2.msra.mxu0 0.0
  %411 = vmatprep.subr.mxu0 0.0
  %412 = vmatpush2.msra.mxu0 0.0
  %413 = vmatprep.subr.mxu0 0.0
  %414 = vmatpush2.msra.mxu0 0.0
  %415 = vmatprep.subr.mxu0 0.0
  %416 = vmatpush2.msra.mxu0 0.0
  %417 = vmatprep.subr.mxu0 0.0
  %418 = vmatpush2.msra.mxu0 0.0
  %419 = vmatprep.subr.mxu0 0.0
  %420 = vmatpush2.msra.mxu0 0.0
  %421 = vmatprep.subr.mxu0 0.0
  %422 = vmatpush2.msra.mxu0 0.0
  %423 = vmatprep.mubr.f32.mxu0 0.0
  %424 = vmatmul.mubr.f32.gmra.mxu0 %v354
  %v425 = vpop.f32.mrf.mxu0
  %v426 = vadd.f32 %v351, %v425
  %v427 = vpop.f32.mrf.mxu0
  %428 = vmatprep.mubr.f32.mxu0 0.0
  %429 = vmatmul.mubr.f32.gmra.mxu0 %v357
  %v430 = vpop.f32.mrf.mxu0
  %v431 = vadd.f32 %v351, %v430
  %v432 = vpop.f32.mrf.mxu0
  %433 = vdwg.mxu0
  %434 = vset.pattern.permute.xlu0 1
  %435 = vperm.xlu0 %434, %v31
  %v436 = vpop.permute.xlu0 %435
  %438 = vset.pattern.permute.xlu0 1
  %439 = vperm.xlu0 %438, %v32
  %v440 = vpop.permute.xlu0 %439
  %v442 = vmul.f32 %v426, %v436
  %v443 = vmul.f32 %v431, %v440
  %v444 = vadd.f32 %v240, %v442
  %v445 = vadd.f32 %v241, %v443
  %v446 = vld [vmem:[%s6] sm:$0x1]
  %v447 = vld [vmem:[%s7] sm:$0x1]
  %v448 = vsel %vm44, %v444, 0.0
  %449 = vadd.xlane.f32.xlu0 %v448
  %v450 = vpop.xlane.xlu0 %449
  %v451 = vsel %vm44, %v445, 0.0
  %452 = vadd.xlane.f32.xlu0 %v451
  %v453 = vpop.xlane.xlu0 %452
  %v454 = vrcp.pop 32.0
  %v455 = vmul.f32 %v450, %v454
  %v456 = vmul.f32 %v453, %v454
  %v457 = vsub.f32 %v444, %v455
  %v458 = vsub.f32 %v445, %v456
  %v459 = vmul.f32 %v457, %v457
  %v460 = vmul.f32 %v458, %v458
  %v461 = vsel %vm44, %v459, 0.0
  %462 = vadd.xlane.f32.xlu0 %v461
  %v463 = vpop.xlane.xlu0 %462
  %v464 = vsel %vm44, %v460, 0.0
  %465 = vadd.xlane.f32.xlu0 %v464
  %v466 = vpop.xlane.xlu0 %465
  %v467 = vmul.f32 %v463, %v454
  %v468 = vmul.f32 %v466, %v454
  %v469 = vadd.f32 %v467, 1e-05
  %v470 = vadd.f32 %v468, 1e-05
  %v471 = vrsqrt.pop %v469
  %v472 = vrsqrt.pop %v470
  %v473 = vmul.f32 %v457, %v471
  %v474 = vmul.f32 %v458, %v472
  %v476 = vlaneseq
  %v477 = vshrl.u32 %v476, 7
  %v478 = vsub.s32 0, %v477
  %v479 = vrot.slane %v446, %v478
  %v481 = vmul.f32 %v473, %v479
  %v482 = vmul.f32 %v474, %v479
  %v484 = vlaneseq
  %v485 = vshrl.u32 %v484, 7
  %v486 = vsub.s32 0, %v485
  %v487 = vrot.slane %v447, %v486
  %v489 = vadd.f32 %v481, %v487
  %v490 = vadd.f32 %v482, %v487
  %v491 = vadd.f32 %v29, %v489
  %v492 = vadd.f32 %v30, %v490
  %493 = vst.msk [vmem:[%s8] sm:$0xff] %vm44, %v491
  %494 = vst.msk [vmem:[%s8 + $0x8] sm:$0xff] %vm44, %v492
  // Predicated region
  $region34: #{_lambda_.27} parent=0 // pred_check
    _
  $region35: #{_lambda_.27} parent=0 // pred_check_branch
    %496 = sbr.rel (0) target = $region37
  $region36: #{_lambda_.27} parent=0 // pred_region
    _
  $region37: #{_lambda_.27} parent=0 // pred_fallthru
    _
  // Predicated region
  $region38: #{_lambda_.27} parent=0 // pred_check
    _
  $region39: #{_lambda_.27} parent=0 // pred_check_branch
    %498 = sbr.rel (0) target = $region41
  $region40: #{_lambda_.27} parent=0 // pred_region
    _
  $region41: #{_lambda_.27} parent=0 // pred_fallthru
    _

// kernel: _lambda_.26
$region0: #{_lambda_.26}
  #allocation0 [shape = 'u32[]', space=smem, size = 0x4, offset = 0x4, fixed_abs, tag = 'smem constant byte address 0x4 - core index']
  #allocation1 [shape = 'u32[144,128]{1,0:T(1,128)}', space=vmem, size = 0x12000, scoped, tag = 'internal scratch']
  %s0 = inlined_call_operand.vmem [shape: f32[16,32], index: 0, kind: input, shape index: {}]
  %s1 = inlined_call_operand.vmem [shape: f32[1,8,32], index: 1, kind: input, shape index: {}]
  %s2 = inlined_call_operand.vmem [shape: f32[1,32], index: 2, kind: input, shape index: {}]
  %s3 = inlined_call_operand.vmem [shape: f32[1,32], index: 3, kind: input, shape index: {}, may-alias: {3,7,13}]
  %s4 = inlined_call_operand.vmem [shape: f32[1,1,32], index: 4, kind: input, shape index: {}]
  %s5 = inlined_call_operand.vmem [shape: f32[1,1,32], index: 5, kind: input, shape index: {}, may-alias: {5,9,11}]
  %s6 = inlined_call_operand.vmem [shape: f32[32,32], index: 6, kind: input, shape index: {}]
  %s7 = inlined_call_operand.vmem [shape: f32[1,32], index: 7, kind: input, shape index: {}, may-alias: {3,7,13}]
  %s8 = inlined_call_operand.vmem [shape: f32[1,32,32], index: 8, kind: input, shape index: {}]
  %s9 = inlined_call_operand.vmem [shape: f32[1,1,32], index: 9, kind: input, shape index: {}, may-alias: {5,9,11}]
  %s10 = inlined_call_operand.vmem [shape: f32[1,32,32], index: 10, kind: input, shape index: {}]
  %s11 = inlined_call_operand.vmem [shape: f32[1,1,32], index: 11, kind: input, shape index: {}, may-alias: {5,9,11}]
  %s12 = inlined_call_operand.vmem [shape: f32[32,32], index: 12, kind: input, shape index: {}]
  %s13 = inlined_call_operand.vmem [shape: f32[1,32], index: 13, kind: input, shape index: {}, may-alias: {3,7,13}]
  %s14 = inlined_call_operand.vmem [shape: f32[16,32], index: 14, kind: output, shape index: {}]
  %s15 = sld [smem:[#allocation0]]
  $region66: #{_lambda_.26} parent=0
    _
  %s17 = ssub.s32 1, %s15
  %s18 = scalar_select 0, %s17, %s15
  // Predicated region
  $region2: #{_lambda_.26} parent=0 // pred_check
    _
  $region3: #{_lambda_.26} parent=0 // pred_check_branch
    %20 = sbr.rel (0) target = $region5
  $region4: #{_lambda_.26} parent=0 // pred_region
    _
  $region5: #{_lambda_.26} parent=0 // pred_fallthru
    _
  // Predicated region
  $region6: #{_lambda_.26} parent=0 // pred_check
    _
  $region7: #{_lambda_.26} parent=0 // pred_check_branch
    %22 = sbr.rel (0) target = $region9
  $region8: #{_lambda_.26} parent=0 // pred_region
    _
  $region9: #{_lambda_.26} parent=0 // pred_fallthru
    _
  // Predicated region
  $region10: #{_lambda_.26} parent=0 // pred_check
    _
  $region11: #{_lambda_.26} parent=0 // pred_check_branch
    %24 = sbr.rel (0) target = $region13
  $region12: #{_lambda_.26} parent=0 // pred_region
    _
  $region13: #{_lambda_.26} parent=0 // pred_fallthru
    _
  // Predicated region
  $region14: #{_lambda_.26} parent=0 // pred_check
    _
  $region15: #{_lambda_.26} parent=0 // pred_check_branch
    %26 = sbr.rel (0) target = $region17
  $region16: #{_lambda_.26} parent=0 // pred_region
    _
  $region17: #{_lambda_.26} parent=0 // pred_fallthru
    _
  // Predicated region
  $region18: #{_lambda_.26} parent=0 // pred_check
    _
  $region19: #{_lambda_.26} parent=0 // pred_check_branch
    %28 = sbr.rel (0) target = $region21
  $region20: #{_lambda_.26} parent=0 // pred_region
    _
  $region21: #{_lambda_.26} parent=0 // pred_fallthru
    _
  // Predicated region
  $region22: #{_lambda_.26} parent=0 // pred_check
    _
  $region23: #{_lambda_.26} parent=0 // pred_check_branch
    %30 = sbr.rel (0) target = $region25
  $region24: #{_lambda_.26} parent=0 // pred_region
    _
  $region25: #{_lambda_.26} parent=0 // pred_fallthru
    _
  // Predicated region
  $region26: #{_lambda_.26} parent=0 // pred_check
    _
  $region27: #{_lambda_.26} parent=0 // pred_check_branch
    %32 = sbr.rel (0) target = $region29
  $region28: #{_lambda_.26} parent=0 // pred_region
    _
  $region29: #{_lambda_.26} parent=0 // pred_fallthru
    _
  // Predicated region
  $region30: #{_lambda_.26} parent=0 // pred_check
    _
  $region31: #{_lambda_.26} parent=0 // pred_check_branch
    %34 = sbr.rel (0) target = $region33
  $region32: #{_lambda_.26} parent=0 // pred_region
    _
  $region33: #{_lambda_.26} parent=0 // pred_fallthru
    _
  // Predicated region
  $region34: #{_lambda_.26} parent=0 // pred_check
    _
  $region35: #{_lambda_.26} parent=0 // pred_check_branch
    %36 = sbr.rel (0) target = $region37
  $region36: #{_lambda_.26} parent=0 // pred_region
    _
  $region37: #{_lambda_.26} parent=0 // pred_fallthru
    _
  // Predicated region
  $region38: #{_lambda_.26} parent=0 // pred_check
    _
  $region39: #{_lambda_.26} parent=0 // pred_check_branch
    %38 = sbr.rel (0) target = $region41
  $region40: #{_lambda_.26} parent=0 // pred_region
    _
  $region41: #{_lambda_.26} parent=0 // pred_fallthru
    _
  // Predicated region
  $region42: #{_lambda_.26} parent=0 // pred_check
    _
  $region43: #{_lambda_.26} parent=0 // pred_check_branch
    %40 = sbr.rel (0) target = $region45
  $region44: #{_lambda_.26} parent=0 // pred_region
    _
  $region45: #{_lambda_.26} parent=0 // pred_fallthru
    _
  // Predicated region
  $region46: #{_lambda_.26} parent=0 // pred_check
    _
  $region47: #{_lambda_.26} parent=0 // pred_check_branch
    %42 = sbr.rel (0) target = $region49
  $region48: #{_lambda_.26} parent=0 // pred_region
    _
  $region49: #{_lambda_.26} parent=0 // pred_fallthru
    _
  // Predicated region
  $region50: #{_lambda_.26} parent=0 // pred_check
    _
  $region51: #{_lambda_.26} parent=0 // pred_check_branch
    %44 = sbr.rel (0) target = $region53
  $region52: #{_lambda_.26} parent=0 // pred_region
    _
  $region53: #{_lambda_.26} parent=0 // pred_fallthru
    _
  // Predicated region
  $region54: #{_lambda_.26} parent=0 // pred_check
    _
  $region55: #{_lambda_.26} parent=0 // pred_check_branch
    %46 = sbr.rel (0) target = $region57
  $region56: #{_lambda_.26} parent=0 // pred_region
    _
  $region57: #{_lambda_.26} parent=0 // pred_fallthru
    _
  %v47 = vld [vmem:[%s0] sm:$0xff]
  %v48 = vld [vmem:[%s0 + $0x8] sm:$0xff]
  %v49 = vld [vmem:[%s2] sm:$0x1]
  %v50 = vld [vmem:[%s3] sm:$0x1]
  %vm51 = vcmask 261120
  %v52 = vsel %vm51, %v47, 0.0
  %53 = vadd.xlane.f32.xlu0 %v52
  %v54 = vpop.xlane.xlu0 %53
  %v55 = vsel %vm51, %v48, 0.0
  %56 = vadd.xlane.f32.xlu0 %v55
  %v57 = vpop.xlane.xlu0 %56
  %v58 = vrcp.pop 32.0
  %v59 = vmul.f32 %v54, %v58
  %v60 = vmul.f32 %v57, %v58
  %v61 = vsub.f32 %v47, %v59
  %v62 = vsub.f32 %v48, %v60
  %v63 = vmul.f32 %v61, %v61
  %v64 = vmul.f32 %v62, %v62
  %v65 = vsel %vm51, %v63, 0.0
  %66 = vadd.xlane.f32.xlu0 %v65
  %v67 = vpop.xlane.xlu0 %66
  %v68 = vsel %vm51, %v64, 0.0
  %69 = vadd.xlane.f32.xlu0 %v68
  %v70 = vpop.xlane.xlu0 %69
  %v71 = vmul.f32 %v67, %v58
  %v72 = vmul.f32 %v70, %v58
  %v73 = vadd.f32 %v71, 1e-05
  %v74 = vadd.f32 %v72, 1e-05
  %v75 = vrsqrt.pop %v73
  %v76 = vrsqrt.pop %v74
  %v77 = vmul.f32 %v61, %v75
  %v78 = vmul.f32 %v62, %v76
  %v80 = vlaneseq
  %v81 = vshrl.u32 %v80, 7
  %v82 = vsub.s32 0, %v81
  %v83 = vrot.slane %v49, %v82
  %v85 = vmul.f32 %v77, %v83
  %v86 = vmul.f32 %v78, %v83
  %v88 = vlaneseq
  %v89 = vshrl.u32 %v88, 7
  %v90 = vsub.s32 0, %v89
  %v91 = vrot.slane %v50, %v90
  %v93 = vadd.f32 %v85, %v91
  %v94 = vadd.f32 %v86, %v91
  %v95 = vld [vmem:[%s6] sm:$0xff]
  %v96 = vld [vmem:[%s6 + $0x8] sm:$0xff]
  %v97 = vld [vmem:[%s6 + $0x10] sm:$0xff]
  %v98 = vld [vmem:[%s6 + $0x18] sm:$0xff]
  %v99 = vld [vmem:[%s7] sm:$0x1]
  %v101 = vlaneseq
  %v102 = vshrl.u32 %v101, 7
  %v103 = vsub.s32 0, %v102
  %v104 = vrot.slane %v99, %v103
  %v107 = vsel %vm51, %v93, 0
  %v110 = vsel %vm51, %v94, 0
  %112 = vmatprep.subr.mxu0 0.0
  %113 = vmatpush1.msra.mxu0 0.0
  %114 = vmatprep.subr.mxu0 0.0
  %115 = vmatpush1.msra.mxu0 0.0
  %116 = vmatprep.subr.mxu0 0.0
  %117 = vmatpush1.msra.mxu0 0.0
  %118 = vmatprep.subr.mxu0 0.0
  %119 = vmatpush1.msra.mxu0 0.0
  %120 = vmatprep.subr.mxu0 0.0
  %121 = vmatpush1.msra.mxu0 0.0
  %122 = vmatprep.subr.mxu0 0.0
  %123 = vmatpush1.msra.mxu0 0.0
  %124 = vmatprep.subr.mxu0 0.0
  %125 = vmatpush1.msra.mxu0 0.0
  %126 = vmatprep.subr.mxu0 0.0
  %127 = vmatpush1.msra.mxu0 0.0
  %128 = vmatprep.subr.mxu0 0.0
  %129 = vmatpush1.msra.mxu0 0.0
  %130 = vmatprep.subr.mxu0 0.0
  %131 = vmatpush1.msra.mxu0 0.0
  %132 = vmatprep.subr.mxu0 0.0
  %133 = vmatpush1.msra.mxu0 0.0
  %134 = vmatprep.subr.mxu0 0.0
  %135 = vmatpush1.msra.mxu0 0.0
  %136 = vmatprep.subr.mxu0 0.0
  %137 = vmatpush1.msra.mxu0 %v98
  %138 = vmatprep.subr.mxu0 0.0
  %139 = vmatpush1.msra.mxu0 %v97
  %140 = vmatprep.subr.mxu0 0.0
  %141 = vmatpush1.msra.mxu0 %v96
  %142 = vmatprep.subr.mxu0 0.0
  %143 = vmatpush1.msra.mxu0 %v95
  %144 = vmatprep.subr.mxu0 0.0
  %145 = vmatpush2.msra.mxu0 0.0
  %146 = vmatprep.subr.mxu0 0.0
  %147 = vmatpush2.msra.mxu0 0.0
  %148 = vmatprep.subr.mxu0 0.0
  %149 = vmatpush2.msra.mxu0 0.0
  %150 = vmatprep.subr.mxu0 0.0
  %151 = vmatpush2.msra.mxu0 0.0
  %152 = vmatprep.subr.mxu0 0.0
  %153 = vmatpush2.msra.mxu0 0.0
  %154 = vmatprep.subr.mxu0 0.0
  %155 = vmatpush2.msra.mxu0 0.0
  %156 = vmatprep.subr.mxu0 0.0
  %157 = vmatpush2.msra.mxu0 0.0
  %158 = vmatprep.subr.mxu0 0.0
  %159 = vmatpush2.msra.mxu0 0.0
  %160 = vmatprep.subr.mxu0 0.0
  %161 = vmatpush2.msra.mxu0 0.0
  %162 = vmatprep.subr.mxu0 0.0
  %163 = vmatpush2.msra.mxu0 0.0
  %164 = vmatprep.subr.mxu0 0.0
  %165 = vmatpush2.msra.mxu0 0.0
  %166 = vmatprep.subr.mxu0 0.0
  %167 = vmatpush2.msra.mxu0 0.0
  %168 = vmatprep.subr.mxu0 0.0
  %169 = vmatpush2.msra.mxu0 0.0
  %170 = vmatprep.subr.mxu0 0.0
  %171 = vmatpush2.msra.mxu0 0.0
  %172 = vmatprep.subr.mxu0 0.0
  %173 = vmatpush2.msra.mxu0 0.0
  %174 = vmatprep.subr.mxu0 0.0
  %175 = vmatpush2.msra.mxu0 0.0
  %176 = vmatprep.mubr.f32.mxu0 0.0
  %177 = vmatmul.mubr.f32.gmra.mxu0 %v107
  %v178 = vpop.f32.mrf.mxu0
  %v179 = vadd.f32 %v104, %v178
  %v180 = vpop.f32.mrf.mxu0
  %181 = vmatprep.mubr.f32.mxu0 0.0
  %182 = vmatmul.mubr.f32.gmra.mxu0 %v110
  %v183 = vpop.f32.mrf.mxu0
  %v184 = vadd.f32 %v104, %v183
  %v185 = vpop.f32.mrf.mxu0
  %186 = vdwg.mxu0
  %vm187 = vcmask 64512
  %v188 = vsel %vm187, %v179, -inf
  %189 = vmax.xlane.f32.xlu0 %v188
  %v190 = vpop.xlane.xlu0 %189
  %v191 = vsel %vm187, %v184, -inf
  %192 = vmax.xlane.f32.xlu0 %v191
  %v193 = vpop.xlane.xlu0 %192
  %v194 = vsub.f32 %v179, %v190
  %v195 = vsub.f32 %v184, %v193
  %v196 = vmul.f32 %v194, 1.442695
  %v197 = vpow.pop %v196
  %v198 = vmul.f32 %v195, 1.442695
  %v199 = vpow.pop %v198
  %v200 = vsel %vm187, %v197, 0.0
  %201 = vadd.xlane.f32.xlu0 %v200
  %v202 = vpop.xlane.xlu0 %201
  %v203 = vsel %vm187, %v199, 0.0
  %204 = vadd.xlane.f32.xlu0 %v203
  %v205 = vpop.xlane.xlu0 %204
  %v206 = vrcp.pop %v202
  %v207 = vrcp.pop %v205
  %v208 = vmul.f32 %v197, %v206
  %v209 = vmul.f32 %v199, %v207
  %vm210 = vcmask 130112
  %v211 = vsel %vm210, %v179, -inf
  %212 = vmax.xlane.f32.xlu0 %v211
  %v213 = vpop.xlane.xlu0 %212
  %v214 = vsel %vm210, %v184, -inf
  %215 = vmax.xlane.f32.xlu0 %v214
  %v216 = vpop.xlane.xlu0 %215
  %v217 = vsub.f32 %v179, %v213
  %v218 = vsub.f32 %v184, %v216
  %v219 = vmul.f32 %v217, 1.442695
  %v220 = vpow.pop %v219
  %v221 = vmul.f32 %v218, 1.442695
  %v222 = vpow.pop %v221
  %225 = vrot.lane.b32.xlu0 %v220, 120
  %v226 = vpop.permute.xlu0 %225
  %227 = vrot.lane.b32.xlu0 %v222, 120
  %v228 = vpop.permute.xlu0 %227
  %v231 = vsel %vm187, %v226, 0.0
  %232 = vadd.xlane.f32.xlu0 %v231
  %v233 = vpop.xlane.xlu0 %232
  %v234 = vsel %vm187, %v228, 0.0
  %235 = vadd.xlane.f32.xlu0 %v234
  %v236 = vpop.xlane.xlu0 %235
  %v237 = vrcp.pop %v233
  %v238 = vrcp.pop %v236
  %v239 = vmul.f32 %v220, %v237
  %v240 = vmul.f32 %v222, %v238
  %vm241 = vcmask 195712
  %v242 = vsel %vm241, %v179, -inf
  %243 = vmax.xlane.f32.xlu0 %v242
  %v244 = vpop.xlane.xlu0 %243
  %v245 = vsel %vm241, %v184, -inf
  %246 = vmax.xlane.f32.xlu0 %v245
  %v247 = vpop.xlane.xlu0 %246
  %v248 = vsub.f32 %v179, %v244
  %v249 = vsub.f32 %v184, %v247
  %v250 = vmul.f32 %v248, 1.442695
  %v251 = vpow.pop %v250
  %v252 = vmul.f32 %v249, 1.442695
  %v253 = vpow.pop %v252
  %256 = vrot.lane.b32.xlu0 %v251, 112
  %v257 = vpop.permute.xlu0 %256
  %258 = vrot.lane.b32.xlu0 %v253, 112
  %v259 = vpop.permute.xlu0 %258
  %v262 = vsel %vm187, %v257, 0.0
  %263 = vadd.xlane.f32.xlu0 %v262
  %v264 = vpop.xlane.xlu0 %263
  %v265 = vsel %vm187, %v259, 0.0
  %266 = vadd.xlane.f32.xlu0 %v265
  %v267 = vpop.xlane.xlu0 %266
  %v268 = vrcp.pop %v264
  %v269 = vrcp.pop %v267
  %v270 = vmul.f32 %v251, %v268
  %v271 = vmul.f32 %v253, %v269
  %vm272 = vcmask 261312
  %v273 = vsel %vm272, %v179, -inf
  %274 = vmax.xlane.f32.xlu0 %v273
  %v275 = vpop.xlane.xlu0 %274
  %v276 = vsel %vm272, %v184, -inf
  %277 = vmax.xlane.f32.xlu0 %v276
  %v278 = vpop.xlane.xlu0 %277
  %v279 = vsub.f32 %v179, %v275
  %v280 = vsub.f32 %v184, %v278
  %v281 = vmul.f32 %v279, 1.442695
  %v282 = vpow.pop %v281
  %v283 = vmul.f32 %v280, 1.442695
  %v284 = vpow.pop %v283
  %287 = vrot.lane.b32.xlu0 %v282, 104
  %v288 = vpop.permute.xlu0 %287
  %289 = vrot.lane.b32.xlu0 %v284, 104
  %v290 = vpop.permute.xlu0 %289
  %v293 = vsel %vm187, %v288, 0.0
  %294 = vadd.xlane.f32.xlu0 %v293
  %v295 = vpop.xlane.xlu0 %294
  %v296 = vsel %vm187, %v290, 0.0
  %297 = vadd.xlane.f32.xlu0 %v296
  %v298 = vpop.xlane.xlu0 %297
  %v299 = vrcp.pop %v295
  %v300 = vrcp.pop %v298
  %v301 = vmul.f32 %v282, %v299
  %v302 = vmul.f32 %v284, %v300
  %v303 = vld [vmem:[%s1] sm:$0xff]
  %v304 = vld [vmem:[%s4] sm:$0x1]
  %v305 = vld [vmem:[%s5] sm:$0x1]
  %v306 = vsel %vm51, %v303, 0.0
  %307 = vadd.xlane.f32.xlu0 %v306
  %v308 = vpop.xlane.xlu0 %307
  %v309 = vmul.f32 %v308, %v58
  %v310 = vsub.f32 %v303, %v309
  %v311 = vmul.f32 %v310, %v310
  %v312 = vsel %vm51, %v311, 0.0
  %313 = vadd.xlane.f32.xlu0 %v312
  %v314 = vpop.xlane.xlu0 %313
  %v315 = vmul.f32 %v314, %v58
  %v316 = vadd.f32 %v315, 1e-05
  %v317 = vrsqrt.pop %v316
  %v318 = vmul.f32 %v310, %v317
  %v320 = vlaneseq
  %v321 = vshrl.u32 %v320, 7
  %v322 = vsub.s32 0, %v321
  %v323 = vrot.slane %v304, %v322
  %v325 = vmul.f32 %v318, %v323
  %v327 = vlaneseq
  %v328 = vshrl.u32 %v327, 7
  %v329 = vsub.s32 0, %v328
  %v330 = vrot.slane %v305, %v329
  %v332 = vadd.f32 %v325, %v330
  %v333 = vld [vmem:[%s8] sm:$0xff]
  %v334 = vld [vmem:[%s8 + $0x8] sm:$0xff]
  %v335 = vld [vmem:[%s8 + $0x10] sm:$0xff]
  %v336 = vld [vmem:[%s8 + $0x18] sm:$0xff]
  %v337 = vld [vmem:[%s9] sm:$0x1]
  %v339 = vlaneseq
  %v340 = vshrl.u32 %v339, 7
  %v341 = vsub.s32 0, %v340
  %v342 = vrot.slane %v337, %v341
  %v345 = vsel %vm51, %v332, 0
  %347 = vmatprep.subr.mxu0 0.0
  %348 = vmatpush1.msra.mxu0 0.0
  %349 = vmatprep.subr.mxu0 0.0
  %350 = vmatpush1.msra.mxu0 0.0
  %351 = vmatprep.subr.mxu0 0.0
  %352 = vmatpush1.msra.mxu0 0.0
  %353 = vmatprep.subr.mxu0 0.0
  %354 = vmatpush1.msra.mxu0 0.0
  %355 = vmatprep.subr.mxu0 0.0
  %356 = vmatpush1.msra.mxu0 0.0
  %357 = vmatprep.subr.mxu0 0.0
  %358 = vmatpush1.msra.mxu0 0.0
  %359 = vmatprep.subr.mxu0 0.0
  %360 = vmatpush1.msra.mxu0 0.0
  %361 = vmatprep.subr.mxu0 0.0
  %362 = vmatpush1.msra.mxu0 0.0
  %363 = vmatprep.subr.mxu0 0.0
  %364 = vmatpush1.msra.mxu0 0.0
  %365 = vmatprep.subr.mxu0 0.0
  %366 = vmatpush1.msra.mxu0 0.0
  %367 = vmatprep.subr.mxu0 0.0
  %368 = vmatpush1.msra.mxu0 0.0
  %369 = vmatprep.subr.mxu0 0.0
  %370 = vmatpush1.msra.mxu0 0.0
  %371 = vmatprep.subr.mxu0 0.0
  %372 = vmatpush1.msra.mxu0 %v336
  %373 = vmatprep.subr.mxu0 0.0
  %374 = vmatpush1.msra.mxu0 %v335
  %375 = vmatprep.subr.mxu0 0.0
  %376 = vmatpush1.msra.mxu0 %v334
  %377 = vmatprep.subr.mxu0 0.0
  %378 = vmatpush1.msra.mxu0 %v333
  %379 = vmatprep.subr.mxu0 0.0
  %380 = vmatpush2.msra.mxu0 0.0
  %381 = vmatprep.subr.mxu0 0.0
  %382 = vmatpush2.msra.mxu0 0.0
  %383 = vmatprep.subr.mxu0 0.0
  %384 = vmatpush2.msra.mxu0 0.0
  %385 = vmatprep.subr.mxu0 0.0
  %386 = vmatpush2.msra.mxu0 0.0
  %387 = vmatprep.subr.mxu0 0.0
  %388 = vmatpush2.msra.mxu0 0.0
  %389 = vmatprep.subr.mxu0 0.0
  %390 = vmatpush2.msra.mxu0 0.0
  %391 = vmatprep.subr.mxu0 0.0
  %392 = vmatpush2.msra.mxu0 0.0
  %393 = vmatprep.subr.mxu0 0.0
  %394 = vmatpush2.msra.mxu0 0.0
  %395 = vmatprep.subr.mxu0 0.0
  %396 = vmatpush2.msra.mxu0 0.0
  %397 = vmatprep.subr.mxu0 0.0
  %398 = vmatpush2.msra.mxu0 0.0
  %399 = vmatprep.subr.mxu0 0.0
  %400 = vmatpush2.msra.mxu0 0.0
  %401 = vmatprep.subr.mxu0 0.0
  %402 = vmatpush2.msra.mxu0 0.0
  %403 = vmatprep.subr.mxu0 0.0
  %404 = vmatpush2.msra.mxu0 0.0
  %405 = vmatprep.subr.mxu0 0.0
  %406 = vmatpush2.msra.mxu0 0.0
  %407 = vmatprep.subr.mxu0 0.0
  %408 = vmatpush2.msra.mxu0 0.0
  %409 = vmatprep.subr.mxu0 0.0
  %410 = vmatpush2.msra.mxu0 0.0
  %411 = vmatprep.mubr.f32.mxu0 0.0
  %412 = vmatmul.mubr.f32.gmra.mxu0 %v345
  %v413 = vpop.f32.mrf.mxu0
  %v414 = vadd.f32 %v342, %v413
  %v415 = vpop.f32.mrf.mxu0
  %416 = vdwg.mxu0
  %v417 = vld [vmem:[%s10] sm:$0xff]
  %v418 = vld [vmem:[%s10 + $0x8] sm:$0xff]
  %v419 = vld [vmem:[%s10 + $0x10] sm:$0xff]
  %v420 = vld [vmem:[%s10 + $0x18] sm:$0xff]
  %v421 = vld [vmem:[%s11] sm:$0x1]
  %v423 = vlaneseq
  %v424 = vshrl.u32 %v423, 7
  %v425 = vsub.s32 0, %v424
  %v426 = vrot.slane %v421, %v425
  %428 = vmatprep.subr.mxu0 0.0
  %429 = vmatpush1.msra.mxu0 0.0
  %430 = vmatprep.subr.mxu0 0.0
  %431 = vmatpush1.msra.mxu0 0.0
  %432 = vmatprep.subr.mxu0 0.0
  %433 = vmatpush1.msra.mxu0 0.0
  %434 = vmatprep.subr.mxu0 0.0
  %435 = vmatpush1.msra.mxu0 0.0
  %436 = vmatprep.subr.mxu0 0.0
  %437 = vmatpush1.msra.mxu0 0.0
  %438 = vmatprep.subr.mxu0 0.0
  %439 = vmatpush1.msra.mxu0 0.0
  %440 = vmatprep.subr.mxu0 0.0
  %441 = vmatpush1.msra.mxu0 0.0
  %442 = vmatprep.subr.mxu0 0.0
  %443 = vmatpush1.msra.mxu0 0.0
  %444 = vmatprep.subr.mxu0 0.0
  %445 = vmatpush1.msra.mxu0 0.0
  %446 = vmatprep.subr.mxu0 0.0
  %447 = vmatpush1.msra.mxu0 0.0
  %448 = vmatprep.subr.mxu0 0.0
  %449 = vmatpush1.msra.mxu0 0.0
  %450 = vmatprep.subr.mxu0 0.0
  %451 = vmatpush1.msra.mxu0 0.0
  %452 = vmatprep.subr.mxu0 0.0
  %453 = vmatpush1.msra.mxu0 %v420
  %454 = vmatprep.subr.mxu0 0.0
  %455 = vmatpush1.msra.mxu0 %v419
  %456 = vmatprep.subr.mxu0 0.0
  %457 = vmatpush1.msra.mxu0 %v418
  %458 = vmatprep.subr.mxu0 0.0
  %459 = vmatpush1.msra.mxu0 %v417
  %460 = vmatprep.subr.mxu0 0.0
  %461 = vmatpush2.msra.mxu0 0.0
  %462 = vmatprep.subr.mxu0 0.0
  %463 = vmatpush2.msra.mxu0 0.0
  %464 = vmatprep.subr.mxu0 0.0
  %465 = vmatpush2.msra.mxu0 0.0
  %466 = vmatprep.subr.mxu0 0.0
  %467 = vmatpush2.msra.mxu0 0.0
  %468 = vmatprep.subr.mxu0 0.0
  %469 = vmatpush2.msra.mxu0 0.0
  %470 = vmatprep.subr.mxu0 0.0
  %471 = vmatpush2.msra.mxu0 0.0
  %472 = vmatprep.subr.mxu0 0.0
  %473 = vmatpush2.msra.mxu0 0.0
  %474 = vmatprep.subr.mxu0 0.0
  %475 = vmatpush2.msra.mxu0 0.0
  %476 = vmatprep.subr.mxu0 0.0
  %477 = vmatpush2.msra.mxu0 0.0
  %478 = vmatprep.subr.mxu0 0.0
  %479 = vmatpush2.msra.mxu0 0.0
  %480 = vmatprep.subr.mxu0 0.0
  %481 = vmatpush2.msra.mxu0 0.0
  %482 = vmatprep.subr.mxu0 0.0
  %483 = vmatpush2.msra.mxu0 0.0
  %484 = vmatprep.subr.mxu0 0.0
  %485 = vmatpush2.msra.mxu0 0.0
  %486 = vmatprep.subr.mxu0 0.0
  %487 = vmatpush2.msra.mxu0 0.0
  %488 = vmatprep.subr.mxu0 0.0
  %489 = vmatpush2.msra.mxu0 0.0
  %490 = vmatprep.subr.mxu0 0.0
  %491 = vmatpush2.msra.mxu0 0.0
  %492 = vmatprep.mubr.f32.mxu0 0.0
  %493 = vmatmul.mubr.f32.gmra.mxu0 %v345
  %v494 = vpop.f32.mrf.mxu0
  %v495 = vadd.f32 %v426, %v494
  %v496 = vpop.f32.mrf.mxu0
  %497 = vdwg.mxu0
  %v498 = vsel %vm187, %v414, -inf
  %499 = vmax.xlane.f32.xlu0 %v498
  %v500 = vpop.xlane.xlu0 %499
  %v501 = vsub.f32 %v414, %v500
  %v502 = vmul.f32 %v501, 1.442695
  %v503 = vpow.pop %v502
  %v504 = vsel %vm187, %v503, 0.0
  %505 = vadd.xlane.f32.xlu0 %v504
  %v506 = vpop.xlane.xlu0 %505
  %v507 = vrcp.pop %v506
  %v508 = vmul.f32 %v503, %v507
  %v509 = vsel %vm187, %v508, 0.0
  %v510 = vrot.slane %v509, 4
  %v511 = vadd.f32 %v509, %v510
  %v512 = vrot.slane %v511, 2
  %v513 = vadd.f32 %v511, %v512
  %v514 = vrot.slane %v513, 1
  %v515 = vadd.f32 %v513, %v514
  %v516 = vmul.f32 %v208, %v515
  %v517 = vmul.f32 %v209, %v515
  %v518 = vsel %vm187, %v516, 0.0
  %519 = vadd.xlane.f32.xlu0 %v518
  %v520 = vpop.xlane.xlu0 %519
  %v521 = vsel %vm187, %v517, 0.0
  %522 = vadd.xlane.f32.xlu0 %v521
  %v523 = vpop.xlane.xlu0 %522
  %v524 = vrcp.pop %v520
  %v525 = vrcp.pop %v523
  %526 = vxpose.xlu0.b32.start [1/16] %v508, 128
  %527 = vxpose.xlu0.b32.cont [2/16] 0.0, 128
  %528 = vxpose.xlu0.b32.cont [3/16] 0.0, 128
  %529 = vxpose.xlu0.b32.cont [4/16] 0.0, 128
  %530 = vxpose.xlu0.b32.cont [5/16] 0.0, 128
  %531 = vxpose.xlu0.b32.cont [6/16] 0.0, 128
  %532 = vxpose.xlu0.b32.cont [7/16] 0.0, 128
  %533 = vxpose.xlu0.b32.cont [8/16] 0.0, 128
  %534 = vxpose.xlu0.b32.cont [9/16] 0.0, 128
  %535 = vxpose.xlu0.b32.cont [10/16] 0.0, 128
  %536 = vxpose.xlu0.b32.cont [11/16] 0.0, 128
  %537 = vxpose.xlu0.b32.cont [12/16] 0.0, 128
  %538 = vxpose.xlu0.b32.cont [13/16] 0.0, 128
  %539 = vxpose.xlu0.b32.cont [14/16] 0.0, 128
  %540 = vxpose.xlu0.b32.cont [15/16] 0.0, 128
  %541 = vxpose.xlu0.b32.end [16/16] 0.0, 128
  %v542 = vpop.trf.xlu0
  %v543 = vpop.trf.xlu0
  %v544 = vpop.trf.xlu0
  %v545 = vpop.trf.xlu0
  %v546 = vpop.trf.xlu0
  %v547 = vpop.trf.xlu0
  %v548 = vpop.trf.xlu0
  %v549 = vpop.trf.xlu0
  %v550 = vpop.trf.xlu0
  %v551 = vpop.trf.xlu0
  %v552 = vpop.trf.xlu0
  %v553 = vpop.trf.xlu0
  %v554 = vpop.trf.xlu0
  %v555 = vpop.trf.xlu0
  %v556 = vpop.trf.xlu0
  %v557 = vpop.trf.xlu0
  %v559 = vsel %vm187, %v542, 0
  %561 = vmatprep.subr.mxu0 0.0
  %562 = vmatpush1.msra.mxu0 0.0
  %563 = vmatprep.subr.mxu0 0.0
  %564 = vmatpush1.msra.mxu0 0.0
  %565 = vmatprep.subr.mxu0 0.0
  %566 = vmatpush1.msra.mxu0 0.0
  %567 = vmatprep.subr.mxu0 0.0
  %568 = vmatpush1.msra.mxu0 0.0
  %569 = vmatprep.subr.mxu0 0.0
  %570 = vmatpush1.msra.mxu0 0.0
  %571 = vmatprep.subr.mxu0 0.0
  %572 = vmatpush1.msra.mxu0 0.0
  %573 = vmatprep.subr.mxu0 0.0
  %574 = vmatpush1.msra.mxu0 0.0
  %575 = vmatprep.subr.mxu0 0.0
  %576 = vmatpush1.msra.mxu0 0.0
  %577 = vmatprep.subr.mxu0 0.0
  %578 = vmatpush1.msra.mxu0 0.0
  %579 = vmatprep.subr.mxu0 0.0
  %580 = vmatpush1.msra.mxu0 0.0
  %581 = vmatprep.subr.mxu0 0.0
  %582 = vmatpush1.msra.mxu0 0.0
  %583 = vmatprep.subr.mxu0 0.0
  %584 = vmatpush1.msra.mxu0 0.0
  %585 = vmatprep.subr.mxu0 0.0
  %586 = vmatpush1.msra.mxu0 0.0
  %587 = vmatprep.subr.mxu0 0.0
  %588 = vmatpush1.msra.mxu0 0.0
  %589 = vmatprep.subr.mxu0 0.0
  %590 = vmatpush1.msra.mxu0 0.0
  %591 = vmatprep.subr.mxu0 0.0
  %592 = vmatpush1.msra.mxu0 %v495
  %593 = vmatprep.subr.mxu0 0.0
  %594 = vmatpush2.msra.mxu0 0.0
  %595 = vmatprep.subr.mxu0 0.0
  %596 = vmatpush2.msra.mxu0 0.0
  %597 = vmatprep.subr.mxu0 0.0
  %598 = vmatpush2.msra.mxu0 0.0
  %599 = vmatprep.subr.mxu0 0.0
  %600 = vmatpush2.msra.mxu0 0.0
  %601 = vmatprep.subr.mxu0 0.0
  %602 = vmatpush2.msra.mxu0 0.0
  %603 = vmatprep.subr.mxu0 0.0
  %604 = vmatpush2.msra.mxu0 0.0
  %605 = vmatprep.subr.mxu0 0.0
  %606 = vmatpush2.msra.mxu0 0.0
  %607 = vmatprep.subr.mxu0 0.0
  %608 = vmatpush2.msra.mxu0 0.0
  %609 = vmatprep.subr.mxu0 0.0
  %610 = vmatpush2.msra.mxu0 0.0
  %611 = vmatprep.subr.mxu0 0.0
  %612 = vmatpush2.msra.mxu0 0.0
  %613 = vmatprep.subr.mxu0 0.0
  %614 = vmatpush2.msra.mxu0 0.0
  %615 = vmatprep.subr.mxu0 0.0
  %616 = vmatpush2.msra.mxu0 0.0
  %617 = vmatprep.subr.mxu0 0.0
  %618 = vmatpush2.msra.mxu0 0.0
  %619 = vmatprep.subr.mxu0 0.0
  %620 = vmatpush2.msra.mxu0 0.0
  %621 = vmatprep.subr.mxu0 0.0
  %622 = vmatpush2.msra.mxu0 0.0
  %623 = vmatprep.subr.mxu0 0.0
  %624 = vmatpush2.msra.mxu0 0.0
  %625 = vmatprep.mubr.f32.mxu0 0.0
  %626 = vmatmul.mubr.f32.gmra.mxu0 %v559
  %v627 = vpop.f32.mrf.mxu0
  %v628 = vadd.f32 0.0, %v627
  %v629 = vpop.f32.mrf.mxu0
  %630 = vdwg.mxu0
  %v632 = vsel %vm187, %v208, 0
  %v635 = vsel %vm187, %v209, 0
  %637 = vmatprep.subr.mxu0 0.0
  %638 = vmatpush1.msra.mxu0 0.0
  %639 = vmatprep.subr.mxu0 0.0
  %640 = vmatpush1.msra.mxu0 0.0
  %641 = vmatprep.subr.mxu0 0.0
  %642 = vmatpush1.msra.mxu0 0.0
  %643 = vmatprep.subr.mxu0 0.0
  %644 = vmatpush1.msra.mxu0 0.0
  %645 = vmatprep.subr.mxu0 0.0
  %646 = vmatpush1.msra.mxu0 0.0
  %647 = vmatprep.subr.mxu0 0.0
  %648 = vmatpush1.msra.mxu0 0.0
  %649 = vmatprep.subr.mxu0 0.0
  %650 = vmatpush1.msra.mxu0 0.0
  %651 = vmatprep.subr.mxu0 0.0
  %652 = vmatpush1.msra.mxu0 0.0
  %653 = vmatprep.subr.mxu0 0.0
  %654 = vmatpush1.msra.mxu0 0.0
  %655 = vmatprep.subr.mxu0 0.0
  %656 = vmatpush1.msra.mxu0 0.0
  %657 = vmatprep.subr.mxu0 0.0
  %658 = vmatpush1.msra.mxu0 0.0
  %659 = vmatprep.subr.mxu0 0.0
  %660 = vmatpush1.msra.mxu0 0.0
  %661 = vmatprep.subr.mxu0 0.0
  %662 = vmatpush1.msra.mxu0 0.0
  %663 = vmatprep.subr.mxu0 0.0
  %664 = vmatpush1.msra.mxu0 0.0
  %665 = vmatprep.subr.mxu0 0.0
  %666 = vmatpush1.msra.mxu0 0.0
  %667 = vmatprep.subr.mxu0 0.0
  %668 = vmatpush1.msra.mxu0 %v628
  %669 = vmatprep.subr.mxu0 0.0
  %670 = vmatpush2.msra.mxu0 0.0
  %671 = vmatprep.subr.mxu0 0.0
  %672 = vmatpush2.msra.mxu0 0.0
  %673 = vmatprep.subr.mxu0 0.0
  %674 = vmatpush2.msra.mxu0 0.0
  %675 = vmatprep.subr.mxu0 0.0
  %676 = vmatpush2.msra.mxu0 0.0
  %677 = vmatprep.subr.mxu0 0.0
  %678 = vmatpush2.msra.mxu0 0.0
  %679 = vmatprep.subr.mxu0 0.0
  %680 = vmatpush2.msra.mxu0 0.0
  %681 = vmatprep.subr.mxu0 0.0
  %682 = vmatpush2.msra.mxu0 0.0
  %683 = vmatprep.subr.mxu0 0.0
  %684 = vmatpush2.msra.mxu0 0.0
  %685 = vmatprep.subr.mxu0 0.0
  %686 = vmatpush2.msra.mxu0 0.0
  %687 = vmatprep.subr.mxu0 0.0
  %688 = vmatpush2.msra.mxu0 0.0
  %689 = vmatprep.subr.mxu0 0.0
  %690 = vmatpush2.msra.mxu0 0.0
  %691 = vmatprep.subr.mxu0 0.0
  %692 = vmatpush2.msra.mxu0 0.0
  %693 = vmatprep.subr.mxu0 0.0
  %694 = vmatpush2.msra.mxu0 0.0
  %695 = vmatprep.subr.mxu0 0.0
  %696 = vmatpush2.msra.mxu0 0.0
  %697 = vmatprep.subr.mxu0 0.0
  %698 = vmatpush2.msra.mxu0 0.0
  %699 = vmatprep.subr.mxu0 0.0
  %700 = vmatpush2.msra.mxu0 0.0
  %701 = vmatprep.mubr.f32.mxu0 0.0
  %702 = vmatmul.mubr.f32.gmra.mxu0 %v632
  %v703 = vpop.f32.mrf.mxu0
  %v704 = vadd.f32 0.0, %v703
  %v705 = vpop.f32.mrf.mxu0
  %706 = vmatprep.mubr.f32.mxu0 0.0
  %707 = vmatmul.mubr.f32.gmra.mxu0 %v635
  %v708 = vpop.f32.mrf.mxu0
  %v709 = vadd.f32 0.0, %v708
  %v710 = vpop.f32.mrf.mxu0
  %711 = vdwg.mxu0
  %v712 = vmul.f32 %v704, %v524
  %v713 = vmul.f32 %v709, %v525
  %v714 = vadd.f32 %v208, %v712
  %v715 = vadd.f32 %v209, %v713
  %v716 = vsel %vm210, %v414, -inf
  %717 = vmax.xlane.f32.xlu0 %v716
  %v718 = vpop.xlane.xlu0 %717
  %v719 = vsub.f32 %v414, %v718
  %v720 = vmul.f32 %v719, 1.442695
  %v721 = vpow.pop %v720
  %723 = vrot.lane.b32.xlu0 %v721, 120
  %v724 = vpop.permute.xlu0 %723
  %v726 = vsel %vm187, %v724, 0.0
  %727 = vadd.xlane.f32.xlu0 %v726
  %v728 = vpop.xlane.xlu0 %727
  %v729 = vrcp.pop %v728
  %v730 = vmul.f32 %v721, %v729
  %v731 = vsel %vm210, %v730, 0.0
  %v732 = vrot.slane %v731, 4
  %v733 = vadd.f32 %v731, %v732
  %v734 = vrot.slane %v733, 2
  %v735 = vadd.f32 %v733, %v734
  %v736 = vrot.slane %v735, 1
  %v737 = vadd.f32 %v735, %v736
  %v738 = vmul.f32 %v239, %v737
  %v739 = vmul.f32 %v240, %v737
  %742 = vrot.lane.b32.xlu0 %v738, 120
  %v743 = vpop.permute.xlu0 %742
  %744 = vrot.lane.b32.xlu0 %v739, 120
  %v745 = vpop.permute.xlu0 %744
  %v748 = vsel %vm187, %v743, 0.0
  %749 = vadd.xlane.f32.xlu0 %v748
  %v750 = vpop.xlane.xlu0 %749
  %v751 = vsel %vm187, %v745, 0.0
  %752 = vadd.xlane.f32.xlu0 %v751
  %v753 = vpop.xlane.xlu0 %752
  %v754 = vrcp.pop %v750
  %v755 = vrcp.pop %v753
  %757 = vrot.lane.b32.xlu0 %v730, 120
  %v758 = vpop.permute.xlu0 %757
  %760 = vxpose.xlu0.b32.start [1/16] %v758, 128
  %761 = vxpose.xlu0.b32.cont [2/16] 0.0, 128
  %762 = vxpose.xlu0.b32.cont [3/16] 0.0, 128
  %763 = vxpose.xlu0.b32.cont [4/16] 0.0, 128
  %764 = vxpose.xlu0.b32.cont [5/16] 0.0, 128
  %765 = vxpose.xlu0.b32.cont [6/16] 0.0, 128
  %766 = vxpose.xlu0.b32.cont [7/16] 0.0, 128
  %767 = vxpose.xlu0.b32.cont [8/16] 0.0, 128
  %768 = vxpose.xlu0.b32.cont [9/16] 0.0, 128
  %769 = vxpose.xlu0.b32.cont [10/16] 0.0, 128
  %770 = vxpose.xlu0.b32.cont [11/16] 0.0, 128
  %771 = vxpose.xlu0.b32.cont [12/16] 0.0, 128
  %772 = vxpose.xlu0.b32.cont [13/16] 0.0, 128
  %773 = vxpose.xlu0.b32.cont [14/16] 0.0, 128
  %774 = vxpose.xlu0.b32.cont [15/16] 0.0, 128
  %775 = vxpose.xlu0.b32.end [16/16] 0.0, 128
  %v776 = vpop.trf.xlu0
  %v777 = vpop.trf.xlu0
  %v778 = vpop.trf.xlu0
  %v779 = vpop.trf.xlu0
  %v780 = vpop.trf.xlu0
  %v781 = vpop.trf.xlu0
  %v782 = vpop.trf.xlu0
  %v783 = vpop.trf.xlu0
  %v784 = vpop.trf.xlu0
  %v785 = vpop.trf.xlu0
  %v786 = vpop.trf.xlu0
  %v787 = vpop.trf.xlu0
  %v788 = vpop.trf.xlu0
  %v789 = vpop.trf.xlu0
  %v790 = vpop.trf.xlu0
  %v791 = vpop.trf.xlu0
  %793 = vrot.lane.b32.xlu0 %v495, 120
  %v794 = vpop.permute.xlu0 %793
  %v797 = vsel %vm187, %v776, 0
  %799 = vmatprep.subr.mxu0 0.0
  %800 = vmatpush1.msra.mxu0 0.0
  %801 = vmatprep.subr.mxu0 0.0
  %802 = vmatpush1.msra.mxu0 0.0
  %803 = vmatprep.subr.mxu0 0.0
  %804 = vmatpush1.msra.mxu0 0.0
  %805 = vmatprep.subr.mxu0 0.0
  %806 = vmatpush1.msra.mxu0 0.0
  %807 = vmatprep.subr.mxu0 0.0
  %808 = vmatpush1.msra.mxu0 0.0
  %809 = vmatprep.subr.mxu0 0.0
  %810 = vmatpush1.msra.mxu0 0.0
  %811 = vmatprep.subr.mxu0 0.0
  %812 = vmatpush1.msra.mxu0 0.0
  %813 = vmatprep.subr.mxu0 0.0
  %814 = vmatpush1.msra.mxu0 0.0
  %815 = vmatprep.subr.mxu0 0.0
  %816 = vmatpush1.msra.mxu0 0.0
  %817 = vmatprep.subr.mxu0 0.0
  %818 = vmatpush1.msra.mxu0 0.0
  %819 = vmatprep.subr.mxu0 0.0
  %820 = vmatpush1.msra.mxu0 0.0
  %821 = vmatprep.subr.mxu0 0.0
  %822 = vmatpush1.msra.mxu0 0.0
  %823 = vmatprep.subr.mxu0 0.0
  %824 = vmatpush1.msra.mxu0 0.0
  %825 = vmatprep.subr.mxu0 0.0
  %826 = vmatpush1.msra.mxu0 0.0
  %827 = vmatprep.subr.mxu0 0.0
  %828 = vmatpush1.msra.mxu0 0.0
  %829 = vmatprep.subr.mxu0 0.0
  %830 = vmatpush1.msra.mxu0 %v794
  %831 = vmatprep.subr.mxu0 0.0
  %832 = vmatpush2.msra.mxu0 0.0
  %833 = vmatprep.subr.mxu0 0.0
  %834 = vmatpush2.msra.mxu0 0.0
  %835 = vmatprep.subr.mxu0 0.0
  %836 = vmatpush2.msra.mxu0 0.0
  %837 = vmatprep.subr.mxu0 0.0
  %838 = vmatpush2.msra.mxu0 0.0
  %839 = vmatprep.subr.mxu0 0.0
  %840 = vmatpush2.msra.mxu0 0.0
  %841 = vmatprep.subr.mxu0 0.0
  %842 = vmatpush2.msra.mxu0 0.0
  %843 = vmatprep.subr.mxu0 0.0
  %844 = vmatpush2.msra.mxu0 0.0
  %845 = vmatprep.subr.mxu0 0.0
  %846 = vmatpush2.msra.mxu0 0.0
  %847 = vmatprep.subr.mxu0 0.0
  %848 = vmatpush2.msra.mxu0 0.0
  %849 = vmatprep.subr.mxu0 0.0
  %850 = vmatpush2.msra.mxu0 0.0
  %851 = vmatprep.subr.mxu0 0.0
  %852 = vmatpush2.msra.mxu0 0.0
  %853 = vmatprep.subr.mxu0 0.0
  %854 = vmatpush2.msra.mxu0 0.0
  %855 = vmatprep.subr.mxu0 0.0
  %856 = vmatpush2.msra.mxu0 0.0
  %857 = vmatprep.subr.mxu0 0.0
  %858 = vmatpush2.msra.mxu0 0.0
  %859 = vmatprep.subr.mxu0 0.0
  %860 = vmatpush2.msra.mxu0 0.0
  %861 = vmatprep.subr.mxu0 0.0
  %862 = vmatpush2.msra.mxu0 0.0
  %863 = vmatprep.mubr.f32.mxu0 0.0
  %864 = vmatmul.mubr.f32.gmra.mxu0 %v797
  %v865 = vpop.f32.mrf.mxu0
  %v866 = vadd.f32 0.0, %v865
  %v867 = vpop.f32.mrf.mxu0
  %868 = vdwg.mxu0
  %871 = vrot.lane.b32.xlu0 %v239, 120
  %v872 = vpop.permute.xlu0 %871
  %873 = vrot.lane.b32.xlu0 %v240, 120
  %v874 = vpop.permute.xlu0 %873
  %v875 = vsel %vm187, %v872, 0
  %v877 = vsel %vm187, %v874, 0
  %879 = vmatprep.subr.mxu0 0.0
  %880 = vmatpush1.msra.mxu0 0.0
  %881 = vmatprep.subr.mxu0 0.0
  %882 = vmatpush1.msra.mxu0 0.0
  %883 = vmatprep.subr.mxu0 0.0
  %884 = vmatpush1.msra.mxu0 0.0
  %885 = vmatprep.subr.mxu0 0.0
  %886 = vmatpush1.msra.mxu0 0.0
  %887 = vmatprep.subr.mxu0 0.0
  %888 = vmatpush1.msra.mxu0 0.0
  %889 = vmatprep.subr.mxu0 0.0
  %890 = vmatpush1.msra.mxu0 0.0
  %891 = vmatprep.subr.mxu0 0.0
  %892 = vmatpush1.msra.mxu0 0.0
  %893 = vmatprep.subr.mxu0 0.0
  %894 = vmatpush1.msra.mxu0 0.0
  %895 = vmatprep.subr.mxu0 0.0
  %896 = vmatpush1.msra.mxu0 0.0
  %897 = vmatprep.subr.mxu0 0.0
  %898 = vmatpush1.msra.mxu0 0.0
  %899 = vmatprep.subr.mxu0 0.0
  %900 = vmatpush1.msra.mxu0 0.0
  %901 = vmatprep.subr.mxu0 0.0
  %902 = vmatpush1.msra.mxu0 0.0
  %903 = vmatprep.subr.mxu0 0.0
  %904 = vmatpush1.msra.mxu0 0.0
  %905 = vmatprep.subr.mxu0 0.0
  %906 = vmatpush1.msra.mxu0 0.0
  %907 = vmatprep.subr.mxu0 0.0
  %908 = vmatpush1.msra.mxu0 0.0
  %909 = vmatprep.subr.mxu0 0.0
  %910 = vmatpush1.msra.mxu0 %v866
  %911 = vmatprep.subr.mxu0 0.0
  %912 = vmatpush2.msra.mxu0 0.0
  %913 = vmatprep.subr.mxu0 0.0
  %914 = vmatpush2.msra.mxu0 0.0
  %915 = vmatprep.subr.mxu0 0.0
  %916 = vmatpush2.msra.mxu0 0.0
  %917 = vmatprep.subr.mxu0 0.0
  %918 = vmatpush2.msra.mxu0 0.0
  %919 = vmatprep.subr.mxu0 0.0
  %920 = vmatpush2.msra.mxu0 0.0
  %921 = vmatprep.subr.mxu0 0.0
  %922 = vmatpush2.msra.mxu0 0.0
  %923 = vmatprep.subr.mxu0 0.0
  %924 = vmatpush2.msra.mxu0 0.0
  %925 = vmatprep.subr.mxu0 0.0
  %926 = vmatpush2.msra.mxu0 0.0
  %927 = vmatprep.subr.mxu0 0.0
  %928 = vmatpush2.msra.mxu0 0.0
  %929 = vmatprep.subr.mxu0 0.0
  %930 = vmatpush2.msra.mxu0 0.0
  %931 = vmatprep.subr.mxu0 0.0
  %932 = vmatpush2.msra.mxu0 0.0
  %933 = vmatprep.subr.mxu0 0.0
  %934 = vmatpush2.msra.mxu0 0.0
  %935 = vmatprep.subr.mxu0 0.0
  %936 = vmatpush2.msra.mxu0 0.0
  %937 = vmatprep.subr.mxu0 0.0
  %938 = vmatpush2.msra.mxu0 0.0
  %939 = vmatprep.subr.mxu0 0.0
  %940 = vmatpush2.msra.mxu0 0.0
  %941 = vmatprep.subr.mxu0 0.0
  %942 = vmatpush2.msra.mxu0 0.0
  %943 = vmatprep.mubr.f32.mxu0 0.0
  %944 = vmatmul.mubr.f32.gmra.mxu0 %v875
  %v945 = vpop.f32.mrf.mxu0
  %v946 = vadd.f32 0.0, %v945
  %v947 = vpop.f32.mrf.mxu0
  %948 = vmatprep.mubr.f32.mxu0 0.0
  %949 = vmatmul.mubr.f32.gmra.mxu0 %v877
  %v950 = vpop.f32.mrf.mxu0
  %v951 = vadd.f32 0.0, %v950
  %v952 = vpop.f32.mrf.mxu0
  %953 = vdwg.mxu0
  %v954 = vmul.f32 %v946, %v754
  %v955 = vmul.f32 %v951, %v755
  %958 = vrot.lane.b32.xlu0 %v954, 8
  %v959 = vpop.permute.xlu0 %958
  %960 = vrot.lane.b32.xlu0 %v955, 8
  %v961 = vpop.permute.xlu0 %960
  %v964 = vadd.f32 %v239, %v959
  %v965 = vadd.f32 %v240, %v961
  %v966 = vsel %vm241, %v414, -inf
  %967 = vmax.xlane.f32.xlu0 %v966
  %v968 = vpop.xlane.xlu0 %967
  %v969 = vsub.f32 %v414, %v968
  %v970 = vmul.f32 %v969, 1.442695
  %v971 = vpow.pop %v970
  %973 = vrot.lane.b32.xlu0 %v971, 112
  %v974 = vpop.permute.xlu0 %973
  %v976 = vsel %vm187, %v974, 0.0
  %977 = vadd.xlane.f32.xlu0 %v976
  %v978 = vpop.xlane.xlu0 %977
  %v979 = vrcp.pop %v978
  %v980 = vmul.f32 %v971, %v979
  %v981 = vsel %vm241, %v980, 0.0
  %v982 = vrot.slane %v981, 4
  %v983 = vadd.f32 %v981, %v982
  %v984 = vrot.slane %v983, 2
  %v985 = vadd.f32 %v983, %v984
  %v986 = vrot.slane %v985, 1
  %v987 = vadd.f32 %v985, %v986
  %v988 = vmul.f32 %v270, %v987
  %v989 = vmul.f32 %v271, %v987
  %992 = vrot.lane.b32.xlu0 %v988, 112
  %v993 = vpop.permute.xlu0 %992
  %994 = vrot.lane.b32.xlu0 %v989, 112
  %v995 = vpop.permute.xlu0 %994
  %v998 = vsel %vm187, %v993, 0.0
  %999 = vadd.xlane.f32.xlu0 %v998
  %v1000 = vpop.xlane.xlu0 %999
  %v1001 = vsel %vm187, %v995, 0.0
  %1002 = vadd.xlane.f32.xlu0 %v1001
  %v1003 = vpop.xlane.xlu0 %1002
  %v1004 = vrcp.pop %v1000
  %v1005 = vrcp.pop %v1003
  %1007 = vrot.lane.b32.xlu0 %v980, 112
  %v1008 = vpop.permute.xlu0 %1007
  %1010 = vxpose.xlu0.b32.start [1/16] %v1008, 128
  %1011 = vxpose.xlu0.b32.cont [2/16] 0.0, 128
  %1012 = vxpose.xlu0.b32.cont [3/16] 0.0, 128
  %1013 = vxpose.xlu0.b32.cont [4/16] 0.0, 128
  %1014 = vxpose.xlu0.b32.cont [5/16] 0.0, 128
  %1015 = vxpose.xlu0.b32.cont [6/16] 0.0, 128
  %1016 = vxpose.xlu0.b32.cont [7/16] 0.0, 128
  %1017 = vxpose.xlu0.b32.cont [8/16] 0.0, 128
  %1018 = vxpose.xlu0.b32.cont [9/16] 0.0, 128
  %1019 = vxpose.xlu0.b32.cont [10/16] 0.0, 128
  %1020 = vxpose.xlu0.b32.cont [11/16] 0.0, 128
  %1021 = vxpose.xlu0.b32.cont [12/16] 0.0, 128
  %1022 = vxpose.xlu0.b32.cont [13/16] 0.0, 128
  %1023 = vxpose.xlu0.b32.cont [14/16] 0.0, 128
  %1024 = vxpose.xlu0.b32.cont [15/16] 0.0, 128
  %1025 = vxpose.xlu0.b32.end [16/16] 0.0, 128
  %v1026 = vpop.trf.xlu0
  %v1027 = vpop.trf.xlu0
  %v1028 = vpop.trf.xlu0
  %v1029 = vpop.trf.xlu0
  %v1030 = vpop.trf.xlu0
  %v1031 = vpop.trf.xlu0
  %v1032 = vpop.trf.xlu0
  %v1033 = vpop.trf.xlu0
  %v1034 = vpop.trf.xlu0
  %v1035 = vpop.trf.xlu0
  %v1036 = vpop.trf.xlu0
  %v1037 = vpop.trf.xlu0
  %v1038 = vpop.trf.xlu0
  %v1039 = vpop.trf.xlu0
  %v1040 = vpop.trf.xlu0
  %v1041 = vpop.trf.xlu0
  %1042 = vrot.lane.b32.xlu0 %v495, 112
  %v1043 = vpop.permute.xlu0 %1042
  %v1046 = vsel %vm187, %v1026, 0
  %1048 = vmatprep.subr.mxu0 0.0
  %1049 = vmatpush1.msra.mxu0 0.0
  %1050 = vmatprep.subr.mxu0 0.0
  %1051 = vmatpush1.msra.mxu0 0.0
  %1052 = vmatprep.subr.mxu0 0.0
  %1053 = vmatpush1.msra.mxu0 0.0
  %1054 = vmatprep.subr.mxu0 0.0
  %1055 = vmatpush1.msra.mxu0 0.0
  %1056 = vmatprep.subr.mxu0 0.0
  %1057 = vmatpush1.msra.mxu0 0.0
  %1058 = vmatprep.subr.mxu0 0.0
  %1059 = vmatpush1.msra.mxu0 0.0
  %1060 = vmatprep.subr.mxu0 0.0
  %1061 = vmatpush1.msra.mxu0 0.0
  %1062 = vmatprep.subr.mxu0 0.0
  %1063 = vmatpush1.msra.mxu0 0.0
  %1064 = vmatprep.subr.mxu0 0.0
  %1065 = vmatpush1.msra.mxu0 0.0
  %1066 = vmatprep.subr.mxu0 0.0
  %1067 = vmatpush1.msra.mxu0 0.0
  %1068 = vmatprep.subr.mxu0 0.0
  %1069 = vmatpush1.msra.mxu0 0.0
  %1070 = vmatprep.subr.mxu0 0.0
  %1071 = vmatpush1.msra.mxu0 0.0
  %1072 = vmatprep.subr.mxu0 0.0
  %1073 = vmatpush1.msra.mxu0 0.0
  %1074 = vmatprep.subr.mxu0 0.0
  %1075 = vmatpush1.msra.mxu0 0.0
  %1076 = vmatprep.subr.mxu0 0.0
  %1077 = vmatpush1.msra.mxu0 0.0
  %1078 = vmatprep.subr.mxu0 0.0
  %1079 = vmatpush1.msra.mxu0 %v1043
  %1080 = vmatprep.subr.mxu0 0.0
  %1081 = vmatpush2.msra.mxu0 0.0
  %1082 = vmatprep.subr.mxu0 0.0
  %1083 = vmatpush2.msra.mxu0 0.0
  %1084 = vmatprep.subr.mxu0 0.0
  %1085 = vmatpush2.msra.mxu0 0.0
  %1086 = vmatprep.subr.mxu0 0.0
  %1087 = vmatpush2.msra.mxu0 0.0
  %1088 = vmatprep.subr.mxu0 0.0
  %1089 = vmatpush2.msra.mxu0 0.0
  %1090 = vmatprep.subr.mxu0 0.0
  %1091 = vmatpush2.msra.mxu0 0.0
  %1092 = vmatprep.subr.mxu0 0.0
  %1093 = vmatpush2.msra.mxu0 0.0
  %1094 = vmatprep.subr.mxu0 0.0
  %1095 = vmatpush2.msra.mxu0 0.0
  %1096 = vmatprep.subr.mxu0 0.0
  %1097 = vmatpush2.msra.mxu0 0.0
  %1098 = vmatprep.subr.mxu0 0.0
  %1099 = vmatpush2.msra.mxu0 0.0
  %1100 = vmatprep.subr.mxu0 0.0
  %1101 = vmatpush2.msra.mxu0 0.0
  %1102 = vmatprep.subr.mxu0 0.0
  %1103 = vmatpush2.msra.mxu0 0.0
  %1104 = vmatprep.subr.mxu0 0.0
  %1105 = vmatpush2.msra.mxu0 0.0
  %1106 = vmatprep.subr.mxu0 0.0
  %1107 = vmatpush2.msra.mxu0 0.0
  %1108 = vmatprep.subr.mxu0 0.0
  %1109 = vmatpush2.msra.mxu0 0.0
  %1110 = vmatprep.subr.mxu0 0.0
  %1111 = vmatpush2.msra.mxu0 0.0
  %1112 = vmatprep.mubr.f32.mxu0 0.0
  %1113 = vmatmul.mubr.f32.gmra.mxu0 %v1046
  %v1114 = vpop.f32.mrf.mxu0
  %v1115 = vadd.f32 0.0, %v1114
  %v1116 = vpop.f32.mrf.mxu0
  %1117 = vdwg.mxu0
  %1120 = vrot.lane.b32.xlu0 %v270, 112
  %v1121 = vpop.permute.xlu0 %1120
  %1122 = vrot.lane.b32.xlu0 %v271, 112
  %v1123 = vpop.permute.xlu0 %1122
  %v1124 = vsel %vm187, %v1121, 0
  %v1126 = vsel %vm187, %v1123, 0
  %1128 = vmatprep.subr.mxu0 0.0
  %1129 = vmatpush1.msra.mxu0 0.0
  %1130 = vmatprep.subr.mxu0 0.0
  %1131 = vmatpush1.msra.mxu0 0.0
  %1132 = vmatprep.subr.mxu0 0.0
  %1133 = vmatpush1.msra.mxu0 0.0
  %1134 = vmatprep.subr.mxu0 0.0
  %1135 = vmatpush1.msra.mxu0 0.0
  %1136 = vmatprep.subr.mxu0 0.0
  %1137 = vmatpush1.msra.mxu0 0.0
  %1138 = vmatprep.subr.mxu0 0.0
  %1139 = vmatpush1.msra.mxu0 0.0
  %1140 = vmatprep.subr.mxu0 0.0
  %1141 = vmatpush1.msra.mxu0 0.0
  %1142 = vmatprep.subr.mxu0 0.0
  %1143 = vmatpush1.msra.mxu0 0.0
  %1144 = vmatprep.subr.mxu0 0.0
  %1145 = vmatpush1.msra.mxu0 0.0
  %1146 = vmatprep.subr.mxu0 0.0
  %1147 = vmatpush1.msra.mxu0 0.0
  %1148 = vmatprep.subr.mxu0 0.0
  %1149 = vmatpush1.msra.mxu0 0.0
  %1150 = vmatprep.subr.mxu0 0.0
  %1151 = vmatpush1.msra.mxu0 0.0
  %1152 = vmatprep.subr.mxu0 0.0
  %1153 = vmatpush1.msra.mxu0 0.0
  %1154 = vmatprep.subr.mxu0 0.0
  %1155 = vmatpush1.msra.mxu0 0.0
  %1156 = vmatprep.subr.mxu0 0.0
  %1157 = vmatpush1.msra.mxu0 0.0
  %1158 = vmatprep.subr.mxu0 0.0
  %1159 = vmatpush1.msra.mxu0 %v1115
  %1160 = vmatprep.subr.mxu0 0.0
  %1161 = vmatpush2.msra.mxu0 0.0
  %1162 = vmatprep.subr.mxu0 0.0
  %1163 = vmatpush2.msra.mxu0 0.0
  %1164 = vmatprep.subr.mxu0 0.0
  %1165 = vmatpush2.msra.mxu0 0.0
  %1166 = vmatprep.subr.mxu0 0.0
  %1167 = vmatpush2.msra.mxu0 0.0
  %1168 = vmatprep.subr.mxu0 0.0
  %1169 = vmatpush2.msra.mxu0 0.0
  %1170 = vmatprep.subr.mxu0 0.0
  %1171 = vmatpush2.msra.mxu0 0.0
  %1172 = vmatprep.subr.mxu0 0.0
  %1173 = vmatpush2.msra.mxu0 0.0
  %1174 = vmatprep.subr.mxu0 0.0
  %1175 = vmatpush2.msra.mxu0 0.0
  %1176 = vmatprep.subr.mxu0 0.0
  %1177 = vmatpush2.msra.mxu0 0.0
  %1178 = vmatprep.subr.mxu0 0.0
  %1179 = vmatpush2.msra.mxu0 0.0
  %1180 = vmatprep.subr.mxu0 0.0
  %1181 = vmatpush2.msra.mxu0 0.0
  %1182 = vmatprep.subr.mxu0 0.0
  %1183 = vmatpush2.msra.mxu0 0.0
  %1184 = vmatprep.subr.mxu0 0.0
  %1185 = vmatpush2.msra.mxu0 0.0
  %1186 = vmatprep.subr.mxu0 0.0
  %1187 = vmatpush2.msra.mxu0 0.0
  %1188 = vmatprep.subr.mxu0 0.0
  %1189 = vmatpush2.msra.mxu0 0.0
  %1190 = vmatprep.subr.mxu0 0.0
  %1191 = vmatpush2.msra.mxu0 0.0
  %1192 = vmatprep.mubr.f32.mxu0 0.0
  %1193 = vmatmul.mubr.f32.gmra.mxu0 %v1124
  %v1194 = vpop.f32.mrf.mxu0
  %v1195 = vadd.f32 0.0, %v1194
  %v1196 = vpop.f32.mrf.mxu0
  %1197 = vmatprep.mubr.f32.mxu0 0.0
  %1198 = vmatmul.mubr.f32.gmra.mxu0 %v1126
  %v1199 = vpop.f32.mrf.mxu0
  %v1200 = vadd.f32 0.0, %v1199
  %v1201 = vpop.f32.mrf.mxu0
  %1202 = vdwg.mxu0
  %v1203 = vmul.f32 %v1195, %v1004
  %v1204 = vmul.f32 %v1200, %v1005
  %1207 = vrot.lane.b32.xlu0 %v1203, 16
  %v1208 = vpop.permute.xlu0 %1207
  %1209 = vrot.lane.b32.xlu0 %v1204, 16
  %v1210 = vpop.permute.xlu0 %1209
  %v1213 = vadd.f32 %v270, %v1208
  %v1214 = vadd.f32 %v271, %v1210
  %v1215 = vsel %vm272, %v414, -inf
  %1216 = vmax.xlane.f32.xlu0 %v1215
  %v1217 = vpop.xlane.xlu0 %1216
  %v1218 = vsub.f32 %v414, %v1217
  %v1219 = vmul.f32 %v1218, 1.442695
  %v1220 = vpow.pop %v1219
  %1222 = vrot.lane.b32.xlu0 %v1220, 104
  %v1223 = vpop.permute.xlu0 %1222
  %v1225 = vsel %vm187, %v1223, 0.0
  %1226 = vadd.xlane.f32.xlu0 %v1225
  %v1227 = vpop.xlane.xlu0 %1226
  %v1228 = vrcp.pop %v1227
  %v1229 = vmul.f32 %v1220, %v1228
  %v1230 = vsel %vm272, %v1229, 0.0
  %v1231 = vrot.slane %v1230, 4
  %v1232 = vadd.f32 %v1230, %v1231
  %v1233 = vrot.slane %v1232, 2
  %v1234 = vadd.f32 %v1232, %v1233
  %v1235 = vrot.slane %v1234, 1
  %v1236 = vadd.f32 %v1234, %v1235
  %v1237 = vmul.f32 %v301, %v1236
  %v1238 = vmul.f32 %v302, %v1236
  %1241 = vrot.lane.b32.xlu0 %v1237, 104
  %v1242 = vpop.permute.xlu0 %1241
  %1243 = vrot.lane.b32.xlu0 %v1238, 104
  %v1244 = vpop.permute.xlu0 %1243
  %v1247 = vsel %vm187, %v1242, 0.0
  %1248 = vadd.xlane.f32.xlu0 %v1247
  %v1249 = vpop.xlane.xlu0 %1248
  %v1250 = vsel %vm187, %v1244, 0.0
  %1251 = vadd.xlane.f32.xlu0 %v1250
  %v1252 = vpop.xlane.xlu0 %1251
  %v1253 = vrcp.pop %v1249
  %v1254 = vrcp.pop %v1252
  %1256 = vrot.lane.b32.xlu0 %v1229, 104
  %v1257 = vpop.permute.xlu0 %1256
  %1259 = vxpose.xlu0.b32.start [1/16] %v1257, 128
  %1260 = vxpose.xlu0.b32.cont [2/16] 0.0, 128
  %1261 = vxpose.xlu0.b32.cont [3/16] 0.0, 128
  %1262 = vxpose.xlu0.b32.cont [4/16] 0.0, 128
  %1263 = vxpose.xlu0.b32.cont [5/16] 0.0, 128
  %1264 = vxpose.xlu0.b32.cont [6/16] 0.0, 128
  %1265 = vxpose.xlu0.b32.cont [7/16] 0.0, 128
  %1266 = vxpose.xlu0.b32.cont [8/16] 0.0, 128
  %1267 = vxpose.xlu0.b32.cont [9/16] 0.0, 128
  %1268 = vxpose.xlu0.b32.cont [10/16] 0.0, 128
  %1269 = vxpose.xlu0.b32.cont [11/16] 0.0, 128
  %1270 = vxpose.xlu0.b32.cont [12/16] 0.0, 128
  %1271 = vxpose.xlu0.b32.cont [13/16] 0.0, 128
  %1272 = vxpose.xlu0.b32.cont [14/16] 0.0, 128
  %1273 = vxpose.xlu0.b32.cont [15/16] 0.0, 128
  %1274 = vxpose.xlu0.b32.end [16/16] 0.0, 128
  %v1275 = vpop.trf.xlu0
  %v1276 = vpop.trf.xlu0
  %v1277 = vpop.trf.xlu0
  %v1278 = vpop.trf.xlu0
  %v1279 = vpop.trf.xlu0
  %v1280 = vpop.trf.xlu0
  %v1281 = vpop.trf.xlu0
  %v1282 = vpop.trf.xlu0
  %v1283 = vpop.trf.xlu0
  %v1284 = vpop.trf.xlu0
  %v1285 = vpop.trf.xlu0
  %v1286 = vpop.trf.xlu0
  %v1287 = vpop.trf.xlu0
  %v1288 = vpop.trf.xlu0
  %v1289 = vpop.trf.xlu0
  %v1290 = vpop.trf.xlu0
  %1291 = vrot.lane.b32.xlu0 %v495, 104
  %v1292 = vpop.permute.xlu0 %1291
  %v1295 = vsel %vm187, %v1275, 0
  %1297 = vmatprep.subr.mxu0 0.0
  %1298 = vmatpush1.msra.mxu0 0.0
  %1299 = vmatprep.subr.mxu0 0.0
  %1300 = vmatpush1.msra.mxu0 0.0
  %1301 = vmatprep.subr.mxu0 0.0
  %1302 = vmatpush1.msra.mxu0 0.0
  %1303 = vmatprep.subr.mxu0 0.0
  %1304 = vmatpush1.msra.mxu0 0.0
  %1305 = vmatprep.subr.mxu0 0.0
  %1306 = vmatpush1.msra.mxu0 0.0
  %1307 = vmatprep.subr.mxu0 0.0
  %1308 = vmatpush1.msra.mxu0 0.0
  %1309 = vmatprep.subr.mxu0 0.0
  %1310 = vmatpush1.msra.mxu0 0.0
  %1311 = vmatprep.subr.mxu0 0.0
  %1312 = vmatpush1.msra.mxu0 0.0
  %1313 = vmatprep.subr.mxu0 0.0
  %1314 = vmatpush1.msra.mxu0 0.0
  %1315 = vmatprep.subr.mxu0 0.0
  %1316 = vmatpush1.msra.mxu0 0.0
  %1317 = vmatprep.subr.mxu0 0.0
  %1318 = vmatpush1.msra.mxu0 0.0
  %1319 = vmatprep.subr.mxu0 0.0
  %1320 = vmatpush1.msra.mxu0 0.0
  %1321 = vmatprep.subr.mxu0 0.0
  %1322 = vmatpush1.msra.mxu0 0.0
  %1323 = vmatprep.subr.mxu0 0.0
  %1324 = vmatpush1.msra.mxu0 0.0
  %1325 = vmatprep.subr.mxu0 0.0
  %1326 = vmatpush1.msra.mxu0 0.0
  %1327 = vmatprep.subr.mxu0 0.0
  %1328 = vmatpush1.msra.mxu0 %v1292
  %1329 = vmatprep.subr.mxu0 0.0
  %1330 = vmatpush2.msra.mxu0 0.0
  %1331 = vmatprep.subr.mxu0 0.0
  %1332 = vmatpush2.msra.mxu0 0.0
  %1333 = vmatprep.subr.mxu0 0.0
  %1334 = vmatpush2.msra.mxu0 0.0
  %1335 = vmatprep.subr.mxu0 0.0
  %1336 = vmatpush2.msra.mxu0 0.0
  %1337 = vmatprep.subr.mxu0 0.0
  %1338 = vmatpush2.msra.mxu0 0.0
  %1339 = vmatprep.subr.mxu0 0.0
  %1340 = vmatpush2.msra.mxu0 0.0
  %1341 = vmatprep.subr.mxu0 0.0
  %1342 = vmatpush2.msra.mxu0 0.0
  %1343 = vmatprep.subr.mxu0 0.0
  %1344 = vmatpush2.msra.mxu0 0.0
  %1345 = vmatprep.subr.mxu0 0.0
  %1346 = vmatpush2.msra.mxu0 0.0
  %1347 = vmatprep.subr.mxu0 0.0
  %1348 = vmatpush2.msra.mxu0 0.0
  %1349 = vmatprep.subr.mxu0 0.0
  %1350 = vmatpush2.msra.mxu0 0.0
  %1351 = vmatprep.subr.mxu0 0.0
  %1352 = vmatpush2.msra.mxu0 0.0
  %1353 = vmatprep.subr.mxu0 0.0
  %1354 = vmatpush2.msra.mxu0 0.0
  %1355 = vmatprep.subr.mxu0 0.0
  %1356 = vmatpush2.msra.mxu0 0.0
  %1357 = vmatprep.subr.mxu0 0.0
  %1358 = vmatpush2.msra.mxu0 0.0
  %1359 = vmatprep.subr.mxu0 0.0
  %1360 = vmatpush2.msra.mxu0 0.0
  %1361 = vmatprep.mubr.f32.mxu0 0.0
  %1362 = vmatmul.mubr.f32.gmra.mxu0 %v1295
  %v1363 = vpop.f32.mrf.mxu0
  %v1364 = vadd.f32 0.0, %v1363
  %v1365 = vpop.f32.mrf.mxu0
  %1366 = vdwg.mxu0
  %1369 = vrot.lane.b32.xlu0 %v301, 104
  %v1370 = vpop.permute.xlu0 %1369
  %1371 = vrot.lane.b32.xlu0 %v302, 104
  %v1372 = vpop.permute.xlu0 %1371
  %v1373 = vsel %vm187, %v1370, 0
  %v1375 = vsel %vm187, %v1372, 0
  %1377 = vmatprep.subr.mxu0 0.0
  %1378 = vmatpush1.msra.mxu0 0.0
  %1379 = vmatprep.subr.mxu0 0.0
  %1380 = vmatpush1.msra.mxu0 0.0
  %1381 = vmatprep.subr.mxu0 0.0
  %1382 = vmatpush1.msra.mxu0 0.0
  %1383 = vmatprep.subr.mxu0 0.0
  %1384 = vmatpush1.msra.mxu0 0.0
  %1385 = vmatprep.subr.mxu0 0.0
  %1386 = vmatpush1.msra.mxu0 0.0
  %1387 = vmatprep.subr.mxu0 0.0
  %1388 = vmatpush1.msra.mxu0 0.0
  %1389 = vmatprep.subr.mxu0 0.0
  %1390 = vmatpush1.msra.mxu0 0.0
  %1391 = vmatprep.subr.mxu0 0.0
  %1392 = vmatpush1.msra.mxu0 0.0
  %1393 = vmatprep.subr.mxu0 0.0
  %1394 = vmatpush1.msra.mxu0 0.0
  %1395 = vmatprep.subr.mxu0 0.0
  %1396 = vmatpush1.msra.mxu0 0.0
  %1397 = vmatprep.subr.mxu0 0.0
  %1398 = vmatpush1.msra.mxu0 0.0
  %1399 = vmatprep.subr.mxu0 0.0
  %1400 = vmatpush1.msra.mxu0 0.0
  %1401 = vmatprep.subr.mxu0 0.0
  %1402 = vmatpush1.msra.mxu0 0.0
  %1403 = vmatprep.subr.mxu0 0.0
  %1404 = vmatpush1.msra.mxu0 0.0
  %1405 = vmatprep.subr.mxu0 0.0
  %1406 = vmatpush1.msra.mxu0 0.0
  %1407 = vmatprep.subr.mxu0 0.0
  %1408 = vmatpush1.msra.mxu0 %v1364
  %1409 = vmatprep.subr.mxu0 0.0
  %1410 = vmatpush2.msra.mxu0 0.0
  %1411 = vmatprep.subr.mxu0 0.0
  %1412 = vmatpush2.msra.mxu0 0.0
  %1413 = vmatprep.subr.mxu0 0.0
  %1414 = vmatpush2.msra.mxu0 0.0
  %1415 = vmatprep.subr.mxu0 0.0
  %1416 = vmatpush2.msra.mxu0 0.0
  %1417 = vmatprep.subr.mxu0 0.0
  %1418 = vmatpush2.msra.mxu0 0.0
  %1419 = vmatprep.subr.mxu0 0.0
  %1420 = vmatpush2.msra.mxu0 0.0
  %1421 = vmatprep.subr.mxu0 0.0
  %1422 = vmatpush2.msra.mxu0 0.0
  %1423 = vmatprep.subr.mxu0 0.0
  %1424 = vmatpush2.msra.mxu0 0.0
  %1425 = vmatprep.subr.mxu0 0.0
  %1426 = vmatpush2.msra.mxu0 0.0
  %1427 = vmatprep.subr.mxu0 0.0
  %1428 = vmatpush2.msra.mxu0 0.0
  %1429 = vmatprep.subr.mxu0 0.0
  %1430 = vmatpush2.msra.mxu0 0.0
  %1431 = vmatprep.subr.mxu0 0.0
  %1432 = vmatpush2.msra.mxu0 0.0
  %1433 = vmatprep.subr.mxu0 0.0
  %1434 = vmatpush2.msra.mxu0 0.0
  %1435 = vmatprep.subr.mxu0 0.0
  %1436 = vmatpush2.msra.mxu0 0.0
  %1437 = vmatprep.subr.mxu0 0.0
  %1438 = vmatpush2.msra.mxu0 0.0
  %1439 = vmatprep.subr.mxu0 0.0
  %1440 = vmatpush2.msra.mxu0 0.0
  %1441 = vmatprep.mubr.f32.mxu0 0.0
  %1442 = vmatmul.mubr.f32.gmra.mxu0 %v1373
  %v1443 = vpop.f32.mrf.mxu0
  %v1444 = vadd.f32 0.0, %v1443
  %v1445 = vpop.f32.mrf.mxu0
  %1446 = vmatprep.mubr.f32.mxu0 0.0
  %1447 = vmatmul.mubr.f32.gmra.mxu0 %v1375
  %v1448 = vpop.f32.mrf.mxu0
  %v1449 = vadd.f32 0.0, %v1448
  %v1450 = vpop.f32.mrf.mxu0
  %1451 = vdwg.mxu0
  %v1452 = vmul.f32 %v1444, %v1253
  %v1453 = vmul.f32 %v1449, %v1254
  %1456 = vrot.lane.b32.xlu0 %v1452, 24
  %v1457 = vpop.permute.xlu0 %1456
  %1458 = vrot.lane.b32.xlu0 %v1453, 24
  %v1459 = vpop.permute.xlu0 %1458
  %v1462 = vadd.f32 %v301, %v1457
  %v1463 = vadd.f32 %v302, %v1459
  %v1464 = vld [vmem:[%s12] sm:$0xff]
  %v1465 = vld [vmem:[%s12 + $0x8] sm:$0xff]
  %v1466 = vld [vmem:[%s12 + $0x10] sm:$0xff]
  %v1467 = vld [vmem:[%s12 + $0x18] sm:$0xff]
  %v1468 = vld [vmem:[%s13] sm:$0x1]
  %v1470 = vsel %vm187, %v714, 0
  %v1473 = vsel %vm187, %v715, 0
  %1475 = vmatprep.subr.mxu0 0.0
  %1476 = vmatpush1.msra.mxu0 0.0
  %1477 = vmatprep.subr.mxu0 0.0
  %1478 = vmatpush1.msra.mxu0 0.0
  %1479 = vmatprep.subr.mxu0 0.0
  %1480 = vmatpush1.msra.mxu0 0.0
  %1481 = vmatprep.subr.mxu0 0.0
  %1482 = vmatpush1.msra.mxu0 0.0
  %1483 = vmatprep.subr.mxu0 0.0
  %1484 = vmatpush1.msra.mxu0 0.0
  %1485 = vmatprep.subr.mxu0 0.0
  %1486 = vmatpush1.msra.mxu0 0.0
  %1487 = vmatprep.subr.mxu0 0.0
  %1488 = vmatpush1.msra.mxu0 0.0
  %1489 = vmatprep.subr.mxu0 0.0
  %1490 = vmatpush1.msra.mxu0 0.0
  %1491 = vmatprep.subr.mxu0 0.0
  %1492 = vmatpush1.msra.mxu0 0.0
  %1493 = vmatprep.subr.mxu0 0.0
  %1494 = vmatpush1.msra.mxu0 0.0
  %1495 = vmatprep.subr.mxu0 0.0
  %1496 = vmatpush1.msra.mxu0 0.0
  %1497 = vmatprep.subr.mxu0 0.0
  %1498 = vmatpush1.msra.mxu0 0.0
  %1499 = vmatprep.subr.mxu0 0.0
  %1500 = vmatpush1.msra.mxu0 0.0
  %1501 = vmatprep.subr.mxu0 0.0
  %1502 = vmatpush1.msra.mxu0 0.0
  %1503 = vmatprep.subr.mxu0 0.0
  %1504 = vmatpush1.msra.mxu0 0.0
  %1505 = vmatprep.subr.mxu0 0.0
  %1506 = vmatpush1.msra.mxu0 %v1464
  %1507 = vmatprep.subr.mxu0 0.0
  %1508 = vmatpush2.msra.mxu0 0.0
  %1509 = vmatprep.subr.mxu0 0.0
  %1510 = vmatpush2.msra.mxu0 0.0
  %1511 = vmatprep.subr.mxu0 0.0
  %1512 = vmatpush2.msra.mxu0 0.0
  %1513 = vmatprep.subr.mxu0 0.0
  %1514 = vmatpush2.msra.mxu0 0.0
  %1515 = vmatprep.subr.mxu0 0.0
  %1516 = vmatpush2.msra.mxu0 0.0
  %1517 = vmatprep.subr.mxu0 0.0
  %1518 = vmatpush2.msra.mxu0 0.0
  %1519 = vmatprep.subr.mxu0 0.0
  %1520 = vmatpush2.msra.mxu0 0.0
  %1521 = vmatprep.subr.mxu0 0.0
  %1522 = vmatpush2.msra.mxu0 0.0
  %1523 = vmatprep.subr.mxu0 0.0
  %1524 = vmatpush2.msra.mxu0 0.0
  %1525 = vmatprep.subr.mxu0 0.0
  %1526 = vmatpush2.msra.mxu0 0.0
  %1527 = vmatprep.subr.mxu0 0.0
  %1528 = vmatpush2.msra.mxu0 0.0
  %1529 = vmatprep.subr.mxu0 0.0
  %1530 = vmatpush2.msra.mxu0 0.0
  %1531 = vmatprep.subr.mxu0 0.0
  %1532 = vmatpush2.msra.mxu0 0.0
  %1533 = vmatprep.subr.mxu0 0.0
  %1534 = vmatpush2.msra.mxu0 0.0
  %1535 = vmatprep.subr.mxu0 0.0
  %1536 = vmatpush2.msra.mxu0 0.0
  %1537 = vmatprep.subr.mxu0 0.0
  %1538 = vmatpush2.msra.mxu0 0.0
  %1539 = vmatprep.mubr.f32.mxu0 0.0
  %1540 = vmatmul.mubr.f32.gmra.mxu0 %v1470
  %v1541 = vpop.f32.mrf.mxu0
  %v1542 = vadd.f32 0.0, %v1541
  %v1543 = vpop.f32.mrf.mxu0
  %1544 = vmatprep.mubr.f32.mxu0 0.0
  %1545 = vmatmul.mubr.f32.gmra.mxu0 %v1473
  %v1546 = vpop.f32.mrf.mxu0
  %v1547 = vadd.f32 0.0, %v1546
  %v1548 = vpop.f32.mrf.mxu0
  %1549 = vdwg.mxu0
  %v1551 = vlaneseq
  %v1552 = vshrl.u32 %v1551, 7
  %v1553 = vsub.s32 0, %v1552
  %v1554 = vrot.slane %v1468, %v1553
  %v1556 = vadd.f32 %v1554, %v1542
  %v1557 = vadd.f32 %v1554, %v1547
  %1560 = vrot.lane.b32.xlu0 %v964, 120
  %v1561 = vpop.permute.xlu0 %1560
  %1562 = vrot.lane.b32.xlu0 %v965, 120
  %v1563 = vpop.permute.xlu0 %1562
  %v1564 = vsel %vm187, %v1561, 0
  %v1566 = vsel %vm187, %v1563, 0
  %1568 = vmatprep.subr.mxu0 0.0
  %1569 = vmatpush1.msra.mxu0 0.0
  %1570 = vmatprep.subr.mxu0 0.0
  %1571 = vmatpush1.msra.mxu0 0.0
  %1572 = vmatprep.subr.mxu0 0.0
  %1573 = vmatpush1.msra.mxu0 0.0
  %1574 = vmatprep.subr.mxu0 0.0
  %1575 = vmatpush1.msra.mxu0 0.0
  %1576 = vmatprep.subr.mxu0 0.0
  %1577 = vmatpush1.msra.mxu0 0.0
  %1578 = vmatprep.subr.mxu0 0.0
  %1579 = vmatpush1.msra.mxu0 0.0
  %1580 = vmatprep.subr.mxu0 0.0
  %1581 = vmatpush1.msra.mxu0 0.0
  %1582 = vmatprep.subr.mxu0 0.0
  %1583 = vmatpush1.msra.mxu0 0.0
  %1584 = vmatprep.subr.mxu0 0.0
  %1585 = vmatpush1.msra.mxu0 0.0
  %1586 = vmatprep.subr.mxu0 0.0
  %1587 = vmatpush1.msra.mxu0 0.0
  %1588 = vmatprep.subr.mxu0 0.0
  %1589 = vmatpush1.msra.mxu0 0.0
  %1590 = vmatprep.subr.mxu0 0.0
  %1591 = vmatpush1.msra.mxu0 0.0
  %1592 = vmatprep.subr.mxu0 0.0
  %1593 = vmatpush1.msra.mxu0 0.0
  %1594 = vmatprep.subr.mxu0 0.0
  %1595 = vmatpush1.msra.mxu0 0.0
  %1596 = vmatprep.subr.mxu0 0.0
  %1597 = vmatpush1.msra.mxu0 0.0
  %1598 = vmatprep.subr.mxu0 0.0
  %1599 = vmatpush1.msra.mxu0 %v1465
  %1600 = vmatprep.subr.mxu0 0.0
  %1601 = vmatpush2.msra.mxu0 0.0
  %1602 = vmatprep.subr.mxu0 0.0
  %1603 = vmatpush2.msra.mxu0 0.0
  %1604 = vmatprep.subr.mxu0 0.0
  %1605 = vmatpush2.msra.mxu0 0.0
  %1606 = vmatprep.subr.mxu0 0.0
  %1607 = vmatpush2.msra.mxu0 0.0
  %1608 = vmatprep.subr.mxu0 0.0
  %1609 = vmatpush2.msra.mxu0 0.0
  %1610 = vmatprep.subr.mxu0 0.0
  %1611 = vmatpush2.msra.mxu0 0.0
  %1612 = vmatprep.subr.mxu0 0.0
  %1613 = vmatpush2.msra.mxu0 0.0
  %1614 = vmatprep.subr.mxu0 0.0
  %1615 = vmatpush2.msra.mxu0 0.0
  %1616 = vmatprep.subr.mxu0 0.0
  %1617 = vmatpush2.msra.mxu0 0.0
  %1618 = vmatprep.subr.mxu0 0.0
  %1619 = vmatpush2.msra.mxu0 0.0
  %1620 = vmatprep.subr.mxu0 0.0
  %1621 = vmatpush2.msra.mxu0 0.0
  %1622 = vmatprep.subr.mxu0 0.0
  %1623 = vmatpush2.msra.mxu0 0.0
  %1624 = vmatprep.subr.mxu0 0.0
  %1625 = vmatpush2.msra.mxu0 0.0
  %1626 = vmatprep.subr.mxu0 0.0
  %1627 = vmatpush2.msra.mxu0 0.0
  %1628 = vmatprep.subr.mxu0 0.0
  %1629 = vmatpush2.msra.mxu0 0.0
  %1630 = vmatprep.subr.mxu0 0.0
  %1631 = vmatpush2.msra.mxu0 0.0
  %1632 = vmatprep.mubr.f32.mxu0 0.0
  %1633 = vmatmul.mubr.f32.gmra.mxu0 %v1564
  %v1634 = vpop.f32.mrf.mxu0
  %v1635 = vadd.f32 0.0, %v1634
  %v1636 = vpop.f32.mrf.mxu0
  %1637 = vmatprep.mubr.f32.mxu0 0.0
  %1638 = vmatmul.mubr.f32.gmra.mxu0 %v1566
  %v1639 = vpop.f32.mrf.mxu0
  %v1640 = vadd.f32 0.0, %v1639
  %v1641 = vpop.f32.mrf.mxu0
  %1642 = vdwg.mxu0
  %v1643 = vadd.f32 %v1556, %v1635
  %v1644 = vadd.f32 %v1557, %v1640
  %1647 = vrot.lane.b32.xlu0 %v1213, 112
  %v1648 = vpop.permute.xlu0 %1647
  %1649 = vrot.lane.b32.xlu0 %v1214, 112
  %v1650 = vpop.permute.xlu0 %1649
  %v1651 = vsel %vm187, %v1648, 0
  %v1653 = vsel %vm187, %v1650, 0
  %1655 = vmatprep.subr.mxu0 0.0
  %1656 = vmatpush1.msra.mxu0 0.0
  %1657 = vmatprep.subr.mxu0 0.0
  %1658 = vmatpush1.msra.mxu0 0.0
  %1659 = vmatprep.subr.mxu0 0.0
  %1660 = vmatpush1.msra.mxu0 0.0
  %1661 = vmatprep.subr.mxu0 0.0
  %1662 = vmatpush1.msra.mxu0 0.0
  %1663 = vmatprep.subr.mxu0 0.0
  %1664 = vmatpush1.msra.mxu0 0.0
  %1665 = vmatprep.subr.mxu0 0.0
  %1666 = vmatpush1.msra.mxu0 0.0
  %1667 = vmatprep.subr.mxu0 0.0
  %1668 = vmatpush1.msra.mxu0 0.0
  %1669 = vmatprep.subr.mxu0 0.0
  %1670 = vmatpush1.msra.mxu0 0.0
  %1671 = vmatprep.subr.mxu0 0.0
  %1672 = vmatpush1.msra.mxu0 0.0
  %1673 = vmatprep.subr.mxu0 0.0
  %1674 = vmatpush1.msra.mxu0 0.0
  %1675 = vmatprep.subr.mxu0 0.0
  %1676 = vmatpush1.msra.mxu0 0.0
  %1677 = vmatprep.subr.mxu0 0.0
  %1678 = vmatpush1.msra.mxu0 0.0
  %1679 = vmatprep.subr.mxu0 0.0
  %1680 = vmatpush1.msra.mxu0 0.0
  %1681 = vmatprep.subr.mxu0 0.0
  %1682 = vmatpush1.msra.mxu0 0.0
  %1683 = vmatprep.subr.mxu0 0.0
  %1684 = vmatpush1.msra.mxu0 0.0
  %1685 = vmatprep.subr.mxu0 0.0
  %1686 = vmatpush1.msra.mxu0 %v1466
  %1687 = vmatprep.subr.mxu0 0.0
  %1688 = vmatpush2.msra.mxu0 0.0
  %1689 = vmatprep.subr.mxu0 0.0
  %1690 = vmatpush2.msra.mxu0 0.0
  %1691 = vmatprep.subr.mxu0 0.0
  %1692 = vmatpush2.msra.mxu0 0.0
  %1693 = vmatprep.subr.mxu0 0.0
  %1694 = vmatpush2.msra.mxu0 0.0
  %1695 = vmatprep.subr.mxu0 0.0
  %1696 = vmatpush2.msra.mxu0 0.0
  %1697 = vmatprep.subr.mxu0 0.0
  %1698 = vmatpush2.msra.mxu0 0.0
  %1699 = vmatprep.subr.mxu0 0.0
  %1700 = vmatpush2.msra.mxu0 0.0
  %1701 = vmatprep.subr.mxu0 0.0
  %1702 = vmatpush2.msra.mxu0 0.0
  %1703 = vmatprep.subr.mxu0 0.0
  %1704 = vmatpush2.msra.mxu0 0.0
  %1705 = vmatprep.subr.mxu0 0.0
  %1706 = vmatpush2.msra.mxu0 0.0
  %1707 = vmatprep.subr.mxu0 0.0
  %1708 = vmatpush2.msra.mxu0 0.0
  %1709 = vmatprep.subr.mxu0 0.0
  %1710 = vmatpush2.msra.mxu0 0.0
  %1711 = vmatprep.subr.mxu0 0.0
  %1712 = vmatpush2.msra.mxu0 0.0
  %1713 = vmatprep.subr.mxu0 0.0
  %1714 = vmatpush2.msra.mxu0 0.0
  %1715 = vmatprep.subr.mxu0 0.0
  %1716 = vmatpush2.msra.mxu0 0.0
  %1717 = vmatprep.subr.mxu0 0.0
  %1718 = vmatpush2.msra.mxu0 0.0
  %1719 = vmatprep.mubr.f32.mxu0 0.0
  %1720 = vmatmul.mubr.f32.gmra.mxu0 %v1651
  %v1721 = vpop.f32.mrf.mxu0
  %v1722 = vadd.f32 0.0, %v1721
  %v1723 = vpop.f32.mrf.mxu0
  %1724 = vmatprep.mubr.f32.mxu0 0.0
  %1725 = vmatmul.mubr.f32.gmra.mxu0 %v1653
  %v1726 = vpop.f32.mrf.mxu0
  %v1727 = vadd.f32 0.0, %v1726
  %v1728 = vpop.f32.mrf.mxu0
  %1729 = vdwg.mxu0
  %v1730 = vadd.f32 %v1643, %v1722
  %v1731 = vadd.f32 %v1644, %v1727
  %1734 = vrot.lane.b32.xlu0 %v1462, 104
  %v1735 = vpop.permute.xlu0 %1734
  %1736 = vrot.lane.b32.xlu0 %v1463, 104
  %v1737 = vpop.permute.xlu0 %1736
  %v1738 = vsel %vm187, %v1735, 0
  %v1740 = vsel %vm187, %v1737, 0
  %1742 = vmatprep.subr.mxu0 0.0
  %1743 = vmatpush1.msra.mxu0 0.0
  %1744 = vmatprep.subr.mxu0 0.0
  %1745 = vmatpush1.msra.mxu0 0.0
  %1746 = vmatprep.subr.mxu0 0.0
  %1747 = vmatpush1.msra.mxu0 0.0
  %1748 = vmatprep.subr.mxu0 0.0
  %1749 = vmatpush1.msra.mxu0 0.0
  %1750 = vmatprep.subr.mxu0 0.0
  %1751 = vmatpush1.msra.mxu0 0.0
  %1752 = vmatprep.subr.mxu0 0.0
  %1753 = vmatpush1.msra.mxu0 0.0
  %1754 = vmatprep.subr.mxu0 0.0
  %1755 = vmatpush1.msra.mxu0 0.0
  %1756 = vmatprep.subr.mxu0 0.0
  %1757 = vmatpush1.msra.mxu0 0.0
  %1758 = vmatprep.subr.mxu0 0.0
  %1759 = vmatpush1.msra.mxu0 0.0
  %1760 = vmatprep.subr.mxu0 0.0
  %1761 = vmatpush1.msra.mxu0 0.0
  %1762 = vmatprep.subr.mxu0 0.0
  %1763 = vmatpush1.msra.mxu0 0.0
  %1764 = vmatprep.subr.mxu0 0.0
  %1765 = vmatpush1.msra.mxu0 0.0
  %1766 = vmatprep.subr.mxu0 0.0
  %1767 = vmatpush1.msra.mxu0 0.0
  %1768 = vmatprep.subr.mxu0 0.0
  %1769 = vmatpush1.msra.mxu0 0.0
  %1770 = vmatprep.subr.mxu0 0.0
  %1771 = vmatpush1.msra.mxu0 0.0
  %1772 = vmatprep.subr.mxu0 0.0
  %1773 = vmatpush1.msra.mxu0 %v1467
  %1774 = vmatprep.subr.mxu0 0.0
  %1775 = vmatpush2.msra.mxu0 0.0
  %1776 = vmatprep.subr.mxu0 0.0
  %1777 = vmatpush2.msra.mxu0 0.0
  %1778 = vmatprep.subr.mxu0 0.0
  %1779 = vmatpush2.msra.mxu0 0.0
  %1780 = vmatprep.subr.mxu0 0.0
  %1781 = vmatpush2.msra.mxu0 0.0
  %1782 = vmatprep.subr.mxu0 0.0
  %1783 = vmatpush2.msra.mxu0 0.0
  %1784 = vmatprep.subr.mxu0 0.0
  %1785 = vmatpush2.msra.mxu0 0.0
  %1786 = vmatprep.subr.mxu0 0.0
  %1787 = vmatpush2.msra.mxu0 0.0
  %1788 = vmatprep.subr.mxu0 0.0
  %1789 = vmatpush2.msra.mxu0 0.0
  %1790 = vmatprep.subr.mxu0 0.0
  %1791 = vmatpush2.msra.mxu0 0.0
  %1792 = vmatprep.subr.mxu0 0.0
  %1793 = vmatpush2.msra.mxu0 0.0
  %1794 = vmatprep.subr.mxu0 0.0
  %1795 = vmatpush2.msra.mxu0 0.0
  %1796 = vmatprep.subr.mxu0 0.0
  %1797 = vmatpush2.msra.mxu0 0.0
  %1798 = vmatprep.subr.mxu0 0.0
  %1799 = vmatpush2.msra.mxu0 0.0
  %1800 = vmatprep.subr.mxu0 0.0
  %1801 = vmatpush2.msra.mxu0 0.0
  %1802 = vmatprep.subr.mxu0 0.0
  %1803 = vmatpush2.msra.mxu0 0.0
  %1804 = vmatprep.subr.mxu0 0.0
  %1805 = vmatpush2.msra.mxu0 0.0
  %1806 = vmatprep.mubr.f32.mxu0 0.0
  %1807 = vmatmul.mubr.f32.gmra.mxu0 %v1738
  %v1808 = vpop.f32.mrf.mxu0
  %v1809 = vadd.f32 0.0, %v1808
  %v1810 = vpop.f32.mrf.mxu0
  %1811 = vmatprep.mubr.f32.mxu0 0.0
  %1812 = vmatmul.mubr.f32.gmra.mxu0 %v1740
  %v1813 = vpop.f32.mrf.mxu0
  %v1814 = vadd.f32 0.0, %v1813
  %v1815 = vpop.f32.mrf.mxu0
  %1816 = vdwg.mxu0
  %v1817 = vadd.f32 %v1730, %v1809
  %v1818 = vadd.f32 %v1731, %v1814
  %v1819 = vadd.f32 %v47, %v1817
  %v1820 = vadd.f32 %v48, %v1818
  %1821 = vst.msk [vmem:[%s14] sm:$0xff] %vm51, %v1819
  %1822 = vst.msk [vmem:[%s14 + $0x8] sm:$0xff] %vm51, %v1820
  // Predicated region
  $region58: #{_lambda_.26} parent=0 // pred_check
    _
  $region59: #{_lambda_.26} parent=0 // pred_check_branch
    %1824 = sbr.rel (0) target = $region61
  $region60: #{_lambda_.26} parent=0 // pred_region
    _
  $region61: #{_lambda_.26} parent=0 // pred_fallthru
    _
  // Predicated region
  $region62: #{_lambda_.26} parent=0 // pred_check
    _
  $region63: #{_lambda_.26} parent=0 // pred_check_branch
    %1826 = sbr.rel (0) target = $region65
  $region64: #{_lambda_.26} parent=0 // pred_region
    _
  $region65: #{_lambda_.26} parent=0 // pred_fallthru
    _

// kernel: _lambda_.37
$region0: #{_lambda_.37}
  #allocation0 [shape = 'u32[]', space=smem, size = 0x4, offset = 0x4, fixed_abs, tag = 'smem constant byte address 0x4 - core index']
  #allocation1 [shape = 'u32[144,128]{1,0:T(1,128)}', space=vmem, size = 0x12000, scoped, tag = 'internal scratch']
  #allocation2 [shape = 'f32[16,2]{1,0:T(8,128)}', space=vmem, size = 0x2000, scoped, tag = 'scratch operand']
  %s0 = inlined_call_operand.vmem [shape: f32[16,32], index: 0, kind: input, shape index: {}]
  %s1 = inlined_call_operand.vmem [shape: f32[32,2], index: 1, kind: input, shape index: {}]
  %s2 = inlined_call_operand.vmem [shape: f32[1,2], index: 2, kind: input, shape index: {}]
  %s3 = inlined_call_operand.vmem [shape: f32[16,2], index: 3, kind: output, shape index: {}]
  %s4 = sld [smem:[#allocation0]]
  $region30: #{_lambda_.37} parent=0
    _
  %s6 = ssub.s32 1, %s4
  %s7 = scalar_select 0, %s6, %s4
  // Predicated region
  $region2: #{_lambda_.37} parent=0 // pred_check
    _
  $region3: #{_lambda_.37} parent=0 // pred_check_branch
    %9 = sbr.rel (0) target = $region5
  $region4: #{_lambda_.37} parent=0 // pred_region
    _
  $region5: #{_lambda_.37} parent=0 // pred_fallthru
    _
  // Predicated region
  $region6: #{_lambda_.37} parent=0 // pred_check
    _
  $region7: #{_lambda_.37} parent=0 // pred_check_branch
    %11 = sbr.rel (0) target = $region9
  $region8: #{_lambda_.37} parent=0 // pred_region
    _
  $region9: #{_lambda_.37} parent=0 // pred_fallthru
    _
  // Predicated region
  $region10: #{_lambda_.37} parent=0 // pred_check
    _
  $region11: #{_lambda_.37} parent=0 // pred_check_branch
    %13 = sbr.rel (0) target = $region13
  $region12: #{_lambda_.37} parent=0 // pred_region
    _
  $region13: #{_lambda_.37} parent=0 // pred_fallthru
    _
  %p14 = scmp.eq.s32.totalorder 0, 0
  // Predicated region
  $region14: #{_lambda_.37} parent=0 // pred_check
    %p15 = pneg %p14
  $region15: #{_lambda_.37} parent=0 // pred_check_branch
    %17 = sbr.rel (%p15) target = $region17
  $region16: #{_lambda_.37} parent=0 // pred_region
    %vm18 = vcmask 15360
    %19 = vst.msk [vmem:[#allocation2] sm:$0xff] %vm18, 0.0
    %20 = vst.msk [vmem:[#allocation2 + $0x8] sm:$0xff] %vm18, 0.0
  $region17: #{_lambda_.37} parent=0 // pred_fallthru
    _
  %v21 = vld [vmem:[#allocation2] sm:$0xff]
  %v22 = vld [vmem:[#allocation2 + $0x8] sm:$0xff]
  %v23 = vld [vmem:[%s0] sm:$0xff]
  %v24 = vld [vmem:[%s0 + $0x8] sm:$0xff]
  %v25 = vld [vmem:[%s1] sm:$0xff]
  %v26 = vld [vmem:[%s1 + $0x8] sm:$0xff]
  %v27 = vld [vmem:[%s1 + $0x10] sm:$0xff]
  %v28 = vld [vmem:[%s1 + $0x18] sm:$0xff]
  %vm29 = vcmask 261120
  %v31 = vsel %vm29, %v23, 0
  %v34 = vsel %vm29, %v24, 0
  %36 = vmatprep.subr.mxu0 0.0
  %37 = vmatpush1.msra.mxu0 0.0
  %38 = vmatprep.subr.mxu0 0.0
  %39 = vmatpush1.msra.mxu0 0.0
  %40 = vmatprep.subr.mxu0 0.0
  %41 = vmatpush1.msra.mxu0 0.0
  %42 = vmatprep.subr.mxu0 0.0
  %43 = vmatpush1.msra.mxu0 0.0
  %44 = vmatprep.subr.mxu0 0.0
  %45 = vmatpush1.msra.mxu0 0.0
  %46 = vmatprep.subr.mxu0 0.0
  %47 = vmatpush1.msra.mxu0 0.0
  %48 = vmatprep.subr.mxu0 0.0
  %49 = vmatpush1.msra.mxu0 0.0
  %50 = vmatprep.subr.mxu0 0.0
  %51 = vmatpush1.msra.mxu0 0.0
  %52 = vmatprep.subr.mxu0 0.0
  %53 = vmatpush1.msra.mxu0 0.0
  %54 = vmatprep.subr.mxu0 0.0
  %55 = vmatpush1.msra.mxu0 0.0
  %56 = vmatprep.subr.mxu0 0.0
  %57 = vmatpush1.msra.mxu0 0.0
  %58 = vmatprep.subr.mxu0 0.0
  %59 = vmatpush1.msra.mxu0 0.0
  %60 = vmatprep.subr.mxu0 0.0
  %61 = vmatpush1.msra.mxu0 %v28
  %62 = vmatprep.subr.mxu0 0.0
  %63 = vmatpush1.msra.mxu0 %v27
  %64 = vmatprep.subr.mxu0 0.0
  %65 = vmatpush1.msra.mxu0 %v26
  %66 = vmatprep.subr.mxu0 0.0
  %67 = vmatpush1.msra.mxu0 %v25
  %68 = vmatprep.subr.mxu0 0.0
  %69 = vmatpush2.msra.mxu0 0.0
  %70 = vmatprep.subr.mxu0 0.0
  %71 = vmatpush2.msra.mxu0 0.0
  %72 = vmatprep.subr.mxu0 0.0
  %73 = vmatpush2.msra.mxu0 0.0
  %74 = vmatprep.subr.mxu0 0.0
  %75 = vmatpush2.msra.mxu0 0.0
  %76 = vmatprep.subr.mxu0 0.0
  %77 = vmatpush2.msra.mxu0 0.0
  %78 = vmatprep.subr.mxu0 0.0
  %79 = vmatpush2.msra.mxu0 0.0
  %80 = vmatprep.subr.mxu0 0.0
  %81 = vmatpush2.msra.mxu0 0.0
  %82 = vmatprep.subr.mxu0 0.0
  %83 = vmatpush2.msra.mxu0 0.0
  %84 = vmatprep.subr.mxu0 0.0
  %85 = vmatpush2.msra.mxu0 0.0
  %86 = vmatprep.subr.mxu0 0.0
  %87 = vmatpush2.msra.mxu0 0.0
  %88 = vmatprep.subr.mxu0 0.0
  %89 = vmatpush2.msra.mxu0 0.0
  %90 = vmatprep.subr.mxu0 0.0
  %91 = vmatpush2.msra.mxu0 0.0
  %92 = vmatprep.subr.mxu0 0.0
  %93 = vmatpush2.msra.mxu0 0.0
  %94 = vmatprep.subr.mxu0 0.0
  %95 = vmatpush2.msra.mxu0 0.0
  %96 = vmatprep.subr.mxu0 0.0
  %97 = vmatpush2.msra.mxu0 0.0
  %98 = vmatprep.subr.mxu0 0.0
  %99 = vmatpush2.msra.mxu0 0.0
  %100 = vmatprep.mubr.f32.mxu0 0.0
  %101 = vmatmul.mubr.f32.gmra.mxu0 %v31
  %v102 = vpop.f32.mrf.mxu0
  %v103 = vadd.f32 0.0, %v102
  %v104 = vpop.f32.mrf.mxu0
  %105 = vmatprep.mubr.f32.mxu0 0.0
  %106 = vmatmul.mubr.f32.gmra.mxu0 %v34
  %v107 = vpop.f32.mrf.mxu0
  %v108 = vadd.f32 0.0, %v107
  %v109 = vpop.f32.mrf.mxu0
  %110 = vdwg.mxu0
  %v111 = vadd.f32 %v21, %v103
  %v112 = vadd.f32 %v22, %v108
  %vm113 = vcmask 15360
  %114 = vst.msk [vmem:[#allocation2] sm:$0xff] %vm113, %v111
  %115 = vst.msk [vmem:[#allocation2 + $0x8] sm:$0xff] %vm113, %v112
  // Predicated region
  $region18: #{_lambda_.37} parent=0 // pred_check
    %p116 = pneg %p14
  $region19: #{_lambda_.37} parent=0 // pred_check_branch
    %118 = sbr.rel (%p116) target = $region21
  $region20: #{_lambda_.37} parent=0 // pred_region
    %v119 = vld [vmem:[#allocation2] sm:$0xff]
    %v120 = vld [vmem:[#allocation2 + $0x8] sm:$0xff]
    %v121 = vld [vmem:[%s2] sm:$0x1]
    %v123 = vlaneseq
    %v124 = vshrl.u32 %v123, 7
    %v125 = vsub.s32 0, %v124
    %v126 = vrot.slane %v121, %v125
    %v128 = vadd.f32 %v119, %v126
    %v129 = vadd.f32 %v120, %v126
    %130 = vst.msk [vmem:[%s3] sm:$0xff] %vm113, %v128
    %131 = vst.msk [vmem:[%s3 + $0x8] sm:$0xff] %vm113, %v129
  $region21: #{_lambda_.37} parent=0 // pred_fallthru
    _
  // Predicated region
  $region22: #{_lambda_.37} parent=0 // pred_check
    _
  $region23: #{_lambda_.37} parent=0 // pred_check_branch
    %133 = sbr.rel (0) target = $region25
  $region24: #{_lambda_.37} parent=0 // pred_region
    _
  $region25: #{_lambda_.37} parent=0 // pred_fallthru
    _
  // Predicated region
  $region26: #{_lambda_.37} parent=0 // pred_check
    _
  $region27: #{_lambda_.37} parent=0 // pred_check_branch
    %135 = sbr.rel (0) target = $region29
  $region28: #{_lambda_.37} parent=0 // pred_region
    _
  $region29: #{_lambda_.37} parent=0 // pred_fallthru
    _

// kernel: _lambda_.28
$region0: #{_lambda_.28}
  #allocation0 [shape = 'u32[]', space=smem, size = 0x4, offset = 0x4, fixed_abs, tag = 'smem constant byte address 0x4 - core index']
  #allocation1 [shape = 'u32[144,128]{1,0:T(1,128)}', space=vmem, size = 0x12000, scoped, tag = 'internal scratch']
  %s0 = inlined_call_operand.vmem [shape: f32[16,32], index: 0, kind: input, shape index: {}, may-alias: {0,1}]
  %s1 = inlined_call_operand.vmem [shape: f32[16,32], index: 1, kind: input, shape index: {}, may-alias: {0,1}]
  %s2 = inlined_call_operand.vmem [shape: f32[1,32], index: 2, kind: input, shape index: {}]
  %s3 = inlined_call_operand.vmem [shape: f32[1,32], index: 3, kind: input, shape index: {}, may-alias: {3,5,9}]
  %s4 = inlined_call_operand.vmem [shape: f32[32,32], index: 4, kind: input, shape index: {}]
  %s5 = inlined_call_operand.vmem [shape: f32[1,32], index: 5, kind: input, shape index: {}, may-alias: {3,5,9}]
  %s6 = inlined_call_operand.vmem [shape: f32[32,64], index: 6, kind: input, shape index: {}]
  %s7 = inlined_call_operand.vmem [shape: f32[1,64], index: 7, kind: input, shape index: {}]
  %s8 = inlined_call_operand.vmem [shape: f32[32,32], index: 8, kind: input, shape index: {}]
  %s9 = inlined_call_operand.vmem [shape: f32[1,32], index: 9, kind: input, shape index: {}, may-alias: {3,5,9}]
  %s10 = inlined_call_operand.vmem [shape: f32[16,32], index: 10, kind: output, shape index: {}]
  %s11 = sld [smem:[#allocation0]]
  $region50: #{_lambda_.28} parent=0
    _
  %s13 = ssub.s32 1, %s11
  %s14 = scalar_select 0, %s13, %s11
  // Predicated region
  $region2: #{_lambda_.28} parent=0 // pred_check
    _
  $region3: #{_lambda_.28} parent=0 // pred_check_branch
    %16 = sbr.rel (0) target = $region5
  $region4: #{_lambda_.28} parent=0 // pred_region
    _
  $region5: #{_lambda_.28} parent=0 // pred_fallthru
    _
  // Predicated region
  $region6: #{_lambda_.28} parent=0 // pred_check
    _
  $region7: #{_lambda_.28} parent=0 // pred_check_branch
    %18 = sbr.rel (0) target = $region9
  $region8: #{_lambda_.28} parent=0 // pred_region
    _
  $region9: #{_lambda_.28} parent=0 // pred_fallthru
    _
  // Predicated region
  $region10: #{_lambda_.28} parent=0 // pred_check
    _
  $region11: #{_lambda_.28} parent=0 // pred_check_branch
    %20 = sbr.rel (0) target = $region13
  $region12: #{_lambda_.28} parent=0 // pred_region
    _
  $region13: #{_lambda_.28} parent=0 // pred_fallthru
    _
  // Predicated region
  $region14: #{_lambda_.28} parent=0 // pred_check
    _
  $region15: #{_lambda_.28} parent=0 // pred_check_branch
    %22 = sbr.rel (0) target = $region17
  $region16: #{_lambda_.28} parent=0 // pred_region
    _
  $region17: #{_lambda_.28} parent=0 // pred_fallthru
    _
  // Predicated region
  $region18: #{_lambda_.28} parent=0 // pred_check
    _
  $region19: #{_lambda_.28} parent=0 // pred_check_branch
    %24 = sbr.rel (0) target = $region21
  $region20: #{_lambda_.28} parent=0 // pred_region
    _
  $region21: #{_lambda_.28} parent=0 // pred_fallthru
    _
  // Predicated region
  $region22: #{_lambda_.28} parent=0 // pred_check
    _
  $region23: #{_lambda_.28} parent=0 // pred_check_branch
    %26 = sbr.rel (0) target = $region25
  $region24: #{_lambda_.28} parent=0 // pred_region
    _
  $region25: #{_lambda_.28} parent=0 // pred_fallthru
    _
  // Predicated region
  $region26: #{_lambda_.28} parent=0 // pred_check
    _
  $region27: #{_lambda_.28} parent=0 // pred_check_branch
    %28 = sbr.rel (0) target = $region29
  $region28: #{_lambda_.28} parent=0 // pred_region
    _
  $region29: #{_lambda_.28} parent=0 // pred_fallthru
    _
  // Predicated region
  $region30: #{_lambda_.28} parent=0 // pred_check
    _
  $region31: #{_lambda_.28} parent=0 // pred_check_branch
    %30 = sbr.rel (0) target = $region33
  $region32: #{_lambda_.28} parent=0 // pred_region
    _
  $region33: #{_lambda_.28} parent=0 // pred_fallthru
    _
  // Predicated region
  $region34: #{_lambda_.28} parent=0 // pred_check
    _
  $region35: #{_lambda_.28} parent=0 // pred_check_branch
    %32 = sbr.rel (0) target = $region37
  $region36: #{_lambda_.28} parent=0 // pred_region
    _
  $region37: #{_lambda_.28} parent=0 // pred_fallthru
    _
  // Predicated region
  $region38: #{_lambda_.28} parent=0 // pred_check
    _
  $region39: #{_lambda_.28} parent=0 // pred_check_branch
    %34 = sbr.rel (0) target = $region41
  $region40: #{_lambda_.28} parent=0 // pred_region
    _
  $region41: #{_lambda_.28} parent=0 // pred_fallthru
    _
  %v35 = vld [vmem:[%s0] sm:$0xff]
  %v36 = vld [vmem:[%s0 + $0x8] sm:$0xff]
  %v37 = vld [vmem:[%s1] sm:$0xff]
  %v38 = vld [vmem:[%s1 + $0x8] sm:$0xff]
  %v39 = vld [vmem:[%s2] sm:$0x1]
  %v40 = vld [vmem:[%s3] sm:$0x1]
  %vm41 = vcmask 261120
  %v42 = vsel %vm41, %v35, 0.0
  %43 = vadd.xlane.f32.xlu0 %v42
  %v44 = vpop.xlane.xlu0 %43
  %v45 = vsel %vm41, %v36, 0.0
  %46 = vadd.xlane.f32.xlu0 %v45
  %v47 = vpop.xlane.xlu0 %46
  %v48 = vrcp.pop 32.0
  %v49 = vmul.f32 %v44, %v48
  %v50 = vmul.f32 %v47, %v48
  %v51 = vsub.f32 %v35, %v49
  %v52 = vsub.f32 %v36, %v50
  %v53 = vmul.f32 %v51, %v51
  %v54 = vmul.f32 %v52, %v52
  %v55 = vsel %vm41, %v53, 0.0
  %56 = vadd.xlane.f32.xlu0 %v55
  %v57 = vpop.xlane.xlu0 %56
  %v58 = vsel %vm41, %v54, 0.0
  %59 = vadd.xlane.f32.xlu0 %v58
  %v60 = vpop.xlane.xlu0 %59
  %v61 = vmul.f32 %v57, %v48
  %v62 = vmul.f32 %v60, %v48
  %v63 = vadd.f32 %v61, 1e-05
  %v64 = vadd.f32 %v62, 1e-05
  %v65 = vrsqrt.pop %v63
  %v66 = vrsqrt.pop %v64
  %v67 = vmul.f32 %v51, %v65
  %v68 = vmul.f32 %v52, %v66
  %v70 = vlaneseq
  %v71 = vshrl.u32 %v70, 7
  %v72 = vsub.s32 0, %v71
  %v73 = vrot.slane %v39, %v72
  %v75 = vmul.f32 %v67, %v73
  %v76 = vmul.f32 %v68, %v73
  %v78 = vlaneseq
  %v79 = vshrl.u32 %v78, 7
  %v80 = vsub.s32 0, %v79
  %v81 = vrot.slane %v40, %v80
  %v83 = vadd.f32 %v75, %v81
  %v84 = vadd.f32 %v76, %v81
  %v85 = vsel %vm41, %v37, 0.0
  %86 = vadd.xlane.f32.xlu0 %v85
  %v87 = vpop.xlane.xlu0 %86
  %v88 = vsel %vm41, %v38, 0.0
  %89 = vadd.xlane.f32.xlu0 %v88
  %v90 = vpop.xlane.xlu0 %89
  %v91 = vmul.f32 %v87, %v48
  %v92 = vmul.f32 %v90, %v48
  %v93 = vsub.f32 %v37, %v91
  %v94 = vsub.f32 %v38, %v92
  %v95 = vmul.f32 %v93, %v93
  %v96 = vmul.f32 %v94, %v94
  %v97 = vsel %vm41, %v95, 0.0
  %98 = vadd.xlane.f32.xlu0 %v97
  %v99 = vpop.xlane.xlu0 %98
  %v100 = vsel %vm41, %v96, 0.0
  %101 = vadd.xlane.f32.xlu0 %v100
  %v102 = vpop.xlane.xlu0 %101
  %v103 = vmul.f32 %v99, %v48
  %v104 = vmul.f32 %v102, %v48
  %v105 = vadd.f32 %v103, 1e-05
  %v106 = vadd.f32 %v104, 1e-05
  %v107 = vrsqrt.pop %v105
  %v108 = vrsqrt.pop %v106
  %v109 = vmul.f32 %v93, %v107
  %v110 = vmul.f32 %v94, %v108
  %v111 = vmul.f32 %v109, %v73
  %v112 = vmul.f32 %v110, %v73
  %v113 = vadd.f32 %v111, %v81
  %v114 = vadd.f32 %v112, %v81
  %v115 = vld [vmem:[%s4] sm:$0xff]
  %v116 = vld [vmem:[%s4 + $0x8] sm:$0xff]
  %v117 = vld [vmem:[%s4 + $0x10] sm:$0xff]
  %v118 = vld [vmem:[%s4 + $0x18] sm:$0xff]
  %v119 = vld [vmem:[%s5] sm:$0x1]
  %v121 = vlaneseq
  %v122 = vshrl.u32 %v121, 7
  %v123 = vsub.s32 0, %v122
  %v124 = vrot.slane %v119, %v123
  %v127 = vsel %vm41, %v83, 0
  %v130 = vsel %vm41, %v84, 0
  %132 = vmatprep.subr.mxu0 0.0
  %133 = vmatpush1.msra.mxu0 0.0
  %134 = vmatprep.subr.mxu0 0.0
  %135 = vmatpush1.msra.mxu0 0.0
  %136 = vmatprep.subr.mxu0 0.0
  %137 = vmatpush1.msra.mxu0 0.0
  %138 = vmatprep.subr.mxu0 0.0
  %139 = vmatpush1.msra.mxu0 0.0
  %140 = vmatprep.subr.mxu0 0.0
  %141 = vmatpush1.msra.mxu0 0.0
  %142 = vmatprep.subr.mxu0 0.0
  %143 = vmatpush1.msra.mxu0 0.0
  %144 = vmatprep.subr.mxu0 0.0
  %145 = vmatpush1.msra.mxu0 0.0
  %146 = vmatprep.subr.mxu0 0.0
  %147 = vmatpush1.msra.mxu0 0.0
  %148 = vmatprep.subr.mxu0 0.0
  %149 = vmatpush1.msra.mxu0 0.0
  %150 = vmatprep.subr.mxu0 0.0
  %151 = vmatpush1.msra.mxu0 0.0
  %152 = vmatprep.subr.mxu0 0.0
  %153 = vmatpush1.msra.mxu0 0.0
  %154 = vmatprep.subr.mxu0 0.0
  %155 = vmatpush1.msra.mxu0 0.0
  %156 = vmatprep.subr.mxu0 0.0
  %157 = vmatpush1.msra.mxu0 %v118
  %158 = vmatprep.subr.mxu0 0.0
  %159 = vmatpush1.msra.mxu0 %v117
  %160 = vmatprep.subr.mxu0 0.0
  %161 = vmatpush1.msra.mxu0 %v116
  %162 = vmatprep.subr.mxu0 0.0
  %163 = vmatpush1.msra.mxu0 %v115
  %164 = vmatprep.subr.mxu0 0.0
  %165 = vmatpush2.msra.mxu0 0.0
  %166 = vmatprep.subr.mxu0 0.0
  %167 = vmatpush2.msra.mxu0 0.0
  %168 = vmatprep.subr.mxu0 0.0
  %169 = vmatpush2.msra.mxu0 0.0
  %170 = vmatprep.subr.mxu0 0.0
  %171 = vmatpush2.msra.mxu0 0.0
  %172 = vmatprep.subr.mxu0 0.0
  %173 = vmatpush2.msra.mxu0 0.0
  %174 = vmatprep.subr.mxu0 0.0
  %175 = vmatpush2.msra.mxu0 0.0
  %176 = vmatprep.subr.mxu0 0.0
  %177 = vmatpush2.msra.mxu0 0.0
  %178 = vmatprep.subr.mxu0 0.0
  %179 = vmatpush2.msra.mxu0 0.0
  %180 = vmatprep.subr.mxu0 0.0
  %181 = vmatpush2.msra.mxu0 0.0
  %182 = vmatprep.subr.mxu0 0.0
  %183 = vmatpush2.msra.mxu0 0.0
  %184 = vmatprep.subr.mxu0 0.0
  %185 = vmatpush2.msra.mxu0 0.0
  %186 = vmatprep.subr.mxu0 0.0
  %187 = vmatpush2.msra.mxu0 0.0
  %188 = vmatprep.subr.mxu0 0.0
  %189 = vmatpush2.msra.mxu0 0.0
  %190 = vmatprep.subr.mxu0 0.0
  %191 = vmatpush2.msra.mxu0 0.0
  %192 = vmatprep.subr.mxu0 0.0
  %193 = vmatpush2.msra.mxu0 0.0
  %194 = vmatprep.subr.mxu0 0.0
  %195 = vmatpush2.msra.mxu0 0.0
  %196 = vmatprep.mubr.f32.mxu0 0.0
  %197 = vmatmul.mubr.f32.gmra.mxu0 %v127
  %v198 = vpop.f32.mrf.mxu0
  %v199 = vadd.f32 %v124, %v198
  %v200 = vpop.f32.mrf.mxu0
  %201 = vmatprep.mubr.f32.mxu0 0.0
  %202 = vmatmul.mubr.f32.gmra.mxu0 %v130
  %v203 = vpop.f32.mrf.mxu0
  %v204 = vadd.f32 %v124, %v203
  %v205 = vpop.f32.mrf.mxu0
  %206 = vdwg.mxu0
  %v207 = vld [vmem:[%s6] sm:$0xff]
  %v208 = vld [vmem:[%s6 + $0x8] sm:$0xff]
  %v209 = vld [vmem:[%s6 + $0x10] sm:$0xff]
  %v210 = vld [vmem:[%s6 + $0x18] sm:$0xff]
  %v211 = vld [vmem:[%s7] sm:$0x1]
  %v213 = vlaneseq
  %v214 = vshrl.u32 %v213, 7
  %v215 = vsub.s32 0, %v214
  %v216 = vrot.slane %v211, %v215
  %v219 = vsel %vm41, %v113, 0
  %v222 = vsel %vm41, %v114, 0
  %224 = vmatprep.subr.mxu0 0.0
  %225 = vmatpush1.msra.mxu0 0.0
  %226 = vmatprep.subr.mxu0 0.0
  %227 = vmatpush1.msra.mxu0 0.0
  %228 = vmatprep.subr.mxu0 0.0
  %229 = vmatpush1.msra.mxu0 0.0
  %230 = vmatprep.subr.mxu0 0.0
  %231 = vmatpush1.msra.mxu0 0.0
  %232 = vmatprep.subr.mxu0 0.0
  %233 = vmatpush1.msra.mxu0 0.0
  %234 = vmatprep.subr.mxu0 0.0
  %235 = vmatpush1.msra.mxu0 0.0
  %236 = vmatprep.subr.mxu0 0.0
  %237 = vmatpush1.msra.mxu0 0.0
  %238 = vmatprep.subr.mxu0 0.0
  %239 = vmatpush1.msra.mxu0 0.0
  %240 = vmatprep.subr.mxu0 0.0
  %241 = vmatpush1.msra.mxu0 0.0
  %242 = vmatprep.subr.mxu0 0.0
  %243 = vmatpush1.msra.mxu0 0.0
  %244 = vmatprep.subr.mxu0 0.0
  %245 = vmatpush1.msra.mxu0 0.0
  %246 = vmatprep.subr.mxu0 0.0
  %247 = vmatpush1.msra.mxu0 0.0
  %248 = vmatprep.subr.mxu0 0.0
  %249 = vmatpush1.msra.mxu0 %v210
  %250 = vmatprep.subr.mxu0 0.0
  %251 = vmatpush1.msra.mxu0 %v209
  %252 = vmatprep.subr.mxu0 0.0
  %253 = vmatpush1.msra.mxu0 %v208
  %254 = vmatprep.subr.mxu0 0.0
  %255 = vmatpush1.msra.mxu0 %v207
  %256 = vmatprep.subr.mxu0 0.0
  %257 = vmatpush2.msra.mxu0 0.0
  %258 = vmatprep.subr.mxu0 0.0
  %259 = vmatpush2.msra.mxu0 0.0
  %260 = vmatprep.subr.mxu0 0.0
  %261 = vmatpush2.msra.mxu0 0.0
  %262 = vmatprep.subr.mxu0 0.0
  %263 = vmatpush2.msra.mxu0 0.0
  %264 = vmatprep.subr.mxu0 0.0
  %265 = vmatpush2.msra.mxu0 0.0
  %266 = vmatprep.subr.mxu0 0.0
  %267 = vmatpush2.msra.mxu0 0.0
  %268 = vmatprep.subr.mxu0 0.0
  %269 = vmatpush2.msra.mxu0 0.0
  %270 = vmatprep.subr.mxu0 0.0
  %271 = vmatpush2.msra.mxu0 0.0
  %272 = vmatprep.subr.mxu0 0.0
  %273 = vmatpush2.msra.mxu0 0.0
  %274 = vmatprep.subr.mxu0 0.0
  %275 = vmatpush2.msra.mxu0 0.0
  %276 = vmatprep.subr.mxu0 0.0
  %277 = vmatpush2.msra.mxu0 0.0
  %278 = vmatprep.subr.mxu0 0.0
  %279 = vmatpush2.msra.mxu0 0.0
  %280 = vmatprep.subr.mxu0 0.0
  %281 = vmatpush2.msra.mxu0 0.0
  %282 = vmatprep.subr.mxu0 0.0
  %283 = vmatpush2.msra.mxu0 0.0
  %284 = vmatprep.subr.mxu0 0.0
  %285 = vmatpush2.msra.mxu0 0.0
  %286 = vmatprep.subr.mxu0 0.0
  %287 = vmatpush2.msra.mxu0 0.0
  %288 = vmatprep.mubr.f32.mxu0 0.0
  %289 = vmatmul.mubr.f32.gmra.mxu0 %v219
  %v290 = vpop.f32.mrf.mxu0
  %v291 = vadd.f32 %v216, %v290
  %v292 = vpop.f32.mrf.mxu0
  %293 = vmatprep.mubr.f32.mxu0 0.0
  %294 = vmatmul.mubr.f32.gmra.mxu0 %v222
  %v295 = vpop.f32.mrf.mxu0
  %v296 = vadd.f32 %v216, %v295
  %v297 = vpop.f32.mrf.mxu0
  %298 = vdwg.mxu0
  %v299 = vld [vmem:[%s8] sm:$0xff]
  %v300 = vld [vmem:[%s8 + $0x8] sm:$0xff]
  %v301 = vld [vmem:[%s8 + $0x10] sm:$0xff]
  %v302 = vld [vmem:[%s8 + $0x18] sm:$0xff]
  %v303 = vld [vmem:[%s9] sm:$0x1]
  %vm304 = vcmask 64512
  %v305 = vsel %vm304, %v199, -inf
  %306 = vmax.xlane.f32.xlu0 %v305
  %v307 = vpop.xlane.xlu0 %306
  %v308 = vsel %vm304, %v204, -inf
  %309 = vmax.xlane.f32.xlu0 %v308
  %v310 = vpop.xlane.xlu0 %309
  %v311 = vsub.f32 %v199, %v307
  %v312 = vsub.f32 %v204, %v310
  %v313 = vmul.f32 %v311, 1.442695
  %v314 = vpow.pop %v313
  %v315 = vmul.f32 %v312, 1.442695
  %v316 = vpow.pop %v315
  %v317 = vsel %vm304, %v314, 0.0
  %318 = vadd.xlane.f32.xlu0 %v317
  %v319 = vpop.xlane.xlu0 %318
  %v320 = vsel %vm304, %v316, 0.0
  %321 = vadd.xlane.f32.xlu0 %v320
  %v322 = vpop.xlane.xlu0 %321
  %v323 = vrcp.pop %v319
  %v324 = vrcp.pop %v322
  %v325 = vmul.f32 %v314, %v323
  %v326 = vmul.f32 %v316, %v324
  %v327 = vsel %vm304, %v291, -inf
  %328 = vmax.xlane.f32.xlu0 %v327
  %v329 = vpop.xlane.xlu0 %328
  %v330 = vsel %vm304, %v296, -inf
  %331 = vmax.xlane.f32.xlu0 %v330
  %v332 = vpop.xlane.xlu0 %331
  %v333 = vsub.f32 %v291, %v329
  %v334 = vsub.f32 %v296, %v332
  %v335 = vmul.f32 %v333, 1.442695
  %v336 = vpow.pop %v335
  %v337 = vmul.f32 %v334, 1.442695
  %v338 = vpow.pop %v337
  %v339 = vsel %vm304, %v336, 0.0
  %340 = vadd.xlane.f32.xlu0 %v339
  %v341 = vpop.xlane.xlu0 %340
  %v342 = vsel %vm304, %v338, 0.0
  %343 = vadd.xlane.f32.xlu0 %v342
  %v344 = vpop.xlane.xlu0 %343
  %v345 = vrcp.pop %v341
  %v346 = vrcp.pop %v344
  %v347 = vmul.f32 %v336, %v345
  %v348 = vmul.f32 %v338, %v346
  %v349 = vsel %vm304, %v347, 0.0
  %v350 = vsel %vm304, %v348, 0.0
  %v351 = vadd.f32 %v349, %v350
  %v352 = vrot.slane %v351, 4
  %v353 = vadd.f32 %v351, %v352
  %v354 = vrot.slane %v353, 2
  %v355 = vadd.f32 %v353, %v354
  %v356 = vrot.slane %v355, 1
  %v357 = vadd.f32 %v355, %v356
  %v358 = vmul.f32 %v325, %v357
  %v359 = vmul.f32 %v326, %v357
  %v360 = vsel %vm304, %v358, 0.0
  %361 = vadd.xlane.f32.xlu0 %v360
  %v362 = vpop.xlane.xlu0 %361
  %v363 = vsel %vm304, %v359, 0.0
  %364 = vadd.xlane.f32.xlu0 %v363
  %v365 = vpop.xlane.xlu0 %364
  %v366 = vrcp.pop %v362
  %v367 = vrcp.pop %v365
  %368 = vxpose.xlu0.b32.start [1/16] %v347, 128
  %369 = vxpose.xlu0.b32.cont [2/16] %v348, 128
  %370 = vxpose.xlu0.b32.cont [3/16] 0.0, 128
  %371 = vxpose.xlu0.b32.cont [4/16] 0.0, 128
  %372 = vxpose.xlu0.b32.cont [5/16] 0.0, 128
  %373 = vxpose.xlu0.b32.cont [6/16] 0.0, 128
  %374 = vxpose.xlu0.b32.cont [7/16] 0.0, 128
  %375 = vxpose.xlu0.b32.cont [8/16] 0.0, 128
  %376 = vxpose.xlu0.b32.cont [9/16] 0.0, 128
  %377 = vxpose.xlu0.b32.cont [10/16] 0.0, 128
  %378 = vxpose.xlu0.b32.cont [11/16] 0.0, 128
  %379 = vxpose.xlu0.b32.cont [12/16] 0.0, 128
  %380 = vxpose.xlu0.b32.cont [13/16] 0.0, 128
  %381 = vxpose.xlu0.b32.cont [14/16] 0.0, 128
  %382 = vxpose.xlu0.b32.cont [15/16] 0.0, 128
  %383 = vxpose.xlu0.b32.end [16/16] 0.0, 128
  %v384 = vpop.trf.xlu0
  %v385 = vpop.trf.xlu0
  %v386 = vpop.trf.xlu0
  %v387 = vpop.trf.xlu0
  %v388 = vpop.trf.xlu0
  %v389 = vpop.trf.xlu0
  %v390 = vpop.trf.xlu0
  %v391 = vpop.trf.xlu0
  %v392 = vpop.trf.xlu0
  %v393 = vpop.trf.xlu0
  %v394 = vpop.trf.xlu0
  %v395 = vpop.trf.xlu0
  %v396 = vpop.trf.xlu0
  %v397 = vpop.trf.xlu0
  %v398 = vpop.trf.xlu0
  %v399 = vpop.trf.xlu0
  %402 = vrot.lane.b32.xlu0 %v291, 96
  %v403 = vpop.permute.xlu0 %402
  %404 = vrot.lane.b32.xlu0 %v296, 96
  %v405 = vpop.permute.xlu0 %404
  %vm408 = vcmask 130048
  %v410 = vsel %vm408, %v384, 0
  %412 = vmatprep.subr.mxu0 0.0
  %413 = vmatpush1.msra.mxu0 0.0
  %414 = vmatprep.subr.mxu0 0.0
  %415 = vmatpush1.msra.mxu0 0.0
  %416 = vmatprep.subr.mxu0 0.0
  %417 = vmatpush1.msra.mxu0 0.0
  %418 = vmatprep.subr.mxu0 0.0
  %419 = vmatpush1.msra.mxu0 0.0
  %420 = vmatprep.subr.mxu0 0.0
  %421 = vmatpush1.msra.mxu0 0.0
  %422 = vmatprep.subr.mxu0 0.0
  %423 = vmatpush1.msra.mxu0 0.0
  %424 = vmatprep.subr.mxu0 0.0
  %425 = vmatpush1.msra.mxu0 0.0
  %426 = vmatprep.subr.mxu0 0.0
  %427 = vmatpush1.msra.mxu0 0.0
  %428 = vmatprep.subr.mxu0 0.0
  %429 = vmatpush1.msra.mxu0 0.0
  %430 = vmatprep.subr.mxu0 0.0
  %431 = vmatpush1.msra.mxu0 0.0
  %432 = vmatprep.subr.mxu0 0.0
  %433 = vmatpush1.msra.mxu0 0.0
  %434 = vmatprep.subr.mxu0 0.0
  %435 = vmatpush1.msra.mxu0 0.0
  %436 = vmatprep.subr.mxu0 0.0
  %437 = vmatpush1.msra.mxu0 0.0
  %438 = vmatprep.subr.mxu0 0.0
  %439 = vmatpush1.msra.mxu0 0.0
  %440 = vmatprep.subr.mxu0 0.0
  %441 = vmatpush1.msra.mxu0 %v405
  %442 = vmatprep.subr.mxu0 0.0
  %443 = vmatpush1.msra.mxu0 %v403
  %444 = vmatprep.subr.mxu0 0.0
  %445 = vmatpush2.msra.mxu0 0.0
  %446 = vmatprep.subr.mxu0 0.0
  %447 = vmatpush2.msra.mxu0 0.0
  %448 = vmatprep.subr.mxu0 0.0
  %449 = vmatpush2.msra.mxu0 0.0
  %450 = vmatprep.subr.mxu0 0.0
  %451 = vmatpush2.msra.mxu0 0.0
  %452 = vmatprep.subr.mxu0 0.0
  %453 = vmatpush2.msra.mxu0 0.0
  %454 = vmatprep.subr.mxu0 0.0
  %455 = vmatpush2.msra.mxu0 0.0
  %456 = vmatprep.subr.mxu0 0.0
  %457 = vmatpush2.msra.mxu0 0.0
  %458 = vmatprep.subr.mxu0 0.0
  %459 = vmatpush2.msra.mxu0 0.0
  %460 = vmatprep.subr.mxu0 0.0
  %461 = vmatpush2.msra.mxu0 0.0
  %462 = vmatprep.subr.mxu0 0.0
  %463 = vmatpush2.msra.mxu0 0.0
  %464 = vmatprep.subr.mxu0 0.0
  %465 = vmatpush2.msra.mxu0 0.0
  %466 = vmatprep.subr.mxu0 0.0
  %467 = vmatpush2.msra.mxu0 0.0
  %468 = vmatprep.subr.mxu0 0.0
  %469 = vmatpush2.msra.mxu0 0.0
  %470 = vmatprep.subr.mxu0 0.0
  %471 = vmatpush2.msra.mxu0 0.0
  %472 = vmatprep.subr.mxu0 0.0
  %473 = vmatpush2.msra.mxu0 0.0
  %474 = vmatprep.subr.mxu0 0.0
  %475 = vmatpush2.msra.mxu0 0.0
  %476 = vmatprep.mubr.f32.mxu0 0.0
  %477 = vmatmul.mubr.f32.gmra.mxu0 %v410
  %v478 = vpop.f32.mrf.mxu0
  %v479 = vadd.f32 0.0, %v478
  %v480 = vpop.f32.mrf.mxu0
  %481 = vdwg.mxu0
  %v483 = vsel %vm304, %v325, 0
  %v486 = vsel %vm304, %v326, 0
  %488 = vmatprep.subr.mxu0 0.0
  %489 = vmatpush1.msra.mxu0 0.0
  %490 = vmatprep.subr.mxu0 0.0
  %491 = vmatpush1.msra.mxu0 0.0
  %492 = vmatprep.subr.mxu0 0.0
  %493 = vmatpush1.msra.mxu0 0.0
  %494 = vmatprep.subr.mxu0 0.0
  %495 = vmatpush1.msra.mxu0 0.0
  %496 = vmatprep.subr.mxu0 0.0
  %497 = vmatpush1.msra.mxu0 0.0
  %498 = vmatprep.subr.mxu0 0.0
  %499 = vmatpush1.msra.mxu0 0.0
  %500 = vmatprep.subr.mxu0 0.0
  %501 = vmatpush1.msra.mxu0 0.0
  %502 = vmatprep.subr.mxu0 0.0
  %503 = vmatpush1.msra.mxu0 0.0
  %504 = vmatprep.subr.mxu0 0.0
  %505 = vmatpush1.msra.mxu0 0.0
  %506 = vmatprep.subr.mxu0 0.0
  %507 = vmatpush1.msra.mxu0 0.0
  %508 = vmatprep.subr.mxu0 0.0
  %509 = vmatpush1.msra.mxu0 0.0
  %510 = vmatprep.subr.mxu0 0.0
  %511 = vmatpush1.msra.mxu0 0.0
  %512 = vmatprep.subr.mxu0 0.0
  %513 = vmatpush1.msra.mxu0 0.0
  %514 = vmatprep.subr.mxu0 0.0
  %515 = vmatpush1.msra.mxu0 0.0
  %516 = vmatprep.subr.mxu0 0.0
  %517 = vmatpush1.msra.mxu0 0.0
  %518 = vmatprep.subr.mxu0 0.0
  %519 = vmatpush1.msra.mxu0 %v479
  %520 = vmatprep.subr.mxu0 0.0
  %521 = vmatpush2.msra.mxu0 0.0
  %522 = vmatprep.subr.mxu0 0.0
  %523 = vmatpush2.msra.mxu0 0.0
  %524 = vmatprep.subr.mxu0 0.0
  %525 = vmatpush2.msra.mxu0 0.0
  %526 = vmatprep.subr.mxu0 0.0
  %527 = vmatpush2.msra.mxu0 0.0
  %528 = vmatprep.subr.mxu0 0.0
  %529 = vmatpush2.msra.mxu0 0.0
  %530 = vmatprep.subr.mxu0 0.0
  %531 = vmatpush2.msra.mxu0 0.0
  %532 = vmatprep.subr.mxu0 0.0
  %533 = vmatpush2.msra.mxu0 0.0
  %534 = vmatprep.subr.mxu0 0.0
  %535 = vmatpush2.msra.mxu0 0.0
  %536 = vmatprep.subr.mxu0 0.0
  %537 = vmatpush2.msra.mxu0 0.0
  %538 = vmatprep.subr.mxu0 0.0
  %539 = vmatpush2.msra.mxu0 0.0
  %540 = vmatprep.subr.mxu0 0.0
  %541 = vmatpush2.msra.mxu0 0.0
  %542 = vmatprep.subr.mxu0 0.0
  %543 = vmatpush2.msra.mxu0 0.0
  %544 = vmatprep.subr.mxu0 0.0
  %545 = vmatpush2.msra.mxu0 0.0
  %546 = vmatprep.subr.mxu0 0.0
  %547 = vmatpush2.msra.mxu0 0.0
  %548 = vmatprep.subr.mxu0 0.0
  %549 = vmatpush2.msra.mxu0 0.0
  %550 = vmatprep.subr.mxu0 0.0
  %551 = vmatpush2.msra.mxu0 0.0
  %552 = vmatprep.mubr.f32.mxu0 0.0
  %553 = vmatmul.mubr.f32.gmra.mxu0 %v483
  %v554 = vpop.f32.mrf.mxu0
  %v555 = vadd.f32 0.0, %v554
  %v556 = vpop.f32.mrf.mxu0
  %557 = vmatprep.mubr.f32.mxu0 0.0
  %558 = vmatmul.mubr.f32.gmra.mxu0 %v486
  %v559 = vpop.f32.mrf.mxu0
  %v560 = vadd.f32 0.0, %v559
  %v561 = vpop.f32.mrf.mxu0
  %562 = vdwg.mxu0
  %v563 = vmul.f32 %v555, %v366
  %v564 = vmul.f32 %v560, %v367
  %v565 = vadd.f32 %v563, %v325
  %v566 = vadd.f32 %v564, %v326
  %v568 = vsel %vm304, %v565, 0
  %v571 = vsel %vm304, %v566, 0
  %573 = vmatprep.subr.mxu0 0.0
  %574 = vmatpush1.msra.mxu0 0.0
  %575 = vmatprep.subr.mxu0 0.0
  %576 = vmatpush1.msra.mxu0 0.0
  %577 = vmatprep.subr.mxu0 0.0
  %578 = vmatpush1.msra.mxu0 0.0
  %579 = vmatprep.subr.mxu0 0.0
  %580 = vmatpush1.msra.mxu0 0.0
  %581 = vmatprep.subr.mxu0 0.0
  %582 = vmatpush1.msra.mxu0 0.0
  %583 = vmatprep.subr.mxu0 0.0
  %584 = vmatpush1.msra.mxu0 0.0
  %585 = vmatprep.subr.mxu0 0.0
  %586 = vmatpush1.msra.mxu0 0.0
  %587 = vmatprep.subr.mxu0 0.0
  %588 = vmatpush1.msra.mxu0 0.0
  %589 = vmatprep.subr.mxu0 0.0
  %590 = vmatpush1.msra.mxu0 0.0
  %591 = vmatprep.subr.mxu0 0.0
  %592 = vmatpush1.msra.mxu0 0.0
  %593 = vmatprep.subr.mxu0 0.0
  %594 = vmatpush1.msra.mxu0 0.0
  %595 = vmatprep.subr.mxu0 0.0
  %596 = vmatpush1.msra.mxu0 0.0
  %597 = vmatprep.subr.mxu0 0.0
  %598 = vmatpush1.msra.mxu0 0.0
  %599 = vmatprep.subr.mxu0 0.0
  %600 = vmatpush1.msra.mxu0 0.0
  %601 = vmatprep.subr.mxu0 0.0
  %602 = vmatpush1.msra.mxu0 0.0
  %603 = vmatprep.subr.mxu0 0.0
  %604 = vmatpush1.msra.mxu0 %v299
  %605 = vmatprep.subr.mxu0 0.0
  %606 = vmatpush2.msra.mxu0 0.0
  %607 = vmatprep.subr.mxu0 0.0
  %608 = vmatpush2.msra.mxu0 0.0
  %609 = vmatprep.subr.mxu0 0.0
  %610 = vmatpush2.msra.mxu0 0.0
  %611 = vmatprep.subr.mxu0 0.0
  %612 = vmatpush2.msra.mxu0 0.0
  %613 = vmatprep.subr.mxu0 0.0
  %614 = vmatpush2.msra.mxu0 0.0
  %615 = vmatprep.subr.mxu0 0.0
  %616 = vmatpush2.msra.mxu0 0.0
  %617 = vmatprep.subr.mxu0 0.0
  %618 = vmatpush2.msra.mxu0 0.0
  %619 = vmatprep.subr.mxu0 0.0
  %620 = vmatpush2.msra.mxu0 0.0
  %621 = vmatprep.subr.mxu0 0.0
  %622 = vmatpush2.msra.mxu0 0.0
  %623 = vmatprep.subr.mxu0 0.0
  %624 = vmatpush2.msra.mxu0 0.0
  %625 = vmatprep.subr.mxu0 0.0
  %626 = vmatpush2.msra.mxu0 0.0
  %627 = vmatprep.subr.mxu0 0.0
  %628 = vmatpush2.msra.mxu0 0.0
  %629 = vmatprep.subr.mxu0 0.0
  %630 = vmatpush2.msra.mxu0 0.0
  %631 = vmatprep.subr.mxu0 0.0
  %632 = vmatpush2.msra.mxu0 0.0
  %633 = vmatprep.subr.mxu0 0.0
  %634 = vmatpush2.msra.mxu0 0.0
  %635 = vmatprep.subr.mxu0 0.0
  %636 = vmatpush2.msra.mxu0 0.0
  %637 = vmatprep.mubr.f32.mxu0 0.0
  %638 = vmatmul.mubr.f32.gmra.mxu0 %v568
  %v639 = vpop.f32.mrf.mxu0
  %v640 = vadd.f32 0.0, %v639
  %v641 = vpop.f32.mrf.mxu0
  %642 = vmatprep.mubr.f32.mxu0 0.0
  %643 = vmatmul.mubr.f32.gmra.mxu0 %v571
  %v644 = vpop.f32.mrf.mxu0
  %v645 = vadd.f32 0.0, %v644
  %v646 = vpop.f32.mrf.mxu0
  %647 = vdwg.mxu0
  %v649 = vlaneseq
  %v650 = vshrl.u32 %v649, 7
  %v651 = vsub.s32 0, %v650
  %v652 = vrot.slane %v303, %v651
  %v654 = vadd.f32 %v652, %v640
  %v655 = vadd.f32 %v652, %v645
  %vm656 = vcmask 130112
  %v657 = vsel %vm656, %v199, -inf
  %658 = vmax.xlane.f32.xlu0 %v657
  %v659 = vpop.xlane.xlu0 %658
  %v660 = vsel %vm656, %v204, -inf
  %661 = vmax.xlane.f32.xlu0 %v660
  %v662 = vpop.xlane.xlu0 %661
  %v663 = vsub.f32 %v199, %v659
  %v664 = vsub.f32 %v204, %v662
  %v665 = vmul.f32 %v663, 1.442695
  %v666 = vpow.pop %v665
  %v667 = vmul.f32 %v664, 1.442695
  %v668 = vpow.pop %v667
  %671 = vrot.lane.b32.xlu0 %v666, 120
  %v672 = vpop.permute.xlu0 %671
  %673 = vrot.lane.b32.xlu0 %v668, 120
  %v674 = vpop.permute.xlu0 %673
  %v677 = vsel %vm304, %v672, 0.0
  %678 = vadd.xlane.f32.xlu0 %v677
  %v679 = vpop.xlane.xlu0 %678
  %v680 = vsel %vm304, %v674, 0.0
  %681 = vadd.xlane.f32.xlu0 %v680
  %v682 = vpop.xlane.xlu0 %681
  %v683 = vrcp.pop %v679
  %v684 = vrcp.pop %v682
  %v685 = vmul.f32 %v666, %v683
  %v686 = vmul.f32 %v668, %v684
  %v687 = vsel %vm656, %v291, -inf
  %688 = vmax.xlane.f32.xlu0 %v687
  %v689 = vpop.xlane.xlu0 %688
  %v690 = vsel %vm656, %v296, -inf
  %691 = vmax.xlane.f32.xlu0 %v690
  %v692 = vpop.xlane.xlu0 %691
  %v693 = vsub.f32 %v291, %v689
  %v694 = vsub.f32 %v296, %v692
  %v695 = vmul.f32 %v693, 1.442695
  %v696 = vpow.pop %v695
  %v697 = vmul.f32 %v694, 1.442695
  %v698 = vpow.pop %v697
  %701 = vrot.lane.b32.xlu0 %v696, 120
  %v702 = vpop.permute.xlu0 %701
  %703 = vrot.lane.b32.xlu0 %v698, 120
  %v704 = vpop.permute.xlu0 %703
  %v707 = vsel %vm304, %v702, 0.0
  %708 = vadd.xlane.f32.xlu0 %v707
  %v709 = vpop.xlane.xlu0 %708
  %v710 = vsel %vm304, %v704, 0.0
  %711 = vadd.xlane.f32.xlu0 %v710
  %v712 = vpop.xlane.xlu0 %711
  %v713 = vrcp.pop %v709
  %v714 = vrcp.pop %v712
  %v715 = vmul.f32 %v696, %v713
  %v716 = vmul.f32 %v698, %v714
  %v717 = vsel %vm656, %v715, 0.0
  %v718 = vsel %vm656, %v716, 0.0
  %v719 = vadd.f32 %v717, %v718
  %v720 = vrot.slane %v719, 4
  %v721 = vadd.f32 %v719, %v720
  %v722 = vrot.slane %v721, 2
  %v723 = vadd.f32 %v721, %v722
  %v724 = vrot.slane %v723, 1
  %v725 = vadd.f32 %v723, %v724
  %v726 = vmul.f32 %v685, %v725
  %v727 = vmul.f32 %v686, %v725
  %730 = vrot.lane.b32.xlu0 %v726, 120
  %v731 = vpop.permute.xlu0 %730
  %732 = vrot.lane.b32.xlu0 %v727, 120
  %v733 = vpop.permute.xlu0 %732
  %v736 = vsel %vm304, %v731, 0.0
  %737 = vadd.xlane.f32.xlu0 %v736
  %v738 = vpop.xlane.xlu0 %737
  %v739 = vsel %vm304, %v733, 0.0
  %740 = vadd.xlane.f32.xlu0 %v739
  %v741 = vpop.xlane.xlu0 %740
  %v742 = vrcp.pop %v738
  %v743 = vrcp.pop %v741
  %746 = vrot.lane.b32.xlu0 %v715, 120
  %v747 = vpop.permute.xlu0 %746
  %748 = vrot.lane.b32.xlu0 %v716, 120
  %v749 = vpop.permute.xlu0 %748
  %752 = vxpose.xlu0.b32.start [1/16] %v747, 128
  %753 = vxpose.xlu0.b32.cont [2/16] %v749, 128
  %754 = vxpose.xlu0.b32.cont [3/16] 0.0, 128
  %755 = vxpose.xlu0.b32.cont [4/16] 0.0, 128
  %756 = vxpose.xlu0.b32.cont [5/16] 0.0, 128
  %757 = vxpose.xlu0.b32.cont [6/16] 0.0, 128
  %758 = vxpose.xlu0.b32.cont [7/16] 0.0, 128
  %759 = vxpose.xlu0.b32.cont [8/16] 0.0, 128
  %760 = vxpose.xlu0.b32.cont [9/16] 0.0, 128
  %761 = vxpose.xlu0.b32.cont [10/16] 0.0, 128
  %762 = vxpose.xlu0.b32.cont [11/16] 0.0, 128
  %763 = vxpose.xlu0.b32.cont [12/16] 0.0, 128
  %764 = vxpose.xlu0.b32.cont [13/16] 0.0, 128
  %765 = vxpose.xlu0.b32.cont [14/16] 0.0, 128
  %766 = vxpose.xlu0.b32.cont [15/16] 0.0, 128
  %767 = vxpose.xlu0.b32.end [16/16] 0.0, 128
  %v768 = vpop.trf.xlu0
  %v769 = vpop.trf.xlu0
  %v770 = vpop.trf.xlu0
  %v771 = vpop.trf.xlu0
  %v772 = vpop.trf.xlu0
  %v773 = vpop.trf.xlu0
  %v774 = vpop.trf.xlu0
  %v775 = vpop.trf.xlu0
  %v776 = vpop.trf.xlu0
  %v777 = vpop.trf.xlu0
  %v778 = vpop.trf.xlu0
  %v779 = vpop.trf.xlu0
  %v780 = vpop.trf.xlu0
  %v781 = vpop.trf.xlu0
  %v782 = vpop.trf.xlu0
  %v783 = vpop.trf.xlu0
  %784 = vrot.lane.b32.xlu0 %v291, 88
  %v785 = vpop.permute.xlu0 %784
  %786 = vrot.lane.b32.xlu0 %v296, 88
  %v787 = vpop.permute.xlu0 %786
  %v791 = vsel %vm408, %v768, 0
  %793 = vmatprep.subr.mxu0 0.0
  %794 = vmatpush1.msra.mxu0 0.0
  %795 = vmatprep.subr.mxu0 0.0
  %796 = vmatpush1.msra.mxu0 0.0
  %797 = vmatprep.subr.mxu0 0.0
  %798 = vmatpush1.msra.mxu0 0.0
  %799 = vmatprep.subr.mxu0 0.0
  %800 = vmatpush1.msra.mxu0 0.0
  %801 = vmatprep.subr.mxu0 0.0
  %802 = vmatpush1.msra.mxu0 0.0
  %803 = vmatprep.subr.mxu0 0.0
  %804 = vmatpush1.msra.mxu0 0.0
  %805 = vmatprep.subr.mxu0 0.0
  %806 = vmatpush1.msra.mxu0 0.0
  %807 = vmatprep.subr.mxu0 0.0
  %808 = vmatpush1.msra.mxu0 0.0
  %809 = vmatprep.subr.mxu0 0.0
  %810 = vmatpush1.msra.mxu0 0.0
  %811 = vmatprep.subr.mxu0 0.0
  %812 = vmatpush1.msra.mxu0 0.0
  %813 = vmatprep.subr.mxu0 0.0
  %814 = vmatpush1.msra.mxu0 0.0
  %815 = vmatprep.subr.mxu0 0.0
  %816 = vmatpush1.msra.mxu0 0.0
  %817 = vmatprep.subr.mxu0 0.0
  %818 = vmatpush1.msra.mxu0 0.0
  %819 = vmatprep.subr.mxu0 0.0
  %820 = vmatpush1.msra.mxu0 0.0
  %821 = vmatprep.subr.mxu0 0.0
  %822 = vmatpush1.msra.mxu0 %v787
  %823 = vmatprep.subr.mxu0 0.0
  %824 = vmatpush1.msra.mxu0 %v785
  %825 = vmatprep.subr.mxu0 0.0
  %826 = vmatpush2.msra.mxu0 0.0
  %827 = vmatprep.subr.mxu0 0.0
  %828 = vmatpush2.msra.mxu0 0.0
  %829 = vmatprep.subr.mxu0 0.0
  %830 = vmatpush2.msra.mxu0 0.0
  %831 = vmatprep.subr.mxu0 0.0
  %832 = vmatpush2.msra.mxu0 0.0
  %833 = vmatprep.subr.mxu0 0.0
  %834 = vmatpush2.msra.mxu0 0.0
  %835 = vmatprep.subr.mxu0 0.0
  %836 = vmatpush2.msra.mxu0 0.0
  %837 = vmatprep.subr.mxu0 0.0
  %838 = vmatpush2.msra.mxu0 0.0
  %839 = vmatprep.subr.mxu0 0.0
  %840 = vmatpush2.msra.mxu0 0.0
  %841 = vmatprep.subr.mxu0 0.0
  %842 = vmatpush2.msra.mxu0 0.0
  %843 = vmatprep.subr.mxu0 0.0
  %844 = vmatpush2.msra.mxu0 0.0
  %845 = vmatprep.subr.mxu0 0.0
  %846 = vmatpush2.msra.mxu0 0.0
  %847 = vmatprep.subr.mxu0 0.0
  %848 = vmatpush2.msra.mxu0 0.0
  %849 = vmatprep.subr.mxu0 0.0
  %850 = vmatpush2.msra.mxu0 0.0
  %851 = vmatprep.subr.mxu0 0.0
  %852 = vmatpush2.msra.mxu0 0.0
  %853 = vmatprep.subr.mxu0 0.0
  %854 = vmatpush2.msra.mxu0 0.0
  %855 = vmatprep.subr.mxu0 0.0
  %856 = vmatpush2.msra.mxu0 0.0
  %857 = vmatprep.mubr.f32.mxu0 0.0
  %858 = vmatmul.mubr.f32.gmra.mxu0 %v791
  %v859 = vpop.f32.mrf.mxu0
  %v860 = vadd.f32 0.0, %v859
  %v861 = vpop.f32.mrf.mxu0
  %862 = vdwg.mxu0
  %865 = vrot.lane.b32.xlu0 %v685, 120
  %v866 = vpop.permute.xlu0 %865
  %867 = vrot.lane.b32.xlu0 %v686, 120
  %v868 = vpop.permute.xlu0 %867
  %v869 = vsel %vm304, %v866, 0
  %v871 = vsel %vm304, %v868, 0
  %873 = vmatprep.subr.mxu0 0.0
  %874 = vmatpush1.msra.mxu0 0.0
  %875 = vmatprep.subr.mxu0 0.0
  %876 = vmatpush1.msra.mxu0 0.0
  %877 = vmatprep.subr.mxu0 0.0
  %878 = vmatpush1.msra.mxu0 0.0
  %879 = vmatprep.subr.mxu0 0.0
  %880 = vmatpush1.msra.mxu0 0.0
  %881 = vmatprep.subr.mxu0 0.0
  %882 = vmatpush1.msra.mxu0 0.0
  %883 = vmatprep.subr.mxu0 0.0
  %884 = vmatpush1.msra.mxu0 0.0
  %885 = vmatprep.subr.mxu0 0.0
  %886 = vmatpush1.msra.mxu0 0.0
  %887 = vmatprep.subr.mxu0 0.0
  %888 = vmatpush1.msra.mxu0 0.0
  %889 = vmatprep.subr.mxu0 0.0
  %890 = vmatpush1.msra.mxu0 0.0
  %891 = vmatprep.subr.mxu0 0.0
  %892 = vmatpush1.msra.mxu0 0.0
  %893 = vmatprep.subr.mxu0 0.0
  %894 = vmatpush1.msra.mxu0 0.0
  %895 = vmatprep.subr.mxu0 0.0
  %896 = vmatpush1.msra.mxu0 0.0
  %897 = vmatprep.subr.mxu0 0.0
  %898 = vmatpush1.msra.mxu0 0.0
  %899 = vmatprep.subr.mxu0 0.0
  %900 = vmatpush1.msra.mxu0 0.0
  %901 = vmatprep.subr.mxu0 0.0
  %902 = vmatpush1.msra.mxu0 0.0
  %903 = vmatprep.subr.mxu0 0.0
  %904 = vmatpush1.msra.mxu0 %v860
  %905 = vmatprep.subr.mxu0 0.0
  %906 = vmatpush2.msra.mxu0 0.0
  %907 = vmatprep.subr.mxu0 0.0
  %908 = vmatpush2.msra.mxu0 0.0
  %909 = vmatprep.subr.mxu0 0.0
  %910 = vmatpush2.msra.mxu0 0.0
  %911 = vmatprep.subr.mxu0 0.0
  %912 = vmatpush2.msra.mxu0 0.0
  %913 = vmatprep.subr.mxu0 0.0
  %914 = vmatpush2.msra.mxu0 0.0
  %915 = vmatprep.subr.mxu0 0.0
  %916 = vmatpush2.msra.mxu0 0.0
  %917 = vmatprep.subr.mxu0 0.0
  %918 = vmatpush2.msra.mxu0 0.0
  %919 = vmatprep.subr.mxu0 0.0
  %920 = vmatpush2.msra.mxu0 0.0
  %921 = vmatprep.subr.mxu0 0.0
  %922 = vmatpush2.msra.mxu0 0.0
  %923 = vmatprep.subr.mxu0 0.0
  %924 = vmatpush2.msra.mxu0 0.0
  %925 = vmatprep.subr.mxu0 0.0
  %926 = vmatpush2.msra.mxu0 0.0
  %927 = vmatprep.subr.mxu0 0.0
  %928 = vmatpush2.msra.mxu0 0.0
  %929 = vmatprep.subr.mxu0 0.0
  %930 = vmatpush2.msra.mxu0 0.0
  %931 = vmatprep.subr.mxu0 0.0
  %932 = vmatpush2.msra.mxu0 0.0
  %933 = vmatprep.subr.mxu0 0.0
  %934 = vmatpush2.msra.mxu0 0.0
  %935 = vmatprep.subr.mxu0 0.0
  %936 = vmatpush2.msra.mxu0 0.0
  %937 = vmatprep.mubr.f32.mxu0 0.0
  %938 = vmatmul.mubr.f32.gmra.mxu0 %v869
  %v939 = vpop.f32.mrf.mxu0
  %v940 = vadd.f32 0.0, %v939
  %v941 = vpop.f32.mrf.mxu0
  %942 = vmatprep.mubr.f32.mxu0 0.0
  %943 = vmatmul.mubr.f32.gmra.mxu0 %v871
  %v944 = vpop.f32.mrf.mxu0
  %v945 = vadd.f32 0.0, %v944
  %v946 = vpop.f32.mrf.mxu0
  %947 = vdwg.mxu0
  %v948 = vmul.f32 %v940, %v742
  %v949 = vmul.f32 %v945, %v743
  %v952 = vadd.f32 %v948, %v866
  %v953 = vadd.f32 %v949, %v868
  %v955 = vsel %vm304, %v952, 0
  %v958 = vsel %vm304, %v953, 0
  %960 = vmatprep.subr.mxu0 0.0
  %961 = vmatpush1.msra.mxu0 0.0
  %962 = vmatprep.subr.mxu0 0.0
  %963 = vmatpush1.msra.mxu0 0.0
  %964 = vmatprep.subr.mxu0 0.0
  %965 = vmatpush1.msra.mxu0 0.0
  %966 = vmatprep.subr.mxu0 0.0
  %967 = vmatpush1.msra.mxu0 0.0
  %968 = vmatprep.subr.mxu0 0.0
  %969 = vmatpush1.msra.mxu0 0.0
  %970 = vmatprep.subr.mxu0 0.0
  %971 = vmatpush1.msra.mxu0 0.0
  %972 = vmatprep.subr.mxu0 0.0
  %973 = vmatpush1.msra.mxu0 0.0
  %974 = vmatprep.subr.mxu0 0.0
  %975 = vmatpush1.msra.mxu0 0.0
  %976 = vmatprep.subr.mxu0 0.0
  %977 = vmatpush1.msra.mxu0 0.0
  %978 = vmatprep.subr.mxu0 0.0
  %979 = vmatpush1.msra.mxu0 0.0
  %980 = vmatprep.subr.mxu0 0.0
  %981 = vmatpush1.msra.mxu0 0.0
  %982 = vmatprep.subr.mxu0 0.0
  %983 = vmatpush1.msra.mxu0 0.0
  %984 = vmatprep.subr.mxu0 0.0
  %985 = vmatpush1.msra.mxu0 0.0
  %986 = vmatprep.subr.mxu0 0.0
  %987 = vmatpush1.msra.mxu0 0.0
  %988 = vmatprep.subr.mxu0 0.0
  %989 = vmatpush1.msra.mxu0 0.0
  %990 = vmatprep.subr.mxu0 0.0
  %991 = vmatpush1.msra.mxu0 %v300
  %992 = vmatprep.subr.mxu0 0.0
  %993 = vmatpush2.msra.mxu0 0.0
  %994 = vmatprep.subr.mxu0 0.0
  %995 = vmatpush2.msra.mxu0 0.0
  %996 = vmatprep.subr.mxu0 0.0
  %997 = vmatpush2.msra.mxu0 0.0
  %998 = vmatprep.subr.mxu0 0.0
  %999 = vmatpush2.msra.mxu0 0.0
  %1000 = vmatprep.subr.mxu0 0.0
  %1001 = vmatpush2.msra.mxu0 0.0
  %1002 = vmatprep.subr.mxu0 0.0
  %1003 = vmatpush2.msra.mxu0 0.0
  %1004 = vmatprep.subr.mxu0 0.0
  %1005 = vmatpush2.msra.mxu0 0.0
  %1006 = vmatprep.subr.mxu0 0.0
  %1007 = vmatpush2.msra.mxu0 0.0
  %1008 = vmatprep.subr.mxu0 0.0
  %1009 = vmatpush2.msra.mxu0 0.0
  %1010 = vmatprep.subr.mxu0 0.0
  %1011 = vmatpush2.msra.mxu0 0.0
  %1012 = vmatprep.subr.mxu0 0.0
  %1013 = vmatpush2.msra.mxu0 0.0
  %1014 = vmatprep.subr.mxu0 0.0
  %1015 = vmatpush2.msra.mxu0 0.0
  %1016 = vmatprep.subr.mxu0 0.0
  %1017 = vmatpush2.msra.mxu0 0.0
  %1018 = vmatprep.subr.mxu0 0.0
  %1019 = vmatpush2.msra.mxu0 0.0
  %1020 = vmatprep.subr.mxu0 0.0
  %1021 = vmatpush2.msra.mxu0 0.0
  %1022 = vmatprep.subr.mxu0 0.0
  %1023 = vmatpush2.msra.mxu0 0.0
  %1024 = vmatprep.mubr.f32.mxu0 0.0
  %1025 = vmatmul.mubr.f32.gmra.mxu0 %v955
  %v1026 = vpop.f32.mrf.mxu0
  %v1027 = vadd.f32 0.0, %v1026
  %v1028 = vpop.f32.mrf.mxu0
  %1029 = vmatprep.mubr.f32.mxu0 0.0
  %1030 = vmatmul.mubr.f32.gmra.mxu0 %v958
  %v1031 = vpop.f32.mrf.mxu0
  %v1032 = vadd.f32 0.0, %v1031
  %v1033 = vpop.f32.mrf.mxu0
  %1034 = vdwg.mxu0
  %v1035 = vadd.f32 %v654, %v1027
  %v1036 = vadd.f32 %v655, %v1032
  %vm1037 = vcmask 195712
  %v1038 = vsel %vm1037, %v199, -inf
  %1039 = vmax.xlane.f32.xlu0 %v1038
  %v1040 = vpop.xlane.xlu0 %1039
  %v1041 = vsel %vm1037, %v204, -inf
  %1042 = vmax.xlane.f32.xlu0 %v1041
  %v1043 = vpop.xlane.xlu0 %1042
  %v1044 = vsub.f32 %v199, %v1040
  %v1045 = vsub.f32 %v204, %v1043
  %v1046 = vmul.f32 %v1044, 1.442695
  %v1047 = vpow.pop %v1046
  %v1048 = vmul.f32 %v1045, 1.442695
  %v1049 = vpow.pop %v1048
  %1052 = vrot.lane.b32.xlu0 %v1047, 112
  %v1053 = vpop.permute.xlu0 %1052
  %1054 = vrot.lane.b32.xlu0 %v1049, 112
  %v1055 = vpop.permute.xlu0 %1054
  %v1058 = vsel %vm304, %v1053, 0.0
  %1059 = vadd.xlane.f32.xlu0 %v1058
  %v1060 = vpop.xlane.xlu0 %1059
  %v1061 = vsel %vm304, %v1055, 0.0
  %1062 = vadd.xlane.f32.xlu0 %v1061
  %v1063 = vpop.xlane.xlu0 %1062
  %v1064 = vrcp.pop %v1060
  %v1065 = vrcp.pop %v1063
  %v1066 = vmul.f32 %v1047, %v1064
  %v1067 = vmul.f32 %v1049, %v1065
  %v1068 = vsel %vm1037, %v291, -inf
  %1069 = vmax.xlane.f32.xlu0 %v1068
  %v1070 = vpop.xlane.xlu0 %1069
  %v1071 = vsel %vm1037, %v296, -inf
  %1072 = vmax.xlane.f32.xlu0 %v1071
  %v1073 = vpop.xlane.xlu0 %1072
  %v1074 = vsub.f32 %v291, %v1070
  %v1075 = vsub.f32 %v296, %v1073
  %v1076 = vmul.f32 %v1074, 1.442695
  %v1077 = vpow.pop %v1076
  %v1078 = vmul.f32 %v1075, 1.442695
  %v1079 = vpow.pop %v1078
  %1082 = vrot.lane.b32.xlu0 %v1077, 112
  %v1083 = vpop.permute.xlu0 %1082
  %1084 = vrot.lane.b32.xlu0 %v1079, 112
  %v1085 = vpop.permute.xlu0 %1084
  %v1088 = vsel %vm304, %v1083, 0.0
  %1089 = vadd.xlane.f32.xlu0 %v1088
  %v1090 = vpop.xlane.xlu0 %1089
  %v1091 = vsel %vm304, %v1085, 0.0
  %1092 = vadd.xlane.f32.xlu0 %v1091
  %v1093 = vpop.xlane.xlu0 %1092
  %v1094 = vrcp.pop %v1090
  %v1095 = vrcp.pop %v1093
  %v1096 = vmul.f32 %v1077, %v1094
  %v1097 = vmul.f32 %v1079, %v1095
  %v1098 = vsel %vm1037, %v1096, 0.0
  %v1099 = vsel %vm1037, %v1097, 0.0
  %v1100 = vadd.f32 %v1098, %v1099
  %v1101 = vrot.slane %v1100, 4
  %v1102 = vadd.f32 %v1100, %v1101
  %v1103 = vrot.slane %v1102, 2
  %v1104 = vadd.f32 %v1102, %v1103
  %v1105 = vrot.slane %v1104, 1
  %v1106 = vadd.f32 %v1104, %v1105
  %v1107 = vmul.f32 %v1066, %v1106
  %v1108 = vmul.f32 %v1067, %v1106
  %1111 = vrot.lane.b32.xlu0 %v1107, 112
  %v1112 = vpop.permute.xlu0 %1111
  %1113 = vrot.lane.b32.xlu0 %v1108, 112
  %v1114 = vpop.permute.xlu0 %1113
  %v1117 = vsel %vm304, %v1112, 0.0
  %1118 = vadd.xlane.f32.xlu0 %v1117
  %v1119 = vpop.xlane.xlu0 %1118
  %v1120 = vsel %vm304, %v1114, 0.0
  %1121 = vadd.xlane.f32.xlu0 %v1120
  %v1122 = vpop.xlane.xlu0 %1121
  %v1123 = vrcp.pop %v1119
  %v1124 = vrcp.pop %v1122
  %1127 = vrot.lane.b32.xlu0 %v1096, 112
  %v1128 = vpop.permute.xlu0 %1127
  %1129 = vrot.lane.b32.xlu0 %v1097, 112
  %v1130 = vpop.permute.xlu0 %1129
  %1133 = vxpose.xlu0.b32.start [1/16] %v1128, 128
  %1134 = vxpose.xlu0.b32.cont [2/16] %v1130, 128
  %1135 = vxpose.xlu0.b32.cont [3/16] 0.0, 128
  %1136 = vxpose.xlu0.b32.cont [4/16] 0.0, 128
  %1137 = vxpose.xlu0.b32.cont [5/16] 0.0, 128
  %1138 = vxpose.xlu0.b32.cont [6/16] 0.0, 128
  %1139 = vxpose.xlu0.b32.cont [7/16] 0.0, 128
  %1140 = vxpose.xlu0.b32.cont [8/16] 0.0, 128
  %1141 = vxpose.xlu0.b32.cont [9/16] 0.0, 128
  %1142 = vxpose.xlu0.b32.cont [10/16] 0.0, 128
  %1143 = vxpose.xlu0.b32.cont [11/16] 0.0, 128
  %1144 = vxpose.xlu0.b32.cont [12/16] 0.0, 128
  %1145 = vxpose.xlu0.b32.cont [13/16] 0.0, 128
  %1146 = vxpose.xlu0.b32.cont [14/16] 0.0, 128
  %1147 = vxpose.xlu0.b32.cont [15/16] 0.0, 128
  %1148 = vxpose.xlu0.b32.end [16/16] 0.0, 128
  %v1149 = vpop.trf.xlu0
  %v1150 = vpop.trf.xlu0
  %v1151 = vpop.trf.xlu0
  %v1152 = vpop.trf.xlu0
  %v1153 = vpop.trf.xlu0
  %v1154 = vpop.trf.xlu0
  %v1155 = vpop.trf.xlu0
  %v1156 = vpop.trf.xlu0
  %v1157 = vpop.trf.xlu0
  %v1158 = vpop.trf.xlu0
  %v1159 = vpop.trf.xlu0
  %v1160 = vpop.trf.xlu0
  %v1161 = vpop.trf.xlu0
  %v1162 = vpop.trf.xlu0
  %v1163 = vpop.trf.xlu0
  %v1164 = vpop.trf.xlu0
  %1165 = vrot.lane.b32.xlu0 %v291, 80
  %v1166 = vpop.permute.xlu0 %1165
  %1167 = vrot.lane.b32.xlu0 %v296, 80
  %v1168 = vpop.permute.xlu0 %1167
  %v1172 = vsel %vm408, %v1149, 0
  %1174 = vmatprep.subr.mxu0 0.0
  %1175 = vmatpush1.msra.mxu0 0.0
  %1176 = vmatprep.subr.mxu0 0.0
  %1177 = vmatpush1.msra.mxu0 0.0
  %1178 = vmatprep.subr.mxu0 0.0
  %1179 = vmatpush1.msra.mxu0 0.0
  %1180 = vmatprep.subr.mxu0 0.0
  %1181 = vmatpush1.msra.mxu0 0.0
  %1182 = vmatprep.subr.mxu0 0.0
  %1183 = vmatpush1.msra.mxu0 0.0
  %1184 = vmatprep.subr.mxu0 0.0
  %1185 = vmatpush1.msra.mxu0 0.0
  %1186 = vmatprep.subr.mxu0 0.0
  %1187 = vmatpush1.msra.mxu0 0.0
  %1188 = vmatprep.subr.mxu0 0.0
  %1189 = vmatpush1.msra.mxu0 0.0
  %1190 = vmatprep.subr.mxu0 0.0
  %1191 = vmatpush1.msra.mxu0 0.0
  %1192 = vmatprep.subr.mxu0 0.0
  %1193 = vmatpush1.msra.mxu0 0.0
  %1194 = vmatprep.subr.mxu0 0.0
  %1195 = vmatpush1.msra.mxu0 0.0
  %1196 = vmatprep.subr.mxu0 0.0
  %1197 = vmatpush1.msra.mxu0 0.0
  %1198 = vmatprep.subr.mxu0 0.0
  %1199 = vmatpush1.msra.mxu0 0.0
  %1200 = vmatprep.subr.mxu0 0.0
  %1201 = vmatpush1.msra.mxu0 0.0
  %1202 = vmatprep.subr.mxu0 0.0
  %1203 = vmatpush1.msra.mxu0 %v1168
  %1204 = vmatprep.subr.mxu0 0.0
  %1205 = vmatpush1.msra.mxu0 %v1166
  %1206 = vmatprep.subr.mxu0 0.0
  %1207 = vmatpush2.msra.mxu0 0.0
  %1208 = vmatprep.subr.mxu0 0.0
  %1209 = vmatpush2.msra.mxu0 0.0
  %1210 = vmatprep.subr.mxu0 0.0
  %1211 = vmatpush2.msra.mxu0 0.0
  %1212 = vmatprep.subr.mxu0 0.0
  %1213 = vmatpush2.msra.mxu0 0.0
  %1214 = vmatprep.subr.mxu0 0.0
  %1215 = vmatpush2.msra.mxu0 0.0
  %1216 = vmatprep.subr.mxu0 0.0
  %1217 = vmatpush2.msra.mxu0 0.0
  %1218 = vmatprep.subr.mxu0 0.0
  %1219 = vmatpush2.msra.mxu0 0.0
  %1220 = vmatprep.subr.mxu0 0.0
  %1221 = vmatpush2.msra.mxu0 0.0
  %1222 = vmatprep.subr.mxu0 0.0
  %1223 = vmatpush2.msra.mxu0 0.0
  %1224 = vmatprep.subr.mxu0 0.0
  %1225 = vmatpush2.msra.mxu0 0.0
  %1226 = vmatprep.subr.mxu0 0.0
  %1227 = vmatpush2.msra.mxu0 0.0
  %1228 = vmatprep.subr.mxu0 0.0
  %1229 = vmatpush2.msra.mxu0 0.0
  %1230 = vmatprep.subr.mxu0 0.0
  %1231 = vmatpush2.msra.mxu0 0.0
  %1232 = vmatprep.subr.mxu0 0.0
  %1233 = vmatpush2.msra.mxu0 0.0
  %1234 = vmatprep.subr.mxu0 0.0
  %1235 = vmatpush2.msra.mxu0 0.0
  %1236 = vmatprep.subr.mxu0 0.0
  %1237 = vmatpush2.msra.mxu0 0.0
  %1238 = vmatprep.mubr.f32.mxu0 0.0
  %1239 = vmatmul.mubr.f32.gmra.mxu0 %v1172
  %v1240 = vpop.f32.mrf.mxu0
  %v1241 = vadd.f32 0.0, %v1240
  %v1242 = vpop.f32.mrf.mxu0
  %1243 = vdwg.mxu0
  %1246 = vrot.lane.b32.xlu0 %v1066, 112
  %v1247 = vpop.permute.xlu0 %1246
  %1248 = vrot.lane.b32.xlu0 %v1067, 112
  %v1249 = vpop.permute.xlu0 %1248
  %v1250 = vsel %vm304, %v1247, 0
  %v1252 = vsel %vm304, %v1249, 0
  %1254 = vmatprep.subr.mxu0 0.0
  %1255 = vmatpush1.msra.mxu0 0.0
  %1256 = vmatprep.subr.mxu0 0.0
  %1257 = vmatpush1.msra.mxu0 0.0
  %1258 = vmatprep.subr.mxu0 0.0
  %1259 = vmatpush1.msra.mxu0 0.0
  %1260 = vmatprep.subr.mxu0 0.0
  %1261 = vmatpush1.msra.mxu0 0.0
  %1262 = vmatprep.subr.mxu0 0.0
  %1263 = vmatpush1.msra.mxu0 0.0
  %1264 = vmatprep.subr.mxu0 0.0
  %1265 = vmatpush1.msra.mxu0 0.0
  %1266 = vmatprep.subr.mxu0 0.0
  %1267 = vmatpush1.msra.mxu0 0.0
  %1268 = vmatprep.subr.mxu0 0.0
  %1269 = vmatpush1.msra.mxu0 0.0
  %1270 = vmatprep.subr.mxu0 0.0
  %1271 = vmatpush1.msra.mxu0 0.0
  %1272 = vmatprep.subr.mxu0 0.0
  %1273 = vmatpush1.msra.mxu0 0.0
  %1274 = vmatprep.subr.mxu0 0.0
  %1275 = vmatpush1.msra.mxu0 0.0
  %1276 = vmatprep.subr.mxu0 0.0
  %1277 = vmatpush1.msra.mxu0 0.0
  %1278 = vmatprep.subr.mxu0 0.0
  %1279 = vmatpush1.msra.mxu0 0.0
  %1280 = vmatprep.subr.mxu0 0.0
  %1281 = vmatpush1.msra.mxu0 0.0
  %1282 = vmatprep.subr.mxu0 0.0
  %1283 = vmatpush1.msra.mxu0 0.0
  %1284 = vmatprep.subr.mxu0 0.0
  %1285 = vmatpush1.msra.mxu0 %v1241
  %1286 = vmatprep.subr.mxu0 0.0
  %1287 = vmatpush2.msra.mxu0 0.0
  %1288 = vmatprep.subr.mxu0 0.0
  %1289 = vmatpush2.msra.mxu0 0.0
  %1290 = vmatprep.subr.mxu0 0.0
  %1291 = vmatpush2.msra.mxu0 0.0
  %1292 = vmatprep.subr.mxu0 0.0
  %1293 = vmatpush2.msra.mxu0 0.0
  %1294 = vmatprep.subr.mxu0 0.0
  %1295 = vmatpush2.msra.mxu0 0.0
  %1296 = vmatprep.subr.mxu0 0.0
  %1297 = vmatpush2.msra.mxu0 0.0
  %1298 = vmatprep.subr.mxu0 0.0
  %1299 = vmatpush2.msra.mxu0 0.0
  %1300 = vmatprep.subr.mxu0 0.0
  %1301 = vmatpush2.msra.mxu0 0.0
  %1302 = vmatprep.subr.mxu0 0.0
  %1303 = vmatpush2.msra.mxu0 0.0
  %1304 = vmatprep.subr.mxu0 0.0
  %1305 = vmatpush2.msra.mxu0 0.0
  %1306 = vmatprep.subr.mxu0 0.0
  %1307 = vmatpush2.msra.mxu0 0.0
  %1308 = vmatprep.subr.mxu0 0.0
  %1309 = vmatpush2.msra.mxu0 0.0
  %1310 = vmatprep.subr.mxu0 0.0
  %1311 = vmatpush2.msra.mxu0 0.0
  %1312 = vmatprep.subr.mxu0 0.0
  %1313 = vmatpush2.msra.mxu0 0.0
  %1314 = vmatprep.subr.mxu0 0.0
  %1315 = vmatpush2.msra.mxu0 0.0
  %1316 = vmatprep.subr.mxu0 0.0
  %1317 = vmatpush2.msra.mxu0 0.0
  %1318 = vmatprep.mubr.f32.mxu0 0.0
  %1319 = vmatmul.mubr.f32.gmra.mxu0 %v1250
  %v1320 = vpop.f32.mrf.mxu0
  %v1321 = vadd.f32 0.0, %v1320
  %v1322 = vpop.f32.mrf.mxu0
  %1323 = vmatprep.mubr.f32.mxu0 0.0
  %1324 = vmatmul.mubr.f32.gmra.mxu0 %v1252
  %v1325 = vpop.f32.mrf.mxu0
  %v1326 = vadd.f32 0.0, %v1325
  %v1327 = vpop.f32.mrf.mxu0
  %1328 = vdwg.mxu0
  %v1329 = vmul.f32 %v1321, %v1123
  %v1330 = vmul.f32 %v1326, %v1124
  %v1333 = vadd.f32 %v1329, %v1247
  %v1334 = vadd.f32 %v1330, %v1249
  %v1336 = vsel %vm304, %v1333, 0
  %v1339 = vsel %vm304, %v1334, 0
  %1341 = vmatprep.subr.mxu0 0.0
  %1342 = vmatpush1.msra.mxu0 0.0
  %1343 = vmatprep.subr.mxu0 0.0
  %1344 = vmatpush1.msra.mxu0 0.0
  %1345 = vmatprep.subr.mxu0 0.0
  %1346 = vmatpush1.msra.mxu0 0.0
  %1347 = vmatprep.subr.mxu0 0.0
  %1348 = vmatpush1.msra.mxu0 0.0
  %1349 = vmatprep.subr.mxu0 0.0
  %1350 = vmatpush1.msra.mxu0 0.0
  %1351 = vmatprep.subr.mxu0 0.0
  %1352 = vmatpush1.msra.mxu0 0.0
  %1353 = vmatprep.subr.mxu0 0.0
  %1354 = vmatpush1.msra.mxu0 0.0
  %1355 = vmatprep.subr.mxu0 0.0
  %1356 = vmatpush1.msra.mxu0 0.0
  %1357 = vmatprep.subr.mxu0 0.0
  %1358 = vmatpush1.msra.mxu0 0.0
  %1359 = vmatprep.subr.mxu0 0.0
  %1360 = vmatpush1.msra.mxu0 0.0
  %1361 = vmatprep.subr.mxu0 0.0
  %1362 = vmatpush1.msra.mxu0 0.0
  %1363 = vmatprep.subr.mxu0 0.0
  %1364 = vmatpush1.msra.mxu0 0.0
  %1365 = vmatprep.subr.mxu0 0.0
  %1366 = vmatpush1.msra.mxu0 0.0
  %1367 = vmatprep.subr.mxu0 0.0
  %1368 = vmatpush1.msra.mxu0 0.0
  %1369 = vmatprep.subr.mxu0 0.0
  %1370 = vmatpush1.msra.mxu0 0.0
  %1371 = vmatprep.subr.mxu0 0.0
  %1372 = vmatpush1.msra.mxu0 %v301
  %1373 = vmatprep.subr.mxu0 0.0
  %1374 = vmatpush2.msra.mxu0 0.0
  %1375 = vmatprep.subr.mxu0 0.0
  %1376 = vmatpush2.msra.mxu0 0.0
  %1377 = vmatprep.subr.mxu0 0.0
  %1378 = vmatpush2.msra.mxu0 0.0
  %1379 = vmatprep.subr.mxu0 0.0
  %1380 = vmatpush2.msra.mxu0 0.0
  %1381 = vmatprep.subr.mxu0 0.0
  %1382 = vmatpush2.msra.mxu0 0.0
  %1383 = vmatprep.subr.mxu0 0.0
  %1384 = vmatpush2.msra.mxu0 0.0
  %1385 = vmatprep.subr.mxu0 0.0
  %1386 = vmatpush2.msra.mxu0 0.0
  %1387 = vmatprep.subr.mxu0 0.0
  %1388 = vmatpush2.msra.mxu0 0.0
  %1389 = vmatprep.subr.mxu0 0.0
  %1390 = vmatpush2.msra.mxu0 0.0
  %1391 = vmatprep.subr.mxu0 0.0
  %1392 = vmatpush2.msra.mxu0 0.0
  %1393 = vmatprep.subr.mxu0 0.0
  %1394 = vmatpush2.msra.mxu0 0.0
  %1395 = vmatprep.subr.mxu0 0.0
  %1396 = vmatpush2.msra.mxu0 0.0
  %1397 = vmatprep.subr.mxu0 0.0
  %1398 = vmatpush2.msra.mxu0 0.0
  %1399 = vmatprep.subr.mxu0 0.0
  %1400 = vmatpush2.msra.mxu0 0.0
  %1401 = vmatprep.subr.mxu0 0.0
  %1402 = vmatpush2.msra.mxu0 0.0
  %1403 = vmatprep.subr.mxu0 0.0
  %1404 = vmatpush2.msra.mxu0 0.0
  %1405 = vmatprep.mubr.f32.mxu0 0.0
  %1406 = vmatmul.mubr.f32.gmra.mxu0 %v1336
  %v1407 = vpop.f32.mrf.mxu0
  %v1408 = vadd.f32 0.0, %v1407
  %v1409 = vpop.f32.mrf.mxu0
  %1410 = vmatprep.mubr.f32.mxu0 0.0
  %1411 = vmatmul.mubr.f32.gmra.mxu0 %v1339
  %v1412 = vpop.f32.mrf.mxu0
  %v1413 = vadd.f32 0.0, %v1412
  %v1414 = vpop.f32.mrf.mxu0
  %1415 = vdwg.mxu0
  %v1416 = vadd.f32 %v1035, %v1408
  %v1417 = vadd.f32 %v1036, %v1413
  %vm1418 = vcmask 261312
  %v1419 = vsel %vm1418, %v199, -inf
  %1420 = vmax.xlane.f32.xlu0 %v1419
  %v1421 = vpop.xlane.xlu0 %1420
  %v1422 = vsel %vm1418, %v204, -inf
  %1423 = vmax.xlane.f32.xlu0 %v1422
  %v1424 = vpop.xlane.xlu0 %1423
  %v1425 = vsub.f32 %v199, %v1421
  %v1426 = vsub.f32 %v204, %v1424
  %v1427 = vmul.f32 %v1425, 1.442695
  %v1428 = vpow.pop %v1427
  %v1429 = vmul.f32 %v1426, 1.442695
  %v1430 = vpow.pop %v1429
  %1433 = vrot.lane.b32.xlu0 %v1428, 104
  %v1434 = vpop.permute.xlu0 %1433
  %1435 = vrot.lane.b32.xlu0 %v1430, 104
  %v1436 = vpop.permute.xlu0 %1435
  %v1439 = vsel %vm304, %v1434, 0.0
  %1440 = vadd.xlane.f32.xlu0 %v1439
  %v1441 = vpop.xlane.xlu0 %1440
  %v1442 = vsel %vm304, %v1436, 0.0
  %1443 = vadd.xlane.f32.xlu0 %v1442
  %v1444 = vpop.xlane.xlu0 %1443
  %v1445 = vrcp.pop %v1441
  %v1446 = vrcp.pop %v1444
  %v1447 = vmul.f32 %v1428, %v1445
  %v1448 = vmul.f32 %v1430, %v1446
  %v1449 = vsel %vm1418, %v291, -inf
  %1450 = vmax.xlane.f32.xlu0 %v1449
  %v1451 = vpop.xlane.xlu0 %1450
  %v1452 = vsel %vm1418, %v296, -inf
  %1453 = vmax.xlane.f32.xlu0 %v1452
  %v1454 = vpop.xlane.xlu0 %1453
  %v1455 = vsub.f32 %v291, %v1451
  %v1456 = vsub.f32 %v296, %v1454
  %v1457 = vmul.f32 %v1455, 1.442695
  %v1458 = vpow.pop %v1457
  %v1459 = vmul.f32 %v1456, 1.442695
  %v1460 = vpow.pop %v1459
  %1463 = vrot.lane.b32.xlu0 %v1458, 104
  %v1464 = vpop.permute.xlu0 %1463
  %1465 = vrot.lane.b32.xlu0 %v1460, 104
  %v1466 = vpop.permute.xlu0 %1465
  %v1469 = vsel %vm304, %v1464, 0.0
  %1470 = vadd.xlane.f32.xlu0 %v1469
  %v1471 = vpop.xlane.xlu0 %1470
  %v1472 = vsel %vm304, %v1466, 0.0
  %1473 = vadd.xlane.f32.xlu0 %v1472
  %v1474 = vpop.xlane.xlu0 %1473
  %v1475 = vrcp.pop %v1471
  %v1476 = vrcp.pop %v1474
  %v1477 = vmul.f32 %v1458, %v1475
  %v1478 = vmul.f32 %v1460, %v1476
  %v1479 = vsel %vm1418, %v1477, 0.0
  %v1480 = vsel %vm1418, %v1478, 0.0
  %v1481 = vadd.f32 %v1479, %v1480
  %v1482 = vrot.slane %v1481, 4
  %v1483 = vadd.f32 %v1481, %v1482
  %v1484 = vrot.slane %v1483, 2
  %v1485 = vadd.f32 %v1483, %v1484
  %v1486 = vrot.slane %v1485, 1
  %v1487 = vadd.f32 %v1485, %v1486
  %v1488 = vmul.f32 %v1447, %v1487
  %v1489 = vmul.f32 %v1448, %v1487
  %1492 = vrot.lane.b32.xlu0 %v1488, 104
  %v1493 = vpop.permute.xlu0 %1492
  %1494 = vrot.lane.b32.xlu0 %v1489, 104
  %v1495 = vpop.permute.xlu0 %1494
  %v1498 = vsel %vm304, %v1493, 0.0
  %1499 = vadd.xlane.f32.xlu0 %v1498
  %v1500 = vpop.xlane.xlu0 %1499
  %v1501 = vsel %vm304, %v1495, 0.0
  %1502 = vadd.xlane.f32.xlu0 %v1501
  %v1503 = vpop.xlane.xlu0 %1502
  %v1504 = vrcp.pop %v1500
  %v1505 = vrcp.pop %v1503
  %1508 = vrot.lane.b32.xlu0 %v1477, 104
  %v1509 = vpop.permute.xlu0 %1508
  %1510 = vrot.lane.b32.xlu0 %v1478, 104
  %v1511 = vpop.permute.xlu0 %1510
  %1514 = vxpose.xlu0.b32.start [1/16] %v1509, 128
  %1515 = vxpose.xlu0.b32.cont [2/16] %v1511, 128
  %1516 = vxpose.xlu0.b32.cont [3/16] 0.0, 128
  %1517 = vxpose.xlu0.b32.cont [4/16] 0.0, 128
  %1518 = vxpose.xlu0.b32.cont [5/16] 0.0, 128
  %1519 = vxpose.xlu0.b32.cont [6/16] 0.0, 128
  %1520 = vxpose.xlu0.b32.cont [7/16] 0.0, 128
  %1521 = vxpose.xlu0.b32.cont [8/16] 0.0, 128
  %1522 = vxpose.xlu0.b32.cont [9/16] 0.0, 128
  %1523 = vxpose.xlu0.b32.cont [10/16] 0.0, 128
  %1524 = vxpose.xlu0.b32.cont [11/16] 0.0, 128
  %1525 = vxpose.xlu0.b32.cont [12/16] 0.0, 128
  %1526 = vxpose.xlu0.b32.cont [13/16] 0.0, 128
  %1527 = vxpose.xlu0.b32.cont [14/16] 0.0, 128
  %1528 = vxpose.xlu0.b32.cont [15/16] 0.0, 128
  %1529 = vxpose.xlu0.b32.end [16/16] 0.0, 128
  %v1530 = vpop.trf.xlu0
  %v1531 = vpop.trf.xlu0
  %v1532 = vpop.trf.xlu0
  %v1533 = vpop.trf.xlu0
  %v1534 = vpop.trf.xlu0
  %v1535 = vpop.trf.xlu0
  %v1536 = vpop.trf.xlu0
  %v1537 = vpop.trf.xlu0
  %v1538 = vpop.trf.xlu0
  %v1539 = vpop.trf.xlu0
  %v1540 = vpop.trf.xlu0
  %v1541 = vpop.trf.xlu0
  %v1542 = vpop.trf.xlu0
  %v1543 = vpop.trf.xlu0
  %v1544 = vpop.trf.xlu0
  %v1545 = vpop.trf.xlu0
  %1546 = vrot.lane.b32.xlu0 %v291, 72
  %v1547 = vpop.permute.xlu0 %1546
  %1548 = vrot.lane.b32.xlu0 %v296, 72
  %v1549 = vpop.permute.xlu0 %1548
  %v1553 = vsel %vm408, %v1530, 0
  %1555 = vmatprep.subr.mxu0 0.0
  %1556 = vmatpush1.msra.mxu0 0.0
  %1557 = vmatprep.subr.mxu0 0.0
  %1558 = vmatpush1.msra.mxu0 0.0
  %1559 = vmatprep.subr.mxu0 0.0
  %1560 = vmatpush1.msra.mxu0 0.0
  %1561 = vmatprep.subr.mxu0 0.0
  %1562 = vmatpush1.msra.mxu0 0.0
  %1563 = vmatprep.subr.mxu0 0.0
  %1564 = vmatpush1.msra.mxu0 0.0
  %1565 = vmatprep.subr.mxu0 0.0
  %1566 = vmatpush1.msra.mxu0 0.0
  %1567 = vmatprep.subr.mxu0 0.0
  %1568 = vmatpush1.msra.mxu0 0.0
  %1569 = vmatprep.subr.mxu0 0.0
  %1570 = vmatpush1.msra.mxu0 0.0
  %1571 = vmatprep.subr.mxu0 0.0
  %1572 = vmatpush1.msra.mxu0 0.0
  %1573 = vmatprep.subr.mxu0 0.0
  %1574 = vmatpush1.msra.mxu0 0.0
  %1575 = vmatprep.subr.mxu0 0.0
  %1576 = vmatpush1.msra.mxu0 0.0
  %1577 = vmatprep.subr.mxu0 0.0
  %1578 = vmatpush1.msra.mxu0 0.0
  %1579 = vmatprep.subr.mxu0 0.0
  %1580 = vmatpush1.msra.mxu0 0.0
  %1581 = vmatprep.subr.mxu0 0.0
  %1582 = vmatpush1.msra.mxu0 0.0
  %1583 = vmatprep.subr.mxu0 0.0
  %1584 = vmatpush1.msra.mxu0 %v1549
  %1585 = vmatprep.subr.mxu0 0.0
  %1586 = vmatpush1.msra.mxu0 %v1547
  %1587 = vmatprep.subr.mxu0 0.0
  %1588 = vmatpush2.msra.mxu0 0.0
  %1589 = vmatprep.subr.mxu0 0.0
  %1590 = vmatpush2.msra.mxu0 0.0
  %1591 = vmatprep.subr.mxu0 0.0
  %1592 = vmatpush2.msra.mxu0 0.0
  %1593 = vmatprep.subr.mxu0 0.0
  %1594 = vmatpush2.msra.mxu0 0.0
  %1595 = vmatprep.subr.mxu0 0.0
  %1596 = vmatpush2.msra.mxu0 0.0
  %1597 = vmatprep.subr.mxu0 0.0
  %1598 = vmatpush2.msra.mxu0 0.0
  %1599 = vmatprep.subr.mxu0 0.0
  %1600 = vmatpush2.msra.mxu0 0.0
  %1601 = vmatprep.subr.mxu0 0.0
  %1602 = vmatpush2.msra.mxu0 0.0
  %1603 = vmatprep.subr.mxu0 0.0
  %1604 = vmatpush2.msra.mxu0 0.0
  %1605 = vmatprep.subr.mxu0 0.0
  %1606 = vmatpush2.msra.mxu0 0.0
  %1607 = vmatprep.subr.mxu0 0.0
  %1608 = vmatpush2.msra.mxu0 0.0
  %1609 = vmatprep.subr.mxu0 0.0
  %1610 = vmatpush2.msra.mxu0 0.0
  %1611 = vmatprep.subr.mxu0 0.0
  %1612 = vmatpush2.msra.mxu0 0.0
  %1613 = vmatprep.subr.mxu0 0.0
  %1614 = vmatpush2.msra.mxu0 0.0
  %1615 = vmatprep.subr.mxu0 0.0
  %1616 = vmatpush2.msra.mxu0 0.0
  %1617 = vmatprep.subr.mxu0 0.0
  %1618 = vmatpush2.msra.mxu0 0.0
  %1619 = vmatprep.mubr.f32.mxu0 0.0
  %1620 = vmatmul.mubr.f32.gmra.mxu0 %v1553
  %v1621 = vpop.f32.mrf.mxu0
  %v1622 = vadd.f32 0.0, %v1621
  %v1623 = vpop.f32.mrf.mxu0
  %1624 = vdwg.mxu0
  %1627 = vrot.lane.b32.xlu0 %v1447, 104
  %v1628 = vpop.permute.xlu0 %1627
  %1629 = vrot.lane.b32.xlu0 %v1448, 104
  %v1630 = vpop.permute.xlu0 %1629
  %v1631 = vsel %vm304, %v1628, 0
  %v1633 = vsel %vm304, %v1630, 0
  %1635 = vmatprep.subr.mxu0 0.0
  %1636 = vmatpush1.msra.mxu0 0.0
  %1637 = vmatprep.subr.mxu0 0.0
  %1638 = vmatpush1.msra.mxu0 0.0
  %1639 = vmatprep.subr.mxu0 0.0
  %1640 = vmatpush1.msra.mxu0 0.0
  %1641 = vmatprep.subr.mxu0 0.0
  %1642 = vmatpush1.msra.mxu0 0.0
  %1643 = vmatprep.subr.mxu0 0.0
  %1644 = vmatpush1.msra.mxu0 0.0
  %1645 = vmatprep.subr.mxu0 0.0
  %1646 = vmatpush1.msra.mxu0 0.0
  %1647 = vmatprep.subr.mxu0 0.0
  %1648 = vmatpush1.msra.mxu0 0.0
  %1649 = vmatprep.subr.mxu0 0.0
  %1650 = vmatpush1.msra.mxu0 0.0
  %1651 = vmatprep.subr.mxu0 0.0
  %1652 = vmatpush1.msra.mxu0 0.0
  %1653 = vmatprep.subr.mxu0 0.0
  %1654 = vmatpush1.msra.mxu0 0.0
  %1655 = vmatprep.subr.mxu0 0.0
  %1656 = vmatpush1.msra.mxu0 0.0
  %1657 = vmatprep.subr.mxu0 0.0
  %1658 = vmatpush1.msra.mxu0 0.0
  %1659 = vmatprep.subr.mxu0 0.0
  %1660 = vmatpush1.msra.mxu0 0.0
  %1661 = vmatprep.subr.mxu0 0.0
  %1662 = vmatpush1.msra.mxu0 0.0
  %1663 = vmatprep.subr.mxu0 0.0
  %1664 = vmatpush1.msra.mxu0 0.0
  %1665 = vmatprep.subr.mxu0 0.0
  %1666 = vmatpush1.msra.mxu0 %v1622
  %1667 = vmatprep.subr.mxu0 0.0
  %1668 = vmatpush2.msra.mxu0 0.0
  %1669 = vmatprep.subr.mxu0 0.0
  %1670 = vmatpush2.msra.mxu0 0.0
  %1671 = vmatprep.subr.mxu0 0.0
  %1672 = vmatpush2.msra.mxu0 0.0
  %1673 = vmatprep.subr.mxu0 0.0
  %1674 = vmatpush2.msra.mxu0 0.0
  %1675 = vmatprep.subr.mxu0 0.0
  %1676 = vmatpush2.msra.mxu0 0.0
  %1677 = vmatprep.subr.mxu0 0.0
  %1678 = vmatpush2.msra.mxu0 0.0
  %1679 = vmatprep.subr.mxu0 0.0
  %1680 = vmatpush2.msra.mxu0 0.0
  %1681 = vmatprep.subr.mxu0 0.0
  %1682 = vmatpush2.msra.mxu0 0.0
  %1683 = vmatprep.subr.mxu0 0.0
  %1684 = vmatpush2.msra.mxu0 0.0
  %1685 = vmatprep.subr.mxu0 0.0
  %1686 = vmatpush2.msra.mxu0 0.0
  %1687 = vmatprep.subr.mxu0 0.0
  %1688 = vmatpush2.msra.mxu0 0.0
  %1689 = vmatprep.subr.mxu0 0.0
  %1690 = vmatpush2.msra.mxu0 0.0
  %1691 = vmatprep.subr.mxu0 0.0
  %1692 = vmatpush2.msra.mxu0 0.0
  %1693 = vmatprep.subr.mxu0 0.0
  %1694 = vmatpush2.msra.mxu0 0.0
  %1695 = vmatprep.subr.mxu0 0.0
  %1696 = vmatpush2.msra.mxu0 0.0
  %1697 = vmatprep.subr.mxu0 0.0
  %1698 = vmatpush2.msra.mxu0 0.0
  %1699 = vmatprep.mubr.f32.mxu0 0.0
  %1700 = vmatmul.mubr.f32.gmra.mxu0 %v1631
  %v1701 = vpop.f32.mrf.mxu0
  %v1702 = vadd.f32 0.0, %v1701
  %v1703 = vpop.f32.mrf.mxu0
  %1704 = vmatprep.mubr.f32.mxu0 0.0
  %1705 = vmatmul.mubr.f32.gmra.mxu0 %v1633
  %v1706 = vpop.f32.mrf.mxu0
  %v1707 = vadd.f32 0.0, %v1706
  %v1708 = vpop.f32.mrf.mxu0
  %1709 = vdwg.mxu0
  %v1710 = vmul.f32 %v1702, %v1504
  %v1711 = vmul.f32 %v1707, %v1505
  %v1714 = vadd.f32 %v1710, %v1628
  %v1715 = vadd.f32 %v1711, %v1630
  %v1717 = vsel %vm304, %v1714, 0
  %v1720 = vsel %vm304, %v1715, 0
  %1722 = vmatprep.subr.mxu0 0.0
  %1723 = vmatpush1.msra.mxu0 0.0
  %1724 = vmatprep.subr.mxu0 0.0
  %1725 = vmatpush1.msra.mxu0 0.0
  %1726 = vmatprep.subr.mxu0 0.0
  %1727 = vmatpush1.msra.mxu0 0.0
  %1728 = vmatprep.subr.mxu0 0.0
  %1729 = vmatpush1.msra.mxu0 0.0
  %1730 = vmatprep.subr.mxu0 0.0
  %1731 = vmatpush1.msra.mxu0 0.0
  %1732 = vmatprep.subr.mxu0 0.0
  %1733 = vmatpush1.msra.mxu0 0.0
  %1734 = vmatprep.subr.mxu0 0.0
  %1735 = vmatpush1.msra.mxu0 0.0
  %1736 = vmatprep.subr.mxu0 0.0
  %1737 = vmatpush1.msra.mxu0 0.0
  %1738 = vmatprep.subr.mxu0 0.0
  %1739 = vmatpush1.msra.mxu0 0.0
  %1740 = vmatprep.subr.mxu0 0.0
  %1741 = vmatpush1.msra.mxu0 0.0
  %1742 = vmatprep.subr.mxu0 0.0
  %1743 = vmatpush1.msra.mxu0 0.0
  %1744 = vmatprep.subr.mxu0 0.0
  %1745 = vmatpush1.msra.mxu0 0.0
  %1746 = vmatprep.subr.mxu0 0.0
  %1747 = vmatpush1.msra.mxu0 0.0
  %1748 = vmatprep.subr.mxu0 0.0
  %1749 = vmatpush1.msra.mxu0 0.0
  %1750 = vmatprep.subr.mxu0 0.0
  %1751 = vmatpush1.msra.mxu0 0.0
  %1752 = vmatprep.subr.mxu0 0.0
  %1753 = vmatpush1.msra.mxu0 %v302
  %1754 = vmatprep.subr.mxu0 0.0
  %1755 = vmatpush2.msra.mxu0 0.0
  %1756 = vmatprep.subr.mxu0 0.0
  %1757 = vmatpush2.msra.mxu0 0.0
  %1758 = vmatprep.subr.mxu0 0.0
  %1759 = vmatpush2.msra.mxu0 0.0
  %1760 = vmatprep.subr.mxu0 0.0
  %1761 = vmatpush2.msra.mxu0 0.0
  %1762 = vmatprep.subr.mxu0 0.0
  %1763 = vmatpush2.msra.mxu0 0.0
  %1764 = vmatprep.subr.mxu0 0.0
  %1765 = vmatpush2.msra.mxu0 0.0
  %1766 = vmatprep.subr.mxu0 0.0
  %1767 = vmatpush2.msra.mxu0 0.0
  %1768 = vmatprep.subr.mxu0 0.0
  %1769 = vmatpush2.msra.mxu0 0.0
  %1770 = vmatprep.subr.mxu0 0.0
  %1771 = vmatpush2.msra.mxu0 0.0
  %1772 = vmatprep.subr.mxu0 0.0
  %1773 = vmatpush2.msra.mxu0 0.0
  %1774 = vmatprep.subr.mxu0 0.0
  %1775 = vmatpush2.msra.mxu0 0.0
  %1776 = vmatprep.subr.mxu0 0.0
  %1777 = vmatpush2.msra.mxu0 0.0
  %1778 = vmatprep.subr.mxu0 0.0
  %1779 = vmatpush2.msra.mxu0 0.0
  %1780 = vmatprep.subr.mxu0 0.0
  %1781 = vmatpush2.msra.mxu0 0.0
  %1782 = vmatprep.subr.mxu0 0.0
  %1783 = vmatpush2.msra.mxu0 0.0
  %1784 = vmatprep.subr.mxu0 0.0
  %1785 = vmatpush2.msra.mxu0 0.0
  %1786 = vmatprep.mubr.f32.mxu0 0.0
  %1787 = vmatmul.mubr.f32.gmra.mxu0 %v1717
  %v1788 = vpop.f32.mrf.mxu0
  %v1789 = vadd.f32 0.0, %v1788
  %v1790 = vpop.f32.mrf.mxu0
  %1791 = vmatprep.mubr.f32.mxu0 0.0
  %1792 = vmatmul.mubr.f32.gmra.mxu0 %v1720
  %v1793 = vpop.f32.mrf.mxu0
  %v1794 = vadd.f32 0.0, %v1793
  %v1795 = vpop.f32.mrf.mxu0
  %1796 = vdwg.mxu0
  %v1797 = vadd.f32 %v1416, %v1789
  %v1798 = vadd.f32 %v1417, %v1794
  %v1799 = vadd.f32 %v35, %v1797
  %v1800 = vadd.f32 %v36, %v1798
  %1801 = vst.msk [vmem:[%s10] sm:$0xff] %vm41, %v1799
  %1802 = vst.msk [vmem:[%s10 + $0x8] sm:$0xff] %vm41, %v1800
  // Predicated region
  $region42: #{_lambda_.28} parent=0 // pred_check
    _
  $region43: #{_lambda_.28} parent=0 // pred_check_branch
    %1804 = sbr.rel (0) target = $region45
  $region44: #{_lambda_.28} parent=0 // pred_region
    _
  $region45: #{_lambda_.28} parent=0 // pred_fallthru
    _
  // Predicated region
  $region46: #{_lambda_.28} parent=0 // pred_check
    _
  $region47: #{_lambda_.28} parent=0 // pred_check_branch
    %1806 = sbr.rel (0) target = $region49
  $region48: #{_lambda_.28} parent=0 // pred_region
    _
  $region49: #{_lambda_.28} parent=0 // pred_fallthru
    _

</llo_original>
